<compile_context>
chip_gen: v6e
topology: v6e:2x2x1
jax: 0.10.0
libtpu: 0.0.40
codegen_flags: <defaults>
</compile_context>

<pallas_src>
import functools

import jax
import jax.numpy as jnp
from jax.experimental import pallas as pl
from jax.experimental.pallas import tpu as pltpu


# ----------------------------------------------------------------------------
# In-kernel helpers (pure jnp on VMEM-resident values).
# ----------------------------------------------------------------------------
def _pad1_hw(x):
    """Zero-pad (H, W, C) by 1 on each spatial side via concats."""
    h, w, c = x.shape
    zrow = jnp.zeros((1, w, c), x.dtype)
    x = jnp.concatenate([zrow, x, zrow], axis=0)            # (H+2, W, C)
    zcol = jnp.zeros((h + 2, 1, c), x.dtype)
    return jnp.concatenate([zcol, x, zcol], axis=1)          # (H+2, W+2, C)


def _conv3x3_acc(x, w3, acc):
    """'same' 3x3 conv, accumulate-style: acc (H*W, Cout) += sum_k shift_k(x) @ w3[k].

    Nine shifted (H*W, Cin) views, each dotted with its (Cin, Cout) weight slab
    (bf16 operands, f32 accumulation).  No 9x im2col patch is materialized.
    """
    h, wd, c = x.shape
    xp = _pad1_hw(x).astype(jnp.bfloat16)                    # (H+2, W+2, C)
    k = 0
    for dh in range(3):
        for dw in range(3):
            sl = xp[dh:dh + h, dw:dw + wd, :].reshape(h * wd, c)
            acc = acc + jnp.dot(sl, w3[k], preferred_element_type=jnp.float32)
            k += 1
    return acc


def _conv3x3_cin1(x2d, w, b):
    """3x3 conv specialized for Cin=1: (H, W) plane -> (H, W, Cout), relu.

    With a single input channel the 'patch' is only 9 lanes wide, so one MXU
    dot over the stacked shifts is cheaper than nine K=1 dots.
    """
    h, wd = x2d.shape
    xp = _pad1_hw(x2d.reshape(h, wd, 1)).astype(jnp.bfloat16)
    cols = [xp[dh:dh + h, dw:dw + wd, :] for dh in range(3) for dw in range(3)]
    patch = jnp.concatenate(cols, axis=-1).reshape(h * wd, 9)
    out = jnp.dot(patch, w, preferred_element_type=jnp.float32) + b
    return jnp.maximum(out, 0.0).reshape(h, wd, w.shape[-1])


def _maxpool2x2(x):
    """2x2 max pool via two pairwise maxima (no per-row/col slice loops)."""
    h, w, c = x.shape
    x4 = x.reshape(h // 2, 2, w, c)
    t = jnp.maximum(x4[:, 0], x4[:, 1])                      # (H/2, W, C)
    t4 = t.reshape(h // 2, w // 2, 2, c)
    return jnp.maximum(t4[:, :, 0], t4[:, :, 1])             # (H/2, W/2, C)


def _upsample2x(x):
    """2x nearest-neighbor upsample via broadcast + reshape."""
    h, w, c = x.shape
    t = jnp.broadcast_to(x[:, None, :, :], (h, 2, w, c)).reshape(2 * h, w, c)
    return jnp.broadcast_to(t[:, :, None, :],
                            (2 * h, w, 2, c)).reshape(2 * h, 2 * w, c)


# ----------------------------------------------------------------------------
# Fused kernel: whole U-Net forward for one image per grid step.
# ----------------------------------------------------------------------------
def _unet_kernel(x_ref, e1w_ref, e1b_ref, e2w_ref, e2b_ref,
                 d1wu_ref, d1we_ref, d1b_ref, hw_ref, hb_ref, o_ref, *, h, w):
    c1 = e1w_ref.shape[-1]
    c2 = e2w_ref.shape[-1]

    x = x_ref[0]                                             # (H, W), lane-dense block

    # ---- Encoder ----
    e1 = _conv3x3_cin1(x, e1w_ref[...], e1b_ref[...])        # (H, W, C1)
    p1 = _maxpool2x2(e1)                                     # (H/2, W/2, C1)
    acc2 = jnp.zeros(((h // 2) * (w // 2), c2), jnp.float32)
    acc2 = _conv3x3_acc(p1, e2w_ref[...], acc2)
    e2 = jnp.maximum(acc2 + e2b_ref[...], 0.0).reshape(h // 2, w // 2, c2)

    # ---- Decoder: upsample + skip ----
    # The skip concat([u1, e1], -1) is folded into the conv by splitting its
    # weights, so no (H, W, C1+C2) tensor is ever materialized.
    u1 = _upsample2x(e2)                                     # (H, W, C2)
    acc1 = jnp.zeros((h * w, c1), jnp.float32)
    acc1 = _conv3x3_acc(u1, d1wu_ref[...], acc1)
    acc1 = _conv3x3_acc(e1, d1we_ref[...], acc1)
    d1 = jnp.maximum(acc1 + d1b_ref[...], 0.0)               # (H*W, C1)

    # ---- 1x1 head + tanh (f32), stored as lane-dense NCHW planes ----
    ab = jnp.tanh(jnp.dot(d1, hw_ref[...], preferred_element_type=jnp.float32)
                  + hb_ref[...])                             # (H*W, 2)
    a_pl = ab[:, 0:1].reshape(1, 1, h, w)
    b_pl = ab[:, 1:2].reshape(1, 1, h, w)
    o_ref[...] = jnp.concatenate([a_pl, b_pl], axis=1).astype(o_ref.dtype)


# ----------------------------------------------------------------------------
# Parameters: deterministic small U-Net.
# ----------------------------------------------------------------------------
def init_params(base_c=8):
    key = jax.random.PRNGKey(0)
    ks = jax.random.split(key, 4)
    c1, c2 = base_c, 2 * base_c

    def w_init(k, shape, fan_in):
        return jax.random.normal(k, shape, jnp.float32) / jnp.sqrt(fan_in)

    return {
        # 3x3 conv weights stored as (9, Cin, Cout); rows ordered k = 3*dh + dw.
        "enc1_w": w_init(ks[0], (9, 1, c1), 9 * 1),
        "enc1_b": jnp.zeros((1, c1), jnp.float32),
        "enc2_w": w_init(ks[1], (9, c1, c2), 9 * c1),
        "enc2_b": jnp.zeros((1, c2), jnp.float32),
        "dec1_w": w_init(ks[2], (9, c2 + c1, c1), 9 * (c2 + c1)),  # conv over cat([u1, e1])
        "dec1_b": jnp.zeros((1, c1), jnp.float32),
        "head_w": w_init(ks[3], (c1, 2), c1),
        "head_b": jnp.zeros((1, 2), jnp.float32),
    }


@jax.jit
def colorization_forward(x_nchw, params):
    """x_nchw: (N, 1, H, W) grayscale -> (N, 2, H, W) AB channels in [-1, 1]."""
    n, cin, h, w = x_nchw.shape
    assert cin == 1 and h % 2 == 0 and w % 2 == 0
    c1 = params["enc1_w"].shape[-1]
    c2 = params["enc2_w"].shape[-1]

    # Squeeze the singleton channel: NCHW -> (N, H, W) is a pure reshape (no
    # transpose) and yields a dense (1, H, W) input block / DMA.
    x = x_nchw.reshape(n, h, w).astype(jnp.float32)

    # bf16 MXU operands (f32 accumulation in-kernel); biases + head stay f32.
    e1w = params["enc1_w"].reshape(9, c1).astype(jnp.bfloat16)
    e2w = params["enc2_w"].astype(jnp.bfloat16)
    d1wu = params["dec1_w"][:, :c2, :].astype(jnp.bfloat16)   # skip split: u1 part
    d1we = params["dec1_w"][:, c2:, :].astype(jnp.bfloat16)   # skip split: e1 part

    def rep(a):
        nd = a.ndim
        return pl.BlockSpec(a.shape, lambda b, _n=nd: (0,) * _n)

    operands = (x, e1w, params["enc1_b"], e2w, params["enc2_b"],
                d1wu, d1we, params["dec1_b"], params["head_w"], params["head_b"])

    out = pl.pallas_call(
        functools.partial(_unet_kernel, h=h, w=w),
        out_shape=jax.ShapeDtypeStruct((n, 2, h, w), jnp.float32),   # NCHW directly
        grid=(n,),
        in_specs=[pl.BlockSpec((1, h, w), lambda b: (b, 0, 0))]
                 + [rep(a) for a in operands[1:]],
        out_specs=pl.BlockSpec((1, 2, h, w), lambda b: (b, 0, 0, 0)),
        compiler_params=pltpu.CompilerParams(
            dimension_semantics=("parallel",),
            # Per-image working set is well under 1 MiB at these sizes; give
            # ample headroom but stay below every chip's physical VMEM.
            vmem_limit_bytes=32 * 1024 * 1024,
        ),
    )(*operands)

    return out   # already NCHW (N, 2, H, W); no wrapper transpose needed


if __name__ == "__main__":
    key = jax.random.PRNGKey(0)
    x = jax.random.normal(key, (2, 1, 16, 16), jnp.float32)   # (N, 1, H, W) grayscale L

    params = init_params(base_c=8)
    y = colorization_forward(x, params)
    y = jax.block_until_ready(y)

    assert y.shape == (2, 2, 16, 16), y.shape
    assert bool(jnp.all(jnp.abs(y) <= 1.0 + 1e-6)), "tanh output must lie in [-1, 1]"
    print("KERNEL_OK")
</pallas_src>

<mosaic_0001>
module attributes {stable_mosaic.version = 11 : i64} {
  func.func @_unet_kernel(%arg0: i32, %arg1: memref<1x16x16xf32, #tpu.memory_space<vmem>>, %arg2: memref<9x8xbf16, #tpu.memory_space<vmem>>, %arg3: memref<1x8xf32, #tpu.memory_space<vmem>>, %arg4: memref<9x8x16xbf16, #tpu.memory_space<vmem>>, %arg5: memref<1x16xf32, #tpu.memory_space<vmem>>, %arg6: memref<9x16x8xbf16, #tpu.memory_space<vmem>>, %arg7: memref<9x8x8xbf16, #tpu.memory_space<vmem>>, %arg8: memref<1x8xf32, #tpu.memory_space<vmem>>, %arg9: memref<8x2xf32, #tpu.memory_space<vmem>>, %arg10: memref<1x2xf32, #tpu.memory_space<vmem>>, %arg11: memref<1x2x16x16xf32, #tpu.memory_space<vmem>>) attributes {dimension_semantics = [#tpu.dimension_semantics<parallel>], iteration_bounds = array<i64: 2>, scalar_prefetch = 0 : i64, scratch_operands = 0 : i64, tpu.core_type = #tpu.core_type<tc>, window_params = [{transform_indices = @transform_0, window_bounds = array<i64: 1, 16, 16>}, {pipeline_mode = #tpu.pipeline_mode<synchronous>, transform_indices = @transform_1, window_bounds = array<i64: 9, 8>}, {pipeline_mode = #tpu.pipeline_mode<synchronous>, transform_indices = @transform_2, window_bounds = array<i64: 1, 8>}, {pipeline_mode = #tpu.pipeline_mode<synchronous>, transform_indices = @transform_3, window_bounds = array<i64: 9, 8, 16>}, {pipeline_mode = #tpu.pipeline_mode<synchronous>, transform_indices = @transform_4, window_bounds = array<i64: 1, 16>}, {pipeline_mode = #tpu.pipeline_mode<synchronous>, transform_indices = @transform_5, window_bounds = array<i64: 9, 16, 8>}, {pipeline_mode = #tpu.pipeline_mode<synchronous>, transform_indices = @transform_6, window_bounds = array<i64: 9, 8, 8>}, {pipeline_mode = #tpu.pipeline_mode<synchronous>, transform_indices = @transform_7, window_bounds = array<i64: 1, 8>}, {pipeline_mode = #tpu.pipeline_mode<synchronous>, transform_indices = @transform_8, window_bounds = array<i64: 8, 2>}, {pipeline_mode = #tpu.pipeline_mode<synchronous>, transform_indices = @transform_9, window_bounds = array<i64: 1, 2>}, {transform_indices = @transform_10, window_bounds = array<i64: 1, 2, 16, 16>}]} {
    %c0 = arith.constant 0 : index
    %c0_0 = arith.constant 0 : index
    %c0_1 = arith.constant 0 : index
    %0 = vector.load %arg1[%c0, %c0_0, %c0_1] : memref<1x16x16xf32, #tpu.memory_space<vmem>>, vector<1x16x16xf32>
    %1 = vector.shape_cast %0 : vector<1x16x16xf32> to vector<16x16xf32>
    %c0_2 = arith.constant 0 : index
    %c0_3 = arith.constant 0 : index
    %2 = vector.load %arg2[%c0_2, %c0_3] : memref<9x8xbf16, #tpu.memory_space<vmem>>, vector<9x8xbf16>
    %c0_4 = arith.constant 0 : index
    %c0_5 = arith.constant 0 : index
    %3 = vector.load %arg3[%c0_4, %c0_5] : memref<1x8xf32, #tpu.memory_space<vmem>>, vector<1x8xf32>
    %4 = vector.shape_cast %1 : vector<16x16xf32> to vector<16x16x1xf32>
    %cst = arith.constant 0.000000e+00 : f32
    %5 = vector.broadcast %cst : f32 to vector<1x16x1xf32>
    %6 = tpu.concatenate %5, %4, %5 in 0 : vector<1x16x1xf32>, vector<16x16x1xf32>, vector<1x16x1xf32> -> vector<18x16x1xf32>
    %cst_6 = arith.constant 0.000000e+00 : f32
    %7 = vector.broadcast %cst_6 : f32 to vector<18x1x1xf32>
    %8 = tpu.concatenate %7, %6, %7 in 1 : vector<18x1x1xf32>, vector<18x16x1xf32>, vector<18x1x1xf32> -> vector<18x18x1xf32>
    %9 = arith.truncf %8 : vector<18x18x1xf32> to vector<18x18x1xbf16>
    %10 = vector.extract_strided_slice %9 {offsets = [0, 0, 0], sizes = [16, 16, 1], strides = [1, 1, 1]} : vector<18x18x1xbf16> to vector<16x16x1xbf16>
    %11 = vector.extract_strided_slice %9 {offsets = [0, 1, 0], sizes = [16, 16, 1], strides = [1, 1, 1]} : vector<18x18x1xbf16> to vector<16x16x1xbf16>
    %12 = vector.extract_strided_slice %9 {offsets = [0, 2, 0], sizes = [16, 16, 1], strides = [1, 1, 1]} : vector<18x18x1xbf16> to vector<16x16x1xbf16>
    %13 = vector.extract_strided_slice %9 {offsets = [1, 0, 0], sizes = [16, 16, 1], strides = [1, 1, 1]} : vector<18x18x1xbf16> to vector<16x16x1xbf16>
    %14 = vector.extract_strided_slice %9 {offsets = [1, 1, 0], sizes = [16, 16, 1], strides = [1, 1, 1]} : vector<18x18x1xbf16> to vector<16x16x1xbf16>
    %15 = vector.extract_strided_slice %9 {offsets = [1, 2, 0], sizes = [16, 16, 1], strides = [1, 1, 1]} : vector<18x18x1xbf16> to vector<16x16x1xbf16>
    %16 = vector.extract_strided_slice %9 {offsets = [2, 0, 0], sizes = [16, 16, 1], strides = [1, 1, 1]} : vector<18x18x1xbf16> to vector<16x16x1xbf16>
    %17 = vector.extract_strided_slice %9 {offsets = [2, 1, 0], sizes = [16, 16, 1], strides = [1, 1, 1]} : vector<18x18x1xbf16> to vector<16x16x1xbf16>
    %18 = vector.extract_strided_slice %9 {offsets = [2, 2, 0], sizes = [16, 16, 1], strides = [1, 1, 1]} : vector<18x18x1xbf16> to vector<16x16x1xbf16>
    %19 = tpu.concatenate %10, %11, %12, %13, %14, %15, %16, %17, %18 in 2 : vector<16x16x1xbf16>, vector<16x16x1xbf16>, vector<16x16x1xbf16>, vector<16x16x1xbf16>, vector<16x16x1xbf16>, vector<16x16x1xbf16>, vector<16x16x1xbf16>, vector<16x16x1xbf16>, vector<16x16x1xbf16> -> vector<16x16x9xbf16>
    %20 = vector.shape_cast %19 : vector<16x16x9xbf16> to vector<256x9xbf16>
    %cst_7 = arith.constant dense<0.000000e+00> : vector<256x8xf32>
    %21 = tpu.matmul %20, %2, %cst_7 {dimension_numbers = #tpu.dot_dimension_numbers<[1], [0], [0], [1], [0, 0, 1, 1], [], []>} : vector<256x9xbf16>, vector<9x8xbf16>, vector<256x8xf32> -> vector<256x8xf32>
    %22 = vector.broadcast %3 : vector<1x8xf32> to vector<256x8xf32>
    %23 = arith.addf %21, %22 : vector<256x8xf32>
    %cst_8 = arith.constant 0.000000e+00 : f32
    %24 = vector.broadcast %cst_8 : f32 to vector<256x8xf32>
    %25 = arith.maximumf %23, %24 : vector<256x8xf32>
    %26 = vector.shape_cast %25 : vector<256x8xf32> to vector<16x16x8xf32>
    %27 = vector.shape_cast %26 : vector<16x16x8xf32> to vector<8x2x16x8xf32>
    %28 = vector.extract_strided_slice %27 {offsets = [0, 0, 0, 0], sizes = [8, 1, 16, 8], strides = [1, 1, 1, 1]} : vector<8x2x16x8xf32> to vector<8x1x16x8xf32>
    %29 = vector.shape_cast %28 : vector<8x1x16x8xf32> to vector<8x16x8xf32>
    %30 = vector.extract_strided_slice %27 {offsets = [0, 1, 0, 0], sizes = [8, 1, 16, 8], strides = [1, 1, 1, 1]} : vector<8x2x16x8xf32> to vector<8x1x16x8xf32>
    %31 = vector.shape_cast %30 : vector<8x1x16x8xf32> to vector<8x16x8xf32>
    %32 = arith.maximumf %29, %31 : vector<8x16x8xf32>
    %33 = vector.shape_cast %32 : vector<8x16x8xf32> to vector<8x8x2x8xf32>
    %34 = vector.extract_strided_slice %33 {offsets = [0, 0, 0, 0], sizes = [8, 8, 1, 8], strides = [1, 1, 1, 1]} : vector<8x8x2x8xf32> to vector<8x8x1x8xf32>
    %35 = vector.shape_cast %34 : vector<8x8x1x8xf32> to vector<8x8x8xf32>
    %36 = vector.extract_strided_slice %33 {offsets = [0, 0, 1, 0], sizes = [8, 8, 1, 8], strides = [1, 1, 1, 1]} : vector<8x8x2x8xf32> to vector<8x8x1x8xf32>
    %37 = vector.shape_cast %36 : vector<8x8x1x8xf32> to vector<8x8x8xf32>
    %38 = arith.maximumf %35, %37 : vector<8x8x8xf32>
    %cst_9 = arith.constant 0.000000e+00 : f32
    %39 = vector.broadcast %cst_9 : f32 to vector<64x16xf32>
    %c0_10 = arith.constant 0 : index
    %c0_11 = arith.constant 0 : index
    %c0_12 = arith.constant 0 : index
    %40 = vector.load %arg4[%c0_10, %c0_11, %c0_12] : memref<9x8x16xbf16, #tpu.memory_space<vmem>>, vector<9x8x16xbf16>
    %cst_13 = arith.constant 0.000000e+00 : f32
    %41 = vector.broadcast %cst_13 : f32 to vector<1x8x8xf32>
    %42 = tpu.concatenate %41, %38, %41 in 0 : vector<1x8x8xf32>, vector<8x8x8xf32>, vector<1x8x8xf32> -> vector<10x8x8xf32>
    %cst_14 = arith.constant 0.000000e+00 : f32
    %43 = vector.broadcast %cst_14 : f32 to vector<10x1x8xf32>
    %44 = tpu.concatenate %43, %42, %43 in 1 : vector<10x1x8xf32>, vector<10x8x8xf32>, vector<10x1x8xf32> -> vector<10x10x8xf32>
    %45 = arith.truncf %44 : vector<10x10x8xf32> to vector<10x10x8xbf16>
    %46 = vector.extract_strided_slice %45 {offsets = [0, 0, 0], sizes = [8, 8, 8], strides = [1, 1, 1]} : vector<10x10x8xbf16> to vector<8x8x8xbf16>
    %47 = vector.shape_cast %46 : vector<8x8x8xbf16> to vector<64x8xbf16>
    %48 = vector.extract_strided_slice %40 {offsets = [0, 0, 0], sizes = [1, 8, 16], strides = [1, 1, 1]} : vector<9x8x16xbf16> to vector<1x8x16xbf16>
    %49 = vector.shape_cast %48 : vector<1x8x16xbf16> to vector<8x16xbf16>
    %cst_15 = arith.constant dense<0.000000e+00> : vector<64x16xf32>
    %50 = tpu.matmul %47, %49, %cst_15 {dimension_numbers = #tpu.dot_dimension_numbers<[1], [0], [0], [1], [0, 0, 1, 1], [], []>} : vector<64x8xbf16>, vector<8x16xbf16>, vector<64x16xf32> -> vector<64x16xf32>
    %51 = arith.addf %39, %50 : vector<64x16xf32>
    %52 = vector.extract_strided_slice %45 {offsets = [0, 1, 0], sizes = [8, 8, 8], strides = [1, 1, 1]} : vector<10x10x8xbf16> to vector<8x8x8xbf16>
    %53 = vector.shape_cast %52 : vector<8x8x8xbf16> to vector<64x8xbf16>
    %54 = vector.extract_strided_slice %40 {offsets = [1, 0, 0], sizes = [1, 8, 16], strides = [1, 1, 1]} : vector<9x8x16xbf16> to vector<1x8x16xbf16>
    %55 = vector.shape_cast %54 : vector<1x8x16xbf16> to vector<8x16xbf16>
    %cst_16 = arith.constant dense<0.000000e+00> : vector<64x16xf32>
    %56 = tpu.matmul %53, %55, %cst_16 {dimension_numbers = #tpu.dot_dimension_numbers<[1], [0], [0], [1], [0, 0, 1, 1], [], []>} : vector<64x8xbf16>, vector<8x16xbf16>, vector<64x16xf32> -> vector<64x16xf32>
    %57 = arith.addf %51, %56 : vector<64x16xf32>
    %58 = vector.extract_strided_slice %45 {offsets = [0, 2, 0], sizes = [8, 8, 8], strides = [1, 1, 1]} : vector<10x10x8xbf16> to vector<8x8x8xbf16>
    %59 = vector.shape_cast %58 : vector<8x8x8xbf16> to vector<64x8xbf16>
    %60 = vector.extract_strided_slice %40 {offsets = [2, 0, 0], sizes = [1, 8, 16], strides = [1, 1, 1]} : vector<9x8x16xbf16> to vector<1x8x16xbf16>
    %61 = vector.shape_cast %60 : vector<1x8x16xbf16> to vector<8x16xbf16>
    %cst_17 = arith.constant dense<0.000000e+00> : vector<64x16xf32>
    %62 = tpu.matmul %59, %61, %cst_17 {dimension_numbers = #tpu.dot_dimension_numbers<[1], [0], [0], [1], [0, 0, 1, 1], [], []>} : vector<64x8xbf16>, vector<8x16xbf16>, vector<64x16xf32> -> vector<64x16xf32>
    %63 = arith.addf %57, %62 : vector<64x16xf32>
    %64 = vector.extract_strided_slice %45 {offsets = [1, 0, 0], sizes = [8, 8, 8], strides = [1, 1, 1]} : vector<10x10x8xbf16> to vector<8x8x8xbf16>
    %65 = vector.shape_cast %64 : vector<8x8x8xbf16> to vector<64x8xbf16>
    %66 = vector.extract_strided_slice %40 {offsets = [3, 0, 0], sizes = [1, 8, 16], strides = [1, 1, 1]} : vector<9x8x16xbf16> to vector<1x8x16xbf16>
    %67 = vector.shape_cast %66 : vector<1x8x16xbf16> to vector<8x16xbf16>
    %cst_18 = arith.constant dense<0.000000e+00> : vector<64x16xf32>
    %68 = tpu.matmul %65, %67, %cst_18 {dimension_numbers = #tpu.dot_dimension_numbers<[1], [0], [0], [1], [0, 0, 1, 1], [], []>} : vector<64x8xbf16>, vector<8x16xbf16>, vector<64x16xf32> -> vector<64x16xf32>
    %69 = arith.addf %63, %68 : vector<64x16xf32>
    %70 = vector.extract_strided_slice %45 {offsets = [1, 1, 0], sizes = [8, 8, 8], strides = [1, 1, 1]} : vector<10x10x8xbf16> to vector<8x8x8xbf16>
    %71 = vector.shape_cast %70 : vector<8x8x8xbf16> to vector<64x8xbf16>
    %72 = vector.extract_strided_slice %40 {offsets = [4, 0, 0], sizes = [1, 8, 16], strides = [1, 1, 1]} : vector<9x8x16xbf16> to vector<1x8x16xbf16>
    %73 = vector.shape_cast %72 : vector<1x8x16xbf16> to vector<8x16xbf16>
    %cst_19 = arith.constant dense<0.000000e+00> : vector<64x16xf32>
    %74 = tpu.matmul %71, %73, %cst_19 {dimension_numbers = #tpu.dot_dimension_numbers<[1], [0], [0], [1], [0, 0, 1, 1], [], []>} : vector<64x8xbf16>, vector<8x16xbf16>, vector<64x16xf32> -> vector<64x16xf32>
    %75 = arith.addf %69, %74 : vector<64x16xf32>
    %76 = vector.extract_strided_slice %45 {offsets = [1, 2, 0], sizes = [8, 8, 8], strides = [1, 1, 1]} : vector<10x10x8xbf16> to vector<8x8x8xbf16>
    %77 = vector.shape_cast %76 : vector<8x8x8xbf16> to vector<64x8xbf16>
    %78 = vector.extract_strided_slice %40 {offsets = [5, 0, 0], sizes = [1, 8, 16], strides = [1, 1, 1]} : vector<9x8x16xbf16> to vector<1x8x16xbf16>
    %79 = vector.shape_cast %78 : vector<1x8x16xbf16> to vector<8x16xbf16>
    %cst_20 = arith.constant dense<0.000000e+00> : vector<64x16xf32>
    %80 = tpu.matmul %77, %79, %cst_20 {dimension_numbers = #tpu.dot_dimension_numbers<[1], [0], [0], [1], [0, 0, 1, 1], [], []>} : vector<64x8xbf16>, vector<8x16xbf16>, vector<64x16xf32> -> vector<64x16xf32>
    %81 = arith.addf %75, %80 : vector<64x16xf32>
    %82 = vector.extract_strided_slice %45 {offsets = [2, 0, 0], sizes = [8, 8, 8], strides = [1, 1, 1]} : vector<10x10x8xbf16> to vector<8x8x8xbf16>
    %83 = vector.shape_cast %82 : vector<8x8x8xbf16> to vector<64x8xbf16>
    %84 = vector.extract_strided_slice %40 {offsets = [6, 0, 0], sizes = [1, 8, 16], strides = [1, 1, 1]} : vector<9x8x16xbf16> to vector<1x8x16xbf16>
    %85 = vector.shape_cast %84 : vector<1x8x16xbf16> to vector<8x16xbf16>
    %cst_21 = arith.constant dense<0.000000e+00> : vector<64x16xf32>
    %86 = tpu.matmul %83, %85, %cst_21 {dimension_numbers = #tpu.dot_dimension_numbers<[1], [0], [0], [1], [0, 0, 1, 1], [], []>} : vector<64x8xbf16>, vector<8x16xbf16>, vector<64x16xf32> -> vector<64x16xf32>
    %87 = arith.addf %81, %86 : vector<64x16xf32>
    %88 = vector.extract_strided_slice %45 {offsets = [2, 1, 0], sizes = [8, 8, 8], strides = [1, 1, 1]} : vector<10x10x8xbf16> to vector<8x8x8xbf16>
    %89 = vector.shape_cast %88 : vector<8x8x8xbf16> to vector<64x8xbf16>
    %90 = vector.extract_strided_slice %40 {offsets = [7, 0, 0], sizes = [1, 8, 16], strides = [1, 1, 1]} : vector<9x8x16xbf16> to vector<1x8x16xbf16>
    %91 = vector.shape_cast %90 : vector<1x8x16xbf16> to vector<8x16xbf16>
    %cst_22 = arith.constant dense<0.000000e+00> : vector<64x16xf32>
    %92 = tpu.matmul %89, %91, %cst_22 {dimension_numbers = #tpu.dot_dimension_numbers<[1], [0], [0], [1], [0, 0, 1, 1], [], []>} : vector<64x8xbf16>, vector<8x16xbf16>, vector<64x16xf32> -> vector<64x16xf32>
    %93 = arith.addf %87, %92 : vector<64x16xf32>
    %94 = vector.extract_strided_slice %45 {offsets = [2, 2, 0], sizes = [8, 8, 8], strides = [1, 1, 1]} : vector<10x10x8xbf16> to vector<8x8x8xbf16>
    %95 = vector.shape_cast %94 : vector<8x8x8xbf16> to vector<64x8xbf16>
    %96 = vector.extract_strided_slice %40 {offsets = [8, 0, 0], sizes = [1, 8, 16], strides = [1, 1, 1]} : vector<9x8x16xbf16> to vector<1x8x16xbf16>
    %97 = vector.shape_cast %96 : vector<1x8x16xbf16> to vector<8x16xbf16>
    %cst_23 = arith.constant dense<0.000000e+00> : vector<64x16xf32>
    %98 = tpu.matmul %95, %97, %cst_23 {dimension_numbers = #tpu.dot_dimension_numbers<[1], [0], [0], [1], [0, 0, 1, 1], [], []>} : vector<64x8xbf16>, vector<8x16xbf16>, vector<64x16xf32> -> vector<64x16xf32>
    %99 = arith.addf %93, %98 : vector<64x16xf32>
    %c0_24 = arith.constant 0 : index
    %c0_25 = arith.constant 0 : index
    %100 = vector.load %arg5[%c0_24, %c0_25] : memref<1x16xf32, #tpu.memory_space<vmem>>, vector<1x16xf32>
    %101 = vector.broadcast %100 : vector<1x16xf32> to vector<64x16xf32>
    %102 = arith.addf %99, %101 : vector<64x16xf32>
    %cst_26 = arith.constant 0.000000e+00 : f32
    %103 = vector.broadcast %cst_26 : f32 to vector<64x16xf32>
    %104 = arith.maximumf %102, %103 : vector<64x16xf32>
    %105 = vector.shape_cast %104 : vector<64x16xf32> to vector<8x8x16xf32>
    %106 = vector.shape_cast %105 : vector<8x8x16xf32> to vector<8x1x8x16xf32>
    %107 = vector.shape_cast %106 : vector<8x1x8x16xf32> to vector<8x1x8x16xf32>
    %108 = vector.broadcast %107 : vector<8x1x8x16xf32> to vector<8x2x8x16xf32>
    %109 = vector.shape_cast %108 : vector<8x2x8x16xf32> to vector<16x8x16xf32>
    %110 = vector.shape_cast %109 : vector<16x8x16xf32> to vector<16x8x1x16xf32>
    %111 = vector.shape_cast %110 : vector<16x8x1x16xf32> to vector<16x8x1x16xf32>
    %112 = vector.broadcast %111 : vector<16x8x1x16xf32> to vector<16x8x2x16xf32>
    %113 = vector.shape_cast %112 : vector<16x8x2x16xf32> to vector<16x16x16xf32>
    %cst_27 = arith.constant 0.000000e+00 : f32
    %114 = vector.broadcast %cst_27 : f32 to vector<256x8xf32>
    %c0_28 = arith.constant 0 : index
    %c0_29 = arith.constant 0 : index
    %c0_30 = arith.constant 0 : index
    %115 = vector.load %arg6[%c0_28, %c0_29, %c0_30] : memref<9x16x8xbf16, #tpu.memory_space<vmem>>, vector<9x16x8xbf16>
    %cst_31 = arith.constant 0.000000e+00 : f32
    %116 = vector.broadcast %cst_31 : f32 to vector<1x16x16xf32>
    %117 = tpu.concatenate %116, %113, %116 in 0 : vector<1x16x16xf32>, vector<16x16x16xf32>, vector<1x16x16xf32> -> vector<18x16x16xf32>
    %cst_32 = arith.constant 0.000000e+00 : f32
    %118 = vector.broadcast %cst_32 : f32 to vector<18x1x16xf32>
    %119 = tpu.concatenate %118, %117, %118 in 1 : vector<18x1x16xf32>, vector<18x16x16xf32>, vector<18x1x16xf32> -> vector<18x18x16xf32>
    %120 = arith.truncf %119 : vector<18x18x16xf32> to vector<18x18x16xbf16>
    %121 = vector.extract_strided_slice %120 {offsets = [0, 0, 0], sizes = [16, 16, 16], strides = [1, 1, 1]} : vector<18x18x16xbf16> to vector<16x16x16xbf16>
    %122 = vector.shape_cast %121 : vector<16x16x16xbf16> to vector<256x16xbf16>
    %123 = vector.extract_strided_slice %115 {offsets = [0, 0, 0], sizes = [1, 16, 8], strides = [1, 1, 1]} : vector<9x16x8xbf16> to vector<1x16x8xbf16>
    %124 = vector.shape_cast %123 : vector<1x16x8xbf16> to vector<16x8xbf16>
    %cst_33 = arith.constant dense<0.000000e+00> : vector<256x8xf32>
    %125 = tpu.matmul %122, %124, %cst_33 {dimension_numbers = #tpu.dot_dimension_numbers<[1], [0], [0], [1], [0, 0, 1, 1], [], []>} : vector<256x16xbf16>, vector<16x8xbf16>, vector<256x8xf32> -> vector<256x8xf32>
    %126 = arith.addf %114, %125 : vector<256x8xf32>
    %127 = vector.extract_strided_slice %120 {offsets = [0, 1, 0], sizes = [16, 16, 16], strides = [1, 1, 1]} : vector<18x18x16xbf16> to vector<16x16x16xbf16>
    %128 = vector.shape_cast %127 : vector<16x16x16xbf16> to vector<256x16xbf16>
    %129 = vector.extract_strided_slice %115 {offsets = [1, 0, 0], sizes = [1, 16, 8], strides = [1, 1, 1]} : vector<9x16x8xbf16> to vector<1x16x8xbf16>
    %130 = vector.shape_cast %129 : vector<1x16x8xbf16> to vector<16x8xbf16>
    %cst_34 = arith.constant dense<0.000000e+00> : vector<256x8xf32>
    %131 = tpu.matmul %128, %130, %cst_34 {dimension_numbers = #tpu.dot_dimension_numbers<[1], [0], [0], [1], [0, 0, 1, 1], [], []>} : vector<256x16xbf16>, vector<16x8xbf16>, vector<256x8xf32> -> vector<256x8xf32>
    %132 = arith.addf %126, %131 : vector<256x8xf32>
    %133 = vector.extract_strided_slice %120 {offsets = [0, 2, 0], sizes = [16, 16, 16], strides = [1, 1, 1]} : vector<18x18x16xbf16> to vector<16x16x16xbf16>
    %134 = vector.shape_cast %133 : vector<16x16x16xbf16> to vector<256x16xbf16>
    %135 = vector.extract_strided_slice %115 {offsets = [2, 0, 0], sizes = [1, 16, 8], strides = [1, 1, 1]} : vector<9x16x8xbf16> to vector<1x16x8xbf16>
    %136 = vector.shape_cast %135 : vector<1x16x8xbf16> to vector<16x8xbf16>
    %cst_35 = arith.constant dense<0.000000e+00> : vector<256x8xf32>
    %137 = tpu.matmul %134, %136, %cst_35 {dimension_numbers = #tpu.dot_dimension_numbers<[1], [0], [0], [1], [0, 0, 1, 1], [], []>} : vector<256x16xbf16>, vector<16x8xbf16>, vector<256x8xf32> -> vector<256x8xf32>
    %138 = arith.addf %132, %137 : vector<256x8xf32>
    %139 = vector.extract_strided_slice %120 {offsets = [1, 0, 0], sizes = [16, 16, 16], strides = [1, 1, 1]} : vector<18x18x16xbf16> to vector<16x16x16xbf16>
    %140 = vector.shape_cast %139 : vector<16x16x16xbf16> to vector<256x16xbf16>
    %141 = vector.extract_strided_slice %115 {offsets = [3, 0, 0], sizes = [1, 16, 8], strides = [1, 1, 1]} : vector<9x16x8xbf16> to vector<1x16x8xbf16>
    %142 = vector.shape_cast %141 : vector<1x16x8xbf16> to vector<16x8xbf16>
    %cst_36 = arith.constant dense<0.000000e+00> : vector<256x8xf32>
    %143 = tpu.matmul %140, %142, %cst_36 {dimension_numbers = #tpu.dot_dimension_numbers<[1], [0], [0], [1], [0, 0, 1, 1], [], []>} : vector<256x16xbf16>, vector<16x8xbf16>, vector<256x8xf32> -> vector<256x8xf32>
    %144 = arith.addf %138, %143 : vector<256x8xf32>
    %145 = vector.extract_strided_slice %120 {offsets = [1, 1, 0], sizes = [16, 16, 16], strides = [1, 1, 1]} : vector<18x18x16xbf16> to vector<16x16x16xbf16>
    %146 = vector.shape_cast %145 : vector<16x16x16xbf16> to vector<256x16xbf16>
    %147 = vector.extract_strided_slice %115 {offsets = [4, 0, 0], sizes = [1, 16, 8], strides = [1, 1, 1]} : vector<9x16x8xbf16> to vector<1x16x8xbf16>
    %148 = vector.shape_cast %147 : vector<1x16x8xbf16> to vector<16x8xbf16>
    %cst_37 = arith.constant dense<0.000000e+00> : vector<256x8xf32>
    %149 = tpu.matmul %146, %148, %cst_37 {dimension_numbers = #tpu.dot_dimension_numbers<[1], [0], [0], [1], [0, 0, 1, 1], [], []>} : vector<256x16xbf16>, vector<16x8xbf16>, vector<256x8xf32> -> vector<256x8xf32>
    %150 = arith.addf %144, %149 : vector<256x8xf32>
    %151 = vector.extract_strided_slice %120 {offsets = [1, 2, 0], sizes = [16, 16, 16], strides = [1, 1, 1]} : vector<18x18x16xbf16> to vector<16x16x16xbf16>
    %152 = vector.shape_cast %151 : vector<16x16x16xbf16> to vector<256x16xbf16>
    %153 = vector.extract_strided_slice %115 {offsets = [5, 0, 0], sizes = [1, 16, 8], strides = [1, 1, 1]} : vector<9x16x8xbf16> to vector<1x16x8xbf16>
    %154 = vector.shape_cast %153 : vector<1x16x8xbf16> to vector<16x8xbf16>
    %cst_38 = arith.constant dense<0.000000e+00> : vector<256x8xf32>
    %155 = tpu.matmul %152, %154, %cst_38 {dimension_numbers = #tpu.dot_dimension_numbers<[1], [0], [0], [1], [0, 0, 1, 1], [], []>} : vector<256x16xbf16>, vector<16x8xbf16>, vector<256x8xf32> -> vector<256x8xf32>
    %156 = arith.addf %150, %155 : vector<256x8xf32>
    %157 = vector.extract_strided_slice %120 {offsets = [2, 0, 0], sizes = [16, 16, 16], strides = [1, 1, 1]} : vector<18x18x16xbf16> to vector<16x16x16xbf16>
    %158 = vector.shape_cast %157 : vector<16x16x16xbf16> to vector<256x16xbf16>
    %159 = vector.extract_strided_slice %115 {offsets = [6, 0, 0], sizes = [1, 16, 8], strides = [1, 1, 1]} : vector<9x16x8xbf16> to vector<1x16x8xbf16>
    %160 = vector.shape_cast %159 : vector<1x16x8xbf16> to vector<16x8xbf16>
    %cst_39 = arith.constant dense<0.000000e+00> : vector<256x8xf32>
    %161 = tpu.matmul %158, %160, %cst_39 {dimension_numbers = #tpu.dot_dimension_numbers<[1], [0], [0], [1], [0, 0, 1, 1], [], []>} : vector<256x16xbf16>, vector<16x8xbf16>, vector<256x8xf32> -> vector<256x8xf32>
    %162 = arith.addf %156, %161 : vector<256x8xf32>
    %163 = vector.extract_strided_slice %120 {offsets = [2, 1, 0], sizes = [16, 16, 16], strides = [1, 1, 1]} : vector<18x18x16xbf16> to vector<16x16x16xbf16>
    %164 = vector.shape_cast %163 : vector<16x16x16xbf16> to vector<256x16xbf16>
    %165 = vector.extract_strided_slice %115 {offsets = [7, 0, 0], sizes = [1, 16, 8], strides = [1, 1, 1]} : vector<9x16x8xbf16> to vector<1x16x8xbf16>
    %166 = vector.shape_cast %165 : vector<1x16x8xbf16> to vector<16x8xbf16>
    %cst_40 = arith.constant dense<0.000000e+00> : vector<256x8xf32>
    %167 = tpu.matmul %164, %166, %cst_40 {dimension_numbers = #tpu.dot_dimension_numbers<[1], [0], [0], [1], [0, 0, 1, 1], [], []>} : vector<256x16xbf16>, vector<16x8xbf16>, vector<256x8xf32> -> vector<256x8xf32>
    %168 = arith.addf %162, %167 : vector<256x8xf32>
    %169 = vector.extract_strided_slice %120 {offsets = [2, 2, 0], sizes = [16, 16, 16], strides = [1, 1, 1]} : vector<18x18x16xbf16> to vector<16x16x16xbf16>
    %170 = vector.shape_cast %169 : vector<16x16x16xbf16> to vector<256x16xbf16>
    %171 = vector.extract_strided_slice %115 {offsets = [8, 0, 0], sizes = [1, 16, 8], strides = [1, 1, 1]} : vector<9x16x8xbf16> to vector<1x16x8xbf16>
    %172 = vector.shape_cast %171 : vector<1x16x8xbf16> to vector<16x8xbf16>
    %cst_41 = arith.constant dense<0.000000e+00> : vector<256x8xf32>
    %173 = tpu.matmul %170, %172, %cst_41 {dimension_numbers = #tpu.dot_dimension_numbers<[1], [0], [0], [1], [0, 0, 1, 1], [], []>} : vector<256x16xbf16>, vector<16x8xbf16>, vector<256x8xf32> -> vector<256x8xf32>
    %174 = arith.addf %168, %173 : vector<256x8xf32>
    %c0_42 = arith.constant 0 : index
    %c0_43 = arith.constant 0 : index
    %c0_44 = arith.constant 0 : index
    %175 = vector.load %arg7[%c0_42, %c0_43, %c0_44] : memref<9x8x8xbf16, #tpu.memory_space<vmem>>, vector<9x8x8xbf16>
    %cst_45 = arith.constant 0.000000e+00 : f32
    %176 = vector.broadcast %cst_45 : f32 to vector<1x16x8xf32>
    %177 = tpu.concatenate %176, %26, %176 in 0 : vector<1x16x8xf32>, vector<16x16x8xf32>, vector<1x16x8xf32> -> vector<18x16x8xf32>
    %cst_46 = arith.constant 0.000000e+00 : f32
    %178 = vector.broadcast %cst_46 : f32 to vector<18x1x8xf32>
    %179 = tpu.concatenate %178, %177, %178 in 1 : vector<18x1x8xf32>, vector<18x16x8xf32>, vector<18x1x8xf32> -> vector<18x18x8xf32>
    %180 = arith.truncf %179 : vector<18x18x8xf32> to vector<18x18x8xbf16>
    %181 = vector.extract_strided_slice %180 {offsets = [0, 0, 0], sizes = [16, 16, 8], strides = [1, 1, 1]} : vector<18x18x8xbf16> to vector<16x16x8xbf16>
    %182 = vector.shape_cast %181 : vector<16x16x8xbf16> to vector<256x8xbf16>
    %183 = vector.extract_strided_slice %175 {offsets = [0, 0, 0], sizes = [1, 8, 8], strides = [1, 1, 1]} : vector<9x8x8xbf16> to vector<1x8x8xbf16>
    %184 = vector.shape_cast %183 : vector<1x8x8xbf16> to vector<8x8xbf16>
    %cst_47 = arith.constant dense<0.000000e+00> : vector<256x8xf32>
    %185 = tpu.matmul %182, %184, %cst_47 {dimension_numbers = #tpu.dot_dimension_numbers<[1], [0], [0], [1], [0, 0, 1, 1], [], []>} : vector<256x8xbf16>, vector<8x8xbf16>, vector<256x8xf32> -> vector<256x8xf32>
    %186 = arith.addf %174, %185 : vector<256x8xf32>
    %187 = vector.extract_strided_slice %180 {offsets = [0, 1, 0], sizes = [16, 16, 8], strides = [1, 1, 1]} : vector<18x18x8xbf16> to vector<16x16x8xbf16>
    %188 = vector.shape_cast %187 : vector<16x16x8xbf16> to vector<256x8xbf16>
    %189 = vector.extract_strided_slice %175 {offsets = [1, 0, 0], sizes = [1, 8, 8], strides = [1, 1, 1]} : vector<9x8x8xbf16> to vector<1x8x8xbf16>
    %190 = vector.shape_cast %189 : vector<1x8x8xbf16> to vector<8x8xbf16>
    %cst_48 = arith.constant dense<0.000000e+00> : vector<256x8xf32>
    %191 = tpu.matmul %188, %190, %cst_48 {dimension_numbers = #tpu.dot_dimension_numbers<[1], [0], [0], [1], [0, 0, 1, 1], [], []>} : vector<256x8xbf16>, vector<8x8xbf16>, vector<256x8xf32> -> vector<256x8xf32>
    %192 = arith.addf %186, %191 : vector<256x8xf32>
    %193 = vector.extract_strided_slice %180 {offsets = [0, 2, 0], sizes = [16, 16, 8], strides = [1, 1, 1]} : vector<18x18x8xbf16> to vector<16x16x8xbf16>
    %194 = vector.shape_cast %193 : vector<16x16x8xbf16> to vector<256x8xbf16>
    %195 = vector.extract_strided_slice %175 {offsets = [2, 0, 0], sizes = [1, 8, 8], strides = [1, 1, 1]} : vector<9x8x8xbf16> to vector<1x8x8xbf16>
    %196 = vector.shape_cast %195 : vector<1x8x8xbf16> to vector<8x8xbf16>
    %cst_49 = arith.constant dense<0.000000e+00> : vector<256x8xf32>
    %197 = tpu.matmul %194, %196, %cst_49 {dimension_numbers = #tpu.dot_dimension_numbers<[1], [0], [0], [1], [0, 0, 1, 1], [], []>} : vector<256x8xbf16>, vector<8x8xbf16>, vector<256x8xf32> -> vector<256x8xf32>
    %198 = arith.addf %192, %197 : vector<256x8xf32>
    %199 = vector.extract_strided_slice %180 {offsets = [1, 0, 0], sizes = [16, 16, 8], strides = [1, 1, 1]} : vector<18x18x8xbf16> to vector<16x16x8xbf16>
    %200 = vector.shape_cast %199 : vector<16x16x8xbf16> to vector<256x8xbf16>
    %201 = vector.extract_strided_slice %175 {offsets = [3, 0, 0], sizes = [1, 8, 8], strides = [1, 1, 1]} : vector<9x8x8xbf16> to vector<1x8x8xbf16>
    %202 = vector.shape_cast %201 : vector<1x8x8xbf16> to vector<8x8xbf16>
    %cst_50 = arith.constant dense<0.000000e+00> : vector<256x8xf32>
    %203 = tpu.matmul %200, %202, %cst_50 {dimension_numbers = #tpu.dot_dimension_numbers<[1], [0], [0], [1], [0, 0, 1, 1], [], []>} : vector<256x8xbf16>, vector<8x8xbf16>, vector<256x8xf32> -> vector<256x8xf32>
    %204 = arith.addf %198, %203 : vector<256x8xf32>
    %205 = vector.extract_strided_slice %180 {offsets = [1, 1, 0], sizes = [16, 16, 8], strides = [1, 1, 1]} : vector<18x18x8xbf16> to vector<16x16x8xbf16>
    %206 = vector.shape_cast %205 : vector<16x16x8xbf16> to vector<256x8xbf16>
    %207 = vector.extract_strided_slice %175 {offsets = [4, 0, 0], sizes = [1, 8, 8], strides = [1, 1, 1]} : vector<9x8x8xbf16> to vector<1x8x8xbf16>
    %208 = vector.shape_cast %207 : vector<1x8x8xbf16> to vector<8x8xbf16>
    %cst_51 = arith.constant dense<0.000000e+00> : vector<256x8xf32>
    %209 = tpu.matmul %206, %208, %cst_51 {dimension_numbers = #tpu.dot_dimension_numbers<[1], [0], [0], [1], [0, 0, 1, 1], [], []>} : vector<256x8xbf16>, vector<8x8xbf16>, vector<256x8xf32> -> vector<256x8xf32>
    %210 = arith.addf %204, %209 : vector<256x8xf32>
    %211 = vector.extract_strided_slice %180 {offsets = [1, 2, 0], sizes = [16, 16, 8], strides = [1, 1, 1]} : vector<18x18x8xbf16> to vector<16x16x8xbf16>
    %212 = vector.shape_cast %211 : vector<16x16x8xbf16> to vector<256x8xbf16>
    %213 = vector.extract_strided_slice %175 {offsets = [5, 0, 0], sizes = [1, 8, 8], strides = [1, 1, 1]} : vector<9x8x8xbf16> to vector<1x8x8xbf16>
    %214 = vector.shape_cast %213 : vector<1x8x8xbf16> to vector<8x8xbf16>
    %cst_52 = arith.constant dense<0.000000e+00> : vector<256x8xf32>
    %215 = tpu.matmul %212, %214, %cst_52 {dimension_numbers = #tpu.dot_dimension_numbers<[1], [0], [0], [1], [0, 0, 1, 1], [], []>} : vector<256x8xbf16>, vector<8x8xbf16>, vector<256x8xf32> -> vector<256x8xf32>
    %216 = arith.addf %210, %215 : vector<256x8xf32>
    %217 = vector.extract_strided_slice %180 {offsets = [2, 0, 0], sizes = [16, 16, 8], strides = [1, 1, 1]} : vector<18x18x8xbf16> to vector<16x16x8xbf16>
    %218 = vector.shape_cast %217 : vector<16x16x8xbf16> to vector<256x8xbf16>
    %219 = vector.extract_strided_slice %175 {offsets = [6, 0, 0], sizes = [1, 8, 8], strides = [1, 1, 1]} : vector<9x8x8xbf16> to vector<1x8x8xbf16>
    %220 = vector.shape_cast %219 : vector<1x8x8xbf16> to vector<8x8xbf16>
    %cst_53 = arith.constant dense<0.000000e+00> : vector<256x8xf32>
    %221 = tpu.matmul %218, %220, %cst_53 {dimension_numbers = #tpu.dot_dimension_numbers<[1], [0], [0], [1], [0, 0, 1, 1], [], []>} : vector<256x8xbf16>, vector<8x8xbf16>, vector<256x8xf32> -> vector<256x8xf32>
    %222 = arith.addf %216, %221 : vector<256x8xf32>
    %223 = vector.extract_strided_slice %180 {offsets = [2, 1, 0], sizes = [16, 16, 8], strides = [1, 1, 1]} : vector<18x18x8xbf16> to vector<16x16x8xbf16>
    %224 = vector.shape_cast %223 : vector<16x16x8xbf16> to vector<256x8xbf16>
    %225 = vector.extract_strided_slice %175 {offsets = [7, 0, 0], sizes = [1, 8, 8], strides = [1, 1, 1]} : vector<9x8x8xbf16> to vector<1x8x8xbf16>
    %226 = vector.shape_cast %225 : vector<1x8x8xbf16> to vector<8x8xbf16>
    %cst_54 = arith.constant dense<0.000000e+00> : vector<256x8xf32>
    %227 = tpu.matmul %224, %226, %cst_54 {dimension_numbers = #tpu.dot_dimension_numbers<[1], [0], [0], [1], [0, 0, 1, 1], [], []>} : vector<256x8xbf16>, vector<8x8xbf16>, vector<256x8xf32> -> vector<256x8xf32>
    %228 = arith.addf %222, %227 : vector<256x8xf32>
    %229 = vector.extract_strided_slice %180 {offsets = [2, 2, 0], sizes = [16, 16, 8], strides = [1, 1, 1]} : vector<18x18x8xbf16> to vector<16x16x8xbf16>
    %230 = vector.shape_cast %229 : vector<16x16x8xbf16> to vector<256x8xbf16>
    %231 = vector.extract_strided_slice %175 {offsets = [8, 0, 0], sizes = [1, 8, 8], strides = [1, 1, 1]} : vector<9x8x8xbf16> to vector<1x8x8xbf16>
    %232 = vector.shape_cast %231 : vector<1x8x8xbf16> to vector<8x8xbf16>
    %cst_55 = arith.constant dense<0.000000e+00> : vector<256x8xf32>
    %233 = tpu.matmul %230, %232, %cst_55 {dimension_numbers = #tpu.dot_dimension_numbers<[1], [0], [0], [1], [0, 0, 1, 1], [], []>} : vector<256x8xbf16>, vector<8x8xbf16>, vector<256x8xf32> -> vector<256x8xf32>
    %234 = arith.addf %228, %233 : vector<256x8xf32>
    %c0_56 = arith.constant 0 : index
    %c0_57 = arith.constant 0 : index
    %235 = vector.load %arg8[%c0_56, %c0_57] : memref<1x8xf32, #tpu.memory_space<vmem>>, vector<1x8xf32>
    %236 = vector.broadcast %235 : vector<1x8xf32> to vector<256x8xf32>
    %237 = arith.addf %234, %236 : vector<256x8xf32>
    %cst_58 = arith.constant 0.000000e+00 : f32
    %238 = vector.broadcast %cst_58 : f32 to vector<256x8xf32>
    %239 = arith.maximumf %237, %238 : vector<256x8xf32>
    %c0_59 = arith.constant 0 : index
    %c0_60 = arith.constant 0 : index
    %240 = vector.load %arg9[%c0_59, %c0_60] : memref<8x2xf32, #tpu.memory_space<vmem>>, vector<8x2xf32>
    %cst_61 = arith.constant dense<0.000000e+00> : vector<256x2xf32>
    %241 = tpu.matmul %239, %240, %cst_61 {dimension_numbers = #tpu.dot_dimension_numbers<[1], [0], [0], [1], [0, 0, 1, 1], [], []>} : vector<256x8xf32>, vector<8x2xf32>, vector<256x2xf32> -> vector<256x2xf32>
    %c0_62 = arith.constant 0 : index
    %c0_63 = arith.constant 0 : index
    %242 = vector.load %arg10[%c0_62, %c0_63] : memref<1x2xf32, #tpu.memory_space<vmem>>, vector<1x2xf32>
    %243 = vector.broadcast %242 : vector<1x2xf32> to vector<256x2xf32>
    %244 = arith.addf %241, %243 : vector<256x2xf32>
    %245 = math.tanh %244 : vector<256x2xf32>
    %246 = vector.extract_strided_slice %245 {offsets = [0, 0], sizes = [256, 1], strides = [1, 1]} : vector<256x2xf32> to vector<256x1xf32>
    %247 = vector.shape_cast %246 : vector<256x1xf32> to vector<1x1x16x16xf32>
    %248 = vector.extract_strided_slice %245 {offsets = [0, 1], sizes = [256, 1], strides = [1, 1]} : vector<256x2xf32> to vector<256x1xf32>
    %249 = vector.shape_cast %248 : vector<256x1xf32> to vector<1x1x16x16xf32>
    %250 = tpu.concatenate %247, %249 in 1 : vector<1x1x16x16xf32>, vector<1x1x16x16xf32> -> vector<1x2x16x16xf32>
    %c0_64 = arith.constant 0 : index
    %c0_65 = arith.constant 0 : index
    %c0_66 = arith.constant 0 : index
    %c0_67 = arith.constant 0 : index
    %251 = vector.load %arg11[%c0_64, %c0_65, %c0_66, %c0_67] : memref<1x2x16x16xf32, #tpu.memory_space<vmem>>, vector<1x2x16x16xf32>
    tpu.vector_store %arg11[%c0_64, %c0_65, %c0_66, %c0_67], %250 {strides = array<i32>} : memref<1x2x16x16xf32, #tpu.memory_space<vmem>>, vector<1x2x16x16xf32>,
    return
  }
  func.func @transform_0(%arg0: i32) -> (i32, i32, i32) {
    %c0_i32 = arith.constant 0 : i32
    %c0_i32_0 = arith.constant 0 : i32
    %c0_i32_1 = arith.constant 0 : i32
    return %arg0, %c0_i32, %c0_i32_0 : i32, i32, i32
  }
  func.func @transform_1(%arg0: i32) -> (i32, i32) {
    %c0_i32 = arith.constant 0 : i32
    %c0_i32_0 = arith.constant 0 : i32
    %c0_i32_1 = arith.constant 0 : i32
    return %c0_i32, %c0_i32_0 : i32, i32
  }
  func.func @transform_2(%arg0: i32) -> (i32, i32) {
    %c0_i32 = arith.constant 0 : i32
    %c0_i32_0 = arith.constant 0 : i32
    %c0_i32_1 = arith.constant 0 : i32
    return %c0_i32, %c0_i32_0 : i32, i32
  }
  func.func @transform_3(%arg0: i32) -> (i32, i32, i32) {
    %c0_i32 = arith.constant 0 : i32
    %c0_i32_0 = arith.constant 0 : i32
    %c0_i32_1 = arith.constant 0 : i32
    %c0_i32_2 = arith.constant 0 : i32
    return %c0_i32, %c0_i32_0, %c0_i32_1 : i32, i32, i32
  }
  func.func @transform_4(%arg0: i32) -> (i32, i32) {
    %c0_i32 = arith.constant 0 : i32
    %c0_i32_0 = arith.constant 0 : i32
    %c0_i32_1 = arith.constant 0 : i32
    return %c0_i32, %c0_i32_0 : i32, i32
  }
  func.func @transform_5(%arg0: i32) -> (i32, i32, i32) {
    %c0_i32 = arith.constant 0 : i32
    %c0_i32_0 = arith.constant 0 : i32
    %c0_i32_1 = arith.constant 0 : i32
    %c0_i32_2 = arith.constant 0 : i32
    return %c0_i32, %c0_i32_0, %c0_i32_1 : i32, i32, i32
  }
  func.func @transform_6(%arg0: i32) -> (i32, i32, i32) {
    %c0_i32 = arith.constant 0 : i32
    %c0_i32_0 = arith.constant 0 : i32
    %c0_i32_1 = arith.constant 0 : i32
    %c0_i32_2 = arith.constant 0 : i32
    return %c0_i32, %c0_i32_0, %c0_i32_1 : i32, i32, i32
  }
  func.func @transform_7(%arg0: i32) -> (i32, i32) {
    %c0_i32 = arith.constant 0 : i32
    %c0_i32_0 = arith.constant 0 : i32
    %c0_i32_1 = arith.constant 0 : i32
    return %c0_i32, %c0_i32_0 : i32, i32
  }
  func.func @transform_8(%arg0: i32) -> (i32, i32) {
    %c0_i32 = arith.constant 0 : i32
    %c0_i32_0 = arith.constant 0 : i32
    %c0_i32_1 = arith.constant 0 : i32
    return %c0_i32, %c0_i32_0 : i32, i32
  }
  func.func @transform_9(%arg0: i32) -> (i32, i32) {
    %c0_i32 = arith.constant 0 : i32
    %c0_i32_0 = arith.constant 0 : i32
    %c0_i32_1 = arith.constant 0 : i32
    return %c0_i32, %c0_i32_0 : i32, i32
  }
  func.func @transform_10(%arg0: i32) -> (i32, i32, i32, i32) {
    %c0_i32 = arith.constant 0 : i32
    %c0_i32_0 = arith.constant 0 : i32
    %c0_i32_1 = arith.constant 0 : i32
    %c0_i32_2 = arith.constant 0 : i32
    return %arg0, %c0_i32, %c0_i32_0, %c0_i32_1 : i32, i32, i32, i32
  }
}

</mosaic_0001>

<llo_original>
// kernel: colorization_forward.1
$region0: #{colorization_forward.1}
  #allocation0 [shape = 'u32[]', space=smem, size = 0x4, offset = 0x4, fixed_abs, tag = 'smem constant byte address 0x4 - core index']
  #allocation1 [shape = 'u32[144,128]{1,0:T(1,128)}', space=vmem, size = 0x12000, scoped, tag = 'internal scratch']
  %s0 = inlined_call_operand.vmem [shape: f32[2,16,16], index: 0, kind: input, shape index: {}]
  %s1 = inlined_call_operand.vmem [shape: bf16[9,8], index: 1, kind: input, shape index: {}]
  %s2 = inlined_call_operand.vmem [shape: f32[1,8], index: 2, kind: input, shape index: {}]
  %s3 = inlined_call_operand.vmem [shape: bf16[9,8,16], index: 3, kind: input, shape index: {}]
  %s4 = inlined_call_operand.vmem [shape: f32[1,16], index: 4, kind: input, shape index: {}]
  %s5 = inlined_call_operand.vmem [shape: bf16[9,16,8], index: 5, kind: input, shape index: {}]
  %s6 = inlined_call_operand.vmem [shape: bf16[9,8,8], index: 6, kind: input, shape index: {}]
  %s7 = inlined_call_operand.vmem [shape: f32[1,8], index: 7, kind: input, shape index: {}]
  %s8 = inlined_call_operand.vmem [shape: f32[8,2], index: 8, kind: input, shape index: {}]
  %s9 = inlined_call_operand.vmem [shape: f32[1,2], index: 9, kind: input, shape index: {}]
  %s10 = inlined_call_operand.hbm [shape: f32[2,2,16,16], index: 10, kind: output, shape index: {}]
  %s11 = sld [smem:[#allocation0]]
  $region73: #{colorization_forward.1} parent=0
    _
  %s13 = ssub.s32 1, %s11
  %s14 = scalar_select 0, %s13, %s11
  $region1: #{colorization_forward.1} parent=0
    #allocation2 [shape = 'u8[32768]{0}', space=vmem, size = 0x8000, scoped, tag = 'output window, operand 0']
    #allocation3 [shape = 's32[2]{0}', space=sflag, size = 0x8, scoped, tag = 'scoped memory for colorization_forward.1']
    %15 = vsyncpa [#allocation3], 0
    %s16 = scalar_lea.sflag [#allocation3], 1
    %17 = vsyncpa %s16, 0
    loop: start=0, step=1, limit=4
    $region2: #{colorization_forward.1} parent=1 // loop_pre_header
      _
    $region3: #{colorization_forward.1} parent=1 // loop_header
      %s19 = sphi 0, %s23
      %p20 = scmp.ge.s32.totalorder %s19, 4
      %s29 = sphi 0, %s31
      %s32 = sphi 0, %s29
      %s33 = sphi 0, %s32
      %s49 = sphi 0, %s33
      %s53 = sphi 0, %s53
      %s55 = sphi 0, %s53
      %s56 = sphi 0, %s55
      %s70 = sphi 0, %s56
      %s74 = sphi 0, %s74
      %s76 = sphi 0, %s74
      %s77 = sphi 0, %s76
      %s91 = sphi 0, %s77
      %s95 = sphi 0, %s95
      %s97 = sphi 0, %s95
      %s98 = sphi 0, %s97
      %s112 = sphi 0, %s98
      %s116 = sphi 0, %s116
      %s118 = sphi 0, %s116
      %s119 = sphi 0, %s118
      %s133 = sphi 0, %s119
      %s137 = sphi 0, %s137
      %s139 = sphi 0, %s137
      %s140 = sphi 0, %s139
      %s154 = sphi 0, %s140
      %s158 = sphi 0, %s158
      %s160 = sphi 0, %s158
      %s161 = sphi 0, %s160
      %s175 = sphi 0, %s161
      %s179 = sphi 0, %s179
      %s181 = sphi 0, %s179
      %s182 = sphi 0, %s181
      %s196 = sphi 0, %s182
      %s200 = sphi 0, %s200
      %s202 = sphi 0, %s200
      %s203 = sphi 0, %s202
      %s217 = sphi 0, %s203
      %s221 = sphi 0, %s221
      %s223 = sphi 0, %s221
      %s224 = sphi 0, %s223
      %s238 = sphi 0, %s224
      %s244 = sphi 0, %s246
      %s247 = sphi 0, %s244
      %s248 = sphi 0, %s247
      %s264 = sphi 0, %s248
    $region4: #{colorization_forward.1} parent=1 // loop_header_branch
      %22 = sbr.rel (%p20) target = $region8
    $region5: #{colorization_forward.1} parent=1 // loop_body
      %s24 = ssub.s32 %s19, 1
      %s25 = ssub.s32 %s19, 2
      %s26 = sadd.s32 %s19, 1
      %s27 = ssub.s32 %s19, %s26
      %p28 = scmp.eq.s32.totalorder %s27, 0
      %s30 = sadd.s32 %s29, 1
      %s31 = scalar_select %p28, %s29, %s30
      %p34 = pneg %p28
      %p35 = scmp.eq.s32.totalorder %s19, 1
      %p36 = por %p34, %p35
      %p37 = scmp.ne.s32.totalorder %s29, %s32
      %p38 = scmp.eq.s32.totalorder %s19, 0
      %p39 = por %p37, %p38
      %p40 = scmp.ne.s32.totalorder %s29, %s32
      %p41 = scmp.eq.s32.totalorder %s24, 1
      %p42 = por %p40, %p41
      %p43 = scmp.ne.s32.totalorder %s32, %s33
      %p44 = scmp.eq.s32.totalorder %s24, 0
      %p45 = por %p43, %p44
      %p46 = scmp.ne.s32.totalorder %s32, %s33
      %p47 = scmp.eq.s32.totalorder %s25, 1
      %p48 = por %p46, %p47
      %p50 = scmp.ne.s32.totalorder %s33, %s49
      %p51 = scmp.eq.s32.totalorder %s25, 0
      %p52 = por %p50, %p51
      %s54 = sadd.s32 %s53, 1
      %p57 = scmp.eq.s32.totalorder %s19, 1
      %p58 = scmp.ne.s32.totalorder %s53, %s55
      %p59 = scmp.eq.s32.totalorder %s19, 0
      %p60 = por %p58, %p59
      %p61 = scmp.ne.s32.totalorder %s53, %s55
      %p62 = scmp.eq.s32.totalorder %s24, 1
      %p63 = por %p61, %p62
      %p64 = scmp.ne.s32.totalorder %s55, %s56
      %p65 = scmp.eq.s32.totalorder %s24, 0
      %p66 = por %p64, %p65
      %p67 = scmp.ne.s32.totalorder %s55, %s56
      %p68 = scmp.eq.s32.totalorder %s25, 1
      %p69 = por %p67, %p68
      %p71 = scmp.ne.s32.totalorder %s56, %s70
      %p72 = scmp.eq.s32.totalorder %s25, 0
      %p73 = por %p71, %p72
      %s75 = sadd.s32 %s74, 1
      %p78 = scmp.eq.s32.totalorder %s19, 1
      %p79 = scmp.ne.s32.totalorder %s74, %s76
      %p80 = scmp.eq.s32.totalorder %s19, 0
      %p81 = por %p79, %p80
      %p82 = scmp.ne.s32.totalorder %s74, %s76
      %p83 = scmp.eq.s32.totalorder %s24, 1
      %p84 = por %p82, %p83
      %p85 = scmp.ne.s32.totalorder %s76, %s77
      %p86 = scmp.eq.s32.totalorder %s24, 0
      %p87 = por %p85, %p86
      %p88 = scmp.ne.s32.totalorder %s76, %s77
      %p89 = scmp.eq.s32.totalorder %s25, 1
      %p90 = por %p88, %p89
      %p92 = scmp.ne.s32.totalorder %s77, %s91
      %p93 = scmp.eq.s32.totalorder %s25, 0
      %p94 = por %p92, %p93
      %s96 = sadd.s32 %s95, 1
      %p99 = scmp.eq.s32.totalorder %s19, 1
      %p100 = scmp.ne.s32.totalorder %s95, %s97
      %p101 = scmp.eq.s32.totalorder %s19, 0
      %p102 = por %p100, %p101
      %p103 = scmp.ne.s32.totalorder %s95, %s97
      %p104 = scmp.eq.s32.totalorder %s24, 1
      %p105 = por %p103, %p104
      %p106 = scmp.ne.s32.totalorder %s97, %s98
      %p107 = scmp.eq.s32.totalorder %s24, 0
      %p108 = por %p106, %p107
      %p109 = scmp.ne.s32.totalorder %s97, %s98
      %p110 = scmp.eq.s32.totalorder %s25, 1
      %p111 = por %p109, %p110
      %p113 = scmp.ne.s32.totalorder %s98, %s112
      %p114 = scmp.eq.s32.totalorder %s25, 0
      %p115 = por %p113, %p114
      %s117 = sadd.s32 %s116, 1
      %p120 = scmp.eq.s32.totalorder %s19, 1
      %p121 = scmp.ne.s32.totalorder %s116, %s118
      %p122 = scmp.eq.s32.totalorder %s19, 0
      %p123 = por %p121, %p122
      %p124 = scmp.ne.s32.totalorder %s116, %s118
      %p125 = scmp.eq.s32.totalorder %s24, 1
      %p126 = por %p124, %p125
      %p127 = scmp.ne.s32.totalorder %s118, %s119
      %p128 = scmp.eq.s32.totalorder %s24, 0
      %p129 = por %p127, %p128
      %p130 = scmp.ne.s32.totalorder %s118, %s119
      %p131 = scmp.eq.s32.totalorder %s25, 1
      %p132 = por %p130, %p131
      %p134 = scmp.ne.s32.totalorder %s119, %s133
      %p135 = scmp.eq.s32.totalorder %s25, 0
      %p136 = por %p134, %p135
      %s138 = sadd.s32 %s137, 1
      %p141 = scmp.eq.s32.totalorder %s19, 1
      %p142 = scmp.ne.s32.totalorder %s137, %s139
      %p143 = scmp.eq.s32.totalorder %s19, 0
      %p144 = por %p142, %p143
      %p145 = scmp.ne.s32.totalorder %s137, %s139
      %p146 = scmp.eq.s32.totalorder %s24, 1
      %p147 = por %p145, %p146
      %p148 = scmp.ne.s32.totalorder %s139, %s140
      %p149 = scmp.eq.s32.totalorder %s24, 0
      %p150 = por %p148, %p149
      %p151 = scmp.ne.s32.totalorder %s139, %s140
      %p152 = scmp.eq.s32.totalorder %s25, 1
      %p153 = por %p151, %p152
      %p155 = scmp.ne.s32.totalorder %s140, %s154
      %p156 = scmp.eq.s32.totalorder %s25, 0
      %p157 = por %p155, %p156
      %s159 = sadd.s32 %s158, 1
      %p162 = scmp.eq.s32.totalorder %s19, 1
      %p163 = scmp.ne.s32.totalorder %s158, %s160
      %p164 = scmp.eq.s32.totalorder %s19, 0
      %p165 = por %p163, %p164
      %p166 = scmp.ne.s32.totalorder %s158, %s160
      %p167 = scmp.eq.s32.totalorder %s24, 1
      %p168 = por %p166, %p167
      %p169 = scmp.ne.s32.totalorder %s160, %s161
      %p170 = scmp.eq.s32.totalorder %s24, 0
      %p171 = por %p169, %p170
      %p172 = scmp.ne.s32.totalorder %s160, %s161
      %p173 = scmp.eq.s32.totalorder %s25, 1
      %p174 = por %p172, %p173
      %p176 = scmp.ne.s32.totalorder %s161, %s175
      %p177 = scmp.eq.s32.totalorder %s25, 0
      %p178 = por %p176, %p177
      %s180 = sadd.s32 %s179, 1
      %p183 = scmp.eq.s32.totalorder %s19, 1
      %p184 = scmp.ne.s32.totalorder %s179, %s181
      %p185 = scmp.eq.s32.totalorder %s19, 0
      %p186 = por %p184, %p185
      %p187 = scmp.ne.s32.totalorder %s179, %s181
      %p188 = scmp.eq.s32.totalorder %s24, 1
      %p189 = por %p187, %p188
      %p190 = scmp.ne.s32.totalorder %s181, %s182
      %p191 = scmp.eq.s32.totalorder %s24, 0
      %p192 = por %p190, %p191
      %p193 = scmp.ne.s32.totalorder %s181, %s182
      %p194 = scmp.eq.s32.totalorder %s25, 1
      %p195 = por %p193, %p194
      %p197 = scmp.ne.s32.totalorder %s182, %s196
      %p198 = scmp.eq.s32.totalorder %s25, 0
      %p199 = por %p197, %p198
      %s201 = sadd.s32 %s200, 1
      %p204 = scmp.eq.s32.totalorder %s19, 1
      %p205 = scmp.ne.s32.totalorder %s200, %s202
      %p206 = scmp.eq.s32.totalorder %s19, 0
      %p207 = por %p205, %p206
      %p208 = scmp.ne.s32.totalorder %s200, %s202
      %p209 = scmp.eq.s32.totalorder %s24, 1
      %p210 = por %p208, %p209
      %p211 = scmp.ne.s32.totalorder %s202, %s203
      %p212 = scmp.eq.s32.totalorder %s24, 0
      %p213 = por %p211, %p212
      %p214 = scmp.ne.s32.totalorder %s202, %s203
      %p215 = scmp.eq.s32.totalorder %s25, 1
      %p216 = por %p214, %p215
      %p218 = scmp.ne.s32.totalorder %s203, %s217
      %p219 = scmp.eq.s32.totalorder %s25, 0
      %p220 = por %p218, %p219
      %s222 = sadd.s32 %s221, 1
      %p225 = scmp.eq.s32.totalorder %s19, 1
      %p226 = scmp.ne.s32.totalorder %s221, %s223
      %p227 = scmp.eq.s32.totalorder %s19, 0
      %p228 = por %p226, %p227
      %p229 = scmp.ne.s32.totalorder %s221, %s223
      %p230 = scmp.eq.s32.totalorder %s24, 1
      %p231 = por %p229, %p230
      %p232 = scmp.ne.s32.totalorder %s223, %s224
      %p233 = scmp.eq.s32.totalorder %s24, 0
      %p234 = por %p232, %p233
      %p235 = scmp.ne.s32.totalorder %s223, %s224
      %p236 = scmp.eq.s32.totalorder %s25, 1
      %p237 = por %p235, %p236
      %p239 = scmp.ne.s32.totalorder %s224, %s238
      %p240 = scmp.eq.s32.totalorder %s25, 0
      %p241 = por %p239, %p240
      %s242 = ssub.s32 %s19, %s26
      %p243 = scmp.eq.s32.totalorder %s242, 0
      %s245 = sadd.s32 %s244, 1
      %s246 = scalar_select %p243, %s244, %s245
      %p249 = pneg %p243
      %p250 = scmp.eq.s32.totalorder %s19, 1
      %p251 = por %p249, %p250
      %p252 = scmp.ne.s32.totalorder %s244, %s247
      %p253 = scmp.eq.s32.totalorder %s19, 0
      %p254 = por %p252, %p253
      %p255 = scmp.ne.s32.totalorder %s244, %s247
      %p256 = scmp.eq.s32.totalorder %s24, 1
      %p257 = por %p255, %p256
      %p258 = scmp.ne.s32.totalorder %s247, %s248
      %p259 = scmp.eq.s32.totalorder %s24, 0
      %p260 = por %p258, %p259
      %p261 = scmp.ne.s32.totalorder %s247, %s248
      %p262 = scmp.eq.s32.totalorder %s25, 1
      %p263 = por %p261, %p262
      %p265 = scmp.ne.s32.totalorder %s248, %s264
      %p266 = scmp.eq.s32.totalorder %s25, 0
      %p267 = por %p265, %p266
      %p268 = scmp.le.s32.totalorder 1, %s19
      %p269 = scmp.lt.s32.totalorder %s19, 3
      %p270 = pnand %p268, %p269
      %p271 = pneg %p270
      // Predicated region
      $region9: #{colorization_forward.1} parent=5 // pred_check
        _
      $region10: #{colorization_forward.1} parent=5 // pred_check_branch
        %273 = sbr.rel (%p270) target = $region12
      $region11: #{colorization_forward.1} parent=5 // pred_region
        %s274 = ssub.s32 %s19, 1
        // Predicated region
        $region13: #{colorization_forward.1} parent=11 // pred_check
          %p275 = pneg %p66
        $region14: #{colorization_forward.1} parent=11 // pred_check_branch
          %277 = sbr.rel (%p275) target = $region16
        $region15: #{colorization_forward.1} parent=11 // pred_region
          _
        $region16: #{colorization_forward.1} parent=11 // pred_fallthru
          _
        // Predicated region
        $region17: #{colorization_forward.1} parent=11 // pred_check
          %p278 = pneg %p87
        $region18: #{colorization_forward.1} parent=11 // pred_check_branch
          %280 = sbr.rel (%p278) target = $region20
        $region19: #{colorization_forward.1} parent=11 // pred_region
          _
        $region20: #{colorization_forward.1} parent=11 // pred_fallthru
          _
        // Predicated region
        $region21: #{colorization_forward.1} parent=11 // pred_check
          %p281 = pneg %p108
        $region22: #{colorization_forward.1} parent=11 // pred_check_branch
          %283 = sbr.rel (%p281) target = $region24
        $region23: #{colorization_forward.1} parent=11 // pred_region
          _
        $region24: #{colorization_forward.1} parent=11 // pred_fallthru
          _
        // Predicated region
        $region25: #{colorization_forward.1} parent=11 // pred_check
          %p284 = pneg %p129
        $region26: #{colorization_forward.1} parent=11 // pred_check_branch
          %286 = sbr.rel (%p284) target = $region28
        $region27: #{colorization_forward.1} parent=11 // pred_region
          _
        $region28: #{colorization_forward.1} parent=11 // pred_fallthru
          _
        // Predicated region
        $region29: #{colorization_forward.1} parent=11 // pred_check
          %p287 = pneg %p150
        $region30: #{colorization_forward.1} parent=11 // pred_check_branch
          %289 = sbr.rel (%p287) target = $region32
        $region31: #{colorization_forward.1} parent=11 // pred_region
          _
        $region32: #{colorization_forward.1} parent=11 // pred_fallthru
          _
        // Predicated region
        $region33: #{colorization_forward.1} parent=11 // pred_check
          %p290 = pneg %p171
        $region34: #{colorization_forward.1} parent=11 // pred_check_branch
          %292 = sbr.rel (%p290) target = $region36
        $region35: #{colorization_forward.1} parent=11 // pred_region
          _
        $region36: #{colorization_forward.1} parent=11 // pred_fallthru
          _
        // Predicated region
        $region37: #{colorization_forward.1} parent=11 // pred_check
          %p293 = pneg %p192
        $region38: #{colorization_forward.1} parent=11 // pred_check_branch
          %295 = sbr.rel (%p293) target = $region40
        $region39: #{colorization_forward.1} parent=11 // pred_region
          _
        $region40: #{colorization_forward.1} parent=11 // pred_fallthru
          _
        // Predicated region
        $region41: #{colorization_forward.1} parent=11 // pred_check
          %p296 = pneg %p213
        $region42: #{colorization_forward.1} parent=11 // pred_check_branch
          %298 = sbr.rel (%p296) target = $region44
        $region43: #{colorization_forward.1} parent=11 // pred_region
          _
        $region44: #{colorization_forward.1} parent=11 // pred_fallthru
          _
        // Predicated region
        $region45: #{colorization_forward.1} parent=11 // pred_check
          %p299 = pneg %p234
        $region46: #{colorization_forward.1} parent=11 // pred_check_branch
          %301 = sbr.rel (%p299) target = $region48
        $region47: #{colorization_forward.1} parent=11 // pred_region
          _
        $region48: #{colorization_forward.1} parent=11 // pred_fallthru
          _
      $region12: #{colorization_forward.1} parent=5 // pred_fallthru
        _
      %p302 = scmp.lt.s32.totalorder %s19, 2
      // Predicated region
      $region49: #{colorization_forward.1} parent=5 // pred_check
        %p303 = pneg %p302
      $region50: #{colorization_forward.1} parent=5 // pred_check_branch
        %305 = sbr.rel (%p303) target = $region52
      $region51: #{colorization_forward.1} parent=5 // pred_region
        // Predicated region
        $region53: #{colorization_forward.1} parent=51 // pred_check
          %p306 = pneg %p39
        $region54: #{colorization_forward.1} parent=51 // pred_check_branch
          %308 = sbr.rel (%p306) target = $region56
        $region55: #{colorization_forward.1} parent=51 // pred_region
          %p309 = scmp.lt.s32.totalorder %s19, 1
          %s310 = scalar_select %p309, %s19, 1
          %s311 = smul.addr %s310, 2
          %s312 = smul.addr %s311, 8
          %s313 = scalar_lea.vmem %s0, %s312
        $region56: #{colorization_forward.1} parent=51 // pred_fallthru
          _
      $region52: #{colorization_forward.1} parent=5 // pred_fallthru
        _
      %p314 = scmp.le.s32.totalorder 1, %s19
      %p315 = scmp.lt.s32.totalorder %s19, 3
      %p316 = pnand %p314, %p315
      %p317 = pneg %p316
      // Predicated region
      $region57: #{colorization_forward.1} parent=5 // pred_check
        _
      $region58: #{colorization_forward.1} parent=5 // pred_check_branch
        %319 = sbr.rel (%p316) target = $region60
      $region59: #{colorization_forward.1} parent=5 // pred_region
        %s320 = ssub.s32 %s19, 1
        %p321 = scmp.lt.s32.totalorder %s24, 1
        %s322 = scalar_select %p321, %s24, 1
        %s323 = smul.addr %s322, 2
        %s324 = smul.addr %s323, 8
        %s325 = scalar_lea.vmem %s0, %s324
        %p326 = pneg %p45
        %p327 = pneg %p42
        %p328 = pneg %p66
        %p329 = pneg %p63
        %p330 = pneg %p87
        %p331 = pneg %p84
        %p332 = pneg %p108
        %p333 = pneg %p105
        %p334 = pneg %p129
        %p335 = pneg %p126
        %p336 = pneg %p150
        %p337 = pneg %p147
        %p338 = pneg %p171
        %p339 = pneg %p168
        %p340 = pneg %p192
        %p341 = pneg %p189
        %p342 = pneg %p213
        %p343 = pneg %p210
        %p344 = pneg %p234
        %p345 = pneg %p231
        %p346 = pneg %p260
        %p347 = pneg %p257
        %s348 = sand.u32 %s247, 1
        %s349 = scalar_lea.sflag [#allocation3], %s348
        %s350 = sand.u32 %s247, 1
        %s351 = smul.addr %s350, 32
        %s352 = scalar_lea.vmem [#allocation2], %s351
        %p353 = scmp.lt.s32.totalorder %s24, 1
        %s354 = scalar_select %p353, %s24, 1
        %s355 = smul.addr %s354, 2
        %s356 = smul.addr %s355, 8
        %s357 = scalar_lea.vmem %s0, %s356
        %v359 = vld [vmem:[%s357] sm:$0xff]
        %v360 = vld [vmem:[%s357 + $0x8] sm:$0xff]
        %v361 = vld [vmem:[%s1] sm:$0xf]
        %v362 = vld [vmem:[%s1 + $0x4] sm:$0x1]
        %v363 = vld [vmem:[%s2] sm:$0x1]
        %v364 = vlaneseq
        %v365 = vshrl.u32 %v364, 7
        %v366 = vsub.s32 0, %v365
        %v367 = vrot.slane %v359, %v366
        %369 = vbcast.lane.b32.xlu0 %v367, 256
        %v370 = vpop.permute.xlu0 %369
        %s372 = sor.u32 256, 8
        %373 = vbcast.lane.b32.xlu0 %v367, %s372
        %v374 = vpop.permute.xlu0 %373
        %v375 = vlaneseq
        %v376 = vshrl.u32 %v375, 7
        %v377 = vsub.s32 1, %v376
        %v378 = vrot.slane %v359, %v377
        %380 = vbcast.lane.b32.xlu0 %v378, 256
        %v381 = vpop.permute.xlu0 %380
        %s383 = sor.u32 256, 8
        %384 = vbcast.lane.b32.xlu0 %v378, %s383
        %v385 = vpop.permute.xlu0 %384
        %v386 = vlaneseq
        %v387 = vshrl.u32 %v386, 7
        %v388 = vsub.s32 2, %v387
        %v389 = vrot.slane %v359, %v388
        %391 = vbcast.lane.b32.xlu0 %v389, 256
        %v392 = vpop.permute.xlu0 %391
        %s394 = sor.u32 256, 8
        %395 = vbcast.lane.b32.xlu0 %v389, %s394
        %v396 = vpop.permute.xlu0 %395
        %v397 = vlaneseq
        %v398 = vshrl.u32 %v397, 7
        %v399 = vsub.s32 3, %v398
        %v400 = vrot.slane %v359, %v399
        %402 = vbcast.lane.b32.xlu0 %v400, 256
        %v403 = vpop.permute.xlu0 %402
        %s405 = sor.u32 256, 8
        %406 = vbcast.lane.b32.xlu0 %v400, %s405
        %v407 = vpop.permute.xlu0 %406
        %v408 = vlaneseq
        %v409 = vshrl.u32 %v408, 7
        %v410 = vsub.s32 4, %v409
        %v411 = vrot.slane %v359, %v410
        %413 = vbcast.lane.b32.xlu0 %v411, 256
        %v414 = vpop.permute.xlu0 %413
        %s416 = sor.u32 256, 8
        %417 = vbcast.lane.b32.xlu0 %v411, %s416
        %v418 = vpop.permute.xlu0 %417
        %v419 = vlaneseq
        %v420 = vshrl.u32 %v419, 7
        %v421 = vsub.s32 5, %v420
        %v422 = vrot.slane %v359, %v421
        %424 = vbcast.lane.b32.xlu0 %v422, 256
        %v425 = vpop.permute.xlu0 %424
        %s427 = sor.u32 256, 8
        %428 = vbcast.lane.b32.xlu0 %v422, %s427
        %v429 = vpop.permute.xlu0 %428
        %v430 = vlaneseq
        %v431 = vshrl.u32 %v430, 7
        %v432 = vsub.s32 6, %v431
        %v433 = vrot.slane %v359, %v432
        %435 = vbcast.lane.b32.xlu0 %v433, 256
        %v436 = vpop.permute.xlu0 %435
        %s438 = sor.u32 256, 8
        %439 = vbcast.lane.b32.xlu0 %v433, %s438
        %v440 = vpop.permute.xlu0 %439
        %v441 = vlaneseq
        %v442 = vshrl.u32 %v441, 7
        %v443 = vsub.s32 7, %v442
        %v444 = vrot.slane %v359, %v443
        %446 = vbcast.lane.b32.xlu0 %v444, 256
        %v447 = vpop.permute.xlu0 %446
        %s449 = sor.u32 256, 8
        %450 = vbcast.lane.b32.xlu0 %v444, %s449
        %v451 = vpop.permute.xlu0 %450
        %v452 = vlaneseq
        %v453 = vshrl.u32 %v452, 7
        %v454 = vsub.s32 0, %v453
        %v455 = vrot.slane %v360, %v454
        %457 = vbcast.lane.b32.xlu0 %v455, 256
        %v458 = vpop.permute.xlu0 %457
        %s460 = sor.u32 256, 8
        %461 = vbcast.lane.b32.xlu0 %v455, %s460
        %v462 = vpop.permute.xlu0 %461
        %v463 = vlaneseq
        %v464 = vshrl.u32 %v463, 7
        %v465 = vsub.s32 1, %v464
        %v466 = vrot.slane %v360, %v465
        %468 = vbcast.lane.b32.xlu0 %v466, 256
        %v469 = vpop.permute.xlu0 %468
        %s471 = sor.u32 256, 8
        %472 = vbcast.lane.b32.xlu0 %v466, %s471
        %v473 = vpop.permute.xlu0 %472
        %v474 = vlaneseq
        %v475 = vshrl.u32 %v474, 7
        %v476 = vsub.s32 2, %v475
        %v477 = vrot.slane %v360, %v476
        %479 = vbcast.lane.b32.xlu0 %v477, 256
        %v480 = vpop.permute.xlu0 %479
        %s482 = sor.u32 256, 8
        %483 = vbcast.lane.b32.xlu0 %v477, %s482
        %v484 = vpop.permute.xlu0 %483
        %v485 = vlaneseq
        %v486 = vshrl.u32 %v485, 7
        %v487 = vsub.s32 3, %v486
        %v488 = vrot.slane %v360, %v487
        %490 = vbcast.lane.b32.xlu0 %v488, 256
        %v491 = vpop.permute.xlu0 %490
        %s493 = sor.u32 256, 8
        %494 = vbcast.lane.b32.xlu0 %v488, %s493
        %v495 = vpop.permute.xlu0 %494
        %v496 = vlaneseq
        %v497 = vshrl.u32 %v496, 7
        %v498 = vsub.s32 4, %v497
        %v499 = vrot.slane %v360, %v498
        %501 = vbcast.lane.b32.xlu0 %v499, 256
        %v502 = vpop.permute.xlu0 %501
        %s504 = sor.u32 256, 8
        %505 = vbcast.lane.b32.xlu0 %v499, %s504
        %v506 = vpop.permute.xlu0 %505
        %v507 = vlaneseq
        %v508 = vshrl.u32 %v507, 7
        %v509 = vsub.s32 5, %v508
        %v510 = vrot.slane %v360, %v509
        %512 = vbcast.lane.b32.xlu0 %v510, 256
        %v513 = vpop.permute.xlu0 %512
        %s515 = sor.u32 256, 8
        %516 = vbcast.lane.b32.xlu0 %v510, %s515
        %v517 = vpop.permute.xlu0 %516
        %v518 = vlaneseq
        %v519 = vshrl.u32 %v518, 7
        %v520 = vsub.s32 6, %v519
        %v521 = vrot.slane %v360, %v520
        %523 = vbcast.lane.b32.xlu0 %v521, 256
        %v524 = vpop.permute.xlu0 %523
        %s526 = sor.u32 256, 8
        %527 = vbcast.lane.b32.xlu0 %v521, %s526
        %v528 = vpop.permute.xlu0 %527
        %v529 = vlaneseq
        %v530 = vshrl.u32 %v529, 7
        %v531 = vsub.s32 7, %v530
        %v532 = vrot.slane %v360, %v531
        %534 = vbcast.lane.b32.xlu0 %v532, 256
        %v535 = vpop.permute.xlu0 %534
        %s537 = sor.u32 256, 8
        %538 = vbcast.lane.b32.xlu0 %v532, %s537
        %v539 = vpop.permute.xlu0 %538
        %vm573 = vcmask 1040384
        %v574 = vrot.slane 0.0, 7
        %v575 = vsel %vm573, %v574, %v574
        %v576 = vrot.slane %v370, 7
        %v577 = vrot.slane %v374, 7
        %v578 = vsel %vm573, %v576, %v577
        %v579 = vrot.slane %v381, 7
        %v580 = vrot.slane %v385, 7
        %v581 = vsel %vm573, %v579, %v580
        %v582 = vrot.slane %v392, 7
        %v583 = vrot.slane %v396, 7
        %v584 = vsel %vm573, %v582, %v583
        %v585 = vrot.slane %v403, 7
        %v586 = vrot.slane %v407, 7
        %v587 = vsel %vm573, %v585, %v586
        %v588 = vrot.slane %v414, 7
        %v589 = vrot.slane %v418, 7
        %v590 = vsel %vm573, %v588, %v589
        %v591 = vrot.slane %v425, 7
        %v592 = vrot.slane %v429, 7
        %v593 = vsel %vm573, %v591, %v592
        %v594 = vrot.slane %v436, 7
        %v595 = vrot.slane %v440, 7
        %v596 = vsel %vm573, %v594, %v595
        %v597 = vrot.slane %v447, 7
        %v598 = vrot.slane %v451, 7
        %v599 = vsel %vm573, %v597, %v598
        %v600 = vrot.slane %v458, 7
        %v601 = vrot.slane %v462, 7
        %v602 = vsel %vm573, %v600, %v601
        %v603 = vrot.slane %v469, 7
        %v604 = vrot.slane %v473, 7
        %v605 = vsel %vm573, %v603, %v604
        %v606 = vrot.slane %v480, 7
        %v607 = vrot.slane %v484, 7
        %v608 = vsel %vm573, %v606, %v607
        %v609 = vrot.slane %v491, 7
        %v610 = vrot.slane %v495, 7
        %v611 = vsel %vm573, %v609, %v610
        %v612 = vrot.slane %v502, 7
        %v613 = vrot.slane %v506, 7
        %v614 = vsel %vm573, %v612, %v613
        %v615 = vrot.slane %v513, 7
        %v616 = vrot.slane %v517, 7
        %v617 = vsel %vm573, %v615, %v616
        %v618 = vrot.slane %v524, 7
        %v619 = vrot.slane %v528, 7
        %v620 = vsel %vm573, %v618, %v619
        %v621 = vrot.slane %v535, 7
        %v622 = vrot.slane %v539, 7
        %v623 = vsel %vm573, %v621, %v622
        %v674 = vsel %vm573, 0.0, %v574
        %v675 = vsel %vm573, 0.0, %v576
        %v676 = vsel %vm573, 0.0, %v579
        %v677 = vsel %vm573, 0.0, %v582
        %v678 = vsel %vm573, 0.0, %v585
        %v679 = vsel %vm573, 0.0, %v588
        %v680 = vsel %vm573, 0.0, %v591
        %v681 = vsel %vm573, 0.0, %v594
        %v682 = vsel %vm573, 0.0, %v597
        %v683 = vsel %vm573, 0.0, %v600
        %v684 = vsel %vm573, 0.0, %v603
        %v685 = vsel %vm573, 0.0, %v606
        %v686 = vsel %vm573, 0.0, %v609
        %v687 = vsel %vm573, 0.0, %v612
        %v688 = vsel %vm573, 0.0, %v615
        %v689 = vsel %vm573, 0.0, %v618
        %v690 = vsel %vm573, 0.0, %v621
        %v691 = vsel %vm573, %v574, 0.0
        %v692 = vsel %vm573, %v577, 0.0
        %v693 = vsel %vm573, %v580, 0.0
        %v694 = vsel %vm573, %v583, 0.0
        %v695 = vsel %vm573, %v586, 0.0
        %v696 = vsel %vm573, %v589, 0.0
        %v697 = vsel %vm573, %v592, 0.0
        %v698 = vsel %vm573, %v595, 0.0
        %v699 = vsel %vm573, %v598, 0.0
        %v700 = vsel %vm573, %v601, 0.0
        %v701 = vsel %vm573, %v604, 0.0
        %v702 = vsel %vm573, %v607, 0.0
        %v703 = vsel %vm573, %v610, 0.0
        %v704 = vsel %vm573, %v613, 0.0
        %v705 = vsel %vm573, %v616, 0.0
        %v706 = vsel %vm573, %v619, 0.0
        %v707 = vsel %vm573, %v622, 0.0
        %v708 = vpack.c.bf16 %v575, %v674
        %v709 = vpack.c.bf16 %v691, %v691
        %v710 = vpack.c.bf16 %v578, %v675
        %v711 = vpack.c.bf16 %v692, %v692
        %v712 = vpack.c.bf16 %v581, %v676
        %v713 = vpack.c.bf16 %v693, %v693
        %v714 = vpack.c.bf16 %v584, %v677
        %v715 = vpack.c.bf16 %v694, %v694
        %v716 = vpack.c.bf16 %v587, %v678
        %v717 = vpack.c.bf16 %v695, %v695
        %v718 = vpack.c.bf16 %v590, %v679
        %v719 = vpack.c.bf16 %v696, %v696
        %v720 = vpack.c.bf16 %v593, %v680
        %v721 = vpack.c.bf16 %v697, %v697
        %v722 = vpack.c.bf16 %v596, %v681
        %v723 = vpack.c.bf16 %v698, %v698
        %v724 = vpack.c.bf16 %v599, %v682
        %v725 = vpack.c.bf16 %v699, %v699
        %v726 = vpack.c.bf16 %v602, %v683
        %v727 = vpack.c.bf16 %v700, %v700
        %v728 = vpack.c.bf16 %v605, %v684
        %v729 = vpack.c.bf16 %v701, %v701
        %v730 = vpack.c.bf16 %v608, %v685
        %v731 = vpack.c.bf16 %v702, %v702
        %v732 = vpack.c.bf16 %v611, %v686
        %v733 = vpack.c.bf16 %v703, %v703
        %v734 = vpack.c.bf16 %v614, %v687
        %v735 = vpack.c.bf16 %v704, %v704
        %v736 = vpack.c.bf16 %v617, %v688
        %v737 = vpack.c.bf16 %v705, %v705
        %v738 = vpack.c.bf16 %v620, %v689
        %v739 = vpack.c.bf16 %v706, %v706
        %v740 = vpack.c.bf16 %v623, %v690
        %v741 = vpack.c.bf16 %v707, %v707
        %vm742 = vsmask.f32 7424
        %v744 = vshrl.u32 %v708, 16
        %v746 = vshll.u32 %v708, 16
        %v748 = vrot.slane %v746, 1
        %v749 = vor.u32 %v744, %v748
        %v751 = vshll.u32 %v709, 16
        %v753 = vrot.slane %v751, 1
        %v754 = vsel %vm742, %v749, %v753
        %v756 = vshrl.u32 %v710, 16
        %v758 = vshll.u32 %v710, 16
        %v760 = vrot.slane %v758, 1
        %v761 = vor.u32 %v756, %v760
        %v763 = vshll.u32 %v711, 16
        %v765 = vrot.slane %v763, 1
        %v766 = vsel %vm742, %v761, %v765
        %v768 = vshrl.u32 %v712, 16
        %v770 = vshll.u32 %v712, 16
        %v772 = vrot.slane %v770, 1
        %v773 = vor.u32 %v768, %v772
        %v775 = vshll.u32 %v713, 16
        %v777 = vrot.slane %v775, 1
        %v778 = vsel %vm742, %v773, %v777
        %v780 = vshrl.u32 %v714, 16
        %v782 = vshll.u32 %v714, 16
        %v784 = vrot.slane %v782, 1
        %v785 = vor.u32 %v780, %v784
        %v787 = vshll.u32 %v715, 16
        %v789 = vrot.slane %v787, 1
        %v790 = vsel %vm742, %v785, %v789
        %v792 = vshrl.u32 %v716, 16
        %v794 = vshll.u32 %v716, 16
        %v796 = vrot.slane %v794, 1
        %v797 = vor.u32 %v792, %v796
        %v799 = vshll.u32 %v717, 16
        %v801 = vrot.slane %v799, 1
        %v802 = vsel %vm742, %v797, %v801
        %v804 = vshrl.u32 %v718, 16
        %v806 = vshll.u32 %v718, 16
        %v808 = vrot.slane %v806, 1
        %v809 = vor.u32 %v804, %v808
        %v811 = vshll.u32 %v719, 16
        %v813 = vrot.slane %v811, 1
        %v814 = vsel %vm742, %v809, %v813
        %v816 = vshrl.u32 %v720, 16
        %v818 = vshll.u32 %v720, 16
        %v820 = vrot.slane %v818, 1
        %v821 = vor.u32 %v816, %v820
        %v823 = vshll.u32 %v721, 16
        %v825 = vrot.slane %v823, 1
        %v826 = vsel %vm742, %v821, %v825
        %v828 = vshrl.u32 %v722, 16
        %v830 = vshll.u32 %v722, 16
        %v832 = vrot.slane %v830, 1
        %v833 = vor.u32 %v828, %v832
        %v835 = vshll.u32 %v723, 16
        %v837 = vrot.slane %v835, 1
        %v838 = vsel %vm742, %v833, %v837
        %v840 = vshrl.u32 %v724, 16
        %v842 = vshll.u32 %v724, 16
        %v844 = vrot.slane %v842, 1
        %v845 = vor.u32 %v840, %v844
        %v847 = vshll.u32 %v725, 16
        %v849 = vrot.slane %v847, 1
        %v850 = vsel %vm742, %v845, %v849
        %v852 = vshrl.u32 %v726, 16
        %v854 = vshll.u32 %v726, 16
        %v856 = vrot.slane %v854, 1
        %v857 = vor.u32 %v852, %v856
        %v859 = vshll.u32 %v727, 16
        %v861 = vrot.slane %v859, 1
        %v862 = vsel %vm742, %v857, %v861
        %v864 = vshrl.u32 %v728, 16
        %v866 = vshll.u32 %v728, 16
        %v868 = vrot.slane %v866, 1
        %v869 = vor.u32 %v864, %v868
        %v871 = vshll.u32 %v729, 16
        %v873 = vrot.slane %v871, 1
        %v874 = vsel %vm742, %v869, %v873
        %v876 = vshrl.u32 %v730, 16
        %v878 = vshll.u32 %v730, 16
        %v880 = vrot.slane %v878, 1
        %v881 = vor.u32 %v876, %v880
        %v883 = vshll.u32 %v731, 16
        %v885 = vrot.slane %v883, 1
        %v886 = vsel %vm742, %v881, %v885
        %v888 = vshrl.u32 %v732, 16
        %v890 = vshll.u32 %v732, 16
        %v892 = vrot.slane %v890, 1
        %v893 = vor.u32 %v888, %v892
        %v895 = vshll.u32 %v733, 16
        %v897 = vrot.slane %v895, 1
        %v898 = vsel %vm742, %v893, %v897
        %v900 = vshrl.u32 %v734, 16
        %v902 = vshll.u32 %v734, 16
        %v904 = vrot.slane %v902, 1
        %v905 = vor.u32 %v900, %v904
        %v907 = vshll.u32 %v735, 16
        %v909 = vrot.slane %v907, 1
        %v910 = vsel %vm742, %v905, %v909
        %v912 = vshrl.u32 %v736, 16
        %v914 = vshll.u32 %v736, 16
        %v916 = vrot.slane %v914, 1
        %v917 = vor.u32 %v912, %v916
        %v919 = vshll.u32 %v737, 16
        %v921 = vrot.slane %v919, 1
        %v922 = vsel %vm742, %v917, %v921
        %v924 = vshrl.u32 %v738, 16
        %v926 = vshll.u32 %v738, 16
        %v928 = vrot.slane %v926, 1
        %v929 = vor.u32 %v924, %v928
        %v931 = vshll.u32 %v739, 16
        %v933 = vrot.slane %v931, 1
        %v934 = vsel %vm742, %v929, %v933
        %935 = vrot.lane.b32.xlu0 %v754, 1
        %v936 = vpop.permute.xlu0 %935
        %937 = vrot.lane.b32.xlu0 %v766, 1
        %v938 = vpop.permute.xlu0 %937
        %939 = vrot.lane.b32.xlu0 %v778, 1
        %v940 = vpop.permute.xlu0 %939
        %941 = vrot.lane.b32.xlu0 %v790, 1
        %v942 = vpop.permute.xlu0 %941
        %943 = vrot.lane.b32.xlu0 %v802, 1
        %v944 = vpop.permute.xlu0 %943
        %945 = vrot.lane.b32.xlu0 %v814, 1
        %v946 = vpop.permute.xlu0 %945
        %947 = vrot.lane.b32.xlu0 %v826, 1
        %v948 = vpop.permute.xlu0 %947
        %949 = vrot.lane.b32.xlu0 %v838, 1
        %v950 = vpop.permute.xlu0 %949
        %951 = vrot.lane.b32.xlu0 %v850, 1
        %v952 = vpop.permute.xlu0 %951
        %953 = vrot.lane.b32.xlu0 %v862, 1
        %v954 = vpop.permute.xlu0 %953
        %955 = vrot.lane.b32.xlu0 %v874, 1
        %v956 = vpop.permute.xlu0 %955
        %957 = vrot.lane.b32.xlu0 %v886, 1
        %v958 = vpop.permute.xlu0 %957
        %959 = vrot.lane.b32.xlu0 %v898, 1
        %v960 = vpop.permute.xlu0 %959
        %961 = vrot.lane.b32.xlu0 %v910, 1
        %v962 = vpop.permute.xlu0 %961
        %963 = vrot.lane.b32.xlu0 %v922, 1
        %v964 = vpop.permute.xlu0 %963
        %965 = vrot.lane.b32.xlu0 %v934, 1
        %v966 = vpop.permute.xlu0 %965
        %vm999 = vcmask 1046528
        %v1000 = vrot.slane %v708, 1
        %v1001 = vrot.slane %v709, 1
        %v1002 = vsel %vm999, %v1000, %v1001
        %v1003 = vrot.slane %v710, 1
        %v1004 = vrot.slane %v711, 1
        %v1005 = vsel %vm999, %v1003, %v1004
        %v1006 = vrot.slane %v712, 1
        %v1007 = vrot.slane %v713, 1
        %v1008 = vsel %vm999, %v1006, %v1007
        %v1009 = vrot.slane %v714, 1
        %v1010 = vrot.slane %v715, 1
        %v1011 = vsel %vm999, %v1009, %v1010
        %v1012 = vrot.slane %v716, 1
        %v1013 = vrot.slane %v717, 1
        %v1014 = vsel %vm999, %v1012, %v1013
        %v1015 = vrot.slane %v718, 1
        %v1016 = vrot.slane %v719, 1
        %v1017 = vsel %vm999, %v1015, %v1016
        %v1018 = vrot.slane %v720, 1
        %v1019 = vrot.slane %v721, 1
        %v1020 = vsel %vm999, %v1018, %v1019
        %v1021 = vrot.slane %v722, 1
        %v1022 = vrot.slane %v723, 1
        %v1023 = vsel %vm999, %v1021, %v1022
        %v1024 = vrot.slane %v724, 1
        %v1025 = vrot.slane %v725, 1
        %v1026 = vsel %vm999, %v1024, %v1025
        %v1027 = vrot.slane %v726, 1
        %v1028 = vrot.slane %v727, 1
        %v1029 = vsel %vm999, %v1027, %v1028
        %v1030 = vrot.slane %v728, 1
        %v1031 = vrot.slane %v729, 1
        %v1032 = vsel %vm999, %v1030, %v1031
        %v1033 = vrot.slane %v730, 1
        %v1034 = vrot.slane %v731, 1
        %v1035 = vsel %vm999, %v1033, %v1034
        %v1036 = vrot.slane %v732, 1
        %v1037 = vrot.slane %v733, 1
        %v1038 = vsel %vm999, %v1036, %v1037
        %v1039 = vrot.slane %v734, 1
        %v1040 = vrot.slane %v735, 1
        %v1041 = vsel %vm999, %v1039, %v1040
        %v1042 = vrot.slane %v736, 1
        %v1043 = vrot.slane %v737, 1
        %v1044 = vsel %vm999, %v1042, %v1043
        %v1045 = vrot.slane %v738, 1
        %v1046 = vrot.slane %v739, 1
        %v1047 = vsel %vm999, %v1045, %v1046
        %1048 = vrot.lane.b32.xlu0 %v1002, 2
        %v1049 = vpop.permute.xlu0 %1048
        %1050 = vrot.lane.b32.xlu0 %v1005, 2
        %v1051 = vpop.permute.xlu0 %1050
        %1052 = vrot.lane.b32.xlu0 %v1008, 2
        %v1053 = vpop.permute.xlu0 %1052
        %1054 = vrot.lane.b32.xlu0 %v1011, 2
        %v1055 = vpop.permute.xlu0 %1054
        %1056 = vrot.lane.b32.xlu0 %v1014, 2
        %v1057 = vpop.permute.xlu0 %1056
        %1058 = vrot.lane.b32.xlu0 %v1017, 2
        %v1059 = vpop.permute.xlu0 %1058
        %1060 = vrot.lane.b32.xlu0 %v1020, 2
        %v1061 = vpop.permute.xlu0 %1060
        %1062 = vrot.lane.b32.xlu0 %v1023, 2
        %v1063 = vpop.permute.xlu0 %1062
        %1064 = vrot.lane.b32.xlu0 %v1026, 2
        %v1065 = vpop.permute.xlu0 %1064
        %1066 = vrot.lane.b32.xlu0 %v1029, 2
        %v1067 = vpop.permute.xlu0 %1066
        %1068 = vrot.lane.b32.xlu0 %v1032, 2
        %v1069 = vpop.permute.xlu0 %1068
        %1070 = vrot.lane.b32.xlu0 %v1035, 2
        %v1071 = vpop.permute.xlu0 %1070
        %1072 = vrot.lane.b32.xlu0 %v1038, 2
        %v1073 = vpop.permute.xlu0 %1072
        %1074 = vrot.lane.b32.xlu0 %v1041, 2
        %v1075 = vpop.permute.xlu0 %1074
        %1076 = vrot.lane.b32.xlu0 %v1044, 2
        %v1077 = vpop.permute.xlu0 %1076
        %1078 = vrot.lane.b32.xlu0 %v1047, 2
        %v1079 = vpop.permute.xlu0 %1078
        %1081 = vrot.lane.b32.xlu0 %v710, 3
        %v1082 = vpop.permute.xlu0 %1081
        %1083 = vrot.lane.b32.xlu0 %v712, 3
        %v1084 = vpop.permute.xlu0 %1083
        %1085 = vrot.lane.b32.xlu0 %v714, 3
        %v1086 = vpop.permute.xlu0 %1085
        %1087 = vrot.lane.b32.xlu0 %v716, 3
        %v1088 = vpop.permute.xlu0 %1087
        %1089 = vrot.lane.b32.xlu0 %v718, 3
        %v1090 = vpop.permute.xlu0 %1089
        %1091 = vrot.lane.b32.xlu0 %v720, 3
        %v1092 = vpop.permute.xlu0 %1091
        %1093 = vrot.lane.b32.xlu0 %v722, 3
        %v1094 = vpop.permute.xlu0 %1093
        %1095 = vrot.lane.b32.xlu0 %v724, 3
        %v1096 = vpop.permute.xlu0 %1095
        %1097 = vrot.lane.b32.xlu0 %v726, 3
        %v1098 = vpop.permute.xlu0 %1097
        %1099 = vrot.lane.b32.xlu0 %v728, 3
        %v1100 = vpop.permute.xlu0 %1099
        %1101 = vrot.lane.b32.xlu0 %v730, 3
        %v1102 = vpop.permute.xlu0 %1101
        %1103 = vrot.lane.b32.xlu0 %v732, 3
        %v1104 = vpop.permute.xlu0 %1103
        %1105 = vrot.lane.b32.xlu0 %v734, 3
        %v1106 = vpop.permute.xlu0 %1105
        %1107 = vrot.lane.b32.xlu0 %v736, 3
        %v1108 = vpop.permute.xlu0 %1107
        %1109 = vrot.lane.b32.xlu0 %v738, 3
        %v1110 = vpop.permute.xlu0 %1109
        %1111 = vrot.lane.b32.xlu0 %v740, 3
        %v1112 = vpop.permute.xlu0 %1111
        %v1114 = vshrl.u32 %v740, 16
        %v1116 = vshll.u32 %v740, 16
        %v1118 = vrot.slane %v1116, 1
        %v1119 = vor.u32 %v1114, %v1118
        %v1121 = vshll.u32 %v741, 16
        %v1123 = vrot.slane %v1121, 1
        %v1124 = vsel %vm742, %v1119, %v1123
        %1125 = vrot.lane.b32.xlu0 %v766, 4
        %v1126 = vpop.permute.xlu0 %1125
        %1127 = vrot.lane.b32.xlu0 %v778, 4
        %v1128 = vpop.permute.xlu0 %1127
        %1129 = vrot.lane.b32.xlu0 %v790, 4
        %v1130 = vpop.permute.xlu0 %1129
        %1131 = vrot.lane.b32.xlu0 %v802, 4
        %v1132 = vpop.permute.xlu0 %1131
        %1133 = vrot.lane.b32.xlu0 %v814, 4
        %v1134 = vpop.permute.xlu0 %1133
        %1135 = vrot.lane.b32.xlu0 %v826, 4
        %v1136 = vpop.permute.xlu0 %1135
        %1137 = vrot.lane.b32.xlu0 %v838, 4
        %v1138 = vpop.permute.xlu0 %1137
        %1139 = vrot.lane.b32.xlu0 %v850, 4
        %v1140 = vpop.permute.xlu0 %1139
        %1141 = vrot.lane.b32.xlu0 %v862, 4
        %v1142 = vpop.permute.xlu0 %1141
        %1143 = vrot.lane.b32.xlu0 %v874, 4
        %v1144 = vpop.permute.xlu0 %1143
        %1145 = vrot.lane.b32.xlu0 %v886, 4
        %v1146 = vpop.permute.xlu0 %1145
        %1147 = vrot.lane.b32.xlu0 %v898, 4
        %v1148 = vpop.permute.xlu0 %1147
        %1149 = vrot.lane.b32.xlu0 %v910, 4
        %v1150 = vpop.permute.xlu0 %1149
        %1151 = vrot.lane.b32.xlu0 %v922, 4
        %v1152 = vpop.permute.xlu0 %1151
        %1153 = vrot.lane.b32.xlu0 %v934, 4
        %v1154 = vpop.permute.xlu0 %1153
        %1155 = vrot.lane.b32.xlu0 %v1124, 4
        %v1156 = vpop.permute.xlu0 %1155
        %v1158 = vrot.slane %v740, 1
        %v1159 = vrot.slane %v741, 1
        %v1160 = vsel %vm999, %v1158, %v1159
        %1161 = vrot.lane.b32.xlu0 %v1005, 5
        %v1162 = vpop.permute.xlu0 %1161
        %1163 = vrot.lane.b32.xlu0 %v1008, 5
        %v1164 = vpop.permute.xlu0 %1163
        %1165 = vrot.lane.b32.xlu0 %v1011, 5
        %v1166 = vpop.permute.xlu0 %1165
        %1167 = vrot.lane.b32.xlu0 %v1014, 5
        %v1168 = vpop.permute.xlu0 %1167
        %1169 = vrot.lane.b32.xlu0 %v1017, 5
        %v1170 = vpop.permute.xlu0 %1169
        %1171 = vrot.lane.b32.xlu0 %v1020, 5
        %v1172 = vpop.permute.xlu0 %1171
        %1173 = vrot.lane.b32.xlu0 %v1023, 5
        %v1174 = vpop.permute.xlu0 %1173
        %1175 = vrot.lane.b32.xlu0 %v1026, 5
        %v1176 = vpop.permute.xlu0 %1175
        %1177 = vrot.lane.b32.xlu0 %v1029, 5
        %v1178 = vpop.permute.xlu0 %1177
        %1179 = vrot.lane.b32.xlu0 %v1032, 5
        %v1180 = vpop.permute.xlu0 %1179
        %1181 = vrot.lane.b32.xlu0 %v1035, 5
        %v1182 = vpop.permute.xlu0 %1181
        %1183 = vrot.lane.b32.xlu0 %v1038, 5
        %v1184 = vpop.permute.xlu0 %1183
        %1185 = vrot.lane.b32.xlu0 %v1041, 5
        %v1186 = vpop.permute.xlu0 %1185
        %1187 = vrot.lane.b32.xlu0 %v1044, 5
        %v1188 = vpop.permute.xlu0 %1187
        %1189 = vrot.lane.b32.xlu0 %v1047, 5
        %v1190 = vpop.permute.xlu0 %1189
        %1191 = vrot.lane.b32.xlu0 %v1160, 5
        %v1192 = vpop.permute.xlu0 %1191
        %1193 = vrot.lane.b32.xlu0 %v712, 6
        %v1194 = vpop.permute.xlu0 %1193
        %1195 = vrot.lane.b32.xlu0 %v714, 6
        %v1196 = vpop.permute.xlu0 %1195
        %1197 = vrot.lane.b32.xlu0 %v716, 6
        %v1198 = vpop.permute.xlu0 %1197
        %1199 = vrot.lane.b32.xlu0 %v718, 6
        %v1200 = vpop.permute.xlu0 %1199
        %1201 = vrot.lane.b32.xlu0 %v720, 6
        %v1202 = vpop.permute.xlu0 %1201
        %1203 = vrot.lane.b32.xlu0 %v722, 6
        %v1204 = vpop.permute.xlu0 %1203
        %1205 = vrot.lane.b32.xlu0 %v724, 6
        %v1206 = vpop.permute.xlu0 %1205
        %1207 = vrot.lane.b32.xlu0 %v726, 6
        %v1208 = vpop.permute.xlu0 %1207
        %1209 = vrot.lane.b32.xlu0 %v728, 6
        %v1210 = vpop.permute.xlu0 %1209
        %1211 = vrot.lane.b32.xlu0 %v730, 6
        %v1212 = vpop.permute.xlu0 %1211
        %1213 = vrot.lane.b32.xlu0 %v732, 6
        %v1214 = vpop.permute.xlu0 %1213
        %1215 = vrot.lane.b32.xlu0 %v734, 6
        %v1216 = vpop.permute.xlu0 %1215
        %1217 = vrot.lane.b32.xlu0 %v736, 6
        %v1218 = vpop.permute.xlu0 %1217
        %1219 = vrot.lane.b32.xlu0 %v738, 6
        %v1220 = vpop.permute.xlu0 %1219
        %1221 = vrot.lane.b32.xlu0 %v740, 6
        %v1222 = vpop.permute.xlu0 %1221
        %1223 = vrot.lane.b32.xlu0 %v708, 6
        %v1224 = vpop.permute.xlu0 %1223
        %1225 = vrot.lane.b32.xlu0 %v778, 7
        %v1226 = vpop.permute.xlu0 %1225
        %1227 = vrot.lane.b32.xlu0 %v790, 7
        %v1228 = vpop.permute.xlu0 %1227
        %1229 = vrot.lane.b32.xlu0 %v802, 7
        %v1230 = vpop.permute.xlu0 %1229
        %1231 = vrot.lane.b32.xlu0 %v814, 7
        %v1232 = vpop.permute.xlu0 %1231
        %1233 = vrot.lane.b32.xlu0 %v826, 7
        %v1234 = vpop.permute.xlu0 %1233
        %1235 = vrot.lane.b32.xlu0 %v838, 7
        %v1236 = vpop.permute.xlu0 %1235
        %1237 = vrot.lane.b32.xlu0 %v850, 7
        %v1238 = vpop.permute.xlu0 %1237
        %1239 = vrot.lane.b32.xlu0 %v862, 7
        %v1240 = vpop.permute.xlu0 %1239
        %1241 = vrot.lane.b32.xlu0 %v874, 7
        %v1242 = vpop.permute.xlu0 %1241
        %1243 = vrot.lane.b32.xlu0 %v886, 7
        %v1244 = vpop.permute.xlu0 %1243
        %1245 = vrot.lane.b32.xlu0 %v898, 7
        %v1246 = vpop.permute.xlu0 %1245
        %1247 = vrot.lane.b32.xlu0 %v910, 7
        %v1248 = vpop.permute.xlu0 %1247
        %1249 = vrot.lane.b32.xlu0 %v922, 7
        %v1250 = vpop.permute.xlu0 %1249
        %1251 = vrot.lane.b32.xlu0 %v934, 7
        %v1252 = vpop.permute.xlu0 %1251
        %1253 = vrot.lane.b32.xlu0 %v1124, 7
        %v1254 = vpop.permute.xlu0 %1253
        %1255 = vrot.lane.b32.xlu0 %v754, 7
        %v1256 = vpop.permute.xlu0 %1255
        %1257 = vrot.lane.b32.xlu0 %v1008, 8
        %v1258 = vpop.permute.xlu0 %1257
        %1259 = vrot.lane.b32.xlu0 %v1011, 8
        %v1260 = vpop.permute.xlu0 %1259
        %1261 = vrot.lane.b32.xlu0 %v1014, 8
        %v1262 = vpop.permute.xlu0 %1261
        %1263 = vrot.lane.b32.xlu0 %v1017, 8
        %v1264 = vpop.permute.xlu0 %1263
        %1265 = vrot.lane.b32.xlu0 %v1020, 8
        %v1266 = vpop.permute.xlu0 %1265
        %1267 = vrot.lane.b32.xlu0 %v1023, 8
        %v1268 = vpop.permute.xlu0 %1267
        %1269 = vrot.lane.b32.xlu0 %v1026, 8
        %v1270 = vpop.permute.xlu0 %1269
        %1271 = vrot.lane.b32.xlu0 %v1029, 8
        %v1272 = vpop.permute.xlu0 %1271
        %1273 = vrot.lane.b32.xlu0 %v1032, 8
        %v1274 = vpop.permute.xlu0 %1273
        %1275 = vrot.lane.b32.xlu0 %v1035, 8
        %v1276 = vpop.permute.xlu0 %1275
        %1277 = vrot.lane.b32.xlu0 %v1038, 8
        %v1278 = vpop.permute.xlu0 %1277
        %1279 = vrot.lane.b32.xlu0 %v1041, 8
        %v1280 = vpop.permute.xlu0 %1279
        %1281 = vrot.lane.b32.xlu0 %v1044, 8
        %v1282 = vpop.permute.xlu0 %1281
        %1283 = vrot.lane.b32.xlu0 %v1047, 8
        %v1284 = vpop.permute.xlu0 %1283
        %1285 = vrot.lane.b32.xlu0 %v1160, 8
        %v1286 = vpop.permute.xlu0 %1285
        %1287 = vrot.lane.b32.xlu0 %v1002, 8
        %v1288 = vpop.permute.xlu0 %1287
        %vm1289 = vcmask 7168
        %v1291 = vsel %vm1289, %v708, %v936
        %v1293 = vsel %vm1289, %v710, %v938
        %v1295 = vsel %vm1289, %v712, %v940
        %v1297 = vsel %vm1289, %v714, %v942
        %v1299 = vsel %vm1289, %v716, %v944
        %v1301 = vsel %vm1289, %v718, %v946
        %v1303 = vsel %vm1289, %v720, %v948
        %v1305 = vsel %vm1289, %v722, %v950
        %v1307 = vsel %vm1289, %v724, %v952
        %v1309 = vsel %vm1289, %v726, %v954
        %v1311 = vsel %vm1289, %v728, %v956
        %v1313 = vsel %vm1289, %v730, %v958
        %v1315 = vsel %vm1289, %v732, %v960
        %v1317 = vsel %vm1289, %v734, %v962
        %v1319 = vsel %vm1289, %v736, %v964
        %v1321 = vsel %vm1289, %v738, %v966
        %vm1322 = vcmask 15360
        %v1324 = vsel %vm1322, %v1291, %v1049
        %v1326 = vsel %vm1322, %v1293, %v1051
        %v1328 = vsel %vm1322, %v1295, %v1053
        %v1330 = vsel %vm1322, %v1297, %v1055
        %v1332 = vsel %vm1322, %v1299, %v1057
        %v1334 = vsel %vm1322, %v1301, %v1059
        %v1336 = vsel %vm1322, %v1303, %v1061
        %v1338 = vsel %vm1322, %v1305, %v1063
        %v1340 = vsel %vm1322, %v1307, %v1065
        %v1342 = vsel %vm1322, %v1309, %v1067
        %v1344 = vsel %vm1322, %v1311, %v1069
        %v1346 = vsel %vm1322, %v1313, %v1071
        %v1348 = vsel %vm1322, %v1315, %v1073
        %v1350 = vsel %vm1322, %v1317, %v1075
        %v1352 = vsel %vm1322, %v1319, %v1077
        %v1354 = vsel %vm1322, %v1321, %v1079
        %vm1355 = vcmask 23552
        %v1357 = vsel %vm1355, %v1324, %v1082
        %v1359 = vsel %vm1355, %v1326, %v1084
        %v1361 = vsel %vm1355, %v1328, %v1086
        %v1363 = vsel %vm1355, %v1330, %v1088
        %v1365 = vsel %vm1355, %v1332, %v1090
        %v1367 = vsel %vm1355, %v1334, %v1092
        %v1369 = vsel %vm1355, %v1336, %v1094
        %v1371 = vsel %vm1355, %v1338, %v1096
        %v1373 = vsel %vm1355, %v1340, %v1098
        %v1375 = vsel %vm1355, %v1342, %v1100
        %v1377 = vsel %vm1355, %v1344, %v1102
        %v1379 = vsel %vm1355, %v1346, %v1104
        %v1381 = vsel %vm1355, %v1348, %v1106
        %v1383 = vsel %vm1355, %v1350, %v1108
        %v1385 = vsel %vm1355, %v1352, %v1110
        %v1387 = vsel %vm1355, %v1354, %v1112
        %vm1388 = vcmask 31744
        %v1390 = vsel %vm1388, %v1357, %v1126
        %v1392 = vsel %vm1388, %v1359, %v1128
        %v1394 = vsel %vm1388, %v1361, %v1130
        %v1396 = vsel %vm1388, %v1363, %v1132
        %v1398 = vsel %vm1388, %v1365, %v1134
        %v1400 = vsel %vm1388, %v1367, %v1136
        %v1402 = vsel %vm1388, %v1369, %v1138
        %v1404 = vsel %vm1388, %v1371, %v1140
        %v1406 = vsel %vm1388, %v1373, %v1142
        %v1408 = vsel %vm1388, %v1375, %v1144
        %v1410 = vsel %vm1388, %v1377, %v1146
        %v1412 = vsel %vm1388, %v1379, %v1148
        %v1414 = vsel %vm1388, %v1381, %v1150
        %v1416 = vsel %vm1388, %v1383, %v1152
        %v1418 = vsel %vm1388, %v1385, %v1154
        %v1420 = vsel %vm1388, %v1387, %v1156
        %vm1421 = vcmask 39936
        %v1423 = vsel %vm1421, %v1390, %v1162
        %v1425 = vsel %vm1421, %v1392, %v1164
        %v1427 = vsel %vm1421, %v1394, %v1166
        %v1429 = vsel %vm1421, %v1396, %v1168
        %v1431 = vsel %vm1421, %v1398, %v1170
        %v1433 = vsel %vm1421, %v1400, %v1172
        %v1435 = vsel %vm1421, %v1402, %v1174
        %v1437 = vsel %vm1421, %v1404, %v1176
        %v1439 = vsel %vm1421, %v1406, %v1178
        %v1441 = vsel %vm1421, %v1408, %v1180
        %v1443 = vsel %vm1421, %v1410, %v1182
        %v1445 = vsel %vm1421, %v1412, %v1184
        %v1447 = vsel %vm1421, %v1414, %v1186
        %v1449 = vsel %vm1421, %v1416, %v1188
        %v1451 = vsel %vm1421, %v1418, %v1190
        %v1453 = vsel %vm1421, %v1420, %v1192
        %vm1454 = vcmask 48128
        %v1456 = vsel %vm1454, %v1423, %v1194
        %v1458 = vsel %vm1454, %v1425, %v1196
        %v1460 = vsel %vm1454, %v1427, %v1198
        %v1462 = vsel %vm1454, %v1429, %v1200
        %v1464 = vsel %vm1454, %v1431, %v1202
        %v1466 = vsel %vm1454, %v1433, %v1204
        %v1468 = vsel %vm1454, %v1435, %v1206
        %v1470 = vsel %vm1454, %v1437, %v1208
        %v1472 = vsel %vm1454, %v1439, %v1210
        %v1474 = vsel %vm1454, %v1441, %v1212
        %v1476 = vsel %vm1454, %v1443, %v1214
        %v1478 = vsel %vm1454, %v1445, %v1216
        %v1480 = vsel %vm1454, %v1447, %v1218
        %v1482 = vsel %vm1454, %v1449, %v1220
        %v1484 = vsel %vm1454, %v1451, %v1222
        %v1486 = vsel %vm1454, %v1453, %v1224
        %vm1487 = vcmask 56320
        %v1489 = vsel %vm1487, %v1456, %v1226
        %v1491 = vsel %vm1487, %v1458, %v1228
        %v1493 = vsel %vm1487, %v1460, %v1230
        %v1495 = vsel %vm1487, %v1462, %v1232
        %v1497 = vsel %vm1487, %v1464, %v1234
        %v1499 = vsel %vm1487, %v1466, %v1236
        %v1501 = vsel %vm1487, %v1468, %v1238
        %v1503 = vsel %vm1487, %v1470, %v1240
        %v1505 = vsel %vm1487, %v1472, %v1242
        %v1507 = vsel %vm1487, %v1474, %v1244
        %v1509 = vsel %vm1487, %v1476, %v1246
        %v1511 = vsel %vm1487, %v1478, %v1248
        %v1513 = vsel %vm1487, %v1480, %v1250
        %v1515 = vsel %vm1487, %v1482, %v1252
        %v1517 = vsel %vm1487, %v1484, %v1254
        %v1519 = vsel %vm1487, %v1486, %v1256
        %vm1520 = vcmask 64512
        %v1522 = vsel %vm1520, %v1489, %v1258
        %v1524 = vsel %vm1520, %v1491, %v1260
        %v1526 = vsel %vm1520, %v1493, %v1262
        %v1528 = vsel %vm1520, %v1495, %v1264
        %v1530 = vsel %vm1520, %v1497, %v1266
        %v1532 = vsel %vm1520, %v1499, %v1268
        %v1534 = vsel %vm1520, %v1501, %v1270
        %v1536 = vsel %vm1520, %v1503, %v1272
        %v1538 = vsel %vm1520, %v1505, %v1274
        %v1540 = vsel %vm1520, %v1507, %v1276
        %v1542 = vsel %vm1520, %v1509, %v1278
        %v1544 = vsel %vm1520, %v1511, %v1280
        %v1546 = vsel %vm1520, %v1513, %v1282
        %v1548 = vsel %vm1520, %v1515, %v1284
        %v1550 = vsel %vm1520, %v1517, %v1286
        %v1552 = vsel %vm1520, %v1519, %v1288
        %v1554 = vlaneseq
        %v1555 = vshrl.u32 %v1554, 7
        %v1556 = vsub.s32 0, %v1555
        %v1557 = vrot.slane %v363, %v1556
        %v1561 = vunpack.c.l.b16 %v361
        %v1562 = vunpack.c.l.b16 %v362
        %v1563 = vpack.c.b16 %v1562, %v1561
        %vm1564 = vcmask 72704
        %v1565 = vsel %vm1564, %v1522, 0
        %v1567 = vsel %vm1564, %v1524, 0
        %v1569 = vsel %vm1564, %v1526, 0
        %v1571 = vsel %vm1564, %v1528, 0
        %v1573 = vsel %vm1564, %v1530, 0
        %v1575 = vsel %vm1564, %v1532, 0
        %v1577 = vsel %vm1564, %v1534, 0
        %v1579 = vsel %vm1564, %v1536, 0
        %v1581 = vsel %vm1564, %v1538, 0
        %v1583 = vsel %vm1564, %v1540, 0
        %v1585 = vsel %vm1564, %v1542, 0
        %v1587 = vsel %vm1564, %v1544, 0
        %v1589 = vsel %vm1564, %v1546, 0
        %v1591 = vsel %vm1564, %v1548, 0
        %v1593 = vsel %vm1564, %v1550, 0
        %v1595 = vsel %vm1564, %v1552, 0
        %vm1597 = vcmask 1043456
        %vm1598 = vcmask 1044480
        %v1599 = vsel %vm1597, 4294967295, 65535
        %v1600 = vsel %vm1598, %v1599, 0
        %v1602 = vand.u32 %v1563, %v1600
        %1604 = vmatprep.subr.bf16.mxu0 0
        %1605 = vmatpush1.bf16.msra.mxu0 0
        %1606 = vmatprep.subr.bf16.mxu0 0
        %1607 = vmatpush1.bf16.msra.mxu0 0
        %1608 = vmatprep.subr.bf16.mxu0 0
        %1609 = vmatpush1.bf16.msra.mxu0 0
        %1610 = vmatprep.subr.bf16.mxu0 0
        %1611 = vmatpush1.bf16.msra.mxu0 0
        %1612 = vmatprep.subr.bf16.mxu0 0
        %1613 = vmatpush1.bf16.msra.mxu0 0
        %1614 = vmatprep.subr.bf16.mxu0 0
        %1615 = vmatpush1.bf16.msra.mxu0 0
        %1616 = vmatprep.subr.bf16.mxu0 0
        %1617 = vmatpush1.bf16.msra.mxu0 0
        %1618 = vmatprep.subr.bf16.mxu0 0
        %1619 = vmatpush1.bf16.msra.mxu0 %v1602
        %1620 = vmatprep.subr.bf16.mxu0 0
        %1621 = vmatpush2.bf16.msra.mxu0 0
        %1622 = vmatprep.subr.bf16.mxu0 0
        %1623 = vmatpush2.bf16.msra.mxu0 0
        %1624 = vmatprep.subr.bf16.mxu0 0
        %1625 = vmatpush2.bf16.msra.mxu0 0
        %1626 = vmatprep.subr.bf16.mxu0 0
        %1627 = vmatpush2.bf16.msra.mxu0 0
        %1628 = vmatprep.subr.bf16.mxu0 0
        %1629 = vmatpush2.bf16.msra.mxu0 0
        %1630 = vmatprep.subr.bf16.mxu0 0
        %1631 = vmatpush2.bf16.msra.mxu0 0
        %1632 = vmatprep.subr.bf16.mxu0 0
        %1633 = vmatpush2.bf16.msra.mxu0 0
        %1634 = vmatprep.subr.bf16.mxu0 0
        %1635 = vmatpush2.bf16.msra.mxu0 0
        %1636 = vmatprep.mubr.bf16.mxu0 0
        %1637 = vmatmul.mubr.bf16.gmra.mxu0 %v1565
        %v1638 = vpop.f32.mrf.mxu0
        %v1639 = vadd.f32 %v1557, %v1638
        %v1640 = vpop.f32.mrf.mxu0
        %v1641 = vpop.f32.mrf.mxu0
        %v1642 = vadd.f32 %v1557, %v1641
        %v1643 = vpop.f32.mrf.mxu0
        %1644 = vmatprep.mubr.bf16.mxu0 0
        %1645 = vmatmul.mubr.bf16.gmra.mxu0 %v1567
        %v1646 = vpop.f32.mrf.mxu0
        %v1647 = vadd.f32 %v1557, %v1646
        %v1648 = vpop.f32.mrf.mxu0
        %v1649 = vpop.f32.mrf.mxu0
        %v1650 = vadd.f32 %v1557, %v1649
        %v1651 = vpop.f32.mrf.mxu0
        %1652 = vmatprep.mubr.bf16.mxu0 0
        %1653 = vmatmul.mubr.bf16.gmra.mxu0 %v1569
        %v1654 = vpop.f32.mrf.mxu0
        %v1655 = vadd.f32 %v1557, %v1654
        %v1656 = vpop.f32.mrf.mxu0
        %v1657 = vpop.f32.mrf.mxu0
        %v1658 = vadd.f32 %v1557, %v1657
        %v1659 = vpop.f32.mrf.mxu0
        %1660 = vmatprep.mubr.bf16.mxu0 0
        %1661 = vmatmul.mubr.bf16.gmra.mxu0 %v1571
        %v1662 = vpop.f32.mrf.mxu0
        %v1663 = vadd.f32 %v1557, %v1662
        %v1664 = vpop.f32.mrf.mxu0
        %v1665 = vpop.f32.mrf.mxu0
        %v1666 = vadd.f32 %v1557, %v1665
        %v1667 = vpop.f32.mrf.mxu0
        %1668 = vmatprep.mubr.bf16.mxu0 0
        %1669 = vmatmul.mubr.bf16.gmra.mxu0 %v1573
        %v1670 = vpop.f32.mrf.mxu0
        %v1671 = vadd.f32 %v1557, %v1670
        %v1672 = vpop.f32.mrf.mxu0
        %v1673 = vpop.f32.mrf.mxu0
        %v1674 = vadd.f32 %v1557, %v1673
        %v1675 = vpop.f32.mrf.mxu0
        %1676 = vmatprep.mubr.bf16.mxu0 0
        %1677 = vmatmul.mubr.bf16.gmra.mxu0 %v1575
        %v1678 = vpop.f32.mrf.mxu0
        %v1679 = vadd.f32 %v1557, %v1678
        %v1680 = vpop.f32.mrf.mxu0
        %v1681 = vpop.f32.mrf.mxu0
        %v1682 = vadd.f32 %v1557, %v1681
        %v1683 = vpop.f32.mrf.mxu0
        %1684 = vmatprep.mubr.bf16.mxu0 0
        %1685 = vmatmul.mubr.bf16.gmra.mxu0 %v1577
        %v1686 = vpop.f32.mrf.mxu0
        %v1687 = vadd.f32 %v1557, %v1686
        %v1688 = vpop.f32.mrf.mxu0
        %v1689 = vpop.f32.mrf.mxu0
        %v1690 = vadd.f32 %v1557, %v1689
        %v1691 = vpop.f32.mrf.mxu0
        %1692 = vmatprep.mubr.bf16.mxu0 0
        %1693 = vmatmul.mubr.bf16.gmra.mxu0 %v1579
        %v1694 = vpop.f32.mrf.mxu0
        %v1695 = vadd.f32 %v1557, %v1694
        %v1696 = vpop.f32.mrf.mxu0
        %v1697 = vpop.f32.mrf.mxu0
        %v1698 = vadd.f32 %v1557, %v1697
        %v1699 = vpop.f32.mrf.mxu0
        %1700 = vmatprep.mubr.bf16.mxu0 0
        %1701 = vmatmul.mubr.bf16.gmra.mxu0 %v1581
        %v1702 = vpop.f32.mrf.mxu0
        %v1703 = vadd.f32 %v1557, %v1702
        %v1704 = vpop.f32.mrf.mxu0
        %v1705 = vpop.f32.mrf.mxu0
        %v1706 = vadd.f32 %v1557, %v1705
        %v1707 = vpop.f32.mrf.mxu0
        %1708 = vmatprep.mubr.bf16.mxu0 0
        %1709 = vmatmul.mubr.bf16.gmra.mxu0 %v1583
        %v1710 = vpop.f32.mrf.mxu0
        %v1711 = vadd.f32 %v1557, %v1710
        %v1712 = vpop.f32.mrf.mxu0
        %v1713 = vpop.f32.mrf.mxu0
        %v1714 = vadd.f32 %v1557, %v1713
        %v1715 = vpop.f32.mrf.mxu0
        %1716 = vmatprep.mubr.bf16.mxu0 0
        %1717 = vmatmul.mubr.bf16.gmra.mxu0 %v1585
        %v1718 = vpop.f32.mrf.mxu0
        %v1719 = vadd.f32 %v1557, %v1718
        %v1720 = vpop.f32.mrf.mxu0
        %v1721 = vpop.f32.mrf.mxu0
        %v1722 = vadd.f32 %v1557, %v1721
        %v1723 = vpop.f32.mrf.mxu0
        %1724 = vmatprep.mubr.bf16.mxu0 0
        %1725 = vmatmul.mubr.bf16.gmra.mxu0 %v1587
        %v1726 = vpop.f32.mrf.mxu0
        %v1727 = vadd.f32 %v1557, %v1726
        %v1728 = vpop.f32.mrf.mxu0
        %v1729 = vpop.f32.mrf.mxu0
        %v1730 = vadd.f32 %v1557, %v1729
        %v1731 = vpop.f32.mrf.mxu0
        %1732 = vmatprep.mubr.bf16.mxu0 0
        %1733 = vmatmul.mubr.bf16.gmra.mxu0 %v1589
        %v1734 = vpop.f32.mrf.mxu0
        %v1735 = vadd.f32 %v1557, %v1734
        %v1736 = vpop.f32.mrf.mxu0
        %v1737 = vpop.f32.mrf.mxu0
        %v1738 = vadd.f32 %v1557, %v1737
        %v1739 = vpop.f32.mrf.mxu0
        %1740 = vmatprep.mubr.bf16.mxu0 0
        %1741 = vmatmul.mubr.bf16.gmra.mxu0 %v1591
        %v1742 = vpop.f32.mrf.mxu0
        %v1743 = vadd.f32 %v1557, %v1742
        %v1744 = vpop.f32.mrf.mxu0
        %v1745 = vpop.f32.mrf.mxu0
        %v1746 = vadd.f32 %v1557, %v1745
        %v1747 = vpop.f32.mrf.mxu0
        %1748 = vmatprep.mubr.bf16.mxu0 0
        %1749 = vmatmul.mubr.bf16.gmra.mxu0 %v1593
        %v1750 = vpop.f32.mrf.mxu0
        %v1751 = vadd.f32 %v1557, %v1750
        %v1752 = vpop.f32.mrf.mxu0
        %v1753 = vpop.f32.mrf.mxu0
        %v1754 = vadd.f32 %v1557, %v1753
        %v1755 = vpop.f32.mrf.mxu0
        %1756 = vmatprep.mubr.bf16.mxu0 0
        %1757 = vmatmul.mubr.bf16.gmra.mxu0 %v1595
        %v1758 = vpop.f32.mrf.mxu0
        %v1759 = vadd.f32 %v1557, %v1758
        %v1760 = vpop.f32.mrf.mxu0
        %v1761 = vpop.f32.mrf.mxu0
        %v1762 = vadd.f32 %v1557, %v1761
        %v1763 = vpop.f32.mrf.mxu0
        %1764 = vdwg.mxu0
        %v1765 = vmax.f32 %v1639, 0.0
        %v1766 = vmax.f32 %v1642, 0.0
        %v1767 = vmax.f32 %v1647, 0.0
        %v1768 = vmax.f32 %v1650, 0.0
        %v1769 = vmax.f32 %v1655, 0.0
        %v1770 = vmax.f32 %v1658, 0.0
        %v1771 = vmax.f32 %v1663, 0.0
        %v1772 = vmax.f32 %v1666, 0.0
        %v1773 = vmax.f32 %v1671, 0.0
        %v1774 = vmax.f32 %v1674, 0.0
        %v1775 = vmax.f32 %v1679, 0.0
        %v1776 = vmax.f32 %v1682, 0.0
        %v1777 = vmax.f32 %v1687, 0.0
        %v1778 = vmax.f32 %v1690, 0.0
        %v1779 = vmax.f32 %v1695, 0.0
        %v1780 = vmax.f32 %v1698, 0.0
        %v1781 = vmax.f32 %v1703, 0.0
        %v1782 = vmax.f32 %v1706, 0.0
        %v1783 = vmax.f32 %v1711, 0.0
        %v1784 = vmax.f32 %v1714, 0.0
        %v1785 = vmax.f32 %v1719, 0.0
        %v1786 = vmax.f32 %v1722, 0.0
        %v1787 = vmax.f32 %v1727, 0.0
        %v1788 = vmax.f32 %v1730, 0.0
        %v1789 = vmax.f32 %v1735, 0.0
        %v1790 = vmax.f32 %v1738, 0.0
        %v1791 = vmax.f32 %v1743, 0.0
        %v1792 = vmax.f32 %v1746, 0.0
        %v1793 = vmax.f32 %v1751, 0.0
        %v1794 = vmax.f32 %v1754, 0.0
        %v1795 = vmax.f32 %v1759, 0.0
        %v1796 = vmax.f32 %v1762, 0.0
        %v1797 = vmax.f32 %v1765, %v1767
        %v1798 = vmax.f32 %v1766, %v1768
        %v1799 = vmax.f32 %v1769, %v1771
        %v1800 = vmax.f32 %v1770, %v1772
        %v1801 = vmax.f32 %v1773, %v1775
        %v1802 = vmax.f32 %v1774, %v1776
        %v1803 = vmax.f32 %v1777, %v1779
        %v1804 = vmax.f32 %v1778, %v1780
        %v1805 = vmax.f32 %v1781, %v1783
        %v1806 = vmax.f32 %v1782, %v1784
        %v1807 = vmax.f32 %v1785, %v1787
        %v1808 = vmax.f32 %v1786, %v1788
        %v1809 = vmax.f32 %v1789, %v1791
        %v1810 = vmax.f32 %v1790, %v1792
        %v1811 = vmax.f32 %v1793, %v1795
        %v1812 = vmax.f32 %v1794, %v1796
        %v1829 = vcombine.high %v1797, %v1797
        %v1831 = vunpack.c.l.s4 1983009808
        %v1832 = vunpack.c.0.s8 %v1831
        %v1833 = vlaneseq
        %v1834 = vshrl.u32 %v1833, 7
        %v1835 = vsub.s32 %v1832, %v1834
        %v1836 = vrot.slane %v1797, %v1835
        %v1838 = vunpack.c.l.s4 1983009808
        %v1839 = vunpack.c.0.s8 %v1838
        %v1840 = vlaneseq
        %v1841 = vshrl.u32 %v1840, 7
        %v1842 = vsub.s32 %v1839, %v1841
        %v1843 = vrot.slane %v1829, %v1842
        %v1844 = vcombine.high %v1836, %v1836
        %v1845 = vcombine.high %v1843, %v1843
        %v1846 = vcombine.high %v1798, %v1798
        %v1848 = vunpack.c.l.s4 1983009808
        %v1849 = vunpack.c.0.s8 %v1848
        %v1850 = vlaneseq
        %v1851 = vshrl.u32 %v1850, 7
        %v1852 = vsub.s32 %v1849, %v1851
        %v1853 = vrot.slane %v1798, %v1852
        %v1855 = vunpack.c.l.s4 1983009808
        %v1856 = vunpack.c.0.s8 %v1855
        %v1857 = vlaneseq
        %v1858 = vshrl.u32 %v1857, 7
        %v1859 = vsub.s32 %v1856, %v1858
        %v1860 = vrot.slane %v1846, %v1859
        %v1861 = vcombine.high %v1853, %v1853
        %v1862 = vcombine.high %v1860, %v1860
        %v1863 = vcombine.high %v1799, %v1799
        %v1865 = vunpack.c.l.s4 1983009808
        %v1866 = vunpack.c.0.s8 %v1865
        %v1867 = vlaneseq
        %v1868 = vshrl.u32 %v1867, 7
        %v1869 = vsub.s32 %v1866, %v1868
        %v1870 = vrot.slane %v1799, %v1869
        %v1872 = vunpack.c.l.s4 1983009808
        %v1873 = vunpack.c.0.s8 %v1872
        %v1874 = vlaneseq
        %v1875 = vshrl.u32 %v1874, 7
        %v1876 = vsub.s32 %v1873, %v1875
        %v1877 = vrot.slane %v1863, %v1876
        %v1878 = vcombine.high %v1870, %v1870
        %v1879 = vcombine.high %v1877, %v1877
        %v1880 = vcombine.high %v1800, %v1800
        %v1882 = vunpack.c.l.s4 1983009808
        %v1883 = vunpack.c.0.s8 %v1882
        %v1884 = vlaneseq
        %v1885 = vshrl.u32 %v1884, 7
        %v1886 = vsub.s32 %v1883, %v1885
        %v1887 = vrot.slane %v1800, %v1886
        %v1889 = vunpack.c.l.s4 1983009808
        %v1890 = vunpack.c.0.s8 %v1889
        %v1891 = vlaneseq
        %v1892 = vshrl.u32 %v1891, 7
        %v1893 = vsub.s32 %v1890, %v1892
        %v1894 = vrot.slane %v1880, %v1893
        %v1895 = vcombine.high %v1887, %v1887
        %v1896 = vcombine.high %v1894, %v1894
        %v1897 = vcombine.high %v1801, %v1801
        %v1899 = vunpack.c.l.s4 1983009808
        %v1900 = vunpack.c.0.s8 %v1899
        %v1901 = vlaneseq
        %v1902 = vshrl.u32 %v1901, 7
        %v1903 = vsub.s32 %v1900, %v1902
        %v1904 = vrot.slane %v1801, %v1903
        %v1906 = vunpack.c.l.s4 1983009808
        %v1907 = vunpack.c.0.s8 %v1906
        %v1908 = vlaneseq
        %v1909 = vshrl.u32 %v1908, 7
        %v1910 = vsub.s32 %v1907, %v1909
        %v1911 = vrot.slane %v1897, %v1910
        %v1912 = vcombine.high %v1904, %v1904
        %v1913 = vcombine.high %v1911, %v1911
        %v1914 = vcombine.high %v1802, %v1802
        %v1916 = vunpack.c.l.s4 1983009808
        %v1917 = vunpack.c.0.s8 %v1916
        %v1918 = vlaneseq
        %v1919 = vshrl.u32 %v1918, 7
        %v1920 = vsub.s32 %v1917, %v1919
        %v1921 = vrot.slane %v1802, %v1920
        %v1923 = vunpack.c.l.s4 1983009808
        %v1924 = vunpack.c.0.s8 %v1923
        %v1925 = vlaneseq
        %v1926 = vshrl.u32 %v1925, 7
        %v1927 = vsub.s32 %v1924, %v1926
        %v1928 = vrot.slane %v1914, %v1927
        %v1929 = vcombine.high %v1921, %v1921
        %v1930 = vcombine.high %v1928, %v1928
        %v1931 = vcombine.high %v1803, %v1803
        %v1933 = vunpack.c.l.s4 1983009808
        %v1934 = vunpack.c.0.s8 %v1933
        %v1935 = vlaneseq
        %v1936 = vshrl.u32 %v1935, 7
        %v1937 = vsub.s32 %v1934, %v1936
        %v1938 = vrot.slane %v1803, %v1937
        %v1940 = vunpack.c.l.s4 1983009808
        %v1941 = vunpack.c.0.s8 %v1940
        %v1942 = vlaneseq
        %v1943 = vshrl.u32 %v1942, 7
        %v1944 = vsub.s32 %v1941, %v1943
        %v1945 = vrot.slane %v1931, %v1944
        %v1946 = vcombine.high %v1938, %v1938
        %v1947 = vcombine.high %v1945, %v1945
        %v1948 = vcombine.high %v1804, %v1804
        %v1950 = vunpack.c.l.s4 1983009808
        %v1951 = vunpack.c.0.s8 %v1950
        %v1952 = vlaneseq
        %v1953 = vshrl.u32 %v1952, 7
        %v1954 = vsub.s32 %v1951, %v1953
        %v1955 = vrot.slane %v1804, %v1954
        %v1957 = vunpack.c.l.s4 1983009808
        %v1958 = vunpack.c.0.s8 %v1957
        %v1959 = vlaneseq
        %v1960 = vshrl.u32 %v1959, 7
        %v1961 = vsub.s32 %v1958, %v1960
        %v1962 = vrot.slane %v1948, %v1961
        %v1963 = vcombine.high %v1955, %v1955
        %v1964 = vcombine.high %v1962, %v1962
        %v1965 = vcombine.high %v1805, %v1805
        %v1967 = vunpack.c.l.s4 1983009808
        %v1968 = vunpack.c.0.s8 %v1967
        %v1969 = vlaneseq
        %v1970 = vshrl.u32 %v1969, 7
        %v1971 = vsub.s32 %v1968, %v1970
        %v1972 = vrot.slane %v1805, %v1971
        %v1974 = vunpack.c.l.s4 1983009808
        %v1975 = vunpack.c.0.s8 %v1974
        %v1976 = vlaneseq
        %v1977 = vshrl.u32 %v1976, 7
        %v1978 = vsub.s32 %v1975, %v1977
        %v1979 = vrot.slane %v1965, %v1978
        %v1980 = vcombine.high %v1972, %v1972
        %v1981 = vcombine.high %v1979, %v1979
        %v1982 = vcombine.high %v1806, %v1806
        %v1984 = vunpack.c.l.s4 1983009808
        %v1985 = vunpack.c.0.s8 %v1984
        %v1986 = vlaneseq
        %v1987 = vshrl.u32 %v1986, 7
        %v1988 = vsub.s32 %v1985, %v1987
        %v1989 = vrot.slane %v1806, %v1988
        %v1991 = vunpack.c.l.s4 1983009808
        %v1992 = vunpack.c.0.s8 %v1991
        %v1993 = vlaneseq
        %v1994 = vshrl.u32 %v1993, 7
        %v1995 = vsub.s32 %v1992, %v1994
        %v1996 = vrot.slane %v1982, %v1995
        %v1997 = vcombine.high %v1989, %v1989
        %v1998 = vcombine.high %v1996, %v1996
        %v1999 = vcombine.high %v1807, %v1807
        %v2001 = vunpack.c.l.s4 1983009808
        %v2002 = vunpack.c.0.s8 %v2001
        %v2003 = vlaneseq
        %v2004 = vshrl.u32 %v2003, 7
        %v2005 = vsub.s32 %v2002, %v2004
        %v2006 = vrot.slane %v1807, %v2005
        %v2008 = vunpack.c.l.s4 1983009808
        %v2009 = vunpack.c.0.s8 %v2008
        %v2010 = vlaneseq
        %v2011 = vshrl.u32 %v2010, 7
        %v2012 = vsub.s32 %v2009, %v2011
        %v2013 = vrot.slane %v1999, %v2012
        %v2014 = vcombine.high %v2006, %v2006
        %v2015 = vcombine.high %v2013, %v2013
        %v2016 = vcombine.high %v1808, %v1808
        %v2018 = vunpack.c.l.s4 1983009808
        %v2019 = vunpack.c.0.s8 %v2018
        %v2020 = vlaneseq
        %v2021 = vshrl.u32 %v2020, 7
        %v2022 = vsub.s32 %v2019, %v2021
        %v2023 = vrot.slane %v1808, %v2022
        %v2025 = vunpack.c.l.s4 1983009808
        %v2026 = vunpack.c.0.s8 %v2025
        %v2027 = vlaneseq
        %v2028 = vshrl.u32 %v2027, 7
        %v2029 = vsub.s32 %v2026, %v2028
        %v2030 = vrot.slane %v2016, %v2029
        %v2031 = vcombine.high %v2023, %v2023
        %v2032 = vcombine.high %v2030, %v2030
        %v2033 = vcombine.high %v1809, %v1809
        %v2035 = vunpack.c.l.s4 1983009808
        %v2036 = vunpack.c.0.s8 %v2035
        %v2037 = vlaneseq
        %v2038 = vshrl.u32 %v2037, 7
        %v2039 = vsub.s32 %v2036, %v2038
        %v2040 = vrot.slane %v1809, %v2039
        %v2042 = vunpack.c.l.s4 1983009808
        %v2043 = vunpack.c.0.s8 %v2042
        %v2044 = vlaneseq
        %v2045 = vshrl.u32 %v2044, 7
        %v2046 = vsub.s32 %v2043, %v2045
        %v2047 = vrot.slane %v2033, %v2046
        %v2048 = vcombine.high %v2040, %v2040
        %v2049 = vcombine.high %v2047, %v2047
        %v2050 = vcombine.high %v1810, %v1810
        %v2052 = vunpack.c.l.s4 1983009808
        %v2053 = vunpack.c.0.s8 %v2052
        %v2054 = vlaneseq
        %v2055 = vshrl.u32 %v2054, 7
        %v2056 = vsub.s32 %v2053, %v2055
        %v2057 = vrot.slane %v1810, %v2056
        %v2059 = vunpack.c.l.s4 1983009808
        %v2060 = vunpack.c.0.s8 %v2059
        %v2061 = vlaneseq
        %v2062 = vshrl.u32 %v2061, 7
        %v2063 = vsub.s32 %v2060, %v2062
        %v2064 = vrot.slane %v2050, %v2063
        %v2065 = vcombine.high %v2057, %v2057
        %v2066 = vcombine.high %v2064, %v2064
        %v2067 = vcombine.high %v1811, %v1811
        %v2069 = vunpack.c.l.s4 1983009808
        %v2070 = vunpack.c.0.s8 %v2069
        %v2071 = vlaneseq
        %v2072 = vshrl.u32 %v2071, 7
        %v2073 = vsub.s32 %v2070, %v2072
        %v2074 = vrot.slane %v1811, %v2073
        %v2076 = vunpack.c.l.s4 1983009808
        %v2077 = vunpack.c.0.s8 %v2076
        %v2078 = vlaneseq
        %v2079 = vshrl.u32 %v2078, 7
        %v2080 = vsub.s32 %v2077, %v2079
        %v2081 = vrot.slane %v2067, %v2080
        %v2082 = vcombine.high %v2074, %v2074
        %v2083 = vcombine.high %v2081, %v2081
        %v2084 = vcombine.high %v1812, %v1812
        %v2086 = vunpack.c.l.s4 1983009808
        %v2087 = vunpack.c.0.s8 %v2086
        %v2088 = vlaneseq
        %v2089 = vshrl.u32 %v2088, 7
        %v2090 = vsub.s32 %v2087, %v2089
        %v2091 = vrot.slane %v1812, %v2090
        %v2093 = vunpack.c.l.s4 1983009808
        %v2094 = vunpack.c.0.s8 %v2093
        %v2095 = vlaneseq
        %v2096 = vshrl.u32 %v2095, 7
        %v2097 = vsub.s32 %v2094, %v2096
        %v2098 = vrot.slane %v2084, %v2097
        %v2099 = vcombine.high %v2091, %v2091
        %v2100 = vcombine.high %v2098, %v2098
        %v2165 = vrot.slane %v1836, 7
        %v2166 = vrot.slane %v2165, 2
        %v2167 = vrot.slane %v1844, 7
        %v2168 = vrot.slane %v2167, 2
        %v2169 = vrot.slane %v1843, 7
        %v2170 = vrot.slane %v2169, 2
        %v2171 = vrot.slane %v1845, 7
        %v2172 = vrot.slane %v2171, 2
        %v2173 = vrot.slane %v1853, 7
        %v2174 = vrot.slane %v2173, 2
        %v2175 = vrot.slane %v1861, 7
        %v2176 = vrot.slane %v2175, 2
        %v2177 = vrot.slane %v1860, 7
        %v2178 = vrot.slane %v2177, 2
        %v2179 = vrot.slane %v1862, 7
        %v2180 = vrot.slane %v2179, 2
        %v2181 = vrot.slane %v1870, 7
        %v2182 = vrot.slane %v2181, 2
        %v2183 = vrot.slane %v1878, 7
        %v2184 = vrot.slane %v2183, 2
        %v2185 = vrot.slane %v1877, 7
        %v2186 = vrot.slane %v2185, 2
        %v2187 = vrot.slane %v1879, 7
        %v2188 = vrot.slane %v2187, 2
        %v2189 = vrot.slane %v1887, 7
        %v2190 = vrot.slane %v2189, 2
        %v2191 = vrot.slane %v1895, 7
        %v2192 = vrot.slane %v2191, 2
        %v2193 = vrot.slane %v1894, 7
        %v2194 = vrot.slane %v2193, 2
        %v2195 = vrot.slane %v1896, 7
        %v2196 = vrot.slane %v2195, 2
        %v2197 = vrot.slane %v1904, 7
        %v2198 = vrot.slane %v2197, 2
        %v2199 = vrot.slane %v1912, 7
        %v2200 = vrot.slane %v2199, 2
        %v2201 = vrot.slane %v1911, 7
        %v2202 = vrot.slane %v2201, 2
        %v2203 = vrot.slane %v1913, 7
        %v2204 = vrot.slane %v2203, 2
        %v2205 = vrot.slane %v1921, 7
        %v2206 = vrot.slane %v2205, 2
        %v2207 = vrot.slane %v1929, 7
        %v2208 = vrot.slane %v2207, 2
        %v2209 = vrot.slane %v1928, 7
        %v2210 = vrot.slane %v2209, 2
        %v2211 = vrot.slane %v1930, 7
        %v2212 = vrot.slane %v2211, 2
        %v2213 = vrot.slane %v1938, 7
        %v2214 = vrot.slane %v2213, 2
        %v2215 = vrot.slane %v1946, 7
        %v2216 = vrot.slane %v2215, 2
        %v2217 = vrot.slane %v1945, 7
        %v2218 = vrot.slane %v2217, 2
        %v2219 = vrot.slane %v1947, 7
        %v2220 = vrot.slane %v2219, 2
        %v2221 = vrot.slane %v1955, 7
        %v2222 = vrot.slane %v2221, 2
        %v2223 = vrot.slane %v1963, 7
        %v2224 = vrot.slane %v2223, 2
        %v2225 = vrot.slane %v1962, 7
        %v2226 = vrot.slane %v2225, 2
        %v2227 = vrot.slane %v1964, 7
        %v2228 = vrot.slane %v2227, 2
        %v2229 = vrot.slane %v1972, 7
        %v2230 = vrot.slane %v2229, 2
        %v2231 = vrot.slane %v1980, 7
        %v2232 = vrot.slane %v2231, 2
        %v2233 = vrot.slane %v1979, 7
        %v2234 = vrot.slane %v2233, 2
        %v2235 = vrot.slane %v1981, 7
        %v2236 = vrot.slane %v2235, 2
        %v2237 = vrot.slane %v1989, 7
        %v2238 = vrot.slane %v2237, 2
        %v2239 = vrot.slane %v1997, 7
        %v2240 = vrot.slane %v2239, 2
        %v2241 = vrot.slane %v1996, 7
        %v2242 = vrot.slane %v2241, 2
        %v2243 = vrot.slane %v1998, 7
        %v2244 = vrot.slane %v2243, 2
        %v2245 = vrot.slane %v2006, 7
        %v2246 = vrot.slane %v2245, 2
        %v2247 = vrot.slane %v2014, 7
        %v2248 = vrot.slane %v2247, 2
        %v2249 = vrot.slane %v2013, 7
        %v2250 = vrot.slane %v2249, 2
        %v2251 = vrot.slane %v2015, 7
        %v2252 = vrot.slane %v2251, 2
        %v2253 = vrot.slane %v2023, 7
        %v2254 = vrot.slane %v2253, 2
        %v2255 = vrot.slane %v2031, 7
        %v2256 = vrot.slane %v2255, 2
        %v2257 = vrot.slane %v2030, 7
        %v2258 = vrot.slane %v2257, 2
        %v2259 = vrot.slane %v2032, 7
        %v2260 = vrot.slane %v2259, 2
        %v2261 = vrot.slane %v2040, 7
        %v2262 = vrot.slane %v2261, 2
        %v2263 = vrot.slane %v2048, 7
        %v2264 = vrot.slane %v2263, 2
        %v2265 = vrot.slane %v2047, 7
        %v2266 = vrot.slane %v2265, 2
        %v2267 = vrot.slane %v2049, 7
        %v2268 = vrot.slane %v2267, 2
        %v2269 = vrot.slane %v2057, 7
        %v2270 = vrot.slane %v2269, 2
        %v2271 = vrot.slane %v2065, 7
        %v2272 = vrot.slane %v2271, 2
        %v2273 = vrot.slane %v2064, 7
        %v2274 = vrot.slane %v2273, 2
        %v2275 = vrot.slane %v2066, 7
        %v2276 = vrot.slane %v2275, 2
        %v2277 = vrot.slane %v2074, 7
        %v2278 = vrot.slane %v2277, 2
        %v2279 = vrot.slane %v2082, 7
        %v2280 = vrot.slane %v2279, 2
        %v2281 = vrot.slane %v2081, 7
        %v2282 = vrot.slane %v2281, 2
        %v2283 = vrot.slane %v2083, 7
        %v2284 = vrot.slane %v2283, 2
        %v2285 = vrot.slane %v2091, 7
        %v2286 = vrot.slane %v2285, 2
        %v2287 = vrot.slane %v2099, 7
        %v2288 = vrot.slane %v2287, 2
        %v2289 = vrot.slane %v2098, 7
        %v2290 = vrot.slane %v2289, 2
        %v2291 = vrot.slane %v2100, 7
        %v2292 = vrot.slane %v2291, 2
        %v2357 = vmax.f32 %v1836, %v2166
        %v2358 = vmax.f32 %v1844, %v2168
        %v2359 = vmax.f32 %v1843, %v2170
        %v2360 = vmax.f32 %v1845, %v2172
        %v2361 = vmax.f32 %v1853, %v2174
        %v2362 = vmax.f32 %v1861, %v2176
        %v2363 = vmax.f32 %v1860, %v2178
        %v2364 = vmax.f32 %v1862, %v2180
        %v2365 = vmax.f32 %v1870, %v2182
        %v2366 = vmax.f32 %v1878, %v2184
        %v2367 = vmax.f32 %v1877, %v2186
        %v2368 = vmax.f32 %v1879, %v2188
        %v2369 = vmax.f32 %v1887, %v2190
        %v2370 = vmax.f32 %v1895, %v2192
        %v2371 = vmax.f32 %v1894, %v2194
        %v2372 = vmax.f32 %v1896, %v2196
        %v2373 = vmax.f32 %v1904, %v2198
        %v2374 = vmax.f32 %v1912, %v2200
        %v2375 = vmax.f32 %v1911, %v2202
        %v2376 = vmax.f32 %v1913, %v2204
        %v2377 = vmax.f32 %v1921, %v2206
        %v2378 = vmax.f32 %v1929, %v2208
        %v2379 = vmax.f32 %v1928, %v2210
        %v2380 = vmax.f32 %v1930, %v2212
        %v2381 = vmax.f32 %v1938, %v2214
        %v2382 = vmax.f32 %v1946, %v2216
        %v2383 = vmax.f32 %v1945, %v2218
        %v2384 = vmax.f32 %v1947, %v2220
        %v2385 = vmax.f32 %v1955, %v2222
        %v2386 = vmax.f32 %v1963, %v2224
        %v2387 = vmax.f32 %v1962, %v2226
        %v2388 = vmax.f32 %v1964, %v2228
        %v2389 = vmax.f32 %v1972, %v2230
        %v2390 = vmax.f32 %v1980, %v2232
        %v2391 = vmax.f32 %v1979, %v2234
        %v2392 = vmax.f32 %v1981, %v2236
        %v2393 = vmax.f32 %v1989, %v2238
        %v2394 = vmax.f32 %v1997, %v2240
        %v2395 = vmax.f32 %v1996, %v2242
        %v2396 = vmax.f32 %v1998, %v2244
        %v2397 = vmax.f32 %v2006, %v2246
        %v2398 = vmax.f32 %v2014, %v2248
        %v2399 = vmax.f32 %v2013, %v2250
        %v2400 = vmax.f32 %v2015, %v2252
        %v2401 = vmax.f32 %v2023, %v2254
        %v2402 = vmax.f32 %v2031, %v2256
        %v2403 = vmax.f32 %v2030, %v2258
        %v2404 = vmax.f32 %v2032, %v2260
        %v2405 = vmax.f32 %v2040, %v2262
        %v2406 = vmax.f32 %v2048, %v2264
        %v2407 = vmax.f32 %v2047, %v2266
        %v2408 = vmax.f32 %v2049, %v2268
        %v2409 = vmax.f32 %v2057, %v2270
        %v2410 = vmax.f32 %v2065, %v2272
        %v2411 = vmax.f32 %v2064, %v2274
        %v2412 = vmax.f32 %v2066, %v2276
        %v2413 = vmax.f32 %v2074, %v2278
        %v2414 = vmax.f32 %v2082, %v2280
        %v2415 = vmax.f32 %v2081, %v2282
        %v2416 = vmax.f32 %v2083, %v2284
        %v2417 = vmax.f32 %v2091, %v2286
        %v2418 = vmax.f32 %v2099, %v2288
        %v2419 = vmax.f32 %v2098, %v2290
        %v2420 = vmax.f32 %v2100, %v2292
        %v2421 = vld [vmem:[%s3] sm:$0xf]
        %v2422 = vld [vmem:[%s3 + $0x4] sm:$0xf]
        %v2423 = vld [vmem:[%s3 + $0x8] sm:$0xf]
        %v2424 = vld [vmem:[%s3 + $0xc] sm:$0xf]
        %v2425 = vld [vmem:[%s3 + $0x10] sm:$0xf]
        %v2426 = vld [vmem:[%s3 + $0x14] sm:$0xf]
        %v2427 = vld [vmem:[%s3 + $0x18] sm:$0xf]
        %v2428 = vld [vmem:[%s3 + $0x1c] sm:$0xf]
        %v2429 = vld [vmem:[%s3 + $0x20] sm:$0xf]
        %v2494 = vlaneseq
        %v2495 = vshrl.u32 %v2494, 7
        %v2496 = vsub.s32 0, %v2495
        %v2497 = vrot.slane %v2357, %v2496
        %v2498 = vlaneseq
        %v2499 = vshrl.u32 %v2498, 7
        %v2500 = vsub.s32 0, %v2499
        %v2501 = vrot.slane %v2358, %v2500
        %v2502 = vlaneseq
        %v2503 = vshrl.u32 %v2502, 7
        %v2504 = vsub.s32 0, %v2503
        %v2505 = vrot.slane %v2359, %v2504
        %v2506 = vlaneseq
        %v2507 = vshrl.u32 %v2506, 7
        %v2508 = vsub.s32 0, %v2507
        %v2509 = vrot.slane %v2360, %v2508
        %v2510 = vlaneseq
        %v2511 = vshrl.u32 %v2510, 7
        %v2512 = vsub.s32 0, %v2511
        %v2513 = vrot.slane %v2361, %v2512
        %v2514 = vlaneseq
        %v2515 = vshrl.u32 %v2514, 7
        %v2516 = vsub.s32 0, %v2515
        %v2517 = vrot.slane %v2362, %v2516
        %v2518 = vlaneseq
        %v2519 = vshrl.u32 %v2518, 7
        %v2520 = vsub.s32 0, %v2519
        %v2521 = vrot.slane %v2363, %v2520
        %v2522 = vlaneseq
        %v2523 = vshrl.u32 %v2522, 7
        %v2524 = vsub.s32 0, %v2523
        %v2525 = vrot.slane %v2364, %v2524
        %v2526 = vlaneseq
        %v2527 = vshrl.u32 %v2526, 7
        %v2528 = vsub.s32 0, %v2527
        %v2529 = vrot.slane %v2365, %v2528
        %v2530 = vlaneseq
        %v2531 = vshrl.u32 %v2530, 7
        %v2532 = vsub.s32 0, %v2531
        %v2533 = vrot.slane %v2366, %v2532
        %v2534 = vlaneseq
        %v2535 = vshrl.u32 %v2534, 7
        %v2536 = vsub.s32 0, %v2535
        %v2537 = vrot.slane %v2367, %v2536
        %v2538 = vlaneseq
        %v2539 = vshrl.u32 %v2538, 7
        %v2540 = vsub.s32 0, %v2539
        %v2541 = vrot.slane %v2368, %v2540
        %v2542 = vlaneseq
        %v2543 = vshrl.u32 %v2542, 7
        %v2544 = vsub.s32 0, %v2543
        %v2545 = vrot.slane %v2369, %v2544
        %v2546 = vlaneseq
        %v2547 = vshrl.u32 %v2546, 7
        %v2548 = vsub.s32 0, %v2547
        %v2549 = vrot.slane %v2370, %v2548
        %v2550 = vlaneseq
        %v2551 = vshrl.u32 %v2550, 7
        %v2552 = vsub.s32 0, %v2551
        %v2553 = vrot.slane %v2371, %v2552
        %v2554 = vlaneseq
        %v2555 = vshrl.u32 %v2554, 7
        %v2556 = vsub.s32 0, %v2555
        %v2557 = vrot.slane %v2372, %v2556
        %v2558 = vlaneseq
        %v2559 = vshrl.u32 %v2558, 7
        %v2560 = vsub.s32 0, %v2559
        %v2561 = vrot.slane %v2373, %v2560
        %v2562 = vlaneseq
        %v2563 = vshrl.u32 %v2562, 7
        %v2564 = vsub.s32 0, %v2563
        %v2565 = vrot.slane %v2374, %v2564
        %v2566 = vlaneseq
        %v2567 = vshrl.u32 %v2566, 7
        %v2568 = vsub.s32 0, %v2567
        %v2569 = vrot.slane %v2375, %v2568
        %v2570 = vlaneseq
        %v2571 = vshrl.u32 %v2570, 7
        %v2572 = vsub.s32 0, %v2571
        %v2573 = vrot.slane %v2376, %v2572
        %v2574 = vlaneseq
        %v2575 = vshrl.u32 %v2574, 7
        %v2576 = vsub.s32 0, %v2575
        %v2577 = vrot.slane %v2377, %v2576
        %v2578 = vlaneseq
        %v2579 = vshrl.u32 %v2578, 7
        %v2580 = vsub.s32 0, %v2579
        %v2581 = vrot.slane %v2378, %v2580
        %v2582 = vlaneseq
        %v2583 = vshrl.u32 %v2582, 7
        %v2584 = vsub.s32 0, %v2583
        %v2585 = vrot.slane %v2379, %v2584
        %v2586 = vlaneseq
        %v2587 = vshrl.u32 %v2586, 7
        %v2588 = vsub.s32 0, %v2587
        %v2589 = vrot.slane %v2380, %v2588
        %v2590 = vlaneseq
        %v2591 = vshrl.u32 %v2590, 7
        %v2592 = vsub.s32 0, %v2591
        %v2593 = vrot.slane %v2381, %v2592
        %v2594 = vlaneseq
        %v2595 = vshrl.u32 %v2594, 7
        %v2596 = vsub.s32 0, %v2595
        %v2597 = vrot.slane %v2382, %v2596
        %v2598 = vlaneseq
        %v2599 = vshrl.u32 %v2598, 7
        %v2600 = vsub.s32 0, %v2599
        %v2601 = vrot.slane %v2383, %v2600
        %v2602 = vlaneseq
        %v2603 = vshrl.u32 %v2602, 7
        %v2604 = vsub.s32 0, %v2603
        %v2605 = vrot.slane %v2384, %v2604
        %v2606 = vlaneseq
        %v2607 = vshrl.u32 %v2606, 7
        %v2608 = vsub.s32 0, %v2607
        %v2609 = vrot.slane %v2385, %v2608
        %v2610 = vlaneseq
        %v2611 = vshrl.u32 %v2610, 7
        %v2612 = vsub.s32 0, %v2611
        %v2613 = vrot.slane %v2386, %v2612
        %v2614 = vlaneseq
        %v2615 = vshrl.u32 %v2614, 7
        %v2616 = vsub.s32 0, %v2615
        %v2617 = vrot.slane %v2387, %v2616
        %v2618 = vlaneseq
        %v2619 = vshrl.u32 %v2618, 7
        %v2620 = vsub.s32 0, %v2619
        %v2621 = vrot.slane %v2388, %v2620
        %v2622 = vlaneseq
        %v2623 = vshrl.u32 %v2622, 7
        %v2624 = vsub.s32 0, %v2623
        %v2625 = vrot.slane %v2389, %v2624
        %v2626 = vlaneseq
        %v2627 = vshrl.u32 %v2626, 7
        %v2628 = vsub.s32 0, %v2627
        %v2629 = vrot.slane %v2390, %v2628
        %v2630 = vlaneseq
        %v2631 = vshrl.u32 %v2630, 7
        %v2632 = vsub.s32 0, %v2631
        %v2633 = vrot.slane %v2391, %v2632
        %v2634 = vlaneseq
        %v2635 = vshrl.u32 %v2634, 7
        %v2636 = vsub.s32 0, %v2635
        %v2637 = vrot.slane %v2392, %v2636
        %v2638 = vlaneseq
        %v2639 = vshrl.u32 %v2638, 7
        %v2640 = vsub.s32 0, %v2639
        %v2641 = vrot.slane %v2393, %v2640
        %v2642 = vlaneseq
        %v2643 = vshrl.u32 %v2642, 7
        %v2644 = vsub.s32 0, %v2643
        %v2645 = vrot.slane %v2394, %v2644
        %v2646 = vlaneseq
        %v2647 = vshrl.u32 %v2646, 7
        %v2648 = vsub.s32 0, %v2647
        %v2649 = vrot.slane %v2395, %v2648
        %v2650 = vlaneseq
        %v2651 = vshrl.u32 %v2650, 7
        %v2652 = vsub.s32 0, %v2651
        %v2653 = vrot.slane %v2396, %v2652
        %v2654 = vlaneseq
        %v2655 = vshrl.u32 %v2654, 7
        %v2656 = vsub.s32 0, %v2655
        %v2657 = vrot.slane %v2397, %v2656
        %v2658 = vlaneseq
        %v2659 = vshrl.u32 %v2658, 7
        %v2660 = vsub.s32 0, %v2659
        %v2661 = vrot.slane %v2398, %v2660
        %v2662 = vlaneseq
        %v2663 = vshrl.u32 %v2662, 7
        %v2664 = vsub.s32 0, %v2663
        %v2665 = vrot.slane %v2399, %v2664
        %v2666 = vlaneseq
        %v2667 = vshrl.u32 %v2666, 7
        %v2668 = vsub.s32 0, %v2667
        %v2669 = vrot.slane %v2400, %v2668
        %v2670 = vlaneseq
        %v2671 = vshrl.u32 %v2670, 7
        %v2672 = vsub.s32 0, %v2671
        %v2673 = vrot.slane %v2401, %v2672
        %v2674 = vlaneseq
        %v2675 = vshrl.u32 %v2674, 7
        %v2676 = vsub.s32 0, %v2675
        %v2677 = vrot.slane %v2402, %v2676
        %v2678 = vlaneseq
        %v2679 = vshrl.u32 %v2678, 7
        %v2680 = vsub.s32 0, %v2679
        %v2681 = vrot.slane %v2403, %v2680
        %v2682 = vlaneseq
        %v2683 = vshrl.u32 %v2682, 7
        %v2684 = vsub.s32 0, %v2683
        %v2685 = vrot.slane %v2404, %v2684
        %v2686 = vlaneseq
        %v2687 = vshrl.u32 %v2686, 7
        %v2688 = vsub.s32 0, %v2687
        %v2689 = vrot.slane %v2405, %v2688
        %v2690 = vlaneseq
        %v2691 = vshrl.u32 %v2690, 7
        %v2692 = vsub.s32 0, %v2691
        %v2693 = vrot.slane %v2406, %v2692
        %v2694 = vlaneseq
        %v2695 = vshrl.u32 %v2694, 7
        %v2696 = vsub.s32 0, %v2695
        %v2697 = vrot.slane %v2407, %v2696
        %v2698 = vlaneseq
        %v2699 = vshrl.u32 %v2698, 7
        %v2700 = vsub.s32 0, %v2699
        %v2701 = vrot.slane %v2408, %v2700
        %v2702 = vlaneseq
        %v2703 = vshrl.u32 %v2702, 7
        %v2704 = vsub.s32 0, %v2703
        %v2705 = vrot.slane %v2409, %v2704
        %v2706 = vlaneseq
        %v2707 = vshrl.u32 %v2706, 7
        %v2708 = vsub.s32 0, %v2707
        %v2709 = vrot.slane %v2410, %v2708
        %v2710 = vlaneseq
        %v2711 = vshrl.u32 %v2710, 7
        %v2712 = vsub.s32 0, %v2711
        %v2713 = vrot.slane %v2411, %v2712
        %v2714 = vlaneseq
        %v2715 = vshrl.u32 %v2714, 7
        %v2716 = vsub.s32 0, %v2715
        %v2717 = vrot.slane %v2412, %v2716
        %v2718 = vlaneseq
        %v2719 = vshrl.u32 %v2718, 7
        %v2720 = vsub.s32 0, %v2719
        %v2721 = vrot.slane %v2413, %v2720
        %v2722 = vlaneseq
        %v2723 = vshrl.u32 %v2722, 7
        %v2724 = vsub.s32 0, %v2723
        %v2725 = vrot.slane %v2414, %v2724
        %v2726 = vlaneseq
        %v2727 = vshrl.u32 %v2726, 7
        %v2728 = vsub.s32 0, %v2727
        %v2729 = vrot.slane %v2415, %v2728
        %v2730 = vlaneseq
        %v2731 = vshrl.u32 %v2730, 7
        %v2732 = vsub.s32 0, %v2731
        %v2733 = vrot.slane %v2416, %v2732
        %v2734 = vlaneseq
        %v2735 = vshrl.u32 %v2734, 7
        %v2736 = vsub.s32 0, %v2735
        %v2737 = vrot.slane %v2417, %v2736
        %v2738 = vlaneseq
        %v2739 = vshrl.u32 %v2738, 7
        %v2740 = vsub.s32 0, %v2739
        %v2741 = vrot.slane %v2418, %v2740
        %v2742 = vlaneseq
        %v2743 = vshrl.u32 %v2742, 7
        %v2744 = vsub.s32 0, %v2743
        %v2745 = vrot.slane %v2419, %v2744
        %v2746 = vlaneseq
        %v2747 = vshrl.u32 %v2746, 7
        %v2748 = vsub.s32 0, %v2747
        %v2749 = vrot.slane %v2420, %v2748
        %vm2750 = vcmask 1041409
        %v2751 = vsel %vm2750, %v2501, %v2497
        %vm2752 = vcmask 1042434
        %v2753 = vsel %vm2752, %v2505, %v2751
        %vm2754 = vcmask 1043459
        %v2755 = vsel %vm2754, %v2509, %v2753
        %vm2756 = vcmask 1044484
        %v2757 = vsel %vm2756, %v2513, %v2755
        %vm2758 = vcmask 1045509
        %v2759 = vsel %vm2758, %v2517, %v2757
        %vm2760 = vcmask 1046534
        %v2761 = vsel %vm2760, %v2521, %v2759
        %vm2762 = vcmask 1047559
        %v2763 = vsel %vm2762, %v2525, %v2761
        %v2764 = vsel %vm2750, %v2533, %v2529
        %v2765 = vsel %vm2752, %v2537, %v2764
        %v2766 = vsel %vm2754, %v2541, %v2765
        %v2767 = vsel %vm2756, %v2545, %v2766
        %v2768 = vsel %vm2758, %v2549, %v2767
        %v2769 = vsel %vm2760, %v2553, %v2768
        %v2770 = vsel %vm2762, %v2557, %v2769
        %v2771 = vsel %vm2750, %v2565, %v2561
        %v2772 = vsel %vm2752, %v2569, %v2771
        %v2773 = vsel %vm2754, %v2573, %v2772
        %v2774 = vsel %vm2756, %v2577, %v2773
        %v2775 = vsel %vm2758, %v2581, %v2774
        %v2776 = vsel %vm2760, %v2585, %v2775
        %v2777 = vsel %vm2762, %v2589, %v2776
        %v2778 = vsel %vm2750, %v2597, %v2593
        %v2779 = vsel %vm2752, %v2601, %v2778
        %v2780 = vsel %vm2754, %v2605, %v2779
        %v2781 = vsel %vm2756, %v2609, %v2780
        %v2782 = vsel %vm2758, %v2613, %v2781
        %v2783 = vsel %vm2760, %v2617, %v2782
        %v2784 = vsel %vm2762, %v2621, %v2783
        %v2785 = vsel %vm2750, %v2629, %v2625
        %v2786 = vsel %vm2752, %v2633, %v2785
        %v2787 = vsel %vm2754, %v2637, %v2786
        %v2788 = vsel %vm2756, %v2641, %v2787
        %v2789 = vsel %vm2758, %v2645, %v2788
        %v2790 = vsel %vm2760, %v2649, %v2789
        %v2791 = vsel %vm2762, %v2653, %v2790
        %v2792 = vsel %vm2750, %v2661, %v2657
        %v2793 = vsel %vm2752, %v2665, %v2792
        %v2794 = vsel %vm2754, %v2669, %v2793
        %v2795 = vsel %vm2756, %v2673, %v2794
        %v2796 = vsel %vm2758, %v2677, %v2795
        %v2797 = vsel %vm2760, %v2681, %v2796
        %v2798 = vsel %vm2762, %v2685, %v2797
        %v2799 = vsel %vm2750, %v2693, %v2689
        %v2800 = vsel %vm2752, %v2697, %v2799
        %v2801 = vsel %vm2754, %v2701, %v2800
        %v2802 = vsel %vm2756, %v2705, %v2801
        %v2803 = vsel %vm2758, %v2709, %v2802
        %v2804 = vsel %vm2760, %v2713, %v2803
        %v2805 = vsel %vm2762, %v2717, %v2804
        %v2806 = vsel %vm2750, %v2725, %v2721
        %v2807 = vsel %vm2752, %v2729, %v2806
        %v2808 = vsel %vm2754, %v2733, %v2807
        %v2809 = vsel %vm2756, %v2737, %v2808
        %v2810 = vsel %vm2758, %v2741, %v2809
        %v2811 = vsel %vm2760, %v2745, %v2810
        %v2812 = vsel %vm2762, %v2749, %v2811
        %v2813 = vrot.slane %v2763, 7
        %v2814 = vrot.slane %v2770, 7
        %v2815 = vrot.slane %v2777, 7
        %v2816 = vrot.slane %v2784, 7
        %v2817 = vrot.slane %v2791, 7
        %v2818 = vrot.slane %v2798, 7
        %v2819 = vrot.slane %v2805, 7
        %v2820 = vrot.slane %v2812, 7
        %v2829 = vsel %vm573, 0.0, %v2813
        %v2830 = vsel %vm573, 0.0, %v2814
        %v2831 = vsel %vm573, 0.0, %v2815
        %v2832 = vsel %vm573, 0.0, %v2816
        %v2833 = vsel %vm573, 0.0, %v2817
        %v2834 = vsel %vm573, 0.0, %v2818
        %v2835 = vsel %vm573, 0.0, %v2819
        %v2836 = vsel %vm573, 0.0, %v2820
        %v2837 = vsel %vm573, %v2813, 0.0
        %v2838 = vsel %vm573, %v2814, 0.0
        %v2839 = vsel %vm573, %v2815, 0.0
        %v2840 = vsel %vm573, %v2816, 0.0
        %v2841 = vsel %vm573, %v2817, 0.0
        %v2842 = vsel %vm573, %v2818, 0.0
        %v2843 = vsel %vm573, %v2819, 0.0
        %v2844 = vsel %vm573, %v2820, 0.0
        %v2845 = vpack.c.bf16 %v691, %v674
        %v2846 = vpack.c.bf16 %v2837, %v2829
        %v2847 = vpack.c.bf16 %v2838, %v2830
        %v2848 = vpack.c.bf16 %v2839, %v2831
        %v2849 = vpack.c.bf16 %v2840, %v2832
        %v2850 = vpack.c.bf16 %v2841, %v2833
        %v2851 = vpack.c.bf16 %v2842, %v2834
        %v2852 = vpack.c.bf16 %v2843, %v2835
        %v2853 = vpack.c.bf16 %v2844, %v2836
        %v2862 = vunpack.c.l.b16 %v2845
        %v2863 = vunpack.c.h.b16 %v2845
        %v2864 = vunpack.c.l.b16 %v2846
        %v2865 = vunpack.c.h.b16 %v2846
        %v2866 = vunpack.c.l.b16 %v2847
        %v2867 = vunpack.c.h.b16 %v2847
        %v2868 = vunpack.c.l.b16 %v2848
        %v2869 = vunpack.c.h.b16 %v2848
        %v2870 = vunpack.c.l.b16 %v2849
        %v2871 = vunpack.c.h.b16 %v2849
        %v2872 = vunpack.c.l.b16 %v2850
        %v2873 = vunpack.c.h.b16 %v2850
        %v2874 = vunpack.c.l.b16 %v2851
        %v2875 = vunpack.c.h.b16 %v2851
        %v2876 = vunpack.c.l.b16 %v2852
        %v2877 = vunpack.c.h.b16 %v2852
        %v2878 = vpack.c.b16 %v2862, %v2862
        %v2879 = vpack.c.b16 %v2863, %v2863
        %v2880 = vpack.c.b16 %v2864, %v2864
        %v2881 = vpack.c.b16 %v2865, %v2865
        %v2882 = vpack.c.b16 %v2866, %v2866
        %v2883 = vpack.c.b16 %v2867, %v2867
        %v2884 = vpack.c.b16 %v2868, %v2868
        %v2885 = vpack.c.b16 %v2869, %v2869
        %v2886 = vpack.c.b16 %v2870, %v2870
        %v2887 = vpack.c.b16 %v2871, %v2871
        %v2888 = vpack.c.b16 %v2872, %v2872
        %v2889 = vpack.c.b16 %v2873, %v2873
        %v2890 = vpack.c.b16 %v2874, %v2874
        %v2891 = vpack.c.b16 %v2875, %v2875
        %v2892 = vpack.c.b16 %v2876, %v2876
        %v2893 = vpack.c.b16 %v2877, %v2877
        %vm2894 = vsmask.f32 3328
        %vm2895 = vsmask.f32 7440
        %vm2896 = vmor %vm2894, %vm2895
        %v2898 = vshrl.u32 %v2878, 16
        %v2900 = vrot.slane %v2898, 4
        %v2901 = vshll.u32 %v2878, 16
        %v2903 = vrot.slane %v2901, 5
        %v2904 = vor.u32 %v2900, %v2903
        %v2905 = vrot.slane %v2904, 4
        %v2907 = vshll.u32 %v2879, 16
        %v2909 = vrot.slane %v2907, 5
        %v2910 = vsel %vm2896, %v2905, %v2909
        %v2912 = vshrl.u32 %v2880, 16
        %v2914 = vrot.slane %v2912, 4
        %v2915 = vshll.u32 %v2880, 16
        %v2917 = vrot.slane %v2915, 5
        %v2918 = vor.u32 %v2914, %v2917
        %v2919 = vrot.slane %v2918, 4
        %v2921 = vshll.u32 %v2881, 16
        %v2923 = vrot.slane %v2921, 5
        %v2924 = vsel %vm2896, %v2919, %v2923
        %v2926 = vshrl.u32 %v2882, 16
        %v2928 = vrot.slane %v2926, 4
        %v2929 = vshll.u32 %v2882, 16
        %v2931 = vrot.slane %v2929, 5
        %v2932 = vor.u32 %v2928, %v2931
        %v2933 = vrot.slane %v2932, 4
        %v2935 = vshll.u32 %v2883, 16
        %v2937 = vrot.slane %v2935, 5
        %v2938 = vsel %vm2896, %v2933, %v2937
        %v2940 = vshrl.u32 %v2884, 16
        %v2942 = vrot.slane %v2940, 4
        %v2943 = vshll.u32 %v2884, 16
        %v2945 = vrot.slane %v2943, 5
        %v2946 = vor.u32 %v2942, %v2945
        %v2947 = vrot.slane %v2946, 4
        %v2949 = vshll.u32 %v2885, 16
        %v2951 = vrot.slane %v2949, 5
        %v2952 = vsel %vm2896, %v2947, %v2951
        %v2954 = vshrl.u32 %v2886, 16
        %v2956 = vrot.slane %v2954, 4
        %v2957 = vshll.u32 %v2886, 16
        %v2959 = vrot.slane %v2957, 5
        %v2960 = vor.u32 %v2956, %v2959
        %v2961 = vrot.slane %v2960, 4
        %v2963 = vshll.u32 %v2887, 16
        %v2965 = vrot.slane %v2963, 5
        %v2966 = vsel %vm2896, %v2961, %v2965
        %v2968 = vshrl.u32 %v2888, 16
        %v2970 = vrot.slane %v2968, 4
        %v2971 = vshll.u32 %v2888, 16
        %v2973 = vrot.slane %v2971, 5
        %v2974 = vor.u32 %v2970, %v2973
        %v2975 = vrot.slane %v2974, 4
        %v2977 = vshll.u32 %v2889, 16
        %v2979 = vrot.slane %v2977, 5
        %v2980 = vsel %vm2896, %v2975, %v2979
        %v2982 = vshrl.u32 %v2890, 16
        %v2984 = vrot.slane %v2982, 4
        %v2985 = vshll.u32 %v2890, 16
        %v2987 = vrot.slane %v2985, 5
        %v2988 = vor.u32 %v2984, %v2987
        %v2989 = vrot.slane %v2988, 4
        %v2991 = vshll.u32 %v2891, 16
        %v2993 = vrot.slane %v2991, 5
        %v2994 = vsel %vm2896, %v2989, %v2993
        %v2996 = vshrl.u32 %v2892, 16
        %v2998 = vrot.slane %v2996, 4
        %v2999 = vshll.u32 %v2892, 16
        %v3001 = vrot.slane %v2999, 5
        %v3002 = vor.u32 %v2998, %v3001
        %v3003 = vrot.slane %v3002, 4
        %v3005 = vshll.u32 %v2893, 16
        %v3007 = vrot.slane %v3005, 5
        %v3008 = vsel %vm2896, %v3003, %v3007
        %v3009 = vunpack.c.l.b16 %v2910
        %v3010 = vunpack.c.l.b16 %v2924
        %v3011 = vunpack.c.l.b16 %v2938
        %v3012 = vunpack.c.l.b16 %v2952
        %v3013 = vunpack.c.l.b16 %v2966
        %v3014 = vunpack.c.l.b16 %v2980
        %v3015 = vunpack.c.l.b16 %v2994
        %v3016 = vunpack.c.l.b16 %v3008
        %v3017 = vpack.c.b16 %v3010, %v3009
        %v3018 = vpack.c.b16 %v3012, %v3011
        %v3019 = vpack.c.b16 %v3014, %v3013
        %v3020 = vpack.c.b16 %v3016, %v3015
        %v3022 = vsel %vm1520, %v3017, 0
        %v3025 = vsel %vm1520, %v3018, 0
        %v3028 = vsel %vm1520, %v3019, 0
        %v3031 = vsel %vm1520, %v3020, 0
        %v3034 = vsel %vm1597, %v2422, 0
        %3036 = vmatprep.subr.bf16.mxu0 0
        %3037 = vmatpush1.bf16.msra.mxu0 0
        %3038 = vmatprep.subr.bf16.mxu0 0
        %3039 = vmatpush1.bf16.msra.mxu0 0
        %3040 = vmatprep.subr.bf16.mxu0 0
        %3041 = vmatpush1.bf16.msra.mxu0 0
        %3042 = vmatprep.subr.bf16.mxu0 0
        %3043 = vmatpush1.bf16.msra.mxu0 0
        %3044 = vmatprep.subr.bf16.mxu0 0
        %3045 = vmatpush1.bf16.msra.mxu0 0
        %3046 = vmatprep.subr.bf16.mxu0 0
        %3047 = vmatpush1.bf16.msra.mxu0 0
        %3048 = vmatprep.subr.bf16.mxu0 0
        %3049 = vmatpush1.bf16.msra.mxu0 0
        %3050 = vmatprep.subr.bf16.mxu0 0
        %3051 = vmatpush1.bf16.msra.mxu0 %v3034
        %3052 = vmatprep.subr.bf16.mxu0 0
        %3053 = vmatpush2.bf16.msra.mxu0 0
        %3054 = vmatprep.subr.bf16.mxu0 0
        %3055 = vmatpush2.bf16.msra.mxu0 0
        %3056 = vmatprep.subr.bf16.mxu0 0
        %3057 = vmatpush2.bf16.msra.mxu0 0
        %3058 = vmatprep.subr.bf16.mxu0 0
        %3059 = vmatpush2.bf16.msra.mxu0 0
        %3060 = vmatprep.subr.bf16.mxu0 0
        %3061 = vmatpush2.bf16.msra.mxu0 0
        %3062 = vmatprep.subr.bf16.mxu0 0
        %3063 = vmatpush2.bf16.msra.mxu0 0
        %3064 = vmatprep.subr.bf16.mxu0 0
        %3065 = vmatpush2.bf16.msra.mxu0 0
        %3066 = vmatprep.subr.bf16.mxu0 0
        %3067 = vmatpush2.bf16.msra.mxu0 0
        %3068 = vmatprep.mubr.bf16.mxu0 0
        %3069 = vmatmul.mubr.bf16.gmra.mxu0 %v3022
        %v3070 = vpop.f32.mrf.mxu0
        %v3071 = vadd.f32 0.0, %v3070
        %v3072 = vpop.f32.mrf.mxu0
        %v3073 = vpop.f32.mrf.mxu0
        %v3074 = vadd.f32 0.0, %v3073
        %v3075 = vpop.f32.mrf.mxu0
        %3076 = vmatprep.mubr.bf16.mxu0 0
        %3077 = vmatmul.mubr.bf16.gmra.mxu0 %v3025
        %v3078 = vpop.f32.mrf.mxu0
        %v3079 = vadd.f32 0.0, %v3078
        %v3080 = vpop.f32.mrf.mxu0
        %v3081 = vpop.f32.mrf.mxu0
        %v3082 = vadd.f32 0.0, %v3081
        %v3083 = vpop.f32.mrf.mxu0
        %3084 = vmatprep.mubr.bf16.mxu0 0
        %3085 = vmatmul.mubr.bf16.gmra.mxu0 %v3028
        %v3086 = vpop.f32.mrf.mxu0
        %v3087 = vadd.f32 0.0, %v3086
        %v3088 = vpop.f32.mrf.mxu0
        %v3089 = vpop.f32.mrf.mxu0
        %v3090 = vadd.f32 0.0, %v3089
        %v3091 = vpop.f32.mrf.mxu0
        %3092 = vmatprep.mubr.bf16.mxu0 0
        %3093 = vmatmul.mubr.bf16.gmra.mxu0 %v3031
        %v3094 = vpop.f32.mrf.mxu0
        %v3095 = vadd.f32 0.0, %v3094
        %v3096 = vpop.f32.mrf.mxu0
        %v3097 = vpop.f32.mrf.mxu0
        %v3098 = vadd.f32 0.0, %v3097
        %v3099 = vpop.f32.mrf.mxu0
        %3100 = vdwg.mxu0
        %v3101 = vpack.c.b16 %v2864, %v2862
        %v3102 = vpack.c.b16 %v2868, %v2866
        %v3103 = vpack.c.b16 %v2872, %v2870
        %v3104 = vpack.c.b16 %v2876, %v2874
        %v3106 = vsel %vm1520, %v3101, 0
        %v3109 = vsel %vm1520, %v3102, 0
        %v3112 = vsel %vm1520, %v3103, 0
        %v3115 = vsel %vm1520, %v3104, 0
        %v3118 = vsel %vm1597, %v2421, 0
        %3120 = vmatprep.subr.bf16.mxu0 0
        %3121 = vmatpush1.bf16.msra.mxu0 0
        %3122 = vmatprep.subr.bf16.mxu0 0
        %3123 = vmatpush1.bf16.msra.mxu0 0
        %3124 = vmatprep.subr.bf16.mxu0 0
        %3125 = vmatpush1.bf16.msra.mxu0 0
        %3126 = vmatprep.subr.bf16.mxu0 0
        %3127 = vmatpush1.bf16.msra.mxu0 0
        %3128 = vmatprep.subr.bf16.mxu0 0
        %3129 = vmatpush1.bf16.msra.mxu0 0
        %3130 = vmatprep.subr.bf16.mxu0 0
        %3131 = vmatpush1.bf16.msra.mxu0 0
        %3132 = vmatprep.subr.bf16.mxu0 0
        %3133 = vmatpush1.bf16.msra.mxu0 0
        %3134 = vmatprep.subr.bf16.mxu0 0
        %3135 = vmatpush1.bf16.msra.mxu0 %v3118
        %3136 = vmatprep.subr.bf16.mxu0 0
        %3137 = vmatpush2.bf16.msra.mxu0 0
        %3138 = vmatprep.subr.bf16.mxu0 0
        %3139 = vmatpush2.bf16.msra.mxu0 0
        %3140 = vmatprep.subr.bf16.mxu0 0
        %3141 = vmatpush2.bf16.msra.mxu0 0
        %3142 = vmatprep.subr.bf16.mxu0 0
        %3143 = vmatpush2.bf16.msra.mxu0 0
        %3144 = vmatprep.subr.bf16.mxu0 0
        %3145 = vmatpush2.bf16.msra.mxu0 0
        %3146 = vmatprep.subr.bf16.mxu0 0
        %3147 = vmatpush2.bf16.msra.mxu0 0
        %3148 = vmatprep.subr.bf16.mxu0 0
        %3149 = vmatpush2.bf16.msra.mxu0 0
        %3150 = vmatprep.subr.bf16.mxu0 0
        %3151 = vmatpush2.bf16.msra.mxu0 0
        %3152 = vmatprep.mubr.bf16.mxu0 0
        %3153 = vmatmul.mubr.bf16.gmra.mxu0 %v3106
        %v3154 = vpop.f32.mrf.mxu0
        %v3155 = vadd.f32 %v3071, %v3154
        %v3156 = vpop.f32.mrf.mxu0
        %v3157 = vpop.f32.mrf.mxu0
        %v3158 = vadd.f32 %v3074, %v3157
        %v3159 = vpop.f32.mrf.mxu0
        %3160 = vmatprep.mubr.bf16.mxu0 0
        %3161 = vmatmul.mubr.bf16.gmra.mxu0 %v3109
        %v3162 = vpop.f32.mrf.mxu0
        %v3163 = vadd.f32 %v3079, %v3162
        %v3164 = vpop.f32.mrf.mxu0
        %v3165 = vpop.f32.mrf.mxu0
        %v3166 = vadd.f32 %v3082, %v3165
        %v3167 = vpop.f32.mrf.mxu0
        %3168 = vmatprep.mubr.bf16.mxu0 0
        %3169 = vmatmul.mubr.bf16.gmra.mxu0 %v3112
        %v3170 = vpop.f32.mrf.mxu0
        %v3171 = vadd.f32 %v3087, %v3170
        %v3172 = vpop.f32.mrf.mxu0
        %v3173 = vpop.f32.mrf.mxu0
        %v3174 = vadd.f32 %v3090, %v3173
        %v3175 = vpop.f32.mrf.mxu0
        %3176 = vmatprep.mubr.bf16.mxu0 0
        %3177 = vmatmul.mubr.bf16.gmra.mxu0 %v3115
        %v3178 = vpop.f32.mrf.mxu0
        %v3179 = vadd.f32 %v3095, %v3178
        %v3180 = vpop.f32.mrf.mxu0
        %v3181 = vpop.f32.mrf.mxu0
        %v3182 = vadd.f32 %v3098, %v3181
        %v3183 = vpop.f32.mrf.mxu0
        %3184 = vdwg.mxu0
        %vm3185 = vcmask 1042432
        %vm3186 = vcmask 1046532
        %vm3187 = vmor %vm3185, %vm3186
        %v3188 = vrot.slane %v2878, 5
        %v3189 = vrot.slane %v3188, 4
        %v3190 = vrot.slane %v2879, 5
        %v3191 = vsel %vm3187, %v3189, %v3190
        %v3192 = vrot.slane %v2880, 5
        %v3193 = vrot.slane %v3192, 4
        %v3194 = vrot.slane %v2881, 5
        %v3195 = vsel %vm3187, %v3193, %v3194
        %v3196 = vrot.slane %v2882, 5
        %v3197 = vrot.slane %v3196, 4
        %v3198 = vrot.slane %v2883, 5
        %v3199 = vsel %vm3187, %v3197, %v3198
        %v3200 = vrot.slane %v2884, 5
        %v3201 = vrot.slane %v3200, 4
        %v3202 = vrot.slane %v2885, 5
        %v3203 = vsel %vm3187, %v3201, %v3202
        %v3204 = vrot.slane %v2886, 5
        %v3205 = vrot.slane %v3204, 4
        %v3206 = vrot.slane %v2887, 5
        %v3207 = vsel %vm3187, %v3205, %v3206
        %v3208 = vrot.slane %v2888, 5
        %v3209 = vrot.slane %v3208, 4
        %v3210 = vrot.slane %v2889, 5
        %v3211 = vsel %vm3187, %v3209, %v3210
        %v3212 = vrot.slane %v2890, 5
        %v3213 = vrot.slane %v3212, 4
        %v3214 = vrot.slane %v2891, 5
        %v3215 = vsel %vm3187, %v3213, %v3214
        %v3216 = vrot.slane %v2892, 5
        %v3217 = vrot.slane %v3216, 4
        %v3218 = vrot.slane %v2893, 5
        %v3219 = vsel %vm3187, %v3217, %v3218
        %v3220 = vunpack.c.l.b16 %v3191
        %v3221 = vunpack.c.l.b16 %v3195
        %v3222 = vunpack.c.l.b16 %v3199
        %v3223 = vunpack.c.l.b16 %v3203
        %v3224 = vunpack.c.l.b16 %v3207
        %v3225 = vunpack.c.l.b16 %v3211
        %v3226 = vunpack.c.l.b16 %v3215
        %v3227 = vunpack.c.l.b16 %v3219
        %v3228 = vpack.c.b16 %v3221, %v3220
        %v3229 = vpack.c.b16 %v3223, %v3222
        %v3230 = vpack.c.b16 %v3225, %v3224
        %v3231 = vpack.c.b16 %v3227, %v3226
        %v3233 = vsel %vm1520, %v3228, 0
        %v3236 = vsel %vm1520, %v3229, 0
        %v3239 = vsel %vm1520, %v3230, 0
        %v3242 = vsel %vm1520, %v3231, 0
        %v3245 = vsel %vm1597, %v2423, 0
        %3247 = vmatprep.subr.bf16.mxu0 0
        %3248 = vmatpush1.bf16.msra.mxu0 0
        %3249 = vmatprep.subr.bf16.mxu0 0
        %3250 = vmatpush1.bf16.msra.mxu0 0
        %3251 = vmatprep.subr.bf16.mxu0 0
        %3252 = vmatpush1.bf16.msra.mxu0 0
        %3253 = vmatprep.subr.bf16.mxu0 0
        %3254 = vmatpush1.bf16.msra.mxu0 0
        %3255 = vmatprep.subr.bf16.mxu0 0
        %3256 = vmatpush1.bf16.msra.mxu0 0
        %3257 = vmatprep.subr.bf16.mxu0 0
        %3258 = vmatpush1.bf16.msra.mxu0 0
        %3259 = vmatprep.subr.bf16.mxu0 0
        %3260 = vmatpush1.bf16.msra.mxu0 0
        %3261 = vmatprep.subr.bf16.mxu0 0
        %3262 = vmatpush1.bf16.msra.mxu0 %v3245
        %3263 = vmatprep.subr.bf16.mxu0 0
        %3264 = vmatpush2.bf16.msra.mxu0 0
        %3265 = vmatprep.subr.bf16.mxu0 0
        %3266 = vmatpush2.bf16.msra.mxu0 0
        %3267 = vmatprep.subr.bf16.mxu0 0
        %3268 = vmatpush2.bf16.msra.mxu0 0
        %3269 = vmatprep.subr.bf16.mxu0 0
        %3270 = vmatpush2.bf16.msra.mxu0 0
        %3271 = vmatprep.subr.bf16.mxu0 0
        %3272 = vmatpush2.bf16.msra.mxu0 0
        %3273 = vmatprep.subr.bf16.mxu0 0
        %3274 = vmatpush2.bf16.msra.mxu0 0
        %3275 = vmatprep.subr.bf16.mxu0 0
        %3276 = vmatpush2.bf16.msra.mxu0 0
        %3277 = vmatprep.subr.bf16.mxu0 0
        %3278 = vmatpush2.bf16.msra.mxu0 0
        %3279 = vmatprep.mubr.bf16.mxu0 0
        %3280 = vmatmul.mubr.bf16.gmra.mxu0 %v3233
        %v3281 = vpop.f32.mrf.mxu0
        %v3282 = vadd.f32 0.0, %v3281
        %v3283 = vpop.f32.mrf.mxu0
        %v3284 = vpop.f32.mrf.mxu0
        %v3285 = vadd.f32 0.0, %v3284
        %v3286 = vpop.f32.mrf.mxu0
        %3287 = vmatprep.mubr.bf16.mxu0 0
        %3288 = vmatmul.mubr.bf16.gmra.mxu0 %v3236
        %v3289 = vpop.f32.mrf.mxu0
        %v3290 = vadd.f32 0.0, %v3289
        %v3291 = vpop.f32.mrf.mxu0
        %v3292 = vpop.f32.mrf.mxu0
        %v3293 = vadd.f32 0.0, %v3292
        %v3294 = vpop.f32.mrf.mxu0
        %3295 = vmatprep.mubr.bf16.mxu0 0
        %3296 = vmatmul.mubr.bf16.gmra.mxu0 %v3239
        %v3297 = vpop.f32.mrf.mxu0
        %v3298 = vadd.f32 0.0, %v3297
        %v3299 = vpop.f32.mrf.mxu0
        %v3300 = vpop.f32.mrf.mxu0
        %v3301 = vadd.f32 0.0, %v3300
        %v3302 = vpop.f32.mrf.mxu0
        %3303 = vmatprep.mubr.bf16.mxu0 0
        %3304 = vmatmul.mubr.bf16.gmra.mxu0 %v3242
        %v3305 = vpop.f32.mrf.mxu0
        %v3306 = vadd.f32 0.0, %v3305
        %v3307 = vpop.f32.mrf.mxu0
        %v3308 = vpop.f32.mrf.mxu0
        %v3309 = vadd.f32 0.0, %v3308
        %v3310 = vpop.f32.mrf.mxu0
        %3311 = vdwg.mxu0
        %v3312 = vadd.f32 %v3155, %v3282
        %v3313 = vadd.f32 %v3158, %v3285
        %v3314 = vadd.f32 %v3163, %v3290
        %v3315 = vadd.f32 %v3166, %v3293
        %v3316 = vadd.f32 %v3171, %v3298
        %v3317 = vadd.f32 %v3174, %v3301
        %v3318 = vadd.f32 %v3179, %v3306
        %v3319 = vadd.f32 %v3182, %v3309
        %v3321 = vunpack.c.l.b16 %v2853
        %v3322 = vpack.c.b16 %v2866, %v2864
        %v3323 = vpack.c.b16 %v2870, %v2868
        %v3324 = vpack.c.b16 %v2874, %v2872
        %v3325 = vpack.c.b16 %v3321, %v2876
        %v3327 = vsel %vm1520, %v3322, 0
        %v3330 = vsel %vm1520, %v3323, 0
        %v3333 = vsel %vm1520, %v3324, 0
        %v3336 = vsel %vm1520, %v3325, 0
        %v3339 = vsel %vm1597, %v2424, 0
        %3341 = vmatprep.subr.bf16.mxu0 0
        %3342 = vmatpush1.bf16.msra.mxu0 0
        %3343 = vmatprep.subr.bf16.mxu0 0
        %3344 = vmatpush1.bf16.msra.mxu0 0
        %3345 = vmatprep.subr.bf16.mxu0 0
        %3346 = vmatpush1.bf16.msra.mxu0 0
        %3347 = vmatprep.subr.bf16.mxu0 0
        %3348 = vmatpush1.bf16.msra.mxu0 0
        %3349 = vmatprep.subr.bf16.mxu0 0
        %3350 = vmatpush1.bf16.msra.mxu0 0
        %3351 = vmatprep.subr.bf16.mxu0 0
        %3352 = vmatpush1.bf16.msra.mxu0 0
        %3353 = vmatprep.subr.bf16.mxu0 0
        %3354 = vmatpush1.bf16.msra.mxu0 0
        %3355 = vmatprep.subr.bf16.mxu0 0
        %3356 = vmatpush1.bf16.msra.mxu0 %v3339
        %3357 = vmatprep.subr.bf16.mxu0 0
        %3358 = vmatpush2.bf16.msra.mxu0 0
        %3359 = vmatprep.subr.bf16.mxu0 0
        %3360 = vmatpush2.bf16.msra.mxu0 0
        %3361 = vmatprep.subr.bf16.mxu0 0
        %3362 = vmatpush2.bf16.msra.mxu0 0
        %3363 = vmatprep.subr.bf16.mxu0 0
        %3364 = vmatpush2.bf16.msra.mxu0 0
        %3365 = vmatprep.subr.bf16.mxu0 0
        %3366 = vmatpush2.bf16.msra.mxu0 0
        %3367 = vmatprep.subr.bf16.mxu0 0
        %3368 = vmatpush2.bf16.msra.mxu0 0
        %3369 = vmatprep.subr.bf16.mxu0 0
        %3370 = vmatpush2.bf16.msra.mxu0 0
        %3371 = vmatprep.subr.bf16.mxu0 0
        %3372 = vmatpush2.bf16.msra.mxu0 0
        %3373 = vmatprep.mubr.bf16.mxu0 0
        %3374 = vmatmul.mubr.bf16.gmra.mxu0 %v3327
        %v3375 = vpop.f32.mrf.mxu0
        %v3376 = vadd.f32 0.0, %v3375
        %v3377 = vpop.f32.mrf.mxu0
        %v3378 = vpop.f32.mrf.mxu0
        %v3379 = vadd.f32 0.0, %v3378
        %v3380 = vpop.f32.mrf.mxu0
        %3381 = vmatprep.mubr.bf16.mxu0 0
        %3382 = vmatmul.mubr.bf16.gmra.mxu0 %v3330
        %v3383 = vpop.f32.mrf.mxu0
        %v3384 = vadd.f32 0.0, %v3383
        %v3385 = vpop.f32.mrf.mxu0
        %v3386 = vpop.f32.mrf.mxu0
        %v3387 = vadd.f32 0.0, %v3386
        %v3388 = vpop.f32.mrf.mxu0
        %3389 = vmatprep.mubr.bf16.mxu0 0
        %3390 = vmatmul.mubr.bf16.gmra.mxu0 %v3333
        %v3391 = vpop.f32.mrf.mxu0
        %v3392 = vadd.f32 0.0, %v3391
        %v3393 = vpop.f32.mrf.mxu0
        %v3394 = vpop.f32.mrf.mxu0
        %v3395 = vadd.f32 0.0, %v3394
        %v3396 = vpop.f32.mrf.mxu0
        %3397 = vmatprep.mubr.bf16.mxu0 0
        %3398 = vmatmul.mubr.bf16.gmra.mxu0 %v3336
        %v3399 = vpop.f32.mrf.mxu0
        %v3400 = vadd.f32 0.0, %v3399
        %v3401 = vpop.f32.mrf.mxu0
        %v3402 = vpop.f32.mrf.mxu0
        %v3403 = vadd.f32 0.0, %v3402
        %v3404 = vpop.f32.mrf.mxu0
        %3405 = vdwg.mxu0
        %v3406 = vadd.f32 %v3312, %v3376
        %v3407 = vadd.f32 %v3313, %v3379
        %v3408 = vadd.f32 %v3314, %v3384
        %v3409 = vadd.f32 %v3315, %v3387
        %v3410 = vadd.f32 %v3316, %v3392
        %v3411 = vadd.f32 %v3317, %v3395
        %v3412 = vadd.f32 %v3318, %v3400
        %v3413 = vadd.f32 %v3319, %v3403
        %v3414 = vunpack.c.h.b16 %v2853
        %v3415 = vpack.c.b16 %v3321, %v3321
        %v3416 = vpack.c.b16 %v3414, %v3414
        %v3418 = vshrl.u32 %v3415, 16
        %v3420 = vrot.slane %v3418, 4
        %v3421 = vshll.u32 %v3415, 16
        %v3423 = vrot.slane %v3421, 5
        %v3424 = vor.u32 %v3420, %v3423
        %v3425 = vrot.slane %v3424, 4
        %v3427 = vshll.u32 %v3416, 16
        %v3429 = vrot.slane %v3427, 5
        %v3430 = vsel %vm2896, %v3425, %v3429
        %v3431 = vunpack.c.l.b16 %v3430
        %v3432 = vpack.c.b16 %v3011, %v3010
        %v3433 = vpack.c.b16 %v3013, %v3012
        %v3434 = vpack.c.b16 %v3015, %v3014
        %v3435 = vpack.c.b16 %v3431, %v3016
        %v3437 = vsel %vm1520, %v3432, 0
        %v3440 = vsel %vm1520, %v3433, 0
        %v3443 = vsel %vm1520, %v3434, 0
        %v3446 = vsel %vm1520, %v3435, 0
        %v3449 = vsel %vm1597, %v2425, 0
        %3451 = vmatprep.subr.bf16.mxu0 0
        %3452 = vmatpush1.bf16.msra.mxu0 0
        %3453 = vmatprep.subr.bf16.mxu0 0
        %3454 = vmatpush1.bf16.msra.mxu0 0
        %3455 = vmatprep.subr.bf16.mxu0 0
        %3456 = vmatpush1.bf16.msra.mxu0 0
        %3457 = vmatprep.subr.bf16.mxu0 0
        %3458 = vmatpush1.bf16.msra.mxu0 0
        %3459 = vmatprep.subr.bf16.mxu0 0
        %3460 = vmatpush1.bf16.msra.mxu0 0
        %3461 = vmatprep.subr.bf16.mxu0 0
        %3462 = vmatpush1.bf16.msra.mxu0 0
        %3463 = vmatprep.subr.bf16.mxu0 0
        %3464 = vmatpush1.bf16.msra.mxu0 0
        %3465 = vmatprep.subr.bf16.mxu0 0
        %3466 = vmatpush1.bf16.msra.mxu0 %v3449
        %3467 = vmatprep.subr.bf16.mxu0 0
        %3468 = vmatpush2.bf16.msra.mxu0 0
        %3469 = vmatprep.subr.bf16.mxu0 0
        %3470 = vmatpush2.bf16.msra.mxu0 0
        %3471 = vmatprep.subr.bf16.mxu0 0
        %3472 = vmatpush2.bf16.msra.mxu0 0
        %3473 = vmatprep.subr.bf16.mxu0 0
        %3474 = vmatpush2.bf16.msra.mxu0 0
        %3475 = vmatprep.subr.bf16.mxu0 0
        %3476 = vmatpush2.bf16.msra.mxu0 0
        %3477 = vmatprep.subr.bf16.mxu0 0
        %3478 = vmatpush2.bf16.msra.mxu0 0
        %3479 = vmatprep.subr.bf16.mxu0 0
        %3480 = vmatpush2.bf16.msra.mxu0 0
        %3481 = vmatprep.subr.bf16.mxu0 0
        %3482 = vmatpush2.bf16.msra.mxu0 0
        %3483 = vmatprep.mubr.bf16.mxu0 0
        %3484 = vmatmul.mubr.bf16.gmra.mxu0 %v3437
        %v3485 = vpop.f32.mrf.mxu0
        %v3486 = vadd.f32 0.0, %v3485
        %v3487 = vpop.f32.mrf.mxu0
        %v3488 = vpop.f32.mrf.mxu0
        %v3489 = vadd.f32 0.0, %v3488
        %v3490 = vpop.f32.mrf.mxu0
        %3491 = vmatprep.mubr.bf16.mxu0 0
        %3492 = vmatmul.mubr.bf16.gmra.mxu0 %v3440
        %v3493 = vpop.f32.mrf.mxu0
        %v3494 = vadd.f32 0.0, %v3493
        %v3495 = vpop.f32.mrf.mxu0
        %v3496 = vpop.f32.mrf.mxu0
        %v3497 = vadd.f32 0.0, %v3496
        %v3498 = vpop.f32.mrf.mxu0
        %3499 = vmatprep.mubr.bf16.mxu0 0
        %3500 = vmatmul.mubr.bf16.gmra.mxu0 %v3443
        %v3501 = vpop.f32.mrf.mxu0
        %v3502 = vadd.f32 0.0, %v3501
        %v3503 = vpop.f32.mrf.mxu0
        %v3504 = vpop.f32.mrf.mxu0
        %v3505 = vadd.f32 0.0, %v3504
        %v3506 = vpop.f32.mrf.mxu0
        %3507 = vmatprep.mubr.bf16.mxu0 0
        %3508 = vmatmul.mubr.bf16.gmra.mxu0 %v3446
        %v3509 = vpop.f32.mrf.mxu0
        %v3510 = vadd.f32 0.0, %v3509
        %v3511 = vpop.f32.mrf.mxu0
        %v3512 = vpop.f32.mrf.mxu0
        %v3513 = vadd.f32 0.0, %v3512
        %v3514 = vpop.f32.mrf.mxu0
        %3515 = vdwg.mxu0
        %v3516 = vadd.f32 %v3406, %v3486
        %v3517 = vadd.f32 %v3407, %v3489
        %v3518 = vadd.f32 %v3408, %v3494
        %v3519 = vadd.f32 %v3409, %v3497
        %v3520 = vadd.f32 %v3410, %v3502
        %v3521 = vadd.f32 %v3411, %v3505
        %v3522 = vadd.f32 %v3412, %v3510
        %v3523 = vadd.f32 %v3413, %v3513
        %v3524 = vrot.slane %v3415, 5
        %v3525 = vrot.slane %v3524, 4
        %v3526 = vrot.slane %v3416, 5
        %v3527 = vsel %vm3187, %v3525, %v3526
        %v3528 = vunpack.c.l.b16 %v3527
        %v3529 = vpack.c.b16 %v3222, %v3221
        %v3530 = vpack.c.b16 %v3224, %v3223
        %v3531 = vpack.c.b16 %v3226, %v3225
        %v3532 = vpack.c.b16 %v3528, %v3227
        %v3534 = vsel %vm1520, %v3529, 0
        %v3537 = vsel %vm1520, %v3530, 0
        %v3540 = vsel %vm1520, %v3531, 0
        %v3543 = vsel %vm1520, %v3532, 0
        %v3546 = vsel %vm1597, %v2426, 0
        %3548 = vmatprep.subr.bf16.mxu0 0
        %3549 = vmatpush1.bf16.msra.mxu0 0
        %3550 = vmatprep.subr.bf16.mxu0 0
        %3551 = vmatpush1.bf16.msra.mxu0 0
        %3552 = vmatprep.subr.bf16.mxu0 0
        %3553 = vmatpush1.bf16.msra.mxu0 0
        %3554 = vmatprep.subr.bf16.mxu0 0
        %3555 = vmatpush1.bf16.msra.mxu0 0
        %3556 = vmatprep.subr.bf16.mxu0 0
        %3557 = vmatpush1.bf16.msra.mxu0 0
        %3558 = vmatprep.subr.bf16.mxu0 0
        %3559 = vmatpush1.bf16.msra.mxu0 0
        %3560 = vmatprep.subr.bf16.mxu0 0
        %3561 = vmatpush1.bf16.msra.mxu0 0
        %3562 = vmatprep.subr.bf16.mxu0 0
        %3563 = vmatpush1.bf16.msra.mxu0 %v3546
        %3564 = vmatprep.subr.bf16.mxu0 0
        %3565 = vmatpush2.bf16.msra.mxu0 0
        %3566 = vmatprep.subr.bf16.mxu0 0
        %3567 = vmatpush2.bf16.msra.mxu0 0
        %3568 = vmatprep.subr.bf16.mxu0 0
        %3569 = vmatpush2.bf16.msra.mxu0 0
        %3570 = vmatprep.subr.bf16.mxu0 0
        %3571 = vmatpush2.bf16.msra.mxu0 0
        %3572 = vmatprep.subr.bf16.mxu0 0
        %3573 = vmatpush2.bf16.msra.mxu0 0
        %3574 = vmatprep.subr.bf16.mxu0 0
        %3575 = vmatpush2.bf16.msra.mxu0 0
        %3576 = vmatprep.subr.bf16.mxu0 0
        %3577 = vmatpush2.bf16.msra.mxu0 0
        %3578 = vmatprep.subr.bf16.mxu0 0
        %3579 = vmatpush2.bf16.msra.mxu0 0
        %3580 = vmatprep.mubr.bf16.mxu0 0
        %3581 = vmatmul.mubr.bf16.gmra.mxu0 %v3534
        %v3582 = vpop.f32.mrf.mxu0
        %v3583 = vadd.f32 0.0, %v3582
        %v3584 = vpop.f32.mrf.mxu0
        %v3585 = vpop.f32.mrf.mxu0
        %v3586 = vadd.f32 0.0, %v3585
        %v3587 = vpop.f32.mrf.mxu0
        %3588 = vmatprep.mubr.bf16.mxu0 0
        %3589 = vmatmul.mubr.bf16.gmra.mxu0 %v3537
        %v3590 = vpop.f32.mrf.mxu0
        %v3591 = vadd.f32 0.0, %v3590
        %v3592 = vpop.f32.mrf.mxu0
        %v3593 = vpop.f32.mrf.mxu0
        %v3594 = vadd.f32 0.0, %v3593
        %v3595 = vpop.f32.mrf.mxu0
        %3596 = vmatprep.mubr.bf16.mxu0 0
        %3597 = vmatmul.mubr.bf16.gmra.mxu0 %v3540
        %v3598 = vpop.f32.mrf.mxu0
        %v3599 = vadd.f32 0.0, %v3598
        %v3600 = vpop.f32.mrf.mxu0
        %v3601 = vpop.f32.mrf.mxu0
        %v3602 = vadd.f32 0.0, %v3601
        %v3603 = vpop.f32.mrf.mxu0
        %3604 = vmatprep.mubr.bf16.mxu0 0
        %3605 = vmatmul.mubr.bf16.gmra.mxu0 %v3543
        %v3606 = vpop.f32.mrf.mxu0
        %v3607 = vadd.f32 0.0, %v3606
        %v3608 = vpop.f32.mrf.mxu0
        %v3609 = vpop.f32.mrf.mxu0
        %v3610 = vadd.f32 0.0, %v3609
        %v3611 = vpop.f32.mrf.mxu0
        %3612 = vdwg.mxu0
        %v3613 = vadd.f32 %v3516, %v3583
        %v3614 = vadd.f32 %v3517, %v3586
        %v3615 = vadd.f32 %v3518, %v3591
        %v3616 = vadd.f32 %v3519, %v3594
        %v3617 = vadd.f32 %v3520, %v3599
        %v3618 = vadd.f32 %v3521, %v3602
        %v3619 = vadd.f32 %v3522, %v3607
        %v3620 = vadd.f32 %v3523, %v3610
        %v3621 = vpack.c.b16 %v2862, %v3321
        %v3623 = vsel %vm1520, %v3621, 0
        %v3626 = vsel %vm1597, %v2427, 0
        %3628 = vmatprep.subr.bf16.mxu0 0
        %3629 = vmatpush1.bf16.msra.mxu0 0
        %3630 = vmatprep.subr.bf16.mxu0 0
        %3631 = vmatpush1.bf16.msra.mxu0 0
        %3632 = vmatprep.subr.bf16.mxu0 0
        %3633 = vmatpush1.bf16.msra.mxu0 0
        %3634 = vmatprep.subr.bf16.mxu0 0
        %3635 = vmatpush1.bf16.msra.mxu0 0
        %3636 = vmatprep.subr.bf16.mxu0 0
        %3637 = vmatpush1.bf16.msra.mxu0 0
        %3638 = vmatprep.subr.bf16.mxu0 0
        %3639 = vmatpush1.bf16.msra.mxu0 0
        %3640 = vmatprep.subr.bf16.mxu0 0
        %3641 = vmatpush1.bf16.msra.mxu0 0
        %3642 = vmatprep.subr.bf16.mxu0 0
        %3643 = vmatpush1.bf16.msra.mxu0 %v3626
        %3644 = vmatprep.subr.bf16.mxu0 0
        %3645 = vmatpush2.bf16.msra.mxu0 0
        %3646 = vmatprep.subr.bf16.mxu0 0
        %3647 = vmatpush2.bf16.msra.mxu0 0
        %3648 = vmatprep.subr.bf16.mxu0 0
        %3649 = vmatpush2.bf16.msra.mxu0 0
        %3650 = vmatprep.subr.bf16.mxu0 0
        %3651 = vmatpush2.bf16.msra.mxu0 0
        %3652 = vmatprep.subr.bf16.mxu0 0
        %3653 = vmatpush2.bf16.msra.mxu0 0
        %3654 = vmatprep.subr.bf16.mxu0 0
        %3655 = vmatpush2.bf16.msra.mxu0 0
        %3656 = vmatprep.subr.bf16.mxu0 0
        %3657 = vmatpush2.bf16.msra.mxu0 0
        %3658 = vmatprep.subr.bf16.mxu0 0
        %3659 = vmatpush2.bf16.msra.mxu0 0
        %3660 = vmatprep.mubr.bf16.mxu0 0
        %3661 = vmatmul.mubr.bf16.gmra.mxu0 %v3109
        %v3662 = vpop.f32.mrf.mxu0
        %v3663 = vadd.f32 0.0, %v3662
        %v3664 = vpop.f32.mrf.mxu0
        %v3665 = vpop.f32.mrf.mxu0
        %v3666 = vadd.f32 0.0, %v3665
        %v3667 = vpop.f32.mrf.mxu0
        %3668 = vmatprep.mubr.bf16.mxu0 0
        %3669 = vmatmul.mubr.bf16.gmra.mxu0 %v3112
        %v3670 = vpop.f32.mrf.mxu0
        %v3671 = vadd.f32 0.0, %v3670
        %v3672 = vpop.f32.mrf.mxu0
        %v3673 = vpop.f32.mrf.mxu0
        %v3674 = vadd.f32 0.0, %v3673
        %v3675 = vpop.f32.mrf.mxu0
        %3676 = vmatprep.mubr.bf16.mxu0 0
        %3677 = vmatmul.mubr.bf16.gmra.mxu0 %v3115
        %v3678 = vpop.f32.mrf.mxu0
        %v3679 = vadd.f32 0.0, %v3678
        %v3680 = vpop.f32.mrf.mxu0
        %v3681 = vpop.f32.mrf.mxu0
        %v3682 = vadd.f32 0.0, %v3681
        %v3683 = vpop.f32.mrf.mxu0
        %3684 = vmatprep.mubr.bf16.mxu0 0
        %3685 = vmatmul.mubr.bf16.gmra.mxu0 %v3623
        %v3686 = vpop.f32.mrf.mxu0
        %v3687 = vadd.f32 0.0, %v3686
        %v3688 = vpop.f32.mrf.mxu0
        %v3689 = vpop.f32.mrf.mxu0
        %v3690 = vadd.f32 0.0, %v3689
        %v3691 = vpop.f32.mrf.mxu0
        %3692 = vdwg.mxu0
        %v3693 = vadd.f32 %v3613, %v3663
        %v3694 = vadd.f32 %v3614, %v3666
        %v3695 = vadd.f32 %v3615, %v3671
        %v3696 = vadd.f32 %v3616, %v3674
        %v3697 = vadd.f32 %v3617, %v3679
        %v3698 = vadd.f32 %v3618, %v3682
        %v3699 = vadd.f32 %v3619, %v3687
        %v3700 = vadd.f32 %v3620, %v3690
        %v3701 = vpack.c.b16 %v3009, %v3431
        %v3703 = vsel %vm1520, %v3701, 0
        %v3706 = vsel %vm1597, %v2428, 0
        %3708 = vmatprep.subr.bf16.mxu0 0
        %3709 = vmatpush1.bf16.msra.mxu0 0
        %3710 = vmatprep.subr.bf16.mxu0 0
        %3711 = vmatpush1.bf16.msra.mxu0 0
        %3712 = vmatprep.subr.bf16.mxu0 0
        %3713 = vmatpush1.bf16.msra.mxu0 0
        %3714 = vmatprep.subr.bf16.mxu0 0
        %3715 = vmatpush1.bf16.msra.mxu0 0
        %3716 = vmatprep.subr.bf16.mxu0 0
        %3717 = vmatpush1.bf16.msra.mxu0 0
        %3718 = vmatprep.subr.bf16.mxu0 0
        %3719 = vmatpush1.bf16.msra.mxu0 0
        %3720 = vmatprep.subr.bf16.mxu0 0
        %3721 = vmatpush1.bf16.msra.mxu0 0
        %3722 = vmatprep.subr.bf16.mxu0 0
        %3723 = vmatpush1.bf16.msra.mxu0 %v3706
        %3724 = vmatprep.subr.bf16.mxu0 0
        %3725 = vmatpush2.bf16.msra.mxu0 0
        %3726 = vmatprep.subr.bf16.mxu0 0
        %3727 = vmatpush2.bf16.msra.mxu0 0
        %3728 = vmatprep.subr.bf16.mxu0 0
        %3729 = vmatpush2.bf16.msra.mxu0 0
        %3730 = vmatprep.subr.bf16.mxu0 0
        %3731 = vmatpush2.bf16.msra.mxu0 0
        %3732 = vmatprep.subr.bf16.mxu0 0
        %3733 = vmatpush2.bf16.msra.mxu0 0
        %3734 = vmatprep.subr.bf16.mxu0 0
        %3735 = vmatpush2.bf16.msra.mxu0 0
        %3736 = vmatprep.subr.bf16.mxu0 0
        %3737 = vmatpush2.bf16.msra.mxu0 0
        %3738 = vmatprep.subr.bf16.mxu0 0
        %3739 = vmatpush2.bf16.msra.mxu0 0
        %3740 = vmatprep.mubr.bf16.mxu0 0
        %3741 = vmatmul.mubr.bf16.gmra.mxu0 %v3025
        %v3742 = vpop.f32.mrf.mxu0
        %v3743 = vadd.f32 0.0, %v3742
        %v3744 = vpop.f32.mrf.mxu0
        %v3745 = vpop.f32.mrf.mxu0
        %v3746 = vadd.f32 0.0, %v3745
        %v3747 = vpop.f32.mrf.mxu0
        %3748 = vmatprep.mubr.bf16.mxu0 0
        %3749 = vmatmul.mubr.bf16.gmra.mxu0 %v3028
        %v3750 = vpop.f32.mrf.mxu0
        %v3751 = vadd.f32 0.0, %v3750
        %v3752 = vpop.f32.mrf.mxu0
        %v3753 = vpop.f32.mrf.mxu0
        %v3754 = vadd.f32 0.0, %v3753
        %v3755 = vpop.f32.mrf.mxu0
        %3756 = vmatprep.mubr.bf16.mxu0 0
        %3757 = vmatmul.mubr.bf16.gmra.mxu0 %v3031
        %v3758 = vpop.f32.mrf.mxu0
        %v3759 = vadd.f32 0.0, %v3758
        %v3760 = vpop.f32.mrf.mxu0
        %v3761 = vpop.f32.mrf.mxu0
        %v3762 = vadd.f32 0.0, %v3761
        %v3763 = vpop.f32.mrf.mxu0
        %3764 = vmatprep.mubr.bf16.mxu0 0
        %3765 = vmatmul.mubr.bf16.gmra.mxu0 %v3703
        %v3766 = vpop.f32.mrf.mxu0
        %v3767 = vadd.f32 0.0, %v3766
        %v3768 = vpop.f32.mrf.mxu0
        %v3769 = vpop.f32.mrf.mxu0
        %v3770 = vadd.f32 0.0, %v3769
        %v3771 = vpop.f32.mrf.mxu0
        %3772 = vdwg.mxu0
        %v3773 = vadd.f32 %v3693, %v3743
        %v3774 = vadd.f32 %v3694, %v3746
        %v3775 = vadd.f32 %v3695, %v3751
        %v3776 = vadd.f32 %v3696, %v3754
        %v3777 = vadd.f32 %v3697, %v3759
        %v3778 = vadd.f32 %v3698, %v3762
        %v3779 = vadd.f32 %v3699, %v3767
        %v3780 = vadd.f32 %v3700, %v3770
        %v3781 = vpack.c.b16 %v3220, %v3528
        %v3783 = vsel %vm1520, %v3781, 0
        %v3786 = vsel %vm1597, %v2429, 0
        %3788 = vmatprep.subr.bf16.mxu0 0
        %3789 = vmatpush1.bf16.msra.mxu0 0
        %3790 = vmatprep.subr.bf16.mxu0 0
        %3791 = vmatpush1.bf16.msra.mxu0 0
        %3792 = vmatprep.subr.bf16.mxu0 0
        %3793 = vmatpush1.bf16.msra.mxu0 0
        %3794 = vmatprep.subr.bf16.mxu0 0
        %3795 = vmatpush1.bf16.msra.mxu0 0
        %3796 = vmatprep.subr.bf16.mxu0 0
        %3797 = vmatpush1.bf16.msra.mxu0 0
        %3798 = vmatprep.subr.bf16.mxu0 0
        %3799 = vmatpush1.bf16.msra.mxu0 0
        %3800 = vmatprep.subr.bf16.mxu0 0
        %3801 = vmatpush1.bf16.msra.mxu0 0
        %3802 = vmatprep.subr.bf16.mxu0 0
        %3803 = vmatpush1.bf16.msra.mxu0 %v3786
        %3804 = vmatprep.subr.bf16.mxu0 0
        %3805 = vmatpush2.bf16.msra.mxu0 0
        %3806 = vmatprep.subr.bf16.mxu0 0
        %3807 = vmatpush2.bf16.msra.mxu0 0
        %3808 = vmatprep.subr.bf16.mxu0 0
        %3809 = vmatpush2.bf16.msra.mxu0 0
        %3810 = vmatprep.subr.bf16.mxu0 0
        %3811 = vmatpush2.bf16.msra.mxu0 0
        %3812 = vmatprep.subr.bf16.mxu0 0
        %3813 = vmatpush2.bf16.msra.mxu0 0
        %3814 = vmatprep.subr.bf16.mxu0 0
        %3815 = vmatpush2.bf16.msra.mxu0 0
        %3816 = vmatprep.subr.bf16.mxu0 0
        %3817 = vmatpush2.bf16.msra.mxu0 0
        %3818 = vmatprep.subr.bf16.mxu0 0
        %3819 = vmatpush2.bf16.msra.mxu0 0
        %3820 = vmatprep.mubr.bf16.mxu0 0
        %3821 = vmatmul.mubr.bf16.gmra.mxu0 %v3236
        %v3822 = vpop.f32.mrf.mxu0
        %v3823 = vadd.f32 0.0, %v3822
        %v3824 = vpop.f32.mrf.mxu0
        %v3825 = vpop.f32.mrf.mxu0
        %v3826 = vadd.f32 0.0, %v3825
        %v3827 = vpop.f32.mrf.mxu0
        %3828 = vmatprep.mubr.bf16.mxu0 0
        %3829 = vmatmul.mubr.bf16.gmra.mxu0 %v3239
        %v3830 = vpop.f32.mrf.mxu0
        %v3831 = vadd.f32 0.0, %v3830
        %v3832 = vpop.f32.mrf.mxu0
        %v3833 = vpop.f32.mrf.mxu0
        %v3834 = vadd.f32 0.0, %v3833
        %v3835 = vpop.f32.mrf.mxu0
        %3836 = vmatprep.mubr.bf16.mxu0 0
        %3837 = vmatmul.mubr.bf16.gmra.mxu0 %v3242
        %v3838 = vpop.f32.mrf.mxu0
        %v3839 = vadd.f32 0.0, %v3838
        %v3840 = vpop.f32.mrf.mxu0
        %v3841 = vpop.f32.mrf.mxu0
        %v3842 = vadd.f32 0.0, %v3841
        %v3843 = vpop.f32.mrf.mxu0
        %3844 = vmatprep.mubr.bf16.mxu0 0
        %3845 = vmatmul.mubr.bf16.gmra.mxu0 %v3783
        %v3846 = vpop.f32.mrf.mxu0
        %v3847 = vadd.f32 0.0, %v3846
        %v3848 = vpop.f32.mrf.mxu0
        %v3849 = vpop.f32.mrf.mxu0
        %v3850 = vadd.f32 0.0, %v3849
        %v3851 = vpop.f32.mrf.mxu0
        %3852 = vdwg.mxu0
        %v3853 = vadd.f32 %v3773, %v3823
        %v3854 = vadd.f32 %v3774, %v3826
        %v3855 = vadd.f32 %v3775, %v3831
        %v3856 = vadd.f32 %v3776, %v3834
        %v3857 = vadd.f32 %v3777, %v3839
        %v3858 = vadd.f32 %v3778, %v3842
        %v3859 = vadd.f32 %v3779, %v3847
        %v3860 = vadd.f32 %v3780, %v3850
        %v3861 = vld [vmem:[%s4] sm:$0x1]
        %v3863 = vlaneseq
        %v3864 = vshrl.u32 %v3863, 7
        %v3865 = vsub.s32 0, %v3864
        %v3866 = vrot.slane %v3861, %v3865
        %v3868 = vadd.f32 %v3853, %v3866
        %v3869 = vadd.f32 %v3854, %v3866
        %v3870 = vadd.f32 %v3855, %v3866
        %v3871 = vadd.f32 %v3856, %v3866
        %v3872 = vadd.f32 %v3857, %v3866
        %v3873 = vadd.f32 %v3858, %v3866
        %v3874 = vadd.f32 %v3859, %v3866
        %v3875 = vadd.f32 %v3860, %v3866
        %v3876 = vmax.f32 %v3868, 0.0
        %v3877 = vmax.f32 %v3869, 0.0
        %v3878 = vmax.f32 %v3870, 0.0
        %v3879 = vmax.f32 %v3871, 0.0
        %v3880 = vmax.f32 %v3872, 0.0
        %v3881 = vmax.f32 %v3873, 0.0
        %v3882 = vmax.f32 %v3874, 0.0
        %v3883 = vmax.f32 %v3875, 0.0
        %v3892 = vcombine.high %v3876, %v3876
        %v3894 = vunpack.c.l.s4 1966171168
        %v3895 = vunpack.c.0.s8 %v3894
        %v3896 = vlaneseq
        %v3897 = vshrl.u32 %v3896, 7
        %v3898 = vsub.s32 %v3895, %v3897
        %v3899 = vrot.slane %v3876, %v3898
        %v3901 = vunpack.c.l.s4 1966171168
        %v3902 = vunpack.c.0.s8 %v3901
        %v3903 = vlaneseq
        %v3904 = vshrl.u32 %v3903, 7
        %v3905 = vsub.s32 %v3902, %v3904
        %v3906 = vrot.slane %v3892, %v3905
        %v3907 = vcombine.high %v3899, %v3899
        %v3908 = vcombine.high %v3906, %v3906
        %v3910 = vunpack.c.l.s4 1966171168
        %v3911 = vunpack.c.0.s8 %v3910
        %v3912 = vlaneseq
        %v3913 = vshrl.u32 %v3912, 7
        %v3914 = vsub.s32 %v3911, %v3913
        %v3915 = vrot.slane %v3899, %v3914
        %v3917 = vunpack.c.l.s4 1966171168
        %v3918 = vunpack.c.0.s8 %v3917
        %v3919 = vlaneseq
        %v3920 = vshrl.u32 %v3919, 7
        %v3921 = vsub.s32 %v3918, %v3920
        %v3922 = vrot.slane %v3906, %v3921
        %v3924 = vunpack.c.l.s4 1966171168
        %v3925 = vunpack.c.0.s8 %v3924
        %v3926 = vlaneseq
        %v3927 = vshrl.u32 %v3926, 7
        %v3928 = vsub.s32 %v3925, %v3927
        %v3929 = vrot.slane %v3907, %v3928
        %v3931 = vunpack.c.l.s4 1966171168
        %v3932 = vunpack.c.0.s8 %v3931
        %v3933 = vlaneseq
        %v3934 = vshrl.u32 %v3933, 7
        %v3935 = vsub.s32 %v3932, %v3934
        %v3936 = vrot.slane %v3908, %v3935
        %v3937 = vcombine.high %v3915, %v3915
        %v3938 = vcombine.high %v3922, %v3922
        %v3939 = vcombine.high %v3929, %v3929
        %v3940 = vcombine.high %v3936, %v3936
        %v3941 = vcombine.high %v3877, %v3877
        %v3943 = vunpack.c.l.s4 1966171168
        %v3944 = vunpack.c.0.s8 %v3943
        %v3945 = vlaneseq
        %v3946 = vshrl.u32 %v3945, 7
        %v3947 = vsub.s32 %v3944, %v3946
        %v3948 = vrot.slane %v3877, %v3947
        %v3950 = vunpack.c.l.s4 1966171168
        %v3951 = vunpack.c.0.s8 %v3950
        %v3952 = vlaneseq
        %v3953 = vshrl.u32 %v3952, 7
        %v3954 = vsub.s32 %v3951, %v3953
        %v3955 = vrot.slane %v3941, %v3954
        %v3956 = vcombine.high %v3948, %v3948
        %v3957 = vcombine.high %v3955, %v3955
        %v3959 = vunpack.c.l.s4 1966171168
        %v3960 = vunpack.c.0.s8 %v3959
        %v3961 = vlaneseq
        %v3962 = vshrl.u32 %v3961, 7
        %v3963 = vsub.s32 %v3960, %v3962
        %v3964 = vrot.slane %v3948, %v3963
        %v3966 = vunpack.c.l.s4 1966171168
        %v3967 = vunpack.c.0.s8 %v3966
        %v3968 = vlaneseq
        %v3969 = vshrl.u32 %v3968, 7
        %v3970 = vsub.s32 %v3967, %v3969
        %v3971 = vrot.slane %v3955, %v3970
        %v3973 = vunpack.c.l.s4 1966171168
        %v3974 = vunpack.c.0.s8 %v3973
        %v3975 = vlaneseq
        %v3976 = vshrl.u32 %v3975, 7
        %v3977 = vsub.s32 %v3974, %v3976
        %v3978 = vrot.slane %v3956, %v3977
        %v3980 = vunpack.c.l.s4 1966171168
        %v3981 = vunpack.c.0.s8 %v3980
        %v3982 = vlaneseq
        %v3983 = vshrl.u32 %v3982, 7
        %v3984 = vsub.s32 %v3981, %v3983
        %v3985 = vrot.slane %v3957, %v3984
        %v3986 = vcombine.high %v3964, %v3964
        %v3987 = vcombine.high %v3971, %v3971
        %v3988 = vcombine.high %v3978, %v3978
        %v3989 = vcombine.high %v3985, %v3985
        %v3990 = vcombine.high %v3878, %v3878
        %v3992 = vunpack.c.l.s4 1966171168
        %v3993 = vunpack.c.0.s8 %v3992
        %v3994 = vlaneseq
        %v3995 = vshrl.u32 %v3994, 7
        %v3996 = vsub.s32 %v3993, %v3995
        %v3997 = vrot.slane %v3878, %v3996
        %v3999 = vunpack.c.l.s4 1966171168
        %v4000 = vunpack.c.0.s8 %v3999
        %v4001 = vlaneseq
        %v4002 = vshrl.u32 %v4001, 7
        %v4003 = vsub.s32 %v4000, %v4002
        %v4004 = vrot.slane %v3990, %v4003
        %v4005 = vcombine.high %v3997, %v3997
        %v4006 = vcombine.high %v4004, %v4004
        %v4008 = vunpack.c.l.s4 1966171168
        %v4009 = vunpack.c.0.s8 %v4008
        %v4010 = vlaneseq
        %v4011 = vshrl.u32 %v4010, 7
        %v4012 = vsub.s32 %v4009, %v4011
        %v4013 = vrot.slane %v3997, %v4012
        %v4015 = vunpack.c.l.s4 1966171168
        %v4016 = vunpack.c.0.s8 %v4015
        %v4017 = vlaneseq
        %v4018 = vshrl.u32 %v4017, 7
        %v4019 = vsub.s32 %v4016, %v4018
        %v4020 = vrot.slane %v4004, %v4019
        %v4022 = vunpack.c.l.s4 1966171168
        %v4023 = vunpack.c.0.s8 %v4022
        %v4024 = vlaneseq
        %v4025 = vshrl.u32 %v4024, 7
        %v4026 = vsub.s32 %v4023, %v4025
        %v4027 = vrot.slane %v4005, %v4026
        %v4029 = vunpack.c.l.s4 1966171168
        %v4030 = vunpack.c.0.s8 %v4029
        %v4031 = vlaneseq
        %v4032 = vshrl.u32 %v4031, 7
        %v4033 = vsub.s32 %v4030, %v4032
        %v4034 = vrot.slane %v4006, %v4033
        %v4035 = vcombine.high %v4013, %v4013
        %v4036 = vcombine.high %v4020, %v4020
        %v4037 = vcombine.high %v4027, %v4027
        %v4038 = vcombine.high %v4034, %v4034
        %v4039 = vcombine.high %v3879, %v3879
        %v4041 = vunpack.c.l.s4 1966171168
        %v4042 = vunpack.c.0.s8 %v4041
        %v4043 = vlaneseq
        %v4044 = vshrl.u32 %v4043, 7
        %v4045 = vsub.s32 %v4042, %v4044
        %v4046 = vrot.slane %v3879, %v4045
        %v4048 = vunpack.c.l.s4 1966171168
        %v4049 = vunpack.c.0.s8 %v4048
        %v4050 = vlaneseq
        %v4051 = vshrl.u32 %v4050, 7
        %v4052 = vsub.s32 %v4049, %v4051
        %v4053 = vrot.slane %v4039, %v4052
        %v4054 = vcombine.high %v4046, %v4046
        %v4055 = vcombine.high %v4053, %v4053
        %v4057 = vunpack.c.l.s4 1966171168
        %v4058 = vunpack.c.0.s8 %v4057
        %v4059 = vlaneseq
        %v4060 = vshrl.u32 %v4059, 7
        %v4061 = vsub.s32 %v4058, %v4060
        %v4062 = vrot.slane %v4046, %v4061
        %v4064 = vunpack.c.l.s4 1966171168
        %v4065 = vunpack.c.0.s8 %v4064
        %v4066 = vlaneseq
        %v4067 = vshrl.u32 %v4066, 7
        %v4068 = vsub.s32 %v4065, %v4067
        %v4069 = vrot.slane %v4053, %v4068
        %v4071 = vunpack.c.l.s4 1966171168
        %v4072 = vunpack.c.0.s8 %v4071
        %v4073 = vlaneseq
        %v4074 = vshrl.u32 %v4073, 7
        %v4075 = vsub.s32 %v4072, %v4074
        %v4076 = vrot.slane %v4054, %v4075
        %v4078 = vunpack.c.l.s4 1966171168
        %v4079 = vunpack.c.0.s8 %v4078
        %v4080 = vlaneseq
        %v4081 = vshrl.u32 %v4080, 7
        %v4082 = vsub.s32 %v4079, %v4081
        %v4083 = vrot.slane %v4055, %v4082
        %v4084 = vcombine.high %v4062, %v4062
        %v4085 = vcombine.high %v4069, %v4069
        %v4086 = vcombine.high %v4076, %v4076
        %v4087 = vcombine.high %v4083, %v4083
        %v4088 = vcombine.high %v3880, %v3880
        %v4090 = vunpack.c.l.s4 1966171168
        %v4091 = vunpack.c.0.s8 %v4090
        %v4092 = vlaneseq
        %v4093 = vshrl.u32 %v4092, 7
        %v4094 = vsub.s32 %v4091, %v4093
        %v4095 = vrot.slane %v3880, %v4094
        %v4097 = vunpack.c.l.s4 1966171168
        %v4098 = vunpack.c.0.s8 %v4097
        %v4099 = vlaneseq
        %v4100 = vshrl.u32 %v4099, 7
        %v4101 = vsub.s32 %v4098, %v4100
        %v4102 = vrot.slane %v4088, %v4101
        %v4103 = vcombine.high %v4095, %v4095
        %v4104 = vcombine.high %v4102, %v4102
        %v4106 = vunpack.c.l.s4 1966171168
        %v4107 = vunpack.c.0.s8 %v4106
        %v4108 = vlaneseq
        %v4109 = vshrl.u32 %v4108, 7
        %v4110 = vsub.s32 %v4107, %v4109
        %v4111 = vrot.slane %v4095, %v4110
        %v4113 = vunpack.c.l.s4 1966171168
        %v4114 = vunpack.c.0.s8 %v4113
        %v4115 = vlaneseq
        %v4116 = vshrl.u32 %v4115, 7
        %v4117 = vsub.s32 %v4114, %v4116
        %v4118 = vrot.slane %v4102, %v4117
        %v4120 = vunpack.c.l.s4 1966171168
        %v4121 = vunpack.c.0.s8 %v4120
        %v4122 = vlaneseq
        %v4123 = vshrl.u32 %v4122, 7
        %v4124 = vsub.s32 %v4121, %v4123
        %v4125 = vrot.slane %v4103, %v4124
        %v4127 = vunpack.c.l.s4 1966171168
        %v4128 = vunpack.c.0.s8 %v4127
        %v4129 = vlaneseq
        %v4130 = vshrl.u32 %v4129, 7
        %v4131 = vsub.s32 %v4128, %v4130
        %v4132 = vrot.slane %v4104, %v4131
        %v4133 = vcombine.high %v4111, %v4111
        %v4134 = vcombine.high %v4118, %v4118
        %v4135 = vcombine.high %v4125, %v4125
        %v4136 = vcombine.high %v4132, %v4132
        %v4137 = vcombine.high %v3881, %v3881
        %v4139 = vunpack.c.l.s4 1966171168
        %v4140 = vunpack.c.0.s8 %v4139
        %v4141 = vlaneseq
        %v4142 = vshrl.u32 %v4141, 7
        %v4143 = vsub.s32 %v4140, %v4142
        %v4144 = vrot.slane %v3881, %v4143
        %v4146 = vunpack.c.l.s4 1966171168
        %v4147 = vunpack.c.0.s8 %v4146
        %v4148 = vlaneseq
        %v4149 = vshrl.u32 %v4148, 7
        %v4150 = vsub.s32 %v4147, %v4149
        %v4151 = vrot.slane %v4137, %v4150
        %v4152 = vcombine.high %v4144, %v4144
        %v4153 = vcombine.high %v4151, %v4151
        %v4155 = vunpack.c.l.s4 1966171168
        %v4156 = vunpack.c.0.s8 %v4155
        %v4157 = vlaneseq
        %v4158 = vshrl.u32 %v4157, 7
        %v4159 = vsub.s32 %v4156, %v4158
        %v4160 = vrot.slane %v4144, %v4159
        %v4162 = vunpack.c.l.s4 1966171168
        %v4163 = vunpack.c.0.s8 %v4162
        %v4164 = vlaneseq
        %v4165 = vshrl.u32 %v4164, 7
        %v4166 = vsub.s32 %v4163, %v4165
        %v4167 = vrot.slane %v4151, %v4166
        %v4169 = vunpack.c.l.s4 1966171168
        %v4170 = vunpack.c.0.s8 %v4169
        %v4171 = vlaneseq
        %v4172 = vshrl.u32 %v4171, 7
        %v4173 = vsub.s32 %v4170, %v4172
        %v4174 = vrot.slane %v4152, %v4173
        %v4176 = vunpack.c.l.s4 1966171168
        %v4177 = vunpack.c.0.s8 %v4176
        %v4178 = vlaneseq
        %v4179 = vshrl.u32 %v4178, 7
        %v4180 = vsub.s32 %v4177, %v4179
        %v4181 = vrot.slane %v4153, %v4180
        %v4182 = vcombine.high %v4160, %v4160
        %v4183 = vcombine.high %v4167, %v4167
        %v4184 = vcombine.high %v4174, %v4174
        %v4185 = vcombine.high %v4181, %v4181
        %v4186 = vcombine.high %v3882, %v3882
        %v4188 = vunpack.c.l.s4 1966171168
        %v4189 = vunpack.c.0.s8 %v4188
        %v4190 = vlaneseq
        %v4191 = vshrl.u32 %v4190, 7
        %v4192 = vsub.s32 %v4189, %v4191
        %v4193 = vrot.slane %v3882, %v4192
        %v4195 = vunpack.c.l.s4 1966171168
        %v4196 = vunpack.c.0.s8 %v4195
        %v4197 = vlaneseq
        %v4198 = vshrl.u32 %v4197, 7
        %v4199 = vsub.s32 %v4196, %v4198
        %v4200 = vrot.slane %v4186, %v4199
        %v4201 = vcombine.high %v4193, %v4193
        %v4202 = vcombine.high %v4200, %v4200
        %v4204 = vunpack.c.l.s4 1966171168
        %v4205 = vunpack.c.0.s8 %v4204
        %v4206 = vlaneseq
        %v4207 = vshrl.u32 %v4206, 7
        %v4208 = vsub.s32 %v4205, %v4207
        %v4209 = vrot.slane %v4193, %v4208
        %v4211 = vunpack.c.l.s4 1966171168
        %v4212 = vunpack.c.0.s8 %v4211
        %v4213 = vlaneseq
        %v4214 = vshrl.u32 %v4213, 7
        %v4215 = vsub.s32 %v4212, %v4214
        %v4216 = vrot.slane %v4200, %v4215
        %v4218 = vunpack.c.l.s4 1966171168
        %v4219 = vunpack.c.0.s8 %v4218
        %v4220 = vlaneseq
        %v4221 = vshrl.u32 %v4220, 7
        %v4222 = vsub.s32 %v4219, %v4221
        %v4223 = vrot.slane %v4201, %v4222
        %v4225 = vunpack.c.l.s4 1966171168
        %v4226 = vunpack.c.0.s8 %v4225
        %v4227 = vlaneseq
        %v4228 = vshrl.u32 %v4227, 7
        %v4229 = vsub.s32 %v4226, %v4228
        %v4230 = vrot.slane %v4202, %v4229
        %v4231 = vcombine.high %v4209, %v4209
        %v4232 = vcombine.high %v4216, %v4216
        %v4233 = vcombine.high %v4223, %v4223
        %v4234 = vcombine.high %v4230, %v4230
        %v4235 = vcombine.high %v3883, %v3883
        %v4237 = vunpack.c.l.s4 1966171168
        %v4238 = vunpack.c.0.s8 %v4237
        %v4239 = vlaneseq
        %v4240 = vshrl.u32 %v4239, 7
        %v4241 = vsub.s32 %v4238, %v4240
        %v4242 = vrot.slane %v3883, %v4241
        %v4244 = vunpack.c.l.s4 1966171168
        %v4245 = vunpack.c.0.s8 %v4244
        %v4246 = vlaneseq
        %v4247 = vshrl.u32 %v4246, 7
        %v4248 = vsub.s32 %v4245, %v4247
        %v4249 = vrot.slane %v4235, %v4248
        %v4250 = vcombine.high %v4242, %v4242
        %v4251 = vcombine.high %v4249, %v4249
        %v4253 = vunpack.c.l.s4 1966171168
        %v4254 = vunpack.c.0.s8 %v4253
        %v4255 = vlaneseq
        %v4256 = vshrl.u32 %v4255, 7
        %v4257 = vsub.s32 %v4254, %v4256
        %v4258 = vrot.slane %v4242, %v4257
        %v4260 = vunpack.c.l.s4 1966171168
        %v4261 = vunpack.c.0.s8 %v4260
        %v4262 = vlaneseq
        %v4263 = vshrl.u32 %v4262, 7
        %v4264 = vsub.s32 %v4261, %v4263
        %v4265 = vrot.slane %v4249, %v4264
        %v4267 = vunpack.c.l.s4 1966171168
        %v4268 = vunpack.c.0.s8 %v4267
        %v4269 = vlaneseq
        %v4270 = vshrl.u32 %v4269, 7
        %v4271 = vsub.s32 %v4268, %v4270
        %v4272 = vrot.slane %v4250, %v4271
        %v4274 = vunpack.c.l.s4 1966171168
        %v4275 = vunpack.c.0.s8 %v4274
        %v4276 = vlaneseq
        %v4277 = vshrl.u32 %v4276, 7
        %v4278 = vsub.s32 %v4275, %v4277
        %v4279 = vrot.slane %v4251, %v4278
        %v4280 = vcombine.high %v4258, %v4258
        %v4281 = vcombine.high %v4265, %v4265
        %v4282 = vcombine.high %v4272, %v4272
        %v4283 = vcombine.high %v4279, %v4279
        %v4284 = vlaneseq
        %v4285 = vshrl.u32 %v4284, 7
        %v4286 = vsub.s32 0, %v4285
        %v4287 = vrot.slane %v3915, %v4286
        %v4288 = vlaneseq
        %v4289 = vshrl.u32 %v4288, 7
        %v4290 = vsub.s32 0, %v4289
        %v4291 = vrot.slane %v3929, %v4290
        %v4292 = vlaneseq
        %v4293 = vshrl.u32 %v4292, 7
        %v4294 = vsub.s32 0, %v4293
        %v4295 = vrot.slane %v3937, %v4294
        %v4296 = vlaneseq
        %v4297 = vshrl.u32 %v4296, 7
        %v4298 = vsub.s32 0, %v4297
        %v4299 = vrot.slane %v3939, %v4298
        %v4300 = vlaneseq
        %v4301 = vshrl.u32 %v4300, 7
        %v4302 = vsub.s32 0, %v4301
        %v4303 = vrot.slane %v3922, %v4302
        %v4304 = vlaneseq
        %v4305 = vshrl.u32 %v4304, 7
        %v4306 = vsub.s32 0, %v4305
        %v4307 = vrot.slane %v3936, %v4306
        %v4308 = vlaneseq
        %v4309 = vshrl.u32 %v4308, 7
        %v4310 = vsub.s32 0, %v4309
        %v4311 = vrot.slane %v3938, %v4310
        %v4312 = vlaneseq
        %v4313 = vshrl.u32 %v4312, 7
        %v4314 = vsub.s32 0, %v4313
        %v4315 = vrot.slane %v3940, %v4314
        %v4316 = vlaneseq
        %v4317 = vshrl.u32 %v4316, 7
        %v4318 = vsub.s32 0, %v4317
        %v4319 = vrot.slane %v3964, %v4318
        %v4320 = vlaneseq
        %v4321 = vshrl.u32 %v4320, 7
        %v4322 = vsub.s32 0, %v4321
        %v4323 = vrot.slane %v3978, %v4322
        %v4324 = vlaneseq
        %v4325 = vshrl.u32 %v4324, 7
        %v4326 = vsub.s32 0, %v4325
        %v4327 = vrot.slane %v3986, %v4326
        %v4328 = vlaneseq
        %v4329 = vshrl.u32 %v4328, 7
        %v4330 = vsub.s32 0, %v4329
        %v4331 = vrot.slane %v3988, %v4330
        %v4332 = vlaneseq
        %v4333 = vshrl.u32 %v4332, 7
        %v4334 = vsub.s32 0, %v4333
        %v4335 = vrot.slane %v3971, %v4334
        %v4336 = vlaneseq
        %v4337 = vshrl.u32 %v4336, 7
        %v4338 = vsub.s32 0, %v4337
        %v4339 = vrot.slane %v3985, %v4338
        %v4340 = vlaneseq
        %v4341 = vshrl.u32 %v4340, 7
        %v4342 = vsub.s32 0, %v4341
        %v4343 = vrot.slane %v3987, %v4342
        %v4344 = vlaneseq
        %v4345 = vshrl.u32 %v4344, 7
        %v4346 = vsub.s32 0, %v4345
        %v4347 = vrot.slane %v3989, %v4346
        %v4348 = vlaneseq
        %v4349 = vshrl.u32 %v4348, 7
        %v4350 = vsub.s32 0, %v4349
        %v4351 = vrot.slane %v4013, %v4350
        %v4352 = vlaneseq
        %v4353 = vshrl.u32 %v4352, 7
        %v4354 = vsub.s32 0, %v4353
        %v4355 = vrot.slane %v4027, %v4354
        %v4356 = vlaneseq
        %v4357 = vshrl.u32 %v4356, 7
        %v4358 = vsub.s32 0, %v4357
        %v4359 = vrot.slane %v4035, %v4358
        %v4360 = vlaneseq
        %v4361 = vshrl.u32 %v4360, 7
        %v4362 = vsub.s32 0, %v4361
        %v4363 = vrot.slane %v4037, %v4362
        %v4364 = vlaneseq
        %v4365 = vshrl.u32 %v4364, 7
        %v4366 = vsub.s32 0, %v4365
        %v4367 = vrot.slane %v4020, %v4366
        %v4368 = vlaneseq
        %v4369 = vshrl.u32 %v4368, 7
        %v4370 = vsub.s32 0, %v4369
        %v4371 = vrot.slane %v4034, %v4370
        %v4372 = vlaneseq
        %v4373 = vshrl.u32 %v4372, 7
        %v4374 = vsub.s32 0, %v4373
        %v4375 = vrot.slane %v4036, %v4374
        %v4376 = vlaneseq
        %v4377 = vshrl.u32 %v4376, 7
        %v4378 = vsub.s32 0, %v4377
        %v4379 = vrot.slane %v4038, %v4378
        %v4380 = vlaneseq
        %v4381 = vshrl.u32 %v4380, 7
        %v4382 = vsub.s32 0, %v4381
        %v4383 = vrot.slane %v4062, %v4382
        %v4384 = vlaneseq
        %v4385 = vshrl.u32 %v4384, 7
        %v4386 = vsub.s32 0, %v4385
        %v4387 = vrot.slane %v4076, %v4386
        %v4388 = vlaneseq
        %v4389 = vshrl.u32 %v4388, 7
        %v4390 = vsub.s32 0, %v4389
        %v4391 = vrot.slane %v4084, %v4390
        %v4392 = vlaneseq
        %v4393 = vshrl.u32 %v4392, 7
        %v4394 = vsub.s32 0, %v4393
        %v4395 = vrot.slane %v4086, %v4394
        %v4396 = vlaneseq
        %v4397 = vshrl.u32 %v4396, 7
        %v4398 = vsub.s32 0, %v4397
        %v4399 = vrot.slane %v4069, %v4398
        %v4400 = vlaneseq
        %v4401 = vshrl.u32 %v4400, 7
        %v4402 = vsub.s32 0, %v4401
        %v4403 = vrot.slane %v4083, %v4402
        %v4404 = vlaneseq
        %v4405 = vshrl.u32 %v4404, 7
        %v4406 = vsub.s32 0, %v4405
        %v4407 = vrot.slane %v4085, %v4406
        %v4408 = vlaneseq
        %v4409 = vshrl.u32 %v4408, 7
        %v4410 = vsub.s32 0, %v4409
        %v4411 = vrot.slane %v4087, %v4410
        %v4412 = vlaneseq
        %v4413 = vshrl.u32 %v4412, 7
        %v4414 = vsub.s32 0, %v4413
        %v4415 = vrot.slane %v4111, %v4414
        %v4416 = vlaneseq
        %v4417 = vshrl.u32 %v4416, 7
        %v4418 = vsub.s32 0, %v4417
        %v4419 = vrot.slane %v4125, %v4418
        %v4420 = vlaneseq
        %v4421 = vshrl.u32 %v4420, 7
        %v4422 = vsub.s32 0, %v4421
        %v4423 = vrot.slane %v4133, %v4422
        %v4424 = vlaneseq
        %v4425 = vshrl.u32 %v4424, 7
        %v4426 = vsub.s32 0, %v4425
        %v4427 = vrot.slane %v4135, %v4426
        %v4428 = vlaneseq
        %v4429 = vshrl.u32 %v4428, 7
        %v4430 = vsub.s32 0, %v4429
        %v4431 = vrot.slane %v4118, %v4430
        %v4432 = vlaneseq
        %v4433 = vshrl.u32 %v4432, 7
        %v4434 = vsub.s32 0, %v4433
        %v4435 = vrot.slane %v4132, %v4434
        %v4436 = vlaneseq
        %v4437 = vshrl.u32 %v4436, 7
        %v4438 = vsub.s32 0, %v4437
        %v4439 = vrot.slane %v4134, %v4438
        %v4440 = vlaneseq
        %v4441 = vshrl.u32 %v4440, 7
        %v4442 = vsub.s32 0, %v4441
        %v4443 = vrot.slane %v4136, %v4442
        %v4444 = vlaneseq
        %v4445 = vshrl.u32 %v4444, 7
        %v4446 = vsub.s32 0, %v4445
        %v4447 = vrot.slane %v4160, %v4446
        %v4448 = vlaneseq
        %v4449 = vshrl.u32 %v4448, 7
        %v4450 = vsub.s32 0, %v4449
        %v4451 = vrot.slane %v4174, %v4450
        %v4452 = vlaneseq
        %v4453 = vshrl.u32 %v4452, 7
        %v4454 = vsub.s32 0, %v4453
        %v4455 = vrot.slane %v4182, %v4454
        %v4456 = vlaneseq
        %v4457 = vshrl.u32 %v4456, 7
        %v4458 = vsub.s32 0, %v4457
        %v4459 = vrot.slane %v4184, %v4458
        %v4460 = vlaneseq
        %v4461 = vshrl.u32 %v4460, 7
        %v4462 = vsub.s32 0, %v4461
        %v4463 = vrot.slane %v4167, %v4462
        %v4464 = vlaneseq
        %v4465 = vshrl.u32 %v4464, 7
        %v4466 = vsub.s32 0, %v4465
        %v4467 = vrot.slane %v4181, %v4466
        %v4468 = vlaneseq
        %v4469 = vshrl.u32 %v4468, 7
        %v4470 = vsub.s32 0, %v4469
        %v4471 = vrot.slane %v4183, %v4470
        %v4472 = vlaneseq
        %v4473 = vshrl.u32 %v4472, 7
        %v4474 = vsub.s32 0, %v4473
        %v4475 = vrot.slane %v4185, %v4474
        %v4476 = vlaneseq
        %v4477 = vshrl.u32 %v4476, 7
        %v4478 = vsub.s32 0, %v4477
        %v4479 = vrot.slane %v4209, %v4478
        %v4480 = vlaneseq
        %v4481 = vshrl.u32 %v4480, 7
        %v4482 = vsub.s32 0, %v4481
        %v4483 = vrot.slane %v4223, %v4482
        %v4484 = vlaneseq
        %v4485 = vshrl.u32 %v4484, 7
        %v4486 = vsub.s32 0, %v4485
        %v4487 = vrot.slane %v4231, %v4486
        %v4488 = vlaneseq
        %v4489 = vshrl.u32 %v4488, 7
        %v4490 = vsub.s32 0, %v4489
        %v4491 = vrot.slane %v4233, %v4490
        %v4492 = vlaneseq
        %v4493 = vshrl.u32 %v4492, 7
        %v4494 = vsub.s32 0, %v4493
        %v4495 = vrot.slane %v4216, %v4494
        %v4496 = vlaneseq
        %v4497 = vshrl.u32 %v4496, 7
        %v4498 = vsub.s32 0, %v4497
        %v4499 = vrot.slane %v4230, %v4498
        %v4500 = vlaneseq
        %v4501 = vshrl.u32 %v4500, 7
        %v4502 = vsub.s32 0, %v4501
        %v4503 = vrot.slane %v4232, %v4502
        %v4504 = vlaneseq
        %v4505 = vshrl.u32 %v4504, 7
        %v4506 = vsub.s32 0, %v4505
        %v4507 = vrot.slane %v4234, %v4506
        %v4508 = vlaneseq
        %v4509 = vshrl.u32 %v4508, 7
        %v4510 = vsub.s32 0, %v4509
        %v4511 = vrot.slane %v4258, %v4510
        %v4512 = vlaneseq
        %v4513 = vshrl.u32 %v4512, 7
        %v4514 = vsub.s32 0, %v4513
        %v4515 = vrot.slane %v4272, %v4514
        %v4516 = vlaneseq
        %v4517 = vshrl.u32 %v4516, 7
        %v4518 = vsub.s32 0, %v4517
        %v4519 = vrot.slane %v4280, %v4518
        %v4520 = vlaneseq
        %v4521 = vshrl.u32 %v4520, 7
        %v4522 = vsub.s32 0, %v4521
        %v4523 = vrot.slane %v4282, %v4522
        %v4524 = vlaneseq
        %v4525 = vshrl.u32 %v4524, 7
        %v4526 = vsub.s32 0, %v4525
        %v4527 = vrot.slane %v4265, %v4526
        %v4528 = vlaneseq
        %v4529 = vshrl.u32 %v4528, 7
        %v4530 = vsub.s32 0, %v4529
        %v4531 = vrot.slane %v4279, %v4530
        %v4532 = vlaneseq
        %v4533 = vshrl.u32 %v4532, 7
        %v4534 = vsub.s32 0, %v4533
        %v4535 = vrot.slane %v4281, %v4534
        %v4536 = vlaneseq
        %v4537 = vshrl.u32 %v4536, 7
        %v4538 = vsub.s32 0, %v4537
        %v4539 = vrot.slane %v4283, %v4538
        %v4540 = vld [vmem:[%s5] sm:$0xf]
        %v4541 = vld [vmem:[%s5 + $0x4] sm:$0xf]
        %v4542 = vld [vmem:[%s5 + $0x8] sm:$0xf]
        %v4543 = vld [vmem:[%s5 + $0xc] sm:$0xf]
        %v4544 = vld [vmem:[%s5 + $0x10] sm:$0xf]
        %v4545 = vld [vmem:[%s5 + $0x14] sm:$0xf]
        %v4546 = vld [vmem:[%s5 + $0x18] sm:$0xf]
        %v4547 = vld [vmem:[%s5 + $0x1c] sm:$0xf]
        %v4548 = vld [vmem:[%s5 + $0x20] sm:$0xf]
        %v4549 = vld [vmem:[%s5 + $0x24] sm:$0xf]
        %v4550 = vld [vmem:[%s5 + $0x28] sm:$0xf]
        %v4551 = vld [vmem:[%s5 + $0x2c] sm:$0xf]
        %v4552 = vld [vmem:[%s5 + $0x30] sm:$0xf]
        %v4553 = vld [vmem:[%s5 + $0x34] sm:$0xf]
        %v4554 = vld [vmem:[%s5 + $0x38] sm:$0xf]
        %v4555 = vld [vmem:[%s5 + $0x3c] sm:$0xf]
        %v4556 = vld [vmem:[%s5 + $0x40] sm:$0xf]
        %v4557 = vld [vmem:[%s5 + $0x44] sm:$0xf]
        %v4558 = vcombine.low %v4287, %v4291
        %v4559 = vcombine.low %v4295, %v4299
        %v4561 = vunpack.c.l.s4 1983009808
        %v4562 = vunpack.c.0.s8 %v4561
        %v4563 = vlaneseq
        %v4564 = vshrl.u32 %v4563, 7
        %v4565 = vsub.s32 %v4562, %v4564
        %v4566 = vrot.slane %v4558, %v4565
        %v4568 = vunpack.c.l.s4 1983009808
        %v4569 = vunpack.c.0.s8 %v4568
        %v4570 = vlaneseq
        %v4571 = vshrl.u32 %v4570, 7
        %v4572 = vsub.s32 %v4569, %v4571
        %v4573 = vrot.slane %v4559, %v4572
        %v4574 = vcombine.low %v4566, %v4573
        %v4575 = vcombine.low %v4303, %v4307
        %v4576 = vcombine.low %v4311, %v4315
        %v4578 = vunpack.c.l.s4 1983009808
        %v4579 = vunpack.c.0.s8 %v4578
        %v4580 = vlaneseq
        %v4581 = vshrl.u32 %v4580, 7
        %v4582 = vsub.s32 %v4579, %v4581
        %v4583 = vrot.slane %v4575, %v4582
        %v4585 = vunpack.c.l.s4 1983009808
        %v4586 = vunpack.c.0.s8 %v4585
        %v4587 = vlaneseq
        %v4588 = vshrl.u32 %v4587, 7
        %v4589 = vsub.s32 %v4586, %v4588
        %v4590 = vrot.slane %v4576, %v4589
        %v4591 = vcombine.low %v4583, %v4590
        %v4592 = vcombine.low %v4319, %v4323
        %v4593 = vcombine.low %v4327, %v4331
        %v4595 = vunpack.c.l.s4 1983009808
        %v4596 = vunpack.c.0.s8 %v4595
        %v4597 = vlaneseq
        %v4598 = vshrl.u32 %v4597, 7
        %v4599 = vsub.s32 %v4596, %v4598
        %v4600 = vrot.slane %v4592, %v4599
        %v4602 = vunpack.c.l.s4 1983009808
        %v4603 = vunpack.c.0.s8 %v4602
        %v4604 = vlaneseq
        %v4605 = vshrl.u32 %v4604, 7
        %v4606 = vsub.s32 %v4603, %v4605
        %v4607 = vrot.slane %v4593, %v4606
        %v4608 = vcombine.low %v4600, %v4607
        %v4609 = vcombine.low %v4335, %v4339
        %v4610 = vcombine.low %v4343, %v4347
        %v4612 = vunpack.c.l.s4 1983009808
        %v4613 = vunpack.c.0.s8 %v4612
        %v4614 = vlaneseq
        %v4615 = vshrl.u32 %v4614, 7
        %v4616 = vsub.s32 %v4613, %v4615
        %v4617 = vrot.slane %v4609, %v4616
        %v4619 = vunpack.c.l.s4 1983009808
        %v4620 = vunpack.c.0.s8 %v4619
        %v4621 = vlaneseq
        %v4622 = vshrl.u32 %v4621, 7
        %v4623 = vsub.s32 %v4620, %v4622
        %v4624 = vrot.slane %v4610, %v4623
        %v4625 = vcombine.low %v4617, %v4624
        %v4626 = vcombine.low %v4351, %v4355
        %v4627 = vcombine.low %v4359, %v4363
        %v4629 = vunpack.c.l.s4 1983009808
        %v4630 = vunpack.c.0.s8 %v4629
        %v4631 = vlaneseq
        %v4632 = vshrl.u32 %v4631, 7
        %v4633 = vsub.s32 %v4630, %v4632
        %v4634 = vrot.slane %v4626, %v4633
        %v4636 = vunpack.c.l.s4 1983009808
        %v4637 = vunpack.c.0.s8 %v4636
        %v4638 = vlaneseq
        %v4639 = vshrl.u32 %v4638, 7
        %v4640 = vsub.s32 %v4637, %v4639
        %v4641 = vrot.slane %v4627, %v4640
        %v4642 = vcombine.low %v4634, %v4641
        %v4643 = vcombine.low %v4367, %v4371
        %v4644 = vcombine.low %v4375, %v4379
        %v4646 = vunpack.c.l.s4 1983009808
        %v4647 = vunpack.c.0.s8 %v4646
        %v4648 = vlaneseq
        %v4649 = vshrl.u32 %v4648, 7
        %v4650 = vsub.s32 %v4647, %v4649
        %v4651 = vrot.slane %v4643, %v4650
        %v4653 = vunpack.c.l.s4 1983009808
        %v4654 = vunpack.c.0.s8 %v4653
        %v4655 = vlaneseq
        %v4656 = vshrl.u32 %v4655, 7
        %v4657 = vsub.s32 %v4654, %v4656
        %v4658 = vrot.slane %v4644, %v4657
        %v4659 = vcombine.low %v4651, %v4658
        %v4660 = vcombine.low %v4383, %v4387
        %v4661 = vcombine.low %v4391, %v4395
        %v4663 = vunpack.c.l.s4 1983009808
        %v4664 = vunpack.c.0.s8 %v4663
        %v4665 = vlaneseq
        %v4666 = vshrl.u32 %v4665, 7
        %v4667 = vsub.s32 %v4664, %v4666
        %v4668 = vrot.slane %v4660, %v4667
        %v4670 = vunpack.c.l.s4 1983009808
        %v4671 = vunpack.c.0.s8 %v4670
        %v4672 = vlaneseq
        %v4673 = vshrl.u32 %v4672, 7
        %v4674 = vsub.s32 %v4671, %v4673
        %v4675 = vrot.slane %v4661, %v4674
        %v4676 = vcombine.low %v4668, %v4675
        %v4677 = vcombine.low %v4399, %v4403
        %v4678 = vcombine.low %v4407, %v4411
        %v4680 = vunpack.c.l.s4 1983009808
        %v4681 = vunpack.c.0.s8 %v4680
        %v4682 = vlaneseq
        %v4683 = vshrl.u32 %v4682, 7
        %v4684 = vsub.s32 %v4681, %v4683
        %v4685 = vrot.slane %v4677, %v4684
        %v4687 = vunpack.c.l.s4 1983009808
        %v4688 = vunpack.c.0.s8 %v4687
        %v4689 = vlaneseq
        %v4690 = vshrl.u32 %v4689, 7
        %v4691 = vsub.s32 %v4688, %v4690
        %v4692 = vrot.slane %v4678, %v4691
        %v4693 = vcombine.low %v4685, %v4692
        %v4694 = vcombine.low %v4415, %v4419
        %v4695 = vcombine.low %v4423, %v4427
        %v4697 = vunpack.c.l.s4 1983009808
        %v4698 = vunpack.c.0.s8 %v4697
        %v4699 = vlaneseq
        %v4700 = vshrl.u32 %v4699, 7
        %v4701 = vsub.s32 %v4698, %v4700
        %v4702 = vrot.slane %v4694, %v4701
        %v4704 = vunpack.c.l.s4 1983009808
        %v4705 = vunpack.c.0.s8 %v4704
        %v4706 = vlaneseq
        %v4707 = vshrl.u32 %v4706, 7
        %v4708 = vsub.s32 %v4705, %v4707
        %v4709 = vrot.slane %v4695, %v4708
        %v4710 = vcombine.low %v4702, %v4709
        %v4711 = vcombine.low %v4431, %v4435
        %v4712 = vcombine.low %v4439, %v4443
        %v4714 = vunpack.c.l.s4 1983009808
        %v4715 = vunpack.c.0.s8 %v4714
        %v4716 = vlaneseq
        %v4717 = vshrl.u32 %v4716, 7
        %v4718 = vsub.s32 %v4715, %v4717
        %v4719 = vrot.slane %v4711, %v4718
        %v4721 = vunpack.c.l.s4 1983009808
        %v4722 = vunpack.c.0.s8 %v4721
        %v4723 = vlaneseq
        %v4724 = vshrl.u32 %v4723, 7
        %v4725 = vsub.s32 %v4722, %v4724
        %v4726 = vrot.slane %v4712, %v4725
        %v4727 = vcombine.low %v4719, %v4726
        %v4728 = vcombine.low %v4447, %v4451
        %v4729 = vcombine.low %v4455, %v4459
        %v4731 = vunpack.c.l.s4 1983009808
        %v4732 = vunpack.c.0.s8 %v4731
        %v4733 = vlaneseq
        %v4734 = vshrl.u32 %v4733, 7
        %v4735 = vsub.s32 %v4732, %v4734
        %v4736 = vrot.slane %v4728, %v4735
        %v4738 = vunpack.c.l.s4 1983009808
        %v4739 = vunpack.c.0.s8 %v4738
        %v4740 = vlaneseq
        %v4741 = vshrl.u32 %v4740, 7
        %v4742 = vsub.s32 %v4739, %v4741
        %v4743 = vrot.slane %v4729, %v4742
        %v4744 = vcombine.low %v4736, %v4743
        %v4745 = vcombine.low %v4463, %v4467
        %v4746 = vcombine.low %v4471, %v4475
        %v4748 = vunpack.c.l.s4 1983009808
        %v4749 = vunpack.c.0.s8 %v4748
        %v4750 = vlaneseq
        %v4751 = vshrl.u32 %v4750, 7
        %v4752 = vsub.s32 %v4749, %v4751
        %v4753 = vrot.slane %v4745, %v4752
        %v4755 = vunpack.c.l.s4 1983009808
        %v4756 = vunpack.c.0.s8 %v4755
        %v4757 = vlaneseq
        %v4758 = vshrl.u32 %v4757, 7
        %v4759 = vsub.s32 %v4756, %v4758
        %v4760 = vrot.slane %v4746, %v4759
        %v4761 = vcombine.low %v4753, %v4760
        %v4762 = vcombine.low %v4479, %v4483
        %v4763 = vcombine.low %v4487, %v4491
        %v4765 = vunpack.c.l.s4 1983009808
        %v4766 = vunpack.c.0.s8 %v4765
        %v4767 = vlaneseq
        %v4768 = vshrl.u32 %v4767, 7
        %v4769 = vsub.s32 %v4766, %v4768
        %v4770 = vrot.slane %v4762, %v4769
        %v4772 = vunpack.c.l.s4 1983009808
        %v4773 = vunpack.c.0.s8 %v4772
        %v4774 = vlaneseq
        %v4775 = vshrl.u32 %v4774, 7
        %v4776 = vsub.s32 %v4773, %v4775
        %v4777 = vrot.slane %v4763, %v4776
        %v4778 = vcombine.low %v4770, %v4777
        %v4779 = vcombine.low %v4495, %v4499
        %v4780 = vcombine.low %v4503, %v4507
        %v4782 = vunpack.c.l.s4 1983009808
        %v4783 = vunpack.c.0.s8 %v4782
        %v4784 = vlaneseq
        %v4785 = vshrl.u32 %v4784, 7
        %v4786 = vsub.s32 %v4783, %v4785
        %v4787 = vrot.slane %v4779, %v4786
        %v4789 = vunpack.c.l.s4 1983009808
        %v4790 = vunpack.c.0.s8 %v4789
        %v4791 = vlaneseq
        %v4792 = vshrl.u32 %v4791, 7
        %v4793 = vsub.s32 %v4790, %v4792
        %v4794 = vrot.slane %v4780, %v4793
        %v4795 = vcombine.low %v4787, %v4794
        %v4796 = vcombine.low %v4511, %v4515
        %v4797 = vcombine.low %v4519, %v4523
        %v4799 = vunpack.c.l.s4 1983009808
        %v4800 = vunpack.c.0.s8 %v4799
        %v4801 = vlaneseq
        %v4802 = vshrl.u32 %v4801, 7
        %v4803 = vsub.s32 %v4800, %v4802
        %v4804 = vrot.slane %v4796, %v4803
        %v4806 = vunpack.c.l.s4 1983009808
        %v4807 = vunpack.c.0.s8 %v4806
        %v4808 = vlaneseq
        %v4809 = vshrl.u32 %v4808, 7
        %v4810 = vsub.s32 %v4807, %v4809
        %v4811 = vrot.slane %v4797, %v4810
        %v4812 = vcombine.low %v4804, %v4811
        %v4813 = vcombine.low %v4527, %v4531
        %v4814 = vcombine.low %v4535, %v4539
        %v4816 = vunpack.c.l.s4 1983009808
        %v4817 = vunpack.c.0.s8 %v4816
        %v4818 = vlaneseq
        %v4819 = vshrl.u32 %v4818, 7
        %v4820 = vsub.s32 %v4817, %v4819
        %v4821 = vrot.slane %v4813, %v4820
        %v4823 = vunpack.c.l.s4 1983009808
        %v4824 = vunpack.c.0.s8 %v4823
        %v4825 = vlaneseq
        %v4826 = vshrl.u32 %v4825, 7
        %v4827 = vsub.s32 %v4824, %v4826
        %v4828 = vrot.slane %v4814, %v4827
        %v4829 = vcombine.low %v4821, %v4828
        %v4830 = vrot.slane %v4574, 7
        %v4831 = vrot.slane %v4591, 7
        %v4832 = vsel %vm573, %v4830, %v4831
        %v4833 = vrot.slane %v4608, 7
        %v4834 = vrot.slane %v4625, 7
        %v4835 = vsel %vm573, %v4833, %v4834
        %v4836 = vrot.slane %v4642, 7
        %v4837 = vrot.slane %v4659, 7
        %v4838 = vsel %vm573, %v4836, %v4837
        %v4839 = vrot.slane %v4676, 7
        %v4840 = vrot.slane %v4693, 7
        %v4841 = vsel %vm573, %v4839, %v4840
        %v4842 = vrot.slane %v4710, 7
        %v4843 = vrot.slane %v4727, 7
        %v4844 = vsel %vm573, %v4842, %v4843
        %v4845 = vrot.slane %v4744, 7
        %v4846 = vrot.slane %v4761, 7
        %v4847 = vsel %vm573, %v4845, %v4846
        %v4848 = vrot.slane %v4778, 7
        %v4849 = vrot.slane %v4795, 7
        %v4850 = vsel %vm573, %v4848, %v4849
        %v4851 = vrot.slane %v4812, 7
        %v4852 = vrot.slane %v4829, 7
        %v4853 = vsel %vm573, %v4851, %v4852
        %v4878 = vsel %vm573, 0.0, %v4830
        %v4879 = vsel %vm573, 0.0, %v4833
        %v4880 = vsel %vm573, 0.0, %v4836
        %v4881 = vsel %vm573, 0.0, %v4839
        %v4882 = vsel %vm573, 0.0, %v4842
        %v4883 = vsel %vm573, 0.0, %v4845
        %v4884 = vsel %vm573, 0.0, %v4848
        %v4885 = vsel %vm573, 0.0, %v4851
        %v4886 = vsel %vm573, %v4831, 0.0
        %v4887 = vsel %vm573, %v4834, 0.0
        %v4888 = vsel %vm573, %v4837, 0.0
        %v4889 = vsel %vm573, %v4840, 0.0
        %v4890 = vsel %vm573, %v4843, 0.0
        %v4891 = vsel %vm573, %v4846, 0.0
        %v4892 = vsel %vm573, %v4849, 0.0
        %v4893 = vsel %vm573, %v4852, 0.0
        %v4894 = vpack.c.bf16 %v4832, %v4878
        %v4895 = vpack.c.bf16 %v4886, %v4886
        %v4896 = vpack.c.bf16 %v4835, %v4879
        %v4897 = vpack.c.bf16 %v4887, %v4887
        %v4898 = vpack.c.bf16 %v4838, %v4880
        %v4899 = vpack.c.bf16 %v4888, %v4888
        %v4900 = vpack.c.bf16 %v4841, %v4881
        %v4901 = vpack.c.bf16 %v4889, %v4889
        %v4902 = vpack.c.bf16 %v4844, %v4882
        %v4903 = vpack.c.bf16 %v4890, %v4890
        %v4904 = vpack.c.bf16 %v4847, %v4883
        %v4905 = vpack.c.bf16 %v4891, %v4891
        %v4906 = vpack.c.bf16 %v4850, %v4884
        %v4907 = vpack.c.bf16 %v4892, %v4892
        %v4908 = vpack.c.bf16 %v4853, %v4885
        %v4909 = vpack.c.bf16 %v4893, %v4893
        %v4911 = vshrl.u32 %v4894, 16
        %v4913 = vshll.u32 %v4894, 16
        %v4915 = vrot.slane %v4913, 1
        %v4916 = vor.u32 %v4911, %v4915
        %v4918 = vshll.u32 %v4895, 16
        %v4920 = vrot.slane %v4918, 1
        %v4921 = vsel %vm742, %v4916, %v4920
        %v4923 = vshrl.u32 %v4896, 16
        %v4925 = vshll.u32 %v4896, 16
        %v4927 = vrot.slane %v4925, 1
        %v4928 = vor.u32 %v4923, %v4927
        %v4930 = vshll.u32 %v4897, 16
        %v4932 = vrot.slane %v4930, 1
        %v4933 = vsel %vm742, %v4928, %v4932
        %v4935 = vshrl.u32 %v4898, 16
        %v4937 = vshll.u32 %v4898, 16
        %v4939 = vrot.slane %v4937, 1
        %v4940 = vor.u32 %v4935, %v4939
        %v4942 = vshll.u32 %v4899, 16
        %v4944 = vrot.slane %v4942, 1
        %v4945 = vsel %vm742, %v4940, %v4944
        %v4947 = vshrl.u32 %v4900, 16
        %v4949 = vshll.u32 %v4900, 16
        %v4951 = vrot.slane %v4949, 1
        %v4952 = vor.u32 %v4947, %v4951
        %v4954 = vshll.u32 %v4901, 16
        %v4956 = vrot.slane %v4954, 1
        %v4957 = vsel %vm742, %v4952, %v4956
        %v4959 = vshrl.u32 %v4902, 16
        %v4961 = vshll.u32 %v4902, 16
        %v4963 = vrot.slane %v4961, 1
        %v4964 = vor.u32 %v4959, %v4963
        %v4966 = vshll.u32 %v4903, 16
        %v4968 = vrot.slane %v4966, 1
        %v4969 = vsel %vm742, %v4964, %v4968
        %v4971 = vshrl.u32 %v4904, 16
        %v4973 = vshll.u32 %v4904, 16
        %v4975 = vrot.slane %v4973, 1
        %v4976 = vor.u32 %v4971, %v4975
        %v4978 = vshll.u32 %v4905, 16
        %v4980 = vrot.slane %v4978, 1
        %v4981 = vsel %vm742, %v4976, %v4980
        %v4983 = vshrl.u32 %v4906, 16
        %v4985 = vshll.u32 %v4906, 16
        %v4987 = vrot.slane %v4985, 1
        %v4988 = vor.u32 %v4983, %v4987
        %v4990 = vshll.u32 %v4907, 16
        %v4992 = vrot.slane %v4990, 1
        %v4993 = vsel %vm742, %v4988, %v4992
        %v4995 = vshrl.u32 %v4908, 16
        %v4997 = vshll.u32 %v4908, 16
        %v4999 = vrot.slane %v4997, 1
        %v5000 = vor.u32 %v4995, %v4999
        %v5002 = vshll.u32 %v4909, 16
        %v5004 = vrot.slane %v5002, 1
        %v5005 = vsel %vm742, %v5000, %v5004
        %v5008 = vunpack.c.l.b16 %v4542
        %v5009 = vunpack.c.l.b16 %v4543
        %v5010 = vpack.c.b16 %v5009, %v5008
        %vm5012 = vcmask 130048
        %v5014 = vsel %vm5012, %v754, 0
        %v5017 = vsel %vm5012, %v4921, 0
        %v5020 = vsel %vm5012, %v4933, 0
        %v5023 = vsel %vm5012, %v4945, 0
        %v5026 = vsel %vm5012, %v4957, 0
        %v5029 = vsel %vm5012, %v4969, 0
        %v5032 = vsel %vm5012, %v4981, 0
        %v5035 = vsel %vm5012, %v4993, 0
        %v5038 = vsel %vm5012, %v5005, 0
        %5040 = vmatprep.subr.bf16.mxu0 0
        %5041 = vmatpush1.bf16.msra.mxu0 0
        %5042 = vmatprep.subr.bf16.mxu0 0
        %5043 = vmatpush1.bf16.msra.mxu0 0
        %5044 = vmatprep.subr.bf16.mxu0 0
        %5045 = vmatpush1.bf16.msra.mxu0 0
        %5046 = vmatprep.subr.bf16.mxu0 0
        %5047 = vmatpush1.bf16.msra.mxu0 0
        %5048 = vmatprep.subr.bf16.mxu0 0
        %5049 = vmatpush1.bf16.msra.mxu0 0
        %5050 = vmatprep.subr.bf16.mxu0 0
        %5051 = vmatpush1.bf16.msra.mxu0 0
        %5052 = vmatprep.subr.bf16.mxu0 0
        %5053 = vmatpush1.bf16.msra.mxu0 0
        %5054 = vmatprep.subr.bf16.mxu0 0
        %5055 = vmatpush1.bf16.msra.mxu0 %v5010
        %5056 = vmatprep.subr.bf16.mxu0 0
        %5057 = vmatpush2.bf16.msra.mxu0 0
        %5058 = vmatprep.subr.bf16.mxu0 0
        %5059 = vmatpush2.bf16.msra.mxu0 0
        %5060 = vmatprep.subr.bf16.mxu0 0
        %5061 = vmatpush2.bf16.msra.mxu0 0
        %5062 = vmatprep.subr.bf16.mxu0 0
        %5063 = vmatpush2.bf16.msra.mxu0 0
        %5064 = vmatprep.subr.bf16.mxu0 0
        %5065 = vmatpush2.bf16.msra.mxu0 0
        %5066 = vmatprep.subr.bf16.mxu0 0
        %5067 = vmatpush2.bf16.msra.mxu0 0
        %5068 = vmatprep.subr.bf16.mxu0 0
        %5069 = vmatpush2.bf16.msra.mxu0 0
        %5070 = vmatprep.subr.bf16.mxu0 0
        %5071 = vmatpush2.bf16.msra.mxu0 0
        %5072 = vmatprep.mubr.bf16.mxu0 0
        %5073 = vmatmul.mubr.bf16.gmra.mxu0 %v5014
        %v5074 = vpop.f32.mrf.mxu0
        %v5075 = vadd.f32 0.0, %v5074
        %v5076 = vpop.f32.mrf.mxu0
        %v5077 = vpop.f32.mrf.mxu0
        %v5078 = vadd.f32 0.0, %v5077
        %v5079 = vpop.f32.mrf.mxu0
        %5080 = vmatprep.mubr.bf16.mxu0 0
        %5081 = vmatmul.mubr.bf16.gmra.mxu0 %v5017
        %v5082 = vpop.f32.mrf.mxu0
        %v5083 = vadd.f32 0.0, %v5082
        %v5084 = vpop.f32.mrf.mxu0
        %v5085 = vpop.f32.mrf.mxu0
        %v5086 = vadd.f32 0.0, %v5085
        %v5087 = vpop.f32.mrf.mxu0
        %5088 = vmatprep.mubr.bf16.mxu0 0
        %5089 = vmatmul.mubr.bf16.gmra.mxu0 %v5017
        %v5090 = vpop.f32.mrf.mxu0
        %v5091 = vadd.f32 0.0, %v5090
        %v5092 = vpop.f32.mrf.mxu0
        %v5093 = vpop.f32.mrf.mxu0
        %v5094 = vadd.f32 0.0, %v5093
        %v5095 = vpop.f32.mrf.mxu0
        %5096 = vmatprep.mubr.bf16.mxu0 0
        %5097 = vmatmul.mubr.bf16.gmra.mxu0 %v5020
        %v5098 = vpop.f32.mrf.mxu0
        %v5099 = vadd.f32 0.0, %v5098
        %v5100 = vpop.f32.mrf.mxu0
        %v5101 = vpop.f32.mrf.mxu0
        %v5102 = vadd.f32 0.0, %v5101
        %v5103 = vpop.f32.mrf.mxu0
        %5104 = vmatprep.mubr.bf16.mxu0 0
        %5105 = vmatmul.mubr.bf16.gmra.mxu0 %v5020
        %v5106 = vpop.f32.mrf.mxu0
        %v5107 = vadd.f32 0.0, %v5106
        %v5108 = vpop.f32.mrf.mxu0
        %v5109 = vpop.f32.mrf.mxu0
        %v5110 = vadd.f32 0.0, %v5109
        %v5111 = vpop.f32.mrf.mxu0
        %5112 = vmatprep.mubr.bf16.mxu0 0
        %5113 = vmatmul.mubr.bf16.gmra.mxu0 %v5023
        %v5114 = vpop.f32.mrf.mxu0
        %v5115 = vadd.f32 0.0, %v5114
        %v5116 = vpop.f32.mrf.mxu0
        %v5117 = vpop.f32.mrf.mxu0
        %v5118 = vadd.f32 0.0, %v5117
        %v5119 = vpop.f32.mrf.mxu0
        %5120 = vmatprep.mubr.bf16.mxu0 0
        %5121 = vmatmul.mubr.bf16.gmra.mxu0 %v5023
        %v5122 = vpop.f32.mrf.mxu0
        %v5123 = vadd.f32 0.0, %v5122
        %v5124 = vpop.f32.mrf.mxu0
        %v5125 = vpop.f32.mrf.mxu0
        %v5126 = vadd.f32 0.0, %v5125
        %v5127 = vpop.f32.mrf.mxu0
        %5128 = vmatprep.mubr.bf16.mxu0 0
        %5129 = vmatmul.mubr.bf16.gmra.mxu0 %v5026
        %v5130 = vpop.f32.mrf.mxu0
        %v5131 = vadd.f32 0.0, %v5130
        %v5132 = vpop.f32.mrf.mxu0
        %v5133 = vpop.f32.mrf.mxu0
        %v5134 = vadd.f32 0.0, %v5133
        %v5135 = vpop.f32.mrf.mxu0
        %5136 = vmatprep.mubr.bf16.mxu0 0
        %5137 = vmatmul.mubr.bf16.gmra.mxu0 %v5026
        %v5138 = vpop.f32.mrf.mxu0
        %v5139 = vadd.f32 0.0, %v5138
        %v5140 = vpop.f32.mrf.mxu0
        %v5141 = vpop.f32.mrf.mxu0
        %v5142 = vadd.f32 0.0, %v5141
        %v5143 = vpop.f32.mrf.mxu0
        %5144 = vmatprep.mubr.bf16.mxu0 0
        %5145 = vmatmul.mubr.bf16.gmra.mxu0 %v5029
        %v5146 = vpop.f32.mrf.mxu0
        %v5147 = vadd.f32 0.0, %v5146
        %v5148 = vpop.f32.mrf.mxu0
        %v5149 = vpop.f32.mrf.mxu0
        %v5150 = vadd.f32 0.0, %v5149
        %v5151 = vpop.f32.mrf.mxu0
        %5152 = vmatprep.mubr.bf16.mxu0 0
        %5153 = vmatmul.mubr.bf16.gmra.mxu0 %v5029
        %v5154 = vpop.f32.mrf.mxu0
        %v5155 = vadd.f32 0.0, %v5154
        %v5156 = vpop.f32.mrf.mxu0
        %v5157 = vpop.f32.mrf.mxu0
        %v5158 = vadd.f32 0.0, %v5157
        %v5159 = vpop.f32.mrf.mxu0
        %5160 = vmatprep.mubr.bf16.mxu0 0
        %5161 = vmatmul.mubr.bf16.gmra.mxu0 %v5032
        %v5162 = vpop.f32.mrf.mxu0
        %v5163 = vadd.f32 0.0, %v5162
        %v5164 = vpop.f32.mrf.mxu0
        %v5165 = vpop.f32.mrf.mxu0
        %v5166 = vadd.f32 0.0, %v5165
        %v5167 = vpop.f32.mrf.mxu0
        %5168 = vmatprep.mubr.bf16.mxu0 0
        %5169 = vmatmul.mubr.bf16.gmra.mxu0 %v5032
        %v5170 = vpop.f32.mrf.mxu0
        %v5171 = vadd.f32 0.0, %v5170
        %v5172 = vpop.f32.mrf.mxu0
        %v5173 = vpop.f32.mrf.mxu0
        %v5174 = vadd.f32 0.0, %v5173
        %v5175 = vpop.f32.mrf.mxu0
        %5176 = vmatprep.mubr.bf16.mxu0 0
        %5177 = vmatmul.mubr.bf16.gmra.mxu0 %v5035
        %v5178 = vpop.f32.mrf.mxu0
        %v5179 = vadd.f32 0.0, %v5178
        %v5180 = vpop.f32.mrf.mxu0
        %v5181 = vpop.f32.mrf.mxu0
        %v5182 = vadd.f32 0.0, %v5181
        %v5183 = vpop.f32.mrf.mxu0
        %5184 = vmatprep.mubr.bf16.mxu0 0
        %5185 = vmatmul.mubr.bf16.gmra.mxu0 %v5035
        %v5186 = vpop.f32.mrf.mxu0
        %v5187 = vadd.f32 0.0, %v5186
        %v5188 = vpop.f32.mrf.mxu0
        %v5189 = vpop.f32.mrf.mxu0
        %v5190 = vadd.f32 0.0, %v5189
        %v5191 = vpop.f32.mrf.mxu0
        %5192 = vmatprep.mubr.bf16.mxu0 0
        %5193 = vmatmul.mubr.bf16.gmra.mxu0 %v5038
        %v5194 = vpop.f32.mrf.mxu0
        %v5195 = vadd.f32 0.0, %v5194
        %v5196 = vpop.f32.mrf.mxu0
        %v5197 = vpop.f32.mrf.mxu0
        %v5198 = vadd.f32 0.0, %v5197
        %v5199 = vpop.f32.mrf.mxu0
        %5200 = vdwg.mxu0
        %v5203 = vunpack.c.l.b16 %v4540
        %v5204 = vunpack.c.l.b16 %v4541
        %v5205 = vpack.c.b16 %v5204, %v5203
        %v5207 = vsel %vm5012, %v708, 0
        %v5209 = vsel %vm5012, %v4894, 0
        %v5211 = vsel %vm5012, %v4896, 0
        %v5213 = vsel %vm5012, %v4898, 0
        %v5215 = vsel %vm5012, %v4900, 0
        %v5217 = vsel %vm5012, %v4902, 0
        %v5219 = vsel %vm5012, %v4904, 0
        %v5221 = vsel %vm5012, %v4906, 0
        %v5223 = vsel %vm5012, %v4908, 0
        %5225 = vmatprep.subr.bf16.mxu0 0
        %5226 = vmatpush1.bf16.msra.mxu0 0
        %5227 = vmatprep.subr.bf16.mxu0 0
        %5228 = vmatpush1.bf16.msra.mxu0 0
        %5229 = vmatprep.subr.bf16.mxu0 0
        %5230 = vmatpush1.bf16.msra.mxu0 0
        %5231 = vmatprep.subr.bf16.mxu0 0
        %5232 = vmatpush1.bf16.msra.mxu0 0
        %5233 = vmatprep.subr.bf16.mxu0 0
        %5234 = vmatpush1.bf16.msra.mxu0 0
        %5235 = vmatprep.subr.bf16.mxu0 0
        %5236 = vmatpush1.bf16.msra.mxu0 0
        %5237 = vmatprep.subr.bf16.mxu0 0
        %5238 = vmatpush1.bf16.msra.mxu0 0
        %5239 = vmatprep.subr.bf16.mxu0 0
        %5240 = vmatpush1.bf16.msra.mxu0 %v5205
        %5241 = vmatprep.subr.bf16.mxu0 0
        %5242 = vmatpush2.bf16.msra.mxu0 0
        %5243 = vmatprep.subr.bf16.mxu0 0
        %5244 = vmatpush2.bf16.msra.mxu0 0
        %5245 = vmatprep.subr.bf16.mxu0 0
        %5246 = vmatpush2.bf16.msra.mxu0 0
        %5247 = vmatprep.subr.bf16.mxu0 0
        %5248 = vmatpush2.bf16.msra.mxu0 0
        %5249 = vmatprep.subr.bf16.mxu0 0
        %5250 = vmatpush2.bf16.msra.mxu0 0
        %5251 = vmatprep.subr.bf16.mxu0 0
        %5252 = vmatpush2.bf16.msra.mxu0 0
        %5253 = vmatprep.subr.bf16.mxu0 0
        %5254 = vmatpush2.bf16.msra.mxu0 0
        %5255 = vmatprep.subr.bf16.mxu0 0
        %5256 = vmatpush2.bf16.msra.mxu0 0
        %5257 = vmatprep.mubr.bf16.mxu0 0
        %5258 = vmatmul.mubr.bf16.gmra.mxu0 %v5207
        %v5259 = vpop.f32.mrf.mxu0
        %v5260 = vadd.f32 %v5075, %v5259
        %v5261 = vpop.f32.mrf.mxu0
        %v5262 = vpop.f32.mrf.mxu0
        %v5263 = vadd.f32 %v5078, %v5262
        %v5264 = vpop.f32.mrf.mxu0
        %5265 = vmatprep.mubr.bf16.mxu0 0
        %5266 = vmatmul.mubr.bf16.gmra.mxu0 %v5209
        %v5267 = vpop.f32.mrf.mxu0
        %v5268 = vadd.f32 %v5083, %v5267
        %v5269 = vpop.f32.mrf.mxu0
        %v5270 = vpop.f32.mrf.mxu0
        %v5271 = vadd.f32 %v5086, %v5270
        %v5272 = vpop.f32.mrf.mxu0
        %5273 = vmatprep.mubr.bf16.mxu0 0
        %5274 = vmatmul.mubr.bf16.gmra.mxu0 %v5209
        %v5275 = vpop.f32.mrf.mxu0
        %v5276 = vadd.f32 %v5091, %v5275
        %v5277 = vpop.f32.mrf.mxu0
        %v5278 = vpop.f32.mrf.mxu0
        %v5279 = vadd.f32 %v5094, %v5278
        %v5280 = vpop.f32.mrf.mxu0
        %5281 = vmatprep.mubr.bf16.mxu0 0
        %5282 = vmatmul.mubr.bf16.gmra.mxu0 %v5211
        %v5283 = vpop.f32.mrf.mxu0
        %v5284 = vadd.f32 %v5099, %v5283
        %v5285 = vpop.f32.mrf.mxu0
        %v5286 = vpop.f32.mrf.mxu0
        %v5287 = vadd.f32 %v5102, %v5286
        %v5288 = vpop.f32.mrf.mxu0
        %5289 = vmatprep.mubr.bf16.mxu0 0
        %5290 = vmatmul.mubr.bf16.gmra.mxu0 %v5211
        %v5291 = vpop.f32.mrf.mxu0
        %v5292 = vadd.f32 %v5107, %v5291
        %v5293 = vpop.f32.mrf.mxu0
        %v5294 = vpop.f32.mrf.mxu0
        %v5295 = vadd.f32 %v5110, %v5294
        %v5296 = vpop.f32.mrf.mxu0
        %5297 = vmatprep.mubr.bf16.mxu0 0
        %5298 = vmatmul.mubr.bf16.gmra.mxu0 %v5213
        %v5299 = vpop.f32.mrf.mxu0
        %v5300 = vadd.f32 %v5115, %v5299
        %v5301 = vpop.f32.mrf.mxu0
        %v5302 = vpop.f32.mrf.mxu0
        %v5303 = vadd.f32 %v5118, %v5302
        %v5304 = vpop.f32.mrf.mxu0
        %5305 = vmatprep.mubr.bf16.mxu0 0
        %5306 = vmatmul.mubr.bf16.gmra.mxu0 %v5213
        %v5307 = vpop.f32.mrf.mxu0
        %v5308 = vadd.f32 %v5123, %v5307
        %v5309 = vpop.f32.mrf.mxu0
        %v5310 = vpop.f32.mrf.mxu0
        %v5311 = vadd.f32 %v5126, %v5310
        %v5312 = vpop.f32.mrf.mxu0
        %5313 = vmatprep.mubr.bf16.mxu0 0
        %5314 = vmatmul.mubr.bf16.gmra.mxu0 %v5215
        %v5315 = vpop.f32.mrf.mxu0
        %v5316 = vadd.f32 %v5131, %v5315
        %v5317 = vpop.f32.mrf.mxu0
        %v5318 = vpop.f32.mrf.mxu0
        %v5319 = vadd.f32 %v5134, %v5318
        %v5320 = vpop.f32.mrf.mxu0
        %5321 = vmatprep.mubr.bf16.mxu0 0
        %5322 = vmatmul.mubr.bf16.gmra.mxu0 %v5215
        %v5323 = vpop.f32.mrf.mxu0
        %v5324 = vadd.f32 %v5139, %v5323
        %v5325 = vpop.f32.mrf.mxu0
        %v5326 = vpop.f32.mrf.mxu0
        %v5327 = vadd.f32 %v5142, %v5326
        %v5328 = vpop.f32.mrf.mxu0
        %5329 = vmatprep.mubr.bf16.mxu0 0
        %5330 = vmatmul.mubr.bf16.gmra.mxu0 %v5217
        %v5331 = vpop.f32.mrf.mxu0
        %v5332 = vadd.f32 %v5147, %v5331
        %v5333 = vpop.f32.mrf.mxu0
        %v5334 = vpop.f32.mrf.mxu0
        %v5335 = vadd.f32 %v5150, %v5334
        %v5336 = vpop.f32.mrf.mxu0
        %5337 = vmatprep.mubr.bf16.mxu0 0
        %5338 = vmatmul.mubr.bf16.gmra.mxu0 %v5217
        %v5339 = vpop.f32.mrf.mxu0
        %v5340 = vadd.f32 %v5155, %v5339
        %v5341 = vpop.f32.mrf.mxu0
        %v5342 = vpop.f32.mrf.mxu0
        %v5343 = vadd.f32 %v5158, %v5342
        %v5344 = vpop.f32.mrf.mxu0
        %5345 = vmatprep.mubr.bf16.mxu0 0
        %5346 = vmatmul.mubr.bf16.gmra.mxu0 %v5219
        %v5347 = vpop.f32.mrf.mxu0
        %v5348 = vadd.f32 %v5163, %v5347
        %v5349 = vpop.f32.mrf.mxu0
        %v5350 = vpop.f32.mrf.mxu0
        %v5351 = vadd.f32 %v5166, %v5350
        %v5352 = vpop.f32.mrf.mxu0
        %5353 = vmatprep.mubr.bf16.mxu0 0
        %5354 = vmatmul.mubr.bf16.gmra.mxu0 %v5219
        %v5355 = vpop.f32.mrf.mxu0
        %v5356 = vadd.f32 %v5171, %v5355
        %v5357 = vpop.f32.mrf.mxu0
        %v5358 = vpop.f32.mrf.mxu0
        %v5359 = vadd.f32 %v5174, %v5358
        %v5360 = vpop.f32.mrf.mxu0
        %5361 = vmatprep.mubr.bf16.mxu0 0
        %5362 = vmatmul.mubr.bf16.gmra.mxu0 %v5221
        %v5363 = vpop.f32.mrf.mxu0
        %v5364 = vadd.f32 %v5179, %v5363
        %v5365 = vpop.f32.mrf.mxu0
        %v5366 = vpop.f32.mrf.mxu0
        %v5367 = vadd.f32 %v5182, %v5366
        %v5368 = vpop.f32.mrf.mxu0
        %5369 = vmatprep.mubr.bf16.mxu0 0
        %5370 = vmatmul.mubr.bf16.gmra.mxu0 %v5221
        %v5371 = vpop.f32.mrf.mxu0
        %v5372 = vadd.f32 %v5187, %v5371
        %v5373 = vpop.f32.mrf.mxu0
        %v5374 = vpop.f32.mrf.mxu0
        %v5375 = vadd.f32 %v5190, %v5374
        %v5376 = vpop.f32.mrf.mxu0
        %5377 = vmatprep.mubr.bf16.mxu0 0
        %5378 = vmatmul.mubr.bf16.gmra.mxu0 %v5223
        %v5379 = vpop.f32.mrf.mxu0
        %v5380 = vadd.f32 %v5195, %v5379
        %v5381 = vpop.f32.mrf.mxu0
        %v5382 = vpop.f32.mrf.mxu0
        %v5383 = vadd.f32 %v5198, %v5382
        %v5384 = vpop.f32.mrf.mxu0
        %5385 = vdwg.mxu0
        %v5402 = vrot.slane %v4894, 1
        %v5403 = vrot.slane %v4895, 1
        %v5404 = vsel %vm999, %v5402, %v5403
        %v5405 = vrot.slane %v4896, 1
        %v5406 = vrot.slane %v4897, 1
        %v5407 = vsel %vm999, %v5405, %v5406
        %v5408 = vrot.slane %v4898, 1
        %v5409 = vrot.slane %v4899, 1
        %v5410 = vsel %vm999, %v5408, %v5409
        %v5411 = vrot.slane %v4900, 1
        %v5412 = vrot.slane %v4901, 1
        %v5413 = vsel %vm999, %v5411, %v5412
        %v5414 = vrot.slane %v4902, 1
        %v5415 = vrot.slane %v4903, 1
        %v5416 = vsel %vm999, %v5414, %v5415
        %v5417 = vrot.slane %v4904, 1
        %v5418 = vrot.slane %v4905, 1
        %v5419 = vsel %vm999, %v5417, %v5418
        %v5420 = vrot.slane %v4906, 1
        %v5421 = vrot.slane %v4907, 1
        %v5422 = vsel %vm999, %v5420, %v5421
        %v5423 = vrot.slane %v4908, 1
        %v5424 = vrot.slane %v4909, 1
        %v5425 = vsel %vm999, %v5423, %v5424
        %v5428 = vunpack.c.l.b16 %v4544
        %v5429 = vunpack.c.l.b16 %v4545
        %v5430 = vpack.c.b16 %v5429, %v5428
        %v5433 = vsel %vm5012, %v1002, 0
        %v5436 = vsel %vm5012, %v5404, 0
        %v5439 = vsel %vm5012, %v5407, 0
        %v5442 = vsel %vm5012, %v5410, 0
        %v5445 = vsel %vm5012, %v5413, 0
        %v5448 = vsel %vm5012, %v5416, 0
        %v5451 = vsel %vm5012, %v5419, 0
        %v5454 = vsel %vm5012, %v5422, 0
        %v5457 = vsel %vm5012, %v5425, 0
        %5459 = vmatprep.subr.bf16.mxu0 0
        %5460 = vmatpush1.bf16.msra.mxu0 0
        %5461 = vmatprep.subr.bf16.mxu0 0
        %5462 = vmatpush1.bf16.msra.mxu0 0
        %5463 = vmatprep.subr.bf16.mxu0 0
        %5464 = vmatpush1.bf16.msra.mxu0 0
        %5465 = vmatprep.subr.bf16.mxu0 0
        %5466 = vmatpush1.bf16.msra.mxu0 0
        %5467 = vmatprep.subr.bf16.mxu0 0
        %5468 = vmatpush1.bf16.msra.mxu0 0
        %5469 = vmatprep.subr.bf16.mxu0 0
        %5470 = vmatpush1.bf16.msra.mxu0 0
        %5471 = vmatprep.subr.bf16.mxu0 0
        %5472 = vmatpush1.bf16.msra.mxu0 0
        %5473 = vmatprep.subr.bf16.mxu0 0
        %5474 = vmatpush1.bf16.msra.mxu0 %v5430
        %5475 = vmatprep.subr.bf16.mxu0 0
        %5476 = vmatpush2.bf16.msra.mxu0 0
        %5477 = vmatprep.subr.bf16.mxu0 0
        %5478 = vmatpush2.bf16.msra.mxu0 0
        %5479 = vmatprep.subr.bf16.mxu0 0
        %5480 = vmatpush2.bf16.msra.mxu0 0
        %5481 = vmatprep.subr.bf16.mxu0 0
        %5482 = vmatpush2.bf16.msra.mxu0 0
        %5483 = vmatprep.subr.bf16.mxu0 0
        %5484 = vmatpush2.bf16.msra.mxu0 0
        %5485 = vmatprep.subr.bf16.mxu0 0
        %5486 = vmatpush2.bf16.msra.mxu0 0
        %5487 = vmatprep.subr.bf16.mxu0 0
        %5488 = vmatpush2.bf16.msra.mxu0 0
        %5489 = vmatprep.subr.bf16.mxu0 0
        %5490 = vmatpush2.bf16.msra.mxu0 0
        %5491 = vmatprep.mubr.bf16.mxu0 0
        %5492 = vmatmul.mubr.bf16.gmra.mxu0 %v5433
        %v5493 = vpop.f32.mrf.mxu0
        %v5494 = vadd.f32 0.0, %v5493
        %v5495 = vpop.f32.mrf.mxu0
        %v5496 = vpop.f32.mrf.mxu0
        %v5497 = vadd.f32 0.0, %v5496
        %v5498 = vpop.f32.mrf.mxu0
        %5499 = vmatprep.mubr.bf16.mxu0 0
        %5500 = vmatmul.mubr.bf16.gmra.mxu0 %v5436
        %v5501 = vpop.f32.mrf.mxu0
        %v5502 = vadd.f32 0.0, %v5501
        %v5503 = vpop.f32.mrf.mxu0
        %v5504 = vpop.f32.mrf.mxu0
        %v5505 = vadd.f32 0.0, %v5504
        %v5506 = vpop.f32.mrf.mxu0
        %5507 = vmatprep.mubr.bf16.mxu0 0
        %5508 = vmatmul.mubr.bf16.gmra.mxu0 %v5436
        %v5509 = vpop.f32.mrf.mxu0
        %v5510 = vadd.f32 0.0, %v5509
        %v5511 = vpop.f32.mrf.mxu0
        %v5512 = vpop.f32.mrf.mxu0
        %v5513 = vadd.f32 0.0, %v5512
        %v5514 = vpop.f32.mrf.mxu0
        %5515 = vmatprep.mubr.bf16.mxu0 0
        %5516 = vmatmul.mubr.bf16.gmra.mxu0 %v5439
        %v5517 = vpop.f32.mrf.mxu0
        %v5518 = vadd.f32 0.0, %v5517
        %v5519 = vpop.f32.mrf.mxu0
        %v5520 = vpop.f32.mrf.mxu0
        %v5521 = vadd.f32 0.0, %v5520
        %v5522 = vpop.f32.mrf.mxu0
        %5523 = vmatprep.mubr.bf16.mxu0 0
        %5524 = vmatmul.mubr.bf16.gmra.mxu0 %v5439
        %v5525 = vpop.f32.mrf.mxu0
        %v5526 = vadd.f32 0.0, %v5525
        %v5527 = vpop.f32.mrf.mxu0
        %v5528 = vpop.f32.mrf.mxu0
        %v5529 = vadd.f32 0.0, %v5528
        %v5530 = vpop.f32.mrf.mxu0
        %5531 = vmatprep.mubr.bf16.mxu0 0
        %5532 = vmatmul.mubr.bf16.gmra.mxu0 %v5442
        %v5533 = vpop.f32.mrf.mxu0
        %v5534 = vadd.f32 0.0, %v5533
        %v5535 = vpop.f32.mrf.mxu0
        %v5536 = vpop.f32.mrf.mxu0
        %v5537 = vadd.f32 0.0, %v5536
        %v5538 = vpop.f32.mrf.mxu0
        %5539 = vmatprep.mubr.bf16.mxu0 0
        %5540 = vmatmul.mubr.bf16.gmra.mxu0 %v5442
        %v5541 = vpop.f32.mrf.mxu0
        %v5542 = vadd.f32 0.0, %v5541
        %v5543 = vpop.f32.mrf.mxu0
        %v5544 = vpop.f32.mrf.mxu0
        %v5545 = vadd.f32 0.0, %v5544
        %v5546 = vpop.f32.mrf.mxu0
        %5547 = vmatprep.mubr.bf16.mxu0 0
        %5548 = vmatmul.mubr.bf16.gmra.mxu0 %v5445
        %v5549 = vpop.f32.mrf.mxu0
        %v5550 = vadd.f32 0.0, %v5549
        %v5551 = vpop.f32.mrf.mxu0
        %v5552 = vpop.f32.mrf.mxu0
        %v5553 = vadd.f32 0.0, %v5552
        %v5554 = vpop.f32.mrf.mxu0
        %5555 = vmatprep.mubr.bf16.mxu0 0
        %5556 = vmatmul.mubr.bf16.gmra.mxu0 %v5445
        %v5557 = vpop.f32.mrf.mxu0
        %v5558 = vadd.f32 0.0, %v5557
        %v5559 = vpop.f32.mrf.mxu0
        %v5560 = vpop.f32.mrf.mxu0
        %v5561 = vadd.f32 0.0, %v5560
        %v5562 = vpop.f32.mrf.mxu0
        %5563 = vmatprep.mubr.bf16.mxu0 0
        %5564 = vmatmul.mubr.bf16.gmra.mxu0 %v5448
        %v5565 = vpop.f32.mrf.mxu0
        %v5566 = vadd.f32 0.0, %v5565
        %v5567 = vpop.f32.mrf.mxu0
        %v5568 = vpop.f32.mrf.mxu0
        %v5569 = vadd.f32 0.0, %v5568
        %v5570 = vpop.f32.mrf.mxu0
        %5571 = vmatprep.mubr.bf16.mxu0 0
        %5572 = vmatmul.mubr.bf16.gmra.mxu0 %v5448
        %v5573 = vpop.f32.mrf.mxu0
        %v5574 = vadd.f32 0.0, %v5573
        %v5575 = vpop.f32.mrf.mxu0
        %v5576 = vpop.f32.mrf.mxu0
        %v5577 = vadd.f32 0.0, %v5576
        %v5578 = vpop.f32.mrf.mxu0
        %5579 = vmatprep.mubr.bf16.mxu0 0
        %5580 = vmatmul.mubr.bf16.gmra.mxu0 %v5451
        %v5581 = vpop.f32.mrf.mxu0
        %v5582 = vadd.f32 0.0, %v5581
        %v5583 = vpop.f32.mrf.mxu0
        %v5584 = vpop.f32.mrf.mxu0
        %v5585 = vadd.f32 0.0, %v5584
        %v5586 = vpop.f32.mrf.mxu0
        %5587 = vmatprep.mubr.bf16.mxu0 0
        %5588 = vmatmul.mubr.bf16.gmra.mxu0 %v5451
        %v5589 = vpop.f32.mrf.mxu0
        %v5590 = vadd.f32 0.0, %v5589
        %v5591 = vpop.f32.mrf.mxu0
        %v5592 = vpop.f32.mrf.mxu0
        %v5593 = vadd.f32 0.0, %v5592
        %v5594 = vpop.f32.mrf.mxu0
        %5595 = vmatprep.mubr.bf16.mxu0 0
        %5596 = vmatmul.mubr.bf16.gmra.mxu0 %v5454
        %v5597 = vpop.f32.mrf.mxu0
        %v5598 = vadd.f32 0.0, %v5597
        %v5599 = vpop.f32.mrf.mxu0
        %v5600 = vpop.f32.mrf.mxu0
        %v5601 = vadd.f32 0.0, %v5600
        %v5602 = vpop.f32.mrf.mxu0
        %5603 = vmatprep.mubr.bf16.mxu0 0
        %5604 = vmatmul.mubr.bf16.gmra.mxu0 %v5454
        %v5605 = vpop.f32.mrf.mxu0
        %v5606 = vadd.f32 0.0, %v5605
        %v5607 = vpop.f32.mrf.mxu0
        %v5608 = vpop.f32.mrf.mxu0
        %v5609 = vadd.f32 0.0, %v5608
        %v5610 = vpop.f32.mrf.mxu0
        %5611 = vmatprep.mubr.bf16.mxu0 0
        %5612 = vmatmul.mubr.bf16.gmra.mxu0 %v5457
        %v5613 = vpop.f32.mrf.mxu0
        %v5614 = vadd.f32 0.0, %v5613
        %v5615 = vpop.f32.mrf.mxu0
        %v5616 = vpop.f32.mrf.mxu0
        %v5617 = vadd.f32 0.0, %v5616
        %v5618 = vpop.f32.mrf.mxu0
        %5619 = vdwg.mxu0
        %v5620 = vadd.f32 %v5260, %v5494
        %v5621 = vadd.f32 %v5263, %v5497
        %v5622 = vadd.f32 %v5268, %v5502
        %v5623 = vadd.f32 %v5271, %v5505
        %v5624 = vadd.f32 %v5276, %v5510
        %v5625 = vadd.f32 %v5279, %v5513
        %v5626 = vadd.f32 %v5284, %v5518
        %v5627 = vadd.f32 %v5287, %v5521
        %v5628 = vadd.f32 %v5292, %v5526
        %v5629 = vadd.f32 %v5295, %v5529
        %v5630 = vadd.f32 %v5300, %v5534
        %v5631 = vadd.f32 %v5303, %v5537
        %v5632 = vadd.f32 %v5308, %v5542
        %v5633 = vadd.f32 %v5311, %v5545
        %v5634 = vadd.f32 %v5316, %v5550
        %v5635 = vadd.f32 %v5319, %v5553
        %v5636 = vadd.f32 %v5324, %v5558
        %v5637 = vadd.f32 %v5327, %v5561
        %v5638 = vadd.f32 %v5332, %v5566
        %v5639 = vadd.f32 %v5335, %v5569
        %v5640 = vadd.f32 %v5340, %v5574
        %v5641 = vadd.f32 %v5343, %v5577
        %v5642 = vadd.f32 %v5348, %v5582
        %v5643 = vadd.f32 %v5351, %v5585
        %v5644 = vadd.f32 %v5356, %v5590
        %v5645 = vadd.f32 %v5359, %v5593
        %v5646 = vadd.f32 %v5364, %v5598
        %v5647 = vadd.f32 %v5367, %v5601
        %v5648 = vadd.f32 %v5372, %v5606
        %v5649 = vadd.f32 %v5375, %v5609
        %v5650 = vadd.f32 %v5380, %v5614
        %v5651 = vadd.f32 %v5383, %v5617
        %v5654 = vunpack.c.l.b16 %v4546
        %v5655 = vunpack.c.l.b16 %v4547
        %v5656 = vpack.c.b16 %v5655, %v5654
        %5658 = vmatprep.subr.bf16.mxu0 0
        %5659 = vmatpush1.bf16.msra.mxu0 0
        %5660 = vmatprep.subr.bf16.mxu0 0
        %5661 = vmatpush1.bf16.msra.mxu0 0
        %5662 = vmatprep.subr.bf16.mxu0 0
        %5663 = vmatpush1.bf16.msra.mxu0 0
        %5664 = vmatprep.subr.bf16.mxu0 0
        %5665 = vmatpush1.bf16.msra.mxu0 0
        %5666 = vmatprep.subr.bf16.mxu0 0
        %5667 = vmatpush1.bf16.msra.mxu0 0
        %5668 = vmatprep.subr.bf16.mxu0 0
        %5669 = vmatpush1.bf16.msra.mxu0 0
        %5670 = vmatprep.subr.bf16.mxu0 0
        %5671 = vmatpush1.bf16.msra.mxu0 0
        %5672 = vmatprep.subr.bf16.mxu0 0
        %5673 = vmatpush1.bf16.msra.mxu0 %v5656
        %5674 = vmatprep.subr.bf16.mxu0 0
        %5675 = vmatpush2.bf16.msra.mxu0 0
        %5676 = vmatprep.subr.bf16.mxu0 0
        %5677 = vmatpush2.bf16.msra.mxu0 0
        %5678 = vmatprep.subr.bf16.mxu0 0
        %5679 = vmatpush2.bf16.msra.mxu0 0
        %5680 = vmatprep.subr.bf16.mxu0 0
        %5681 = vmatpush2.bf16.msra.mxu0 0
        %5682 = vmatprep.subr.bf16.mxu0 0
        %5683 = vmatpush2.bf16.msra.mxu0 0
        %5684 = vmatprep.subr.bf16.mxu0 0
        %5685 = vmatpush2.bf16.msra.mxu0 0
        %5686 = vmatprep.subr.bf16.mxu0 0
        %5687 = vmatpush2.bf16.msra.mxu0 0
        %5688 = vmatprep.subr.bf16.mxu0 0
        %5689 = vmatpush2.bf16.msra.mxu0 0
        %5690 = vmatprep.mubr.bf16.mxu0 0
        %5691 = vmatmul.mubr.bf16.gmra.mxu0 %v5209
        %v5692 = vpop.f32.mrf.mxu0
        %v5693 = vadd.f32 0.0, %v5692
        %v5694 = vpop.f32.mrf.mxu0
        %v5695 = vpop.f32.mrf.mxu0
        %v5696 = vadd.f32 0.0, %v5695
        %v5697 = vpop.f32.mrf.mxu0
        %5698 = vmatprep.mubr.bf16.mxu0 0
        %5699 = vmatmul.mubr.bf16.gmra.mxu0 %v5209
        %v5700 = vpop.f32.mrf.mxu0
        %v5701 = vadd.f32 0.0, %v5700
        %v5702 = vpop.f32.mrf.mxu0
        %v5703 = vpop.f32.mrf.mxu0
        %v5704 = vadd.f32 0.0, %v5703
        %v5705 = vpop.f32.mrf.mxu0
        %5706 = vmatprep.mubr.bf16.mxu0 0
        %5707 = vmatmul.mubr.bf16.gmra.mxu0 %v5211
        %v5708 = vpop.f32.mrf.mxu0
        %v5709 = vadd.f32 0.0, %v5708
        %v5710 = vpop.f32.mrf.mxu0
        %v5711 = vpop.f32.mrf.mxu0
        %v5712 = vadd.f32 0.0, %v5711
        %v5713 = vpop.f32.mrf.mxu0
        %5714 = vmatprep.mubr.bf16.mxu0 0
        %5715 = vmatmul.mubr.bf16.gmra.mxu0 %v5211
        %v5716 = vpop.f32.mrf.mxu0
        %v5717 = vadd.f32 0.0, %v5716
        %v5718 = vpop.f32.mrf.mxu0
        %v5719 = vpop.f32.mrf.mxu0
        %v5720 = vadd.f32 0.0, %v5719
        %v5721 = vpop.f32.mrf.mxu0
        %5722 = vmatprep.mubr.bf16.mxu0 0
        %5723 = vmatmul.mubr.bf16.gmra.mxu0 %v5213
        %v5724 = vpop.f32.mrf.mxu0
        %v5725 = vadd.f32 0.0, %v5724
        %v5726 = vpop.f32.mrf.mxu0
        %v5727 = vpop.f32.mrf.mxu0
        %v5728 = vadd.f32 0.0, %v5727
        %v5729 = vpop.f32.mrf.mxu0
        %5730 = vmatprep.mubr.bf16.mxu0 0
        %5731 = vmatmul.mubr.bf16.gmra.mxu0 %v5213
        %v5732 = vpop.f32.mrf.mxu0
        %v5733 = vadd.f32 0.0, %v5732
        %v5734 = vpop.f32.mrf.mxu0
        %v5735 = vpop.f32.mrf.mxu0
        %v5736 = vadd.f32 0.0, %v5735
        %v5737 = vpop.f32.mrf.mxu0
        %5738 = vmatprep.mubr.bf16.mxu0 0
        %5739 = vmatmul.mubr.bf16.gmra.mxu0 %v5215
        %v5740 = vpop.f32.mrf.mxu0
        %v5741 = vadd.f32 0.0, %v5740
        %v5742 = vpop.f32.mrf.mxu0
        %v5743 = vpop.f32.mrf.mxu0
        %v5744 = vadd.f32 0.0, %v5743
        %v5745 = vpop.f32.mrf.mxu0
        %5746 = vmatprep.mubr.bf16.mxu0 0
        %5747 = vmatmul.mubr.bf16.gmra.mxu0 %v5215
        %v5748 = vpop.f32.mrf.mxu0
        %v5749 = vadd.f32 0.0, %v5748
        %v5750 = vpop.f32.mrf.mxu0
        %v5751 = vpop.f32.mrf.mxu0
        %v5752 = vadd.f32 0.0, %v5751
        %v5753 = vpop.f32.mrf.mxu0
        %5754 = vmatprep.mubr.bf16.mxu0 0
        %5755 = vmatmul.mubr.bf16.gmra.mxu0 %v5217
        %v5756 = vpop.f32.mrf.mxu0
        %v5757 = vadd.f32 0.0, %v5756
        %v5758 = vpop.f32.mrf.mxu0
        %v5759 = vpop.f32.mrf.mxu0
        %v5760 = vadd.f32 0.0, %v5759
        %v5761 = vpop.f32.mrf.mxu0
        %5762 = vmatprep.mubr.bf16.mxu0 0
        %5763 = vmatmul.mubr.bf16.gmra.mxu0 %v5217
        %v5764 = vpop.f32.mrf.mxu0
        %v5765 = vadd.f32 0.0, %v5764
        %v5766 = vpop.f32.mrf.mxu0
        %v5767 = vpop.f32.mrf.mxu0
        %v5768 = vadd.f32 0.0, %v5767
        %v5769 = vpop.f32.mrf.mxu0
        %5770 = vmatprep.mubr.bf16.mxu0 0
        %5771 = vmatmul.mubr.bf16.gmra.mxu0 %v5219
        %v5772 = vpop.f32.mrf.mxu0
        %v5773 = vadd.f32 0.0, %v5772
        %v5774 = vpop.f32.mrf.mxu0
        %v5775 = vpop.f32.mrf.mxu0
        %v5776 = vadd.f32 0.0, %v5775
        %v5777 = vpop.f32.mrf.mxu0
        %5778 = vmatprep.mubr.bf16.mxu0 0
        %5779 = vmatmul.mubr.bf16.gmra.mxu0 %v5219
        %v5780 = vpop.f32.mrf.mxu0
        %v5781 = vadd.f32 0.0, %v5780
        %v5782 = vpop.f32.mrf.mxu0
        %v5783 = vpop.f32.mrf.mxu0
        %v5784 = vadd.f32 0.0, %v5783
        %v5785 = vpop.f32.mrf.mxu0
        %5786 = vmatprep.mubr.bf16.mxu0 0
        %5787 = vmatmul.mubr.bf16.gmra.mxu0 %v5221
        %v5788 = vpop.f32.mrf.mxu0
        %v5789 = vadd.f32 0.0, %v5788
        %v5790 = vpop.f32.mrf.mxu0
        %v5791 = vpop.f32.mrf.mxu0
        %v5792 = vadd.f32 0.0, %v5791
        %v5793 = vpop.f32.mrf.mxu0
        %5794 = vmatprep.mubr.bf16.mxu0 0
        %5795 = vmatmul.mubr.bf16.gmra.mxu0 %v5221
        %v5796 = vpop.f32.mrf.mxu0
        %v5797 = vadd.f32 0.0, %v5796
        %v5798 = vpop.f32.mrf.mxu0
        %v5799 = vpop.f32.mrf.mxu0
        %v5800 = vadd.f32 0.0, %v5799
        %v5801 = vpop.f32.mrf.mxu0
        %5802 = vmatprep.mubr.bf16.mxu0 0
        %5803 = vmatmul.mubr.bf16.gmra.mxu0 %v5223
        %v5804 = vpop.f32.mrf.mxu0
        %v5805 = vadd.f32 0.0, %v5804
        %v5806 = vpop.f32.mrf.mxu0
        %v5807 = vpop.f32.mrf.mxu0
        %v5808 = vadd.f32 0.0, %v5807
        %v5809 = vpop.f32.mrf.mxu0
        %5810 = vmatprep.mubr.bf16.mxu0 0
        %5811 = vmatmul.mubr.bf16.gmra.mxu0 %v5223
        %v5812 = vpop.f32.mrf.mxu0
        %v5813 = vadd.f32 0.0, %v5812
        %v5814 = vpop.f32.mrf.mxu0
        %v5815 = vpop.f32.mrf.mxu0
        %v5816 = vadd.f32 0.0, %v5815
        %v5817 = vpop.f32.mrf.mxu0
        %5818 = vdwg.mxu0
        %v5819 = vadd.f32 %v5620, %v5693
        %v5820 = vadd.f32 %v5621, %v5696
        %v5821 = vadd.f32 %v5622, %v5701
        %v5822 = vadd.f32 %v5623, %v5704
        %v5823 = vadd.f32 %v5624, %v5709
        %v5824 = vadd.f32 %v5625, %v5712
        %v5825 = vadd.f32 %v5626, %v5717
        %v5826 = vadd.f32 %v5627, %v5720
        %v5827 = vadd.f32 %v5628, %v5725
        %v5828 = vadd.f32 %v5629, %v5728
        %v5829 = vadd.f32 %v5630, %v5733
        %v5830 = vadd.f32 %v5631, %v5736
        %v5831 = vadd.f32 %v5632, %v5741
        %v5832 = vadd.f32 %v5633, %v5744
        %v5833 = vadd.f32 %v5634, %v5749
        %v5834 = vadd.f32 %v5635, %v5752
        %v5835 = vadd.f32 %v5636, %v5757
        %v5836 = vadd.f32 %v5637, %v5760
        %v5837 = vadd.f32 %v5638, %v5765
        %v5838 = vadd.f32 %v5639, %v5768
        %v5839 = vadd.f32 %v5640, %v5773
        %v5840 = vadd.f32 %v5641, %v5776
        %v5841 = vadd.f32 %v5642, %v5781
        %v5842 = vadd.f32 %v5643, %v5784
        %v5843 = vadd.f32 %v5644, %v5789
        %v5844 = vadd.f32 %v5645, %v5792
        %v5845 = vadd.f32 %v5646, %v5797
        %v5846 = vadd.f32 %v5647, %v5800
        %v5847 = vadd.f32 %v5648, %v5805
        %v5848 = vadd.f32 %v5649, %v5808
        %v5849 = vadd.f32 %v5650, %v5813
        %v5850 = vadd.f32 %v5651, %v5816
        %v5853 = vunpack.c.l.b16 %v4548
        %v5854 = vunpack.c.l.b16 %v4549
        %v5855 = vpack.c.b16 %v5854, %v5853
        %5857 = vmatprep.subr.bf16.mxu0 0
        %5858 = vmatpush1.bf16.msra.mxu0 0
        %5859 = vmatprep.subr.bf16.mxu0 0
        %5860 = vmatpush1.bf16.msra.mxu0 0
        %5861 = vmatprep.subr.bf16.mxu0 0
        %5862 = vmatpush1.bf16.msra.mxu0 0
        %5863 = vmatprep.subr.bf16.mxu0 0
        %5864 = vmatpush1.bf16.msra.mxu0 0
        %5865 = vmatprep.subr.bf16.mxu0 0
        %5866 = vmatpush1.bf16.msra.mxu0 0
        %5867 = vmatprep.subr.bf16.mxu0 0
        %5868 = vmatpush1.bf16.msra.mxu0 0
        %5869 = vmatprep.subr.bf16.mxu0 0
        %5870 = vmatpush1.bf16.msra.mxu0 0
        %5871 = vmatprep.subr.bf16.mxu0 0
        %5872 = vmatpush1.bf16.msra.mxu0 %v5855
        %5873 = vmatprep.subr.bf16.mxu0 0
        %5874 = vmatpush2.bf16.msra.mxu0 0
        %5875 = vmatprep.subr.bf16.mxu0 0
        %5876 = vmatpush2.bf16.msra.mxu0 0
        %5877 = vmatprep.subr.bf16.mxu0 0
        %5878 = vmatpush2.bf16.msra.mxu0 0
        %5879 = vmatprep.subr.bf16.mxu0 0
        %5880 = vmatpush2.bf16.msra.mxu0 0
        %5881 = vmatprep.subr.bf16.mxu0 0
        %5882 = vmatpush2.bf16.msra.mxu0 0
        %5883 = vmatprep.subr.bf16.mxu0 0
        %5884 = vmatpush2.bf16.msra.mxu0 0
        %5885 = vmatprep.subr.bf16.mxu0 0
        %5886 = vmatpush2.bf16.msra.mxu0 0
        %5887 = vmatprep.subr.bf16.mxu0 0
        %5888 = vmatpush2.bf16.msra.mxu0 0
        %5889 = vmatprep.mubr.bf16.mxu0 0
        %5890 = vmatmul.mubr.bf16.gmra.mxu0 %v5017
        %v5891 = vpop.f32.mrf.mxu0
        %v5892 = vadd.f32 0.0, %v5891
        %v5893 = vpop.f32.mrf.mxu0
        %v5894 = vpop.f32.mrf.mxu0
        %v5895 = vadd.f32 0.0, %v5894
        %v5896 = vpop.f32.mrf.mxu0
        %5897 = vmatprep.mubr.bf16.mxu0 0
        %5898 = vmatmul.mubr.bf16.gmra.mxu0 %v5017
        %v5899 = vpop.f32.mrf.mxu0
        %v5900 = vadd.f32 0.0, %v5899
        %v5901 = vpop.f32.mrf.mxu0
        %v5902 = vpop.f32.mrf.mxu0
        %v5903 = vadd.f32 0.0, %v5902
        %v5904 = vpop.f32.mrf.mxu0
        %5905 = vmatprep.mubr.bf16.mxu0 0
        %5906 = vmatmul.mubr.bf16.gmra.mxu0 %v5020
        %v5907 = vpop.f32.mrf.mxu0
        %v5908 = vadd.f32 0.0, %v5907
        %v5909 = vpop.f32.mrf.mxu0
        %v5910 = vpop.f32.mrf.mxu0
        %v5911 = vadd.f32 0.0, %v5910
        %v5912 = vpop.f32.mrf.mxu0
        %5913 = vmatprep.mubr.bf16.mxu0 0
        %5914 = vmatmul.mubr.bf16.gmra.mxu0 %v5020
        %v5915 = vpop.f32.mrf.mxu0
        %v5916 = vadd.f32 0.0, %v5915
        %v5917 = vpop.f32.mrf.mxu0
        %v5918 = vpop.f32.mrf.mxu0
        %v5919 = vadd.f32 0.0, %v5918
        %v5920 = vpop.f32.mrf.mxu0
        %5921 = vmatprep.mubr.bf16.mxu0 0
        %5922 = vmatmul.mubr.bf16.gmra.mxu0 %v5023
        %v5923 = vpop.f32.mrf.mxu0
        %v5924 = vadd.f32 0.0, %v5923
        %v5925 = vpop.f32.mrf.mxu0
        %v5926 = vpop.f32.mrf.mxu0
        %v5927 = vadd.f32 0.0, %v5926
        %v5928 = vpop.f32.mrf.mxu0
        %5929 = vmatprep.mubr.bf16.mxu0 0
        %5930 = vmatmul.mubr.bf16.gmra.mxu0 %v5023
        %v5931 = vpop.f32.mrf.mxu0
        %v5932 = vadd.f32 0.0, %v5931
        %v5933 = vpop.f32.mrf.mxu0
        %v5934 = vpop.f32.mrf.mxu0
        %v5935 = vadd.f32 0.0, %v5934
        %v5936 = vpop.f32.mrf.mxu0
        %5937 = vmatprep.mubr.bf16.mxu0 0
        %5938 = vmatmul.mubr.bf16.gmra.mxu0 %v5026
        %v5939 = vpop.f32.mrf.mxu0
        %v5940 = vadd.f32 0.0, %v5939
        %v5941 = vpop.f32.mrf.mxu0
        %v5942 = vpop.f32.mrf.mxu0
        %v5943 = vadd.f32 0.0, %v5942
        %v5944 = vpop.f32.mrf.mxu0
        %5945 = vmatprep.mubr.bf16.mxu0 0
        %5946 = vmatmul.mubr.bf16.gmra.mxu0 %v5026
        %v5947 = vpop.f32.mrf.mxu0
        %v5948 = vadd.f32 0.0, %v5947
        %v5949 = vpop.f32.mrf.mxu0
        %v5950 = vpop.f32.mrf.mxu0
        %v5951 = vadd.f32 0.0, %v5950
        %v5952 = vpop.f32.mrf.mxu0
        %5953 = vmatprep.mubr.bf16.mxu0 0
        %5954 = vmatmul.mubr.bf16.gmra.mxu0 %v5029
        %v5955 = vpop.f32.mrf.mxu0
        %v5956 = vadd.f32 0.0, %v5955
        %v5957 = vpop.f32.mrf.mxu0
        %v5958 = vpop.f32.mrf.mxu0
        %v5959 = vadd.f32 0.0, %v5958
        %v5960 = vpop.f32.mrf.mxu0
        %5961 = vmatprep.mubr.bf16.mxu0 0
        %5962 = vmatmul.mubr.bf16.gmra.mxu0 %v5029
        %v5963 = vpop.f32.mrf.mxu0
        %v5964 = vadd.f32 0.0, %v5963
        %v5965 = vpop.f32.mrf.mxu0
        %v5966 = vpop.f32.mrf.mxu0
        %v5967 = vadd.f32 0.0, %v5966
        %v5968 = vpop.f32.mrf.mxu0
        %5969 = vmatprep.mubr.bf16.mxu0 0
        %5970 = vmatmul.mubr.bf16.gmra.mxu0 %v5032
        %v5971 = vpop.f32.mrf.mxu0
        %v5972 = vadd.f32 0.0, %v5971
        %v5973 = vpop.f32.mrf.mxu0
        %v5974 = vpop.f32.mrf.mxu0
        %v5975 = vadd.f32 0.0, %v5974
        %v5976 = vpop.f32.mrf.mxu0
        %5977 = vmatprep.mubr.bf16.mxu0 0
        %5978 = vmatmul.mubr.bf16.gmra.mxu0 %v5032
        %v5979 = vpop.f32.mrf.mxu0
        %v5980 = vadd.f32 0.0, %v5979
        %v5981 = vpop.f32.mrf.mxu0
        %v5982 = vpop.f32.mrf.mxu0
        %v5983 = vadd.f32 0.0, %v5982
        %v5984 = vpop.f32.mrf.mxu0
        %5985 = vmatprep.mubr.bf16.mxu0 0
        %5986 = vmatmul.mubr.bf16.gmra.mxu0 %v5035
        %v5987 = vpop.f32.mrf.mxu0
        %v5988 = vadd.f32 0.0, %v5987
        %v5989 = vpop.f32.mrf.mxu0
        %v5990 = vpop.f32.mrf.mxu0
        %v5991 = vadd.f32 0.0, %v5990
        %v5992 = vpop.f32.mrf.mxu0
        %5993 = vmatprep.mubr.bf16.mxu0 0
        %5994 = vmatmul.mubr.bf16.gmra.mxu0 %v5035
        %v5995 = vpop.f32.mrf.mxu0
        %v5996 = vadd.f32 0.0, %v5995
        %v5997 = vpop.f32.mrf.mxu0
        %v5998 = vpop.f32.mrf.mxu0
        %v5999 = vadd.f32 0.0, %v5998
        %v6000 = vpop.f32.mrf.mxu0
        %6001 = vmatprep.mubr.bf16.mxu0 0
        %6002 = vmatmul.mubr.bf16.gmra.mxu0 %v5038
        %v6003 = vpop.f32.mrf.mxu0
        %v6004 = vadd.f32 0.0, %v6003
        %v6005 = vpop.f32.mrf.mxu0
        %v6006 = vpop.f32.mrf.mxu0
        %v6007 = vadd.f32 0.0, %v6006
        %v6008 = vpop.f32.mrf.mxu0
        %6009 = vmatprep.mubr.bf16.mxu0 0
        %6010 = vmatmul.mubr.bf16.gmra.mxu0 %v5038
        %v6011 = vpop.f32.mrf.mxu0
        %v6012 = vadd.f32 0.0, %v6011
        %v6013 = vpop.f32.mrf.mxu0
        %v6014 = vpop.f32.mrf.mxu0
        %v6015 = vadd.f32 0.0, %v6014
        %v6016 = vpop.f32.mrf.mxu0
        %6017 = vdwg.mxu0
        %v6018 = vadd.f32 %v5819, %v5892
        %v6019 = vadd.f32 %v5820, %v5895
        %v6020 = vadd.f32 %v5821, %v5900
        %v6021 = vadd.f32 %v5822, %v5903
        %v6022 = vadd.f32 %v5823, %v5908
        %v6023 = vadd.f32 %v5824, %v5911
        %v6024 = vadd.f32 %v5825, %v5916
        %v6025 = vadd.f32 %v5826, %v5919
        %v6026 = vadd.f32 %v5827, %v5924
        %v6027 = vadd.f32 %v5828, %v5927
        %v6028 = vadd.f32 %v5829, %v5932
        %v6029 = vadd.f32 %v5830, %v5935
        %v6030 = vadd.f32 %v5831, %v5940
        %v6031 = vadd.f32 %v5832, %v5943
        %v6032 = vadd.f32 %v5833, %v5948
        %v6033 = vadd.f32 %v5834, %v5951
        %v6034 = vadd.f32 %v5835, %v5956
        %v6035 = vadd.f32 %v5836, %v5959
        %v6036 = vadd.f32 %v5837, %v5964
        %v6037 = vadd.f32 %v5838, %v5967
        %v6038 = vadd.f32 %v5839, %v5972
        %v6039 = vadd.f32 %v5840, %v5975
        %v6040 = vadd.f32 %v5841, %v5980
        %v6041 = vadd.f32 %v5842, %v5983
        %v6042 = vadd.f32 %v5843, %v5988
        %v6043 = vadd.f32 %v5844, %v5991
        %v6044 = vadd.f32 %v5845, %v5996
        %v6045 = vadd.f32 %v5846, %v5999
        %v6046 = vadd.f32 %v5847, %v6004
        %v6047 = vadd.f32 %v5848, %v6007
        %v6048 = vadd.f32 %v5849, %v6012
        %v6049 = vadd.f32 %v5850, %v6015
        %v6052 = vunpack.c.l.b16 %v4550
        %v6053 = vunpack.c.l.b16 %v4551
        %v6054 = vpack.c.b16 %v6053, %v6052
        %6056 = vmatprep.subr.bf16.mxu0 0
        %6057 = vmatpush1.bf16.msra.mxu0 0
        %6058 = vmatprep.subr.bf16.mxu0 0
        %6059 = vmatpush1.bf16.msra.mxu0 0
        %6060 = vmatprep.subr.bf16.mxu0 0
        %6061 = vmatpush1.bf16.msra.mxu0 0
        %6062 = vmatprep.subr.bf16.mxu0 0
        %6063 = vmatpush1.bf16.msra.mxu0 0
        %6064 = vmatprep.subr.bf16.mxu0 0
        %6065 = vmatpush1.bf16.msra.mxu0 0
        %6066 = vmatprep.subr.bf16.mxu0 0
        %6067 = vmatpush1.bf16.msra.mxu0 0
        %6068 = vmatprep.subr.bf16.mxu0 0
        %6069 = vmatpush1.bf16.msra.mxu0 0
        %6070 = vmatprep.subr.bf16.mxu0 0
        %6071 = vmatpush1.bf16.msra.mxu0 %v6054
        %6072 = vmatprep.subr.bf16.mxu0 0
        %6073 = vmatpush2.bf16.msra.mxu0 0
        %6074 = vmatprep.subr.bf16.mxu0 0
        %6075 = vmatpush2.bf16.msra.mxu0 0
        %6076 = vmatprep.subr.bf16.mxu0 0
        %6077 = vmatpush2.bf16.msra.mxu0 0
        %6078 = vmatprep.subr.bf16.mxu0 0
        %6079 = vmatpush2.bf16.msra.mxu0 0
        %6080 = vmatprep.subr.bf16.mxu0 0
        %6081 = vmatpush2.bf16.msra.mxu0 0
        %6082 = vmatprep.subr.bf16.mxu0 0
        %6083 = vmatpush2.bf16.msra.mxu0 0
        %6084 = vmatprep.subr.bf16.mxu0 0
        %6085 = vmatpush2.bf16.msra.mxu0 0
        %6086 = vmatprep.subr.bf16.mxu0 0
        %6087 = vmatpush2.bf16.msra.mxu0 0
        %6088 = vmatprep.mubr.bf16.mxu0 0
        %6089 = vmatmul.mubr.bf16.gmra.mxu0 %v5436
        %v6090 = vpop.f32.mrf.mxu0
        %v6091 = vadd.f32 0.0, %v6090
        %v6092 = vpop.f32.mrf.mxu0
        %v6093 = vpop.f32.mrf.mxu0
        %v6094 = vadd.f32 0.0, %v6093
        %v6095 = vpop.f32.mrf.mxu0
        %6096 = vmatprep.mubr.bf16.mxu0 0
        %6097 = vmatmul.mubr.bf16.gmra.mxu0 %v5436
        %v6098 = vpop.f32.mrf.mxu0
        %v6099 = vadd.f32 0.0, %v6098
        %v6100 = vpop.f32.mrf.mxu0
        %v6101 = vpop.f32.mrf.mxu0
        %v6102 = vadd.f32 0.0, %v6101
        %v6103 = vpop.f32.mrf.mxu0
        %6104 = vmatprep.mubr.bf16.mxu0 0
        %6105 = vmatmul.mubr.bf16.gmra.mxu0 %v5439
        %v6106 = vpop.f32.mrf.mxu0
        %v6107 = vadd.f32 0.0, %v6106
        %v6108 = vpop.f32.mrf.mxu0
        %v6109 = vpop.f32.mrf.mxu0
        %v6110 = vadd.f32 0.0, %v6109
        %v6111 = vpop.f32.mrf.mxu0
        %6112 = vmatprep.mubr.bf16.mxu0 0
        %6113 = vmatmul.mubr.bf16.gmra.mxu0 %v5439
        %v6114 = vpop.f32.mrf.mxu0
        %v6115 = vadd.f32 0.0, %v6114
        %v6116 = vpop.f32.mrf.mxu0
        %v6117 = vpop.f32.mrf.mxu0
        %v6118 = vadd.f32 0.0, %v6117
        %v6119 = vpop.f32.mrf.mxu0
        %6120 = vmatprep.mubr.bf16.mxu0 0
        %6121 = vmatmul.mubr.bf16.gmra.mxu0 %v5442
        %v6122 = vpop.f32.mrf.mxu0
        %v6123 = vadd.f32 0.0, %v6122
        %v6124 = vpop.f32.mrf.mxu0
        %v6125 = vpop.f32.mrf.mxu0
        %v6126 = vadd.f32 0.0, %v6125
        %v6127 = vpop.f32.mrf.mxu0
        %6128 = vmatprep.mubr.bf16.mxu0 0
        %6129 = vmatmul.mubr.bf16.gmra.mxu0 %v5442
        %v6130 = vpop.f32.mrf.mxu0
        %v6131 = vadd.f32 0.0, %v6130
        %v6132 = vpop.f32.mrf.mxu0
        %v6133 = vpop.f32.mrf.mxu0
        %v6134 = vadd.f32 0.0, %v6133
        %v6135 = vpop.f32.mrf.mxu0
        %6136 = vmatprep.mubr.bf16.mxu0 0
        %6137 = vmatmul.mubr.bf16.gmra.mxu0 %v5445
        %v6138 = vpop.f32.mrf.mxu0
        %v6139 = vadd.f32 0.0, %v6138
        %v6140 = vpop.f32.mrf.mxu0
        %v6141 = vpop.f32.mrf.mxu0
        %v6142 = vadd.f32 0.0, %v6141
        %v6143 = vpop.f32.mrf.mxu0
        %6144 = vmatprep.mubr.bf16.mxu0 0
        %6145 = vmatmul.mubr.bf16.gmra.mxu0 %v5445
        %v6146 = vpop.f32.mrf.mxu0
        %v6147 = vadd.f32 0.0, %v6146
        %v6148 = vpop.f32.mrf.mxu0
        %v6149 = vpop.f32.mrf.mxu0
        %v6150 = vadd.f32 0.0, %v6149
        %v6151 = vpop.f32.mrf.mxu0
        %6152 = vmatprep.mubr.bf16.mxu0 0
        %6153 = vmatmul.mubr.bf16.gmra.mxu0 %v5448
        %v6154 = vpop.f32.mrf.mxu0
        %v6155 = vadd.f32 0.0, %v6154
        %v6156 = vpop.f32.mrf.mxu0
        %v6157 = vpop.f32.mrf.mxu0
        %v6158 = vadd.f32 0.0, %v6157
        %v6159 = vpop.f32.mrf.mxu0
        %6160 = vmatprep.mubr.bf16.mxu0 0
        %6161 = vmatmul.mubr.bf16.gmra.mxu0 %v5448
        %v6162 = vpop.f32.mrf.mxu0
        %v6163 = vadd.f32 0.0, %v6162
        %v6164 = vpop.f32.mrf.mxu0
        %v6165 = vpop.f32.mrf.mxu0
        %v6166 = vadd.f32 0.0, %v6165
        %v6167 = vpop.f32.mrf.mxu0
        %6168 = vmatprep.mubr.bf16.mxu0 0
        %6169 = vmatmul.mubr.bf16.gmra.mxu0 %v5451
        %v6170 = vpop.f32.mrf.mxu0
        %v6171 = vadd.f32 0.0, %v6170
        %v6172 = vpop.f32.mrf.mxu0
        %v6173 = vpop.f32.mrf.mxu0
        %v6174 = vadd.f32 0.0, %v6173
        %v6175 = vpop.f32.mrf.mxu0
        %6176 = vmatprep.mubr.bf16.mxu0 0
        %6177 = vmatmul.mubr.bf16.gmra.mxu0 %v5451
        %v6178 = vpop.f32.mrf.mxu0
        %v6179 = vadd.f32 0.0, %v6178
        %v6180 = vpop.f32.mrf.mxu0
        %v6181 = vpop.f32.mrf.mxu0
        %v6182 = vadd.f32 0.0, %v6181
        %v6183 = vpop.f32.mrf.mxu0
        %6184 = vmatprep.mubr.bf16.mxu0 0
        %6185 = vmatmul.mubr.bf16.gmra.mxu0 %v5454
        %v6186 = vpop.f32.mrf.mxu0
        %v6187 = vadd.f32 0.0, %v6186
        %v6188 = vpop.f32.mrf.mxu0
        %v6189 = vpop.f32.mrf.mxu0
        %v6190 = vadd.f32 0.0, %v6189
        %v6191 = vpop.f32.mrf.mxu0
        %6192 = vmatprep.mubr.bf16.mxu0 0
        %6193 = vmatmul.mubr.bf16.gmra.mxu0 %v5454
        %v6194 = vpop.f32.mrf.mxu0
        %v6195 = vadd.f32 0.0, %v6194
        %v6196 = vpop.f32.mrf.mxu0
        %v6197 = vpop.f32.mrf.mxu0
        %v6198 = vadd.f32 0.0, %v6197
        %v6199 = vpop.f32.mrf.mxu0
        %6200 = vmatprep.mubr.bf16.mxu0 0
        %6201 = vmatmul.mubr.bf16.gmra.mxu0 %v5457
        %v6202 = vpop.f32.mrf.mxu0
        %v6203 = vadd.f32 0.0, %v6202
        %v6204 = vpop.f32.mrf.mxu0
        %v6205 = vpop.f32.mrf.mxu0
        %v6206 = vadd.f32 0.0, %v6205
        %v6207 = vpop.f32.mrf.mxu0
        %6208 = vmatprep.mubr.bf16.mxu0 0
        %6209 = vmatmul.mubr.bf16.gmra.mxu0 %v5457
        %v6210 = vpop.f32.mrf.mxu0
        %v6211 = vadd.f32 0.0, %v6210
        %v6212 = vpop.f32.mrf.mxu0
        %v6213 = vpop.f32.mrf.mxu0
        %v6214 = vadd.f32 0.0, %v6213
        %v6215 = vpop.f32.mrf.mxu0
        %6216 = vdwg.mxu0
        %v6217 = vadd.f32 %v6018, %v6091
        %v6218 = vadd.f32 %v6019, %v6094
        %v6219 = vadd.f32 %v6020, %v6099
        %v6220 = vadd.f32 %v6021, %v6102
        %v6221 = vadd.f32 %v6022, %v6107
        %v6222 = vadd.f32 %v6023, %v6110
        %v6223 = vadd.f32 %v6024, %v6115
        %v6224 = vadd.f32 %v6025, %v6118
        %v6225 = vadd.f32 %v6026, %v6123
        %v6226 = vadd.f32 %v6027, %v6126
        %v6227 = vadd.f32 %v6028, %v6131
        %v6228 = vadd.f32 %v6029, %v6134
        %v6229 = vadd.f32 %v6030, %v6139
        %v6230 = vadd.f32 %v6031, %v6142
        %v6231 = vadd.f32 %v6032, %v6147
        %v6232 = vadd.f32 %v6033, %v6150
        %v6233 = vadd.f32 %v6034, %v6155
        %v6234 = vadd.f32 %v6035, %v6158
        %v6235 = vadd.f32 %v6036, %v6163
        %v6236 = vadd.f32 %v6037, %v6166
        %v6237 = vadd.f32 %v6038, %v6171
        %v6238 = vadd.f32 %v6039, %v6174
        %v6239 = vadd.f32 %v6040, %v6179
        %v6240 = vadd.f32 %v6041, %v6182
        %v6241 = vadd.f32 %v6042, %v6187
        %v6242 = vadd.f32 %v6043, %v6190
        %v6243 = vadd.f32 %v6044, %v6195
        %v6244 = vadd.f32 %v6045, %v6198
        %v6245 = vadd.f32 %v6046, %v6203
        %v6246 = vadd.f32 %v6047, %v6206
        %v6247 = vadd.f32 %v6048, %v6211
        %v6248 = vadd.f32 %v6049, %v6214
        %v6251 = vunpack.c.l.b16 %v4552
        %v6252 = vunpack.c.l.b16 %v4553
        %v6253 = vpack.c.b16 %v6252, %v6251
        %6255 = vmatprep.subr.bf16.mxu0 0
        %6256 = vmatpush1.bf16.msra.mxu0 0
        %6257 = vmatprep.subr.bf16.mxu0 0
        %6258 = vmatpush1.bf16.msra.mxu0 0
        %6259 = vmatprep.subr.bf16.mxu0 0
        %6260 = vmatpush1.bf16.msra.mxu0 0
        %6261 = vmatprep.subr.bf16.mxu0 0
        %6262 = vmatpush1.bf16.msra.mxu0 0
        %6263 = vmatprep.subr.bf16.mxu0 0
        %6264 = vmatpush1.bf16.msra.mxu0 0
        %6265 = vmatprep.subr.bf16.mxu0 0
        %6266 = vmatpush1.bf16.msra.mxu0 0
        %6267 = vmatprep.subr.bf16.mxu0 0
        %6268 = vmatpush1.bf16.msra.mxu0 0
        %6269 = vmatprep.subr.bf16.mxu0 0
        %6270 = vmatpush1.bf16.msra.mxu0 %v6253
        %6271 = vmatprep.subr.bf16.mxu0 0
        %6272 = vmatpush2.bf16.msra.mxu0 0
        %6273 = vmatprep.subr.bf16.mxu0 0
        %6274 = vmatpush2.bf16.msra.mxu0 0
        %6275 = vmatprep.subr.bf16.mxu0 0
        %6276 = vmatpush2.bf16.msra.mxu0 0
        %6277 = vmatprep.subr.bf16.mxu0 0
        %6278 = vmatpush2.bf16.msra.mxu0 0
        %6279 = vmatprep.subr.bf16.mxu0 0
        %6280 = vmatpush2.bf16.msra.mxu0 0
        %6281 = vmatprep.subr.bf16.mxu0 0
        %6282 = vmatpush2.bf16.msra.mxu0 0
        %6283 = vmatprep.subr.bf16.mxu0 0
        %6284 = vmatpush2.bf16.msra.mxu0 0
        %6285 = vmatprep.subr.bf16.mxu0 0
        %6286 = vmatpush2.bf16.msra.mxu0 0
        %6287 = vmatprep.mubr.bf16.mxu0 0
        %6288 = vmatmul.mubr.bf16.gmra.mxu0 %v5209
        %v6289 = vpop.f32.mrf.mxu0
        %v6290 = vadd.f32 0.0, %v6289
        %v6291 = vpop.f32.mrf.mxu0
        %v6292 = vpop.f32.mrf.mxu0
        %v6293 = vadd.f32 0.0, %v6292
        %v6294 = vpop.f32.mrf.mxu0
        %6295 = vmatprep.mubr.bf16.mxu0 0
        %6296 = vmatmul.mubr.bf16.gmra.mxu0 %v5211
        %v6297 = vpop.f32.mrf.mxu0
        %v6298 = vadd.f32 0.0, %v6297
        %v6299 = vpop.f32.mrf.mxu0
        %v6300 = vpop.f32.mrf.mxu0
        %v6301 = vadd.f32 0.0, %v6300
        %v6302 = vpop.f32.mrf.mxu0
        %6303 = vmatprep.mubr.bf16.mxu0 0
        %6304 = vmatmul.mubr.bf16.gmra.mxu0 %v5211
        %v6305 = vpop.f32.mrf.mxu0
        %v6306 = vadd.f32 0.0, %v6305
        %v6307 = vpop.f32.mrf.mxu0
        %v6308 = vpop.f32.mrf.mxu0
        %v6309 = vadd.f32 0.0, %v6308
        %v6310 = vpop.f32.mrf.mxu0
        %6311 = vmatprep.mubr.bf16.mxu0 0
        %6312 = vmatmul.mubr.bf16.gmra.mxu0 %v5213
        %v6313 = vpop.f32.mrf.mxu0
        %v6314 = vadd.f32 0.0, %v6313
        %v6315 = vpop.f32.mrf.mxu0
        %v6316 = vpop.f32.mrf.mxu0
        %v6317 = vadd.f32 0.0, %v6316
        %v6318 = vpop.f32.mrf.mxu0
        %6319 = vmatprep.mubr.bf16.mxu0 0
        %6320 = vmatmul.mubr.bf16.gmra.mxu0 %v5213
        %v6321 = vpop.f32.mrf.mxu0
        %v6322 = vadd.f32 0.0, %v6321
        %v6323 = vpop.f32.mrf.mxu0
        %v6324 = vpop.f32.mrf.mxu0
        %v6325 = vadd.f32 0.0, %v6324
        %v6326 = vpop.f32.mrf.mxu0
        %6327 = vmatprep.mubr.bf16.mxu0 0
        %6328 = vmatmul.mubr.bf16.gmra.mxu0 %v5215
        %v6329 = vpop.f32.mrf.mxu0
        %v6330 = vadd.f32 0.0, %v6329
        %v6331 = vpop.f32.mrf.mxu0
        %v6332 = vpop.f32.mrf.mxu0
        %v6333 = vadd.f32 0.0, %v6332
        %v6334 = vpop.f32.mrf.mxu0
        %6335 = vmatprep.mubr.bf16.mxu0 0
        %6336 = vmatmul.mubr.bf16.gmra.mxu0 %v5215
        %v6337 = vpop.f32.mrf.mxu0
        %v6338 = vadd.f32 0.0, %v6337
        %v6339 = vpop.f32.mrf.mxu0
        %v6340 = vpop.f32.mrf.mxu0
        %v6341 = vadd.f32 0.0, %v6340
        %v6342 = vpop.f32.mrf.mxu0
        %6343 = vmatprep.mubr.bf16.mxu0 0
        %6344 = vmatmul.mubr.bf16.gmra.mxu0 %v5217
        %v6345 = vpop.f32.mrf.mxu0
        %v6346 = vadd.f32 0.0, %v6345
        %v6347 = vpop.f32.mrf.mxu0
        %v6348 = vpop.f32.mrf.mxu0
        %v6349 = vadd.f32 0.0, %v6348
        %v6350 = vpop.f32.mrf.mxu0
        %6351 = vmatprep.mubr.bf16.mxu0 0
        %6352 = vmatmul.mubr.bf16.gmra.mxu0 %v5217
        %v6353 = vpop.f32.mrf.mxu0
        %v6354 = vadd.f32 0.0, %v6353
        %v6355 = vpop.f32.mrf.mxu0
        %v6356 = vpop.f32.mrf.mxu0
        %v6357 = vadd.f32 0.0, %v6356
        %v6358 = vpop.f32.mrf.mxu0
        %6359 = vmatprep.mubr.bf16.mxu0 0
        %6360 = vmatmul.mubr.bf16.gmra.mxu0 %v5219
        %v6361 = vpop.f32.mrf.mxu0
        %v6362 = vadd.f32 0.0, %v6361
        %v6363 = vpop.f32.mrf.mxu0
        %v6364 = vpop.f32.mrf.mxu0
        %v6365 = vadd.f32 0.0, %v6364
        %v6366 = vpop.f32.mrf.mxu0
        %6367 = vmatprep.mubr.bf16.mxu0 0
        %6368 = vmatmul.mubr.bf16.gmra.mxu0 %v5219
        %v6369 = vpop.f32.mrf.mxu0
        %v6370 = vadd.f32 0.0, %v6369
        %v6371 = vpop.f32.mrf.mxu0
        %v6372 = vpop.f32.mrf.mxu0
        %v6373 = vadd.f32 0.0, %v6372
        %v6374 = vpop.f32.mrf.mxu0
        %6375 = vmatprep.mubr.bf16.mxu0 0
        %6376 = vmatmul.mubr.bf16.gmra.mxu0 %v5221
        %v6377 = vpop.f32.mrf.mxu0
        %v6378 = vadd.f32 0.0, %v6377
        %v6379 = vpop.f32.mrf.mxu0
        %v6380 = vpop.f32.mrf.mxu0
        %v6381 = vadd.f32 0.0, %v6380
        %v6382 = vpop.f32.mrf.mxu0
        %6383 = vmatprep.mubr.bf16.mxu0 0
        %6384 = vmatmul.mubr.bf16.gmra.mxu0 %v5221
        %v6385 = vpop.f32.mrf.mxu0
        %v6386 = vadd.f32 0.0, %v6385
        %v6387 = vpop.f32.mrf.mxu0
        %v6388 = vpop.f32.mrf.mxu0
        %v6389 = vadd.f32 0.0, %v6388
        %v6390 = vpop.f32.mrf.mxu0
        %6391 = vmatprep.mubr.bf16.mxu0 0
        %6392 = vmatmul.mubr.bf16.gmra.mxu0 %v5223
        %v6393 = vpop.f32.mrf.mxu0
        %v6394 = vadd.f32 0.0, %v6393
        %v6395 = vpop.f32.mrf.mxu0
        %v6396 = vpop.f32.mrf.mxu0
        %v6397 = vadd.f32 0.0, %v6396
        %v6398 = vpop.f32.mrf.mxu0
        %6399 = vmatprep.mubr.bf16.mxu0 0
        %6400 = vmatmul.mubr.bf16.gmra.mxu0 %v5223
        %v6401 = vpop.f32.mrf.mxu0
        %v6402 = vadd.f32 0.0, %v6401
        %v6403 = vpop.f32.mrf.mxu0
        %v6404 = vpop.f32.mrf.mxu0
        %v6405 = vadd.f32 0.0, %v6404
        %v6406 = vpop.f32.mrf.mxu0
        %6407 = vmatprep.mubr.bf16.mxu0 0
        %6408 = vmatmul.mubr.bf16.gmra.mxu0 %v5207
        %v6409 = vpop.f32.mrf.mxu0
        %v6410 = vadd.f32 0.0, %v6409
        %v6411 = vpop.f32.mrf.mxu0
        %v6412 = vpop.f32.mrf.mxu0
        %v6413 = vadd.f32 0.0, %v6412
        %v6414 = vpop.f32.mrf.mxu0
        %6415 = vdwg.mxu0
        %v6416 = vadd.f32 %v6217, %v6290
        %v6417 = vadd.f32 %v6218, %v6293
        %v6418 = vadd.f32 %v6219, %v6298
        %v6419 = vadd.f32 %v6220, %v6301
        %v6420 = vadd.f32 %v6221, %v6306
        %v6421 = vadd.f32 %v6222, %v6309
        %v6422 = vadd.f32 %v6223, %v6314
        %v6423 = vadd.f32 %v6224, %v6317
        %v6424 = vadd.f32 %v6225, %v6322
        %v6425 = vadd.f32 %v6226, %v6325
        %v6426 = vadd.f32 %v6227, %v6330
        %v6427 = vadd.f32 %v6228, %v6333
        %v6428 = vadd.f32 %v6229, %v6338
        %v6429 = vadd.f32 %v6230, %v6341
        %v6430 = vadd.f32 %v6231, %v6346
        %v6431 = vadd.f32 %v6232, %v6349
        %v6432 = vadd.f32 %v6233, %v6354
        %v6433 = vadd.f32 %v6234, %v6357
        %v6434 = vadd.f32 %v6235, %v6362
        %v6435 = vadd.f32 %v6236, %v6365
        %v6436 = vadd.f32 %v6237, %v6370
        %v6437 = vadd.f32 %v6238, %v6373
        %v6438 = vadd.f32 %v6239, %v6378
        %v6439 = vadd.f32 %v6240, %v6381
        %v6440 = vadd.f32 %v6241, %v6386
        %v6441 = vadd.f32 %v6242, %v6389
        %v6442 = vadd.f32 %v6243, %v6394
        %v6443 = vadd.f32 %v6244, %v6397
        %v6444 = vadd.f32 %v6245, %v6402
        %v6445 = vadd.f32 %v6246, %v6405
        %v6446 = vadd.f32 %v6247, %v6410
        %v6447 = vadd.f32 %v6248, %v6413
        %v6450 = vunpack.c.l.b16 %v4554
        %v6451 = vunpack.c.l.b16 %v4555
        %v6452 = vpack.c.b16 %v6451, %v6450
        %6454 = vmatprep.subr.bf16.mxu0 0
        %6455 = vmatpush1.bf16.msra.mxu0 0
        %6456 = vmatprep.subr.bf16.mxu0 0
        %6457 = vmatpush1.bf16.msra.mxu0 0
        %6458 = vmatprep.subr.bf16.mxu0 0
        %6459 = vmatpush1.bf16.msra.mxu0 0
        %6460 = vmatprep.subr.bf16.mxu0 0
        %6461 = vmatpush1.bf16.msra.mxu0 0
        %6462 = vmatprep.subr.bf16.mxu0 0
        %6463 = vmatpush1.bf16.msra.mxu0 0
        %6464 = vmatprep.subr.bf16.mxu0 0
        %6465 = vmatpush1.bf16.msra.mxu0 0
        %6466 = vmatprep.subr.bf16.mxu0 0
        %6467 = vmatpush1.bf16.msra.mxu0 0
        %6468 = vmatprep.subr.bf16.mxu0 0
        %6469 = vmatpush1.bf16.msra.mxu0 %v6452
        %6470 = vmatprep.subr.bf16.mxu0 0
        %6471 = vmatpush2.bf16.msra.mxu0 0
        %6472 = vmatprep.subr.bf16.mxu0 0
        %6473 = vmatpush2.bf16.msra.mxu0 0
        %6474 = vmatprep.subr.bf16.mxu0 0
        %6475 = vmatpush2.bf16.msra.mxu0 0
        %6476 = vmatprep.subr.bf16.mxu0 0
        %6477 = vmatpush2.bf16.msra.mxu0 0
        %6478 = vmatprep.subr.bf16.mxu0 0
        %6479 = vmatpush2.bf16.msra.mxu0 0
        %6480 = vmatprep.subr.bf16.mxu0 0
        %6481 = vmatpush2.bf16.msra.mxu0 0
        %6482 = vmatprep.subr.bf16.mxu0 0
        %6483 = vmatpush2.bf16.msra.mxu0 0
        %6484 = vmatprep.subr.bf16.mxu0 0
        %6485 = vmatpush2.bf16.msra.mxu0 0
        %6486 = vmatprep.mubr.bf16.mxu0 0
        %6487 = vmatmul.mubr.bf16.gmra.mxu0 %v5017
        %v6488 = vpop.f32.mrf.mxu0
        %v6489 = vadd.f32 0.0, %v6488
        %v6490 = vpop.f32.mrf.mxu0
        %v6491 = vpop.f32.mrf.mxu0
        %v6492 = vadd.f32 0.0, %v6491
        %v6493 = vpop.f32.mrf.mxu0
        %6494 = vmatprep.mubr.bf16.mxu0 0
        %6495 = vmatmul.mubr.bf16.gmra.mxu0 %v5020
        %v6496 = vpop.f32.mrf.mxu0
        %v6497 = vadd.f32 0.0, %v6496
        %v6498 = vpop.f32.mrf.mxu0
        %v6499 = vpop.f32.mrf.mxu0
        %v6500 = vadd.f32 0.0, %v6499
        %v6501 = vpop.f32.mrf.mxu0
        %6502 = vmatprep.mubr.bf16.mxu0 0
        %6503 = vmatmul.mubr.bf16.gmra.mxu0 %v5020
        %v6504 = vpop.f32.mrf.mxu0
        %v6505 = vadd.f32 0.0, %v6504
        %v6506 = vpop.f32.mrf.mxu0
        %v6507 = vpop.f32.mrf.mxu0
        %v6508 = vadd.f32 0.0, %v6507
        %v6509 = vpop.f32.mrf.mxu0
        %6510 = vmatprep.mubr.bf16.mxu0 0
        %6511 = vmatmul.mubr.bf16.gmra.mxu0 %v5023
        %v6512 = vpop.f32.mrf.mxu0
        %v6513 = vadd.f32 0.0, %v6512
        %v6514 = vpop.f32.mrf.mxu0
        %v6515 = vpop.f32.mrf.mxu0
        %v6516 = vadd.f32 0.0, %v6515
        %v6517 = vpop.f32.mrf.mxu0
        %6518 = vmatprep.mubr.bf16.mxu0 0
        %6519 = vmatmul.mubr.bf16.gmra.mxu0 %v5023
        %v6520 = vpop.f32.mrf.mxu0
        %v6521 = vadd.f32 0.0, %v6520
        %v6522 = vpop.f32.mrf.mxu0
        %v6523 = vpop.f32.mrf.mxu0
        %v6524 = vadd.f32 0.0, %v6523
        %v6525 = vpop.f32.mrf.mxu0
        %6526 = vmatprep.mubr.bf16.mxu0 0
        %6527 = vmatmul.mubr.bf16.gmra.mxu0 %v5026
        %v6528 = vpop.f32.mrf.mxu0
        %v6529 = vadd.f32 0.0, %v6528
        %v6530 = vpop.f32.mrf.mxu0
        %v6531 = vpop.f32.mrf.mxu0
        %v6532 = vadd.f32 0.0, %v6531
        %v6533 = vpop.f32.mrf.mxu0
        %6534 = vmatprep.mubr.bf16.mxu0 0
        %6535 = vmatmul.mubr.bf16.gmra.mxu0 %v5026
        %v6536 = vpop.f32.mrf.mxu0
        %v6537 = vadd.f32 0.0, %v6536
        %v6538 = vpop.f32.mrf.mxu0
        %v6539 = vpop.f32.mrf.mxu0
        %v6540 = vadd.f32 0.0, %v6539
        %v6541 = vpop.f32.mrf.mxu0
        %6542 = vmatprep.mubr.bf16.mxu0 0
        %6543 = vmatmul.mubr.bf16.gmra.mxu0 %v5029
        %v6544 = vpop.f32.mrf.mxu0
        %v6545 = vadd.f32 0.0, %v6544
        %v6546 = vpop.f32.mrf.mxu0
        %v6547 = vpop.f32.mrf.mxu0
        %v6548 = vadd.f32 0.0, %v6547
        %v6549 = vpop.f32.mrf.mxu0
        %6550 = vmatprep.mubr.bf16.mxu0 0
        %6551 = vmatmul.mubr.bf16.gmra.mxu0 %v5029
        %v6552 = vpop.f32.mrf.mxu0
        %v6553 = vadd.f32 0.0, %v6552
        %v6554 = vpop.f32.mrf.mxu0
        %v6555 = vpop.f32.mrf.mxu0
        %v6556 = vadd.f32 0.0, %v6555
        %v6557 = vpop.f32.mrf.mxu0
        %6558 = vmatprep.mubr.bf16.mxu0 0
        %6559 = vmatmul.mubr.bf16.gmra.mxu0 %v5032
        %v6560 = vpop.f32.mrf.mxu0
        %v6561 = vadd.f32 0.0, %v6560
        %v6562 = vpop.f32.mrf.mxu0
        %v6563 = vpop.f32.mrf.mxu0
        %v6564 = vadd.f32 0.0, %v6563
        %v6565 = vpop.f32.mrf.mxu0
        %6566 = vmatprep.mubr.bf16.mxu0 0
        %6567 = vmatmul.mubr.bf16.gmra.mxu0 %v5032
        %v6568 = vpop.f32.mrf.mxu0
        %v6569 = vadd.f32 0.0, %v6568
        %v6570 = vpop.f32.mrf.mxu0
        %v6571 = vpop.f32.mrf.mxu0
        %v6572 = vadd.f32 0.0, %v6571
        %v6573 = vpop.f32.mrf.mxu0
        %6574 = vmatprep.mubr.bf16.mxu0 0
        %6575 = vmatmul.mubr.bf16.gmra.mxu0 %v5035
        %v6576 = vpop.f32.mrf.mxu0
        %v6577 = vadd.f32 0.0, %v6576
        %v6578 = vpop.f32.mrf.mxu0
        %v6579 = vpop.f32.mrf.mxu0
        %v6580 = vadd.f32 0.0, %v6579
        %v6581 = vpop.f32.mrf.mxu0
        %6582 = vmatprep.mubr.bf16.mxu0 0
        %6583 = vmatmul.mubr.bf16.gmra.mxu0 %v5035
        %v6584 = vpop.f32.mrf.mxu0
        %v6585 = vadd.f32 0.0, %v6584
        %v6586 = vpop.f32.mrf.mxu0
        %v6587 = vpop.f32.mrf.mxu0
        %v6588 = vadd.f32 0.0, %v6587
        %v6589 = vpop.f32.mrf.mxu0
        %6590 = vmatprep.mubr.bf16.mxu0 0
        %6591 = vmatmul.mubr.bf16.gmra.mxu0 %v5038
        %v6592 = vpop.f32.mrf.mxu0
        %v6593 = vadd.f32 0.0, %v6592
        %v6594 = vpop.f32.mrf.mxu0
        %v6595 = vpop.f32.mrf.mxu0
        %v6596 = vadd.f32 0.0, %v6595
        %v6597 = vpop.f32.mrf.mxu0
        %6598 = vmatprep.mubr.bf16.mxu0 0
        %6599 = vmatmul.mubr.bf16.gmra.mxu0 %v5038
        %v6600 = vpop.f32.mrf.mxu0
        %v6601 = vadd.f32 0.0, %v6600
        %v6602 = vpop.f32.mrf.mxu0
        %v6603 = vpop.f32.mrf.mxu0
        %v6604 = vadd.f32 0.0, %v6603
        %v6605 = vpop.f32.mrf.mxu0
        %6606 = vmatprep.mubr.bf16.mxu0 0
        %6607 = vmatmul.mubr.bf16.gmra.mxu0 %v5014
        %v6608 = vpop.f32.mrf.mxu0
        %v6609 = vadd.f32 0.0, %v6608
        %v6610 = vpop.f32.mrf.mxu0
        %v6611 = vpop.f32.mrf.mxu0
        %v6612 = vadd.f32 0.0, %v6611
        %v6613 = vpop.f32.mrf.mxu0
        %6614 = vdwg.mxu0
        %v6615 = vadd.f32 %v6416, %v6489
        %v6616 = vadd.f32 %v6417, %v6492
        %v6617 = vadd.f32 %v6418, %v6497
        %v6618 = vadd.f32 %v6419, %v6500
        %v6619 = vadd.f32 %v6420, %v6505
        %v6620 = vadd.f32 %v6421, %v6508
        %v6621 = vadd.f32 %v6422, %v6513
        %v6622 = vadd.f32 %v6423, %v6516
        %v6623 = vadd.f32 %v6424, %v6521
        %v6624 = vadd.f32 %v6425, %v6524
        %v6625 = vadd.f32 %v6426, %v6529
        %v6626 = vadd.f32 %v6427, %v6532
        %v6627 = vadd.f32 %v6428, %v6537
        %v6628 = vadd.f32 %v6429, %v6540
        %v6629 = vadd.f32 %v6430, %v6545
        %v6630 = vadd.f32 %v6431, %v6548
        %v6631 = vadd.f32 %v6432, %v6553
        %v6632 = vadd.f32 %v6433, %v6556
        %v6633 = vadd.f32 %v6434, %v6561
        %v6634 = vadd.f32 %v6435, %v6564
        %v6635 = vadd.f32 %v6436, %v6569
        %v6636 = vadd.f32 %v6437, %v6572
        %v6637 = vadd.f32 %v6438, %v6577
        %v6638 = vadd.f32 %v6439, %v6580
        %v6639 = vadd.f32 %v6440, %v6585
        %v6640 = vadd.f32 %v6441, %v6588
        %v6641 = vadd.f32 %v6442, %v6593
        %v6642 = vadd.f32 %v6443, %v6596
        %v6643 = vadd.f32 %v6444, %v6601
        %v6644 = vadd.f32 %v6445, %v6604
        %v6645 = vadd.f32 %v6446, %v6609
        %v6646 = vadd.f32 %v6447, %v6612
        %v6649 = vunpack.c.l.b16 %v4556
        %v6650 = vunpack.c.l.b16 %v4557
        %v6651 = vpack.c.b16 %v6650, %v6649
        %6653 = vmatprep.subr.bf16.mxu0 0
        %6654 = vmatpush1.bf16.msra.mxu0 0
        %6655 = vmatprep.subr.bf16.mxu0 0
        %6656 = vmatpush1.bf16.msra.mxu0 0
        %6657 = vmatprep.subr.bf16.mxu0 0
        %6658 = vmatpush1.bf16.msra.mxu0 0
        %6659 = vmatprep.subr.bf16.mxu0 0
        %6660 = vmatpush1.bf16.msra.mxu0 0
        %6661 = vmatprep.subr.bf16.mxu0 0
        %6662 = vmatpush1.bf16.msra.mxu0 0
        %6663 = vmatprep.subr.bf16.mxu0 0
        %6664 = vmatpush1.bf16.msra.mxu0 0
        %6665 = vmatprep.subr.bf16.mxu0 0
        %6666 = vmatpush1.bf16.msra.mxu0 0
        %6667 = vmatprep.subr.bf16.mxu0 0
        %6668 = vmatpush1.bf16.msra.mxu0 %v6651
        %6669 = vmatprep.subr.bf16.mxu0 0
        %6670 = vmatpush2.bf16.msra.mxu0 0
        %6671 = vmatprep.subr.bf16.mxu0 0
        %6672 = vmatpush2.bf16.msra.mxu0 0
        %6673 = vmatprep.subr.bf16.mxu0 0
        %6674 = vmatpush2.bf16.msra.mxu0 0
        %6675 = vmatprep.subr.bf16.mxu0 0
        %6676 = vmatpush2.bf16.msra.mxu0 0
        %6677 = vmatprep.subr.bf16.mxu0 0
        %6678 = vmatpush2.bf16.msra.mxu0 0
        %6679 = vmatprep.subr.bf16.mxu0 0
        %6680 = vmatpush2.bf16.msra.mxu0 0
        %6681 = vmatprep.subr.bf16.mxu0 0
        %6682 = vmatpush2.bf16.msra.mxu0 0
        %6683 = vmatprep.subr.bf16.mxu0 0
        %6684 = vmatpush2.bf16.msra.mxu0 0
        %6685 = vmatprep.mubr.bf16.mxu0 0
        %6686 = vmatmul.mubr.bf16.gmra.mxu0 %v5436
        %v6687 = vpop.f32.mrf.mxu0
        %v6688 = vadd.f32 0.0, %v6687
        %v6689 = vpop.f32.mrf.mxu0
        %v6690 = vpop.f32.mrf.mxu0
        %v6691 = vadd.f32 0.0, %v6690
        %v6692 = vpop.f32.mrf.mxu0
        %6693 = vmatprep.mubr.bf16.mxu0 0
        %6694 = vmatmul.mubr.bf16.gmra.mxu0 %v5439
        %v6695 = vpop.f32.mrf.mxu0
        %v6696 = vadd.f32 0.0, %v6695
        %v6697 = vpop.f32.mrf.mxu0
        %v6698 = vpop.f32.mrf.mxu0
        %v6699 = vadd.f32 0.0, %v6698
        %v6700 = vpop.f32.mrf.mxu0
        %6701 = vmatprep.mubr.bf16.mxu0 0
        %6702 = vmatmul.mubr.bf16.gmra.mxu0 %v5439
        %v6703 = vpop.f32.mrf.mxu0
        %v6704 = vadd.f32 0.0, %v6703
        %v6705 = vpop.f32.mrf.mxu0
        %v6706 = vpop.f32.mrf.mxu0
        %v6707 = vadd.f32 0.0, %v6706
        %v6708 = vpop.f32.mrf.mxu0
        %6709 = vmatprep.mubr.bf16.mxu0 0
        %6710 = vmatmul.mubr.bf16.gmra.mxu0 %v5442
        %v6711 = vpop.f32.mrf.mxu0
        %v6712 = vadd.f32 0.0, %v6711
        %v6713 = vpop.f32.mrf.mxu0
        %v6714 = vpop.f32.mrf.mxu0
        %v6715 = vadd.f32 0.0, %v6714
        %v6716 = vpop.f32.mrf.mxu0
        %6717 = vmatprep.mubr.bf16.mxu0 0
        %6718 = vmatmul.mubr.bf16.gmra.mxu0 %v5442
        %v6719 = vpop.f32.mrf.mxu0
        %v6720 = vadd.f32 0.0, %v6719
        %v6721 = vpop.f32.mrf.mxu0
        %v6722 = vpop.f32.mrf.mxu0
        %v6723 = vadd.f32 0.0, %v6722
        %v6724 = vpop.f32.mrf.mxu0
        %6725 = vmatprep.mubr.bf16.mxu0 0
        %6726 = vmatmul.mubr.bf16.gmra.mxu0 %v5445
        %v6727 = vpop.f32.mrf.mxu0
        %v6728 = vadd.f32 0.0, %v6727
        %v6729 = vpop.f32.mrf.mxu0
        %v6730 = vpop.f32.mrf.mxu0
        %v6731 = vadd.f32 0.0, %v6730
        %v6732 = vpop.f32.mrf.mxu0
        %6733 = vmatprep.mubr.bf16.mxu0 0
        %6734 = vmatmul.mubr.bf16.gmra.mxu0 %v5445
        %v6735 = vpop.f32.mrf.mxu0
        %v6736 = vadd.f32 0.0, %v6735
        %v6737 = vpop.f32.mrf.mxu0
        %v6738 = vpop.f32.mrf.mxu0
        %v6739 = vadd.f32 0.0, %v6738
        %v6740 = vpop.f32.mrf.mxu0
        %6741 = vmatprep.mubr.bf16.mxu0 0
        %6742 = vmatmul.mubr.bf16.gmra.mxu0 %v5448
        %v6743 = vpop.f32.mrf.mxu0
        %v6744 = vadd.f32 0.0, %v6743
        %v6745 = vpop.f32.mrf.mxu0
        %v6746 = vpop.f32.mrf.mxu0
        %v6747 = vadd.f32 0.0, %v6746
        %v6748 = vpop.f32.mrf.mxu0
        %6749 = vmatprep.mubr.bf16.mxu0 0
        %6750 = vmatmul.mubr.bf16.gmra.mxu0 %v5448
        %v6751 = vpop.f32.mrf.mxu0
        %v6752 = vadd.f32 0.0, %v6751
        %v6753 = vpop.f32.mrf.mxu0
        %v6754 = vpop.f32.mrf.mxu0
        %v6755 = vadd.f32 0.0, %v6754
        %v6756 = vpop.f32.mrf.mxu0
        %6757 = vmatprep.mubr.bf16.mxu0 0
        %6758 = vmatmul.mubr.bf16.gmra.mxu0 %v5451
        %v6759 = vpop.f32.mrf.mxu0
        %v6760 = vadd.f32 0.0, %v6759
        %v6761 = vpop.f32.mrf.mxu0
        %v6762 = vpop.f32.mrf.mxu0
        %v6763 = vadd.f32 0.0, %v6762
        %v6764 = vpop.f32.mrf.mxu0
        %6765 = vmatprep.mubr.bf16.mxu0 0
        %6766 = vmatmul.mubr.bf16.gmra.mxu0 %v5451
        %v6767 = vpop.f32.mrf.mxu0
        %v6768 = vadd.f32 0.0, %v6767
        %v6769 = vpop.f32.mrf.mxu0
        %v6770 = vpop.f32.mrf.mxu0
        %v6771 = vadd.f32 0.0, %v6770
        %v6772 = vpop.f32.mrf.mxu0
        %6773 = vmatprep.mubr.bf16.mxu0 0
        %6774 = vmatmul.mubr.bf16.gmra.mxu0 %v5454
        %v6775 = vpop.f32.mrf.mxu0
        %v6776 = vadd.f32 0.0, %v6775
        %v6777 = vpop.f32.mrf.mxu0
        %v6778 = vpop.f32.mrf.mxu0
        %v6779 = vadd.f32 0.0, %v6778
        %v6780 = vpop.f32.mrf.mxu0
        %6781 = vmatprep.mubr.bf16.mxu0 0
        %6782 = vmatmul.mubr.bf16.gmra.mxu0 %v5454
        %v6783 = vpop.f32.mrf.mxu0
        %v6784 = vadd.f32 0.0, %v6783
        %v6785 = vpop.f32.mrf.mxu0
        %v6786 = vpop.f32.mrf.mxu0
        %v6787 = vadd.f32 0.0, %v6786
        %v6788 = vpop.f32.mrf.mxu0
        %6789 = vmatprep.mubr.bf16.mxu0 0
        %6790 = vmatmul.mubr.bf16.gmra.mxu0 %v5457
        %v6791 = vpop.f32.mrf.mxu0
        %v6792 = vadd.f32 0.0, %v6791
        %v6793 = vpop.f32.mrf.mxu0
        %v6794 = vpop.f32.mrf.mxu0
        %v6795 = vadd.f32 0.0, %v6794
        %v6796 = vpop.f32.mrf.mxu0
        %6797 = vmatprep.mubr.bf16.mxu0 0
        %6798 = vmatmul.mubr.bf16.gmra.mxu0 %v5457
        %v6799 = vpop.f32.mrf.mxu0
        %v6800 = vadd.f32 0.0, %v6799
        %v6801 = vpop.f32.mrf.mxu0
        %v6802 = vpop.f32.mrf.mxu0
        %v6803 = vadd.f32 0.0, %v6802
        %v6804 = vpop.f32.mrf.mxu0
        %6805 = vmatprep.mubr.bf16.mxu0 0
        %6806 = vmatmul.mubr.bf16.gmra.mxu0 %v5433
        %v6807 = vpop.f32.mrf.mxu0
        %v6808 = vadd.f32 0.0, %v6807
        %v6809 = vpop.f32.mrf.mxu0
        %v6810 = vpop.f32.mrf.mxu0
        %v6811 = vadd.f32 0.0, %v6810
        %v6812 = vpop.f32.mrf.mxu0
        %6813 = vdwg.mxu0
        %v6814 = vadd.f32 %v6615, %v6688
        %v6815 = vadd.f32 %v6616, %v6691
        %v6816 = vadd.f32 %v6617, %v6696
        %v6817 = vadd.f32 %v6618, %v6699
        %v6818 = vadd.f32 %v6619, %v6704
        %v6819 = vadd.f32 %v6620, %v6707
        %v6820 = vadd.f32 %v6621, %v6712
        %v6821 = vadd.f32 %v6622, %v6715
        %v6822 = vadd.f32 %v6623, %v6720
        %v6823 = vadd.f32 %v6624, %v6723
        %v6824 = vadd.f32 %v6625, %v6728
        %v6825 = vadd.f32 %v6626, %v6731
        %v6826 = vadd.f32 %v6627, %v6736
        %v6827 = vadd.f32 %v6628, %v6739
        %v6828 = vadd.f32 %v6629, %v6744
        %v6829 = vadd.f32 %v6630, %v6747
        %v6830 = vadd.f32 %v6631, %v6752
        %v6831 = vadd.f32 %v6632, %v6755
        %v6832 = vadd.f32 %v6633, %v6760
        %v6833 = vadd.f32 %v6634, %v6763
        %v6834 = vadd.f32 %v6635, %v6768
        %v6835 = vadd.f32 %v6636, %v6771
        %v6836 = vadd.f32 %v6637, %v6776
        %v6837 = vadd.f32 %v6638, %v6779
        %v6838 = vadd.f32 %v6639, %v6784
        %v6839 = vadd.f32 %v6640, %v6787
        %v6840 = vadd.f32 %v6641, %v6792
        %v6841 = vadd.f32 %v6642, %v6795
        %v6842 = vadd.f32 %v6643, %v6800
        %v6843 = vadd.f32 %v6644, %v6803
        %v6844 = vadd.f32 %v6645, %v6808
        %v6845 = vadd.f32 %v6646, %v6811
        %v6846 = vld [vmem:[%s6] sm:$0xf]
        %v6847 = vld [vmem:[%s6 + $0x4] sm:$0xf]
        %v6848 = vld [vmem:[%s6 + $0x8] sm:$0xf]
        %v6849 = vld [vmem:[%s6 + $0xc] sm:$0xf]
        %v6850 = vld [vmem:[%s6 + $0x10] sm:$0xf]
        %v6851 = vld [vmem:[%s6 + $0x14] sm:$0xf]
        %v6852 = vld [vmem:[%s6 + $0x18] sm:$0xf]
        %v6853 = vld [vmem:[%s6 + $0x1c] sm:$0xf]
        %v6854 = vld [vmem:[%s6 + $0x20] sm:$0xf]
        %v6887 = vrot.slane %v1765, 7
        %v6888 = vrot.slane %v1766, 7
        %v6889 = vsel %vm573, %v6887, %v6888
        %v6890 = vrot.slane %v1767, 7
        %v6891 = vrot.slane %v1768, 7
        %v6892 = vsel %vm573, %v6890, %v6891
        %v6893 = vrot.slane %v1769, 7
        %v6894 = vrot.slane %v1770, 7
        %v6895 = vsel %vm573, %v6893, %v6894
        %v6896 = vrot.slane %v1771, 7
        %v6897 = vrot.slane %v1772, 7
        %v6898 = vsel %vm573, %v6896, %v6897
        %v6899 = vrot.slane %v1773, 7
        %v6900 = vrot.slane %v1774, 7
        %v6901 = vsel %vm573, %v6899, %v6900
        %v6902 = vrot.slane %v1775, 7
        %v6903 = vrot.slane %v1776, 7
        %v6904 = vsel %vm573, %v6902, %v6903
        %v6905 = vrot.slane %v1777, 7
        %v6906 = vrot.slane %v1778, 7
        %v6907 = vsel %vm573, %v6905, %v6906
        %v6908 = vrot.slane %v1779, 7
        %v6909 = vrot.slane %v1780, 7
        %v6910 = vsel %vm573, %v6908, %v6909
        %v6911 = vrot.slane %v1781, 7
        %v6912 = vrot.slane %v1782, 7
        %v6913 = vsel %vm573, %v6911, %v6912
        %v6914 = vrot.slane %v1783, 7
        %v6915 = vrot.slane %v1784, 7
        %v6916 = vsel %vm573, %v6914, %v6915
        %v6917 = vrot.slane %v1785, 7
        %v6918 = vrot.slane %v1786, 7
        %v6919 = vsel %vm573, %v6917, %v6918
        %v6920 = vrot.slane %v1787, 7
        %v6921 = vrot.slane %v1788, 7
        %v6922 = vsel %vm573, %v6920, %v6921
        %v6923 = vrot.slane %v1789, 7
        %v6924 = vrot.slane %v1790, 7
        %v6925 = vsel %vm573, %v6923, %v6924
        %v6926 = vrot.slane %v1791, 7
        %v6927 = vrot.slane %v1792, 7
        %v6928 = vsel %vm573, %v6926, %v6927
        %v6929 = vrot.slane %v1793, 7
        %v6930 = vrot.slane %v1794, 7
        %v6931 = vsel %vm573, %v6929, %v6930
        %v6932 = vrot.slane %v1795, 7
        %v6933 = vrot.slane %v1796, 7
        %v6934 = vsel %vm573, %v6932, %v6933
        %v6983 = vsel %vm573, 0.0, %v6887
        %v6984 = vsel %vm573, 0.0, %v6890
        %v6985 = vsel %vm573, 0.0, %v6893
        %v6986 = vsel %vm573, 0.0, %v6896
        %v6987 = vsel %vm573, 0.0, %v6899
        %v6988 = vsel %vm573, 0.0, %v6902
        %v6989 = vsel %vm573, 0.0, %v6905
        %v6990 = vsel %vm573, 0.0, %v6908
        %v6991 = vsel %vm573, 0.0, %v6911
        %v6992 = vsel %vm573, 0.0, %v6914
        %v6993 = vsel %vm573, 0.0, %v6917
        %v6994 = vsel %vm573, 0.0, %v6920
        %v6995 = vsel %vm573, 0.0, %v6923
        %v6996 = vsel %vm573, 0.0, %v6926
        %v6997 = vsel %vm573, 0.0, %v6929
        %v6998 = vsel %vm573, 0.0, %v6932
        %v6999 = vsel %vm573, %v6888, 0.0
        %v7000 = vsel %vm573, %v6891, 0.0
        %v7001 = vsel %vm573, %v6894, 0.0
        %v7002 = vsel %vm573, %v6897, 0.0
        %v7003 = vsel %vm573, %v6900, 0.0
        %v7004 = vsel %vm573, %v6903, 0.0
        %v7005 = vsel %vm573, %v6906, 0.0
        %v7006 = vsel %vm573, %v6909, 0.0
        %v7007 = vsel %vm573, %v6912, 0.0
        %v7008 = vsel %vm573, %v6915, 0.0
        %v7009 = vsel %vm573, %v6918, 0.0
        %v7010 = vsel %vm573, %v6921, 0.0
        %v7011 = vsel %vm573, %v6924, 0.0
        %v7012 = vsel %vm573, %v6927, 0.0
        %v7013 = vsel %vm573, %v6930, 0.0
        %v7014 = vsel %vm573, %v6933, 0.0
        %v7015 = vpack.c.bf16 %v6889, %v6983
        %v7016 = vpack.c.bf16 %v6999, %v6999
        %v7017 = vpack.c.bf16 %v6892, %v6984
        %v7018 = vpack.c.bf16 %v7000, %v7000
        %v7019 = vpack.c.bf16 %v6895, %v6985
        %v7020 = vpack.c.bf16 %v7001, %v7001
        %v7021 = vpack.c.bf16 %v6898, %v6986
        %v7022 = vpack.c.bf16 %v7002, %v7002
        %v7023 = vpack.c.bf16 %v6901, %v6987
        %v7024 = vpack.c.bf16 %v7003, %v7003
        %v7025 = vpack.c.bf16 %v6904, %v6988
        %v7026 = vpack.c.bf16 %v7004, %v7004
        %v7027 = vpack.c.bf16 %v6907, %v6989
        %v7028 = vpack.c.bf16 %v7005, %v7005
        %v7029 = vpack.c.bf16 %v6910, %v6990
        %v7030 = vpack.c.bf16 %v7006, %v7006
        %v7031 = vpack.c.bf16 %v6913, %v6991
        %v7032 = vpack.c.bf16 %v7007, %v7007
        %v7033 = vpack.c.bf16 %v6916, %v6992
        %v7034 = vpack.c.bf16 %v7008, %v7008
        %v7035 = vpack.c.bf16 %v6919, %v6993
        %v7036 = vpack.c.bf16 %v7009, %v7009
        %v7037 = vpack.c.bf16 %v6922, %v6994
        %v7038 = vpack.c.bf16 %v7010, %v7010
        %v7039 = vpack.c.bf16 %v6925, %v6995
        %v7040 = vpack.c.bf16 %v7011, %v7011
        %v7041 = vpack.c.bf16 %v6928, %v6996
        %v7042 = vpack.c.bf16 %v7012, %v7012
        %v7043 = vpack.c.bf16 %v6931, %v6997
        %v7044 = vpack.c.bf16 %v7013, %v7013
        %v7045 = vpack.c.bf16 %v6934, %v6998
        %v7046 = vpack.c.bf16 %v7014, %v7014
        %v7047 = vsel %vm1520, %v708, 0
        %v7050 = vsel %vm1520, %v7015, 0
        %v7053 = vsel %vm1520, %v7017, 0
        %v7056 = vsel %vm1520, %v7019, 0
        %v7059 = vsel %vm1520, %v7021, 0
        %v7062 = vsel %vm1520, %v7023, 0
        %v7065 = vsel %vm1520, %v7025, 0
        %v7068 = vsel %vm1520, %v7027, 0
        %v7071 = vsel %vm1520, %v7029, 0
        %v7074 = vsel %vm1520, %v7031, 0
        %v7077 = vsel %vm1520, %v7033, 0
        %v7080 = vsel %vm1520, %v7035, 0
        %v7083 = vsel %vm1520, %v7037, 0
        %v7086 = vsel %vm1520, %v7039, 0
        %v7089 = vsel %vm1520, %v7041, 0
        %v7092 = vsel %vm1520, %v7043, 0
        %v7095 = vsel %vm1597, %v6846, 0
        %7097 = vmatprep.subr.bf16.mxu0 0
        %7098 = vmatpush1.bf16.msra.mxu0 0
        %7099 = vmatprep.subr.bf16.mxu0 0
        %7100 = vmatpush1.bf16.msra.mxu0 0
        %7101 = vmatprep.subr.bf16.mxu0 0
        %7102 = vmatpush1.bf16.msra.mxu0 0
        %7103 = vmatprep.subr.bf16.mxu0 0
        %7104 = vmatpush1.bf16.msra.mxu0 0
        %7105 = vmatprep.subr.bf16.mxu0 0
        %7106 = vmatpush1.bf16.msra.mxu0 0
        %7107 = vmatprep.subr.bf16.mxu0 0
        %7108 = vmatpush1.bf16.msra.mxu0 0
        %7109 = vmatprep.subr.bf16.mxu0 0
        %7110 = vmatpush1.bf16.msra.mxu0 0
        %7111 = vmatprep.subr.bf16.mxu0 0
        %7112 = vmatpush1.bf16.msra.mxu0 %v7095
        %7113 = vmatprep.subr.bf16.mxu0 0
        %7114 = vmatpush2.bf16.msra.mxu0 0
        %7115 = vmatprep.subr.bf16.mxu0 0
        %7116 = vmatpush2.bf16.msra.mxu0 0
        %7117 = vmatprep.subr.bf16.mxu0 0
        %7118 = vmatpush2.bf16.msra.mxu0 0
        %7119 = vmatprep.subr.bf16.mxu0 0
        %7120 = vmatpush2.bf16.msra.mxu0 0
        %7121 = vmatprep.subr.bf16.mxu0 0
        %7122 = vmatpush2.bf16.msra.mxu0 0
        %7123 = vmatprep.subr.bf16.mxu0 0
        %7124 = vmatpush2.bf16.msra.mxu0 0
        %7125 = vmatprep.subr.bf16.mxu0 0
        %7126 = vmatpush2.bf16.msra.mxu0 0
        %7127 = vmatprep.subr.bf16.mxu0 0
        %7128 = vmatpush2.bf16.msra.mxu0 0
        %7129 = vmatprep.mubr.bf16.mxu0 0
        %7130 = vmatmul.mubr.bf16.gmra.mxu0 %v7047
        %v7131 = vpop.f32.mrf.mxu0
        %v7132 = vadd.f32 0.0, %v7131
        %v7133 = vpop.f32.mrf.mxu0
        %v7134 = vpop.f32.mrf.mxu0
        %v7135 = vadd.f32 0.0, %v7134
        %v7136 = vpop.f32.mrf.mxu0
        %7137 = vmatprep.mubr.bf16.mxu0 0
        %7138 = vmatmul.mubr.bf16.gmra.mxu0 %v7050
        %v7139 = vpop.f32.mrf.mxu0
        %v7140 = vadd.f32 0.0, %v7139
        %v7141 = vpop.f32.mrf.mxu0
        %v7142 = vpop.f32.mrf.mxu0
        %v7143 = vadd.f32 0.0, %v7142
        %v7144 = vpop.f32.mrf.mxu0
        %7145 = vmatprep.mubr.bf16.mxu0 0
        %7146 = vmatmul.mubr.bf16.gmra.mxu0 %v7053
        %v7147 = vpop.f32.mrf.mxu0
        %v7148 = vadd.f32 0.0, %v7147
        %v7149 = vpop.f32.mrf.mxu0
        %v7150 = vpop.f32.mrf.mxu0
        %v7151 = vadd.f32 0.0, %v7150
        %v7152 = vpop.f32.mrf.mxu0
        %7153 = vmatprep.mubr.bf16.mxu0 0
        %7154 = vmatmul.mubr.bf16.gmra.mxu0 %v7056
        %v7155 = vpop.f32.mrf.mxu0
        %v7156 = vadd.f32 0.0, %v7155
        %v7157 = vpop.f32.mrf.mxu0
        %v7158 = vpop.f32.mrf.mxu0
        %v7159 = vadd.f32 0.0, %v7158
        %v7160 = vpop.f32.mrf.mxu0
        %7161 = vmatprep.mubr.bf16.mxu0 0
        %7162 = vmatmul.mubr.bf16.gmra.mxu0 %v7059
        %v7163 = vpop.f32.mrf.mxu0
        %v7164 = vadd.f32 0.0, %v7163
        %v7165 = vpop.f32.mrf.mxu0
        %v7166 = vpop.f32.mrf.mxu0
        %v7167 = vadd.f32 0.0, %v7166
        %v7168 = vpop.f32.mrf.mxu0
        %7169 = vmatprep.mubr.bf16.mxu0 0
        %7170 = vmatmul.mubr.bf16.gmra.mxu0 %v7062
        %v7171 = vpop.f32.mrf.mxu0
        %v7172 = vadd.f32 0.0, %v7171
        %v7173 = vpop.f32.mrf.mxu0
        %v7174 = vpop.f32.mrf.mxu0
        %v7175 = vadd.f32 0.0, %v7174
        %v7176 = vpop.f32.mrf.mxu0
        %7177 = vmatprep.mubr.bf16.mxu0 0
        %7178 = vmatmul.mubr.bf16.gmra.mxu0 %v7065
        %v7179 = vpop.f32.mrf.mxu0
        %v7180 = vadd.f32 0.0, %v7179
        %v7181 = vpop.f32.mrf.mxu0
        %v7182 = vpop.f32.mrf.mxu0
        %v7183 = vadd.f32 0.0, %v7182
        %v7184 = vpop.f32.mrf.mxu0
        %7185 = vmatprep.mubr.bf16.mxu0 0
        %7186 = vmatmul.mubr.bf16.gmra.mxu0 %v7068
        %v7187 = vpop.f32.mrf.mxu0
        %v7188 = vadd.f32 0.0, %v7187
        %v7189 = vpop.f32.mrf.mxu0
        %v7190 = vpop.f32.mrf.mxu0
        %v7191 = vadd.f32 0.0, %v7190
        %v7192 = vpop.f32.mrf.mxu0
        %7193 = vmatprep.mubr.bf16.mxu0 0
        %7194 = vmatmul.mubr.bf16.gmra.mxu0 %v7071
        %v7195 = vpop.f32.mrf.mxu0
        %v7196 = vadd.f32 0.0, %v7195
        %v7197 = vpop.f32.mrf.mxu0
        %v7198 = vpop.f32.mrf.mxu0
        %v7199 = vadd.f32 0.0, %v7198
        %v7200 = vpop.f32.mrf.mxu0
        %7201 = vmatprep.mubr.bf16.mxu0 0
        %7202 = vmatmul.mubr.bf16.gmra.mxu0 %v7074
        %v7203 = vpop.f32.mrf.mxu0
        %v7204 = vadd.f32 0.0, %v7203
        %v7205 = vpop.f32.mrf.mxu0
        %v7206 = vpop.f32.mrf.mxu0
        %v7207 = vadd.f32 0.0, %v7206
        %v7208 = vpop.f32.mrf.mxu0
        %7209 = vmatprep.mubr.bf16.mxu0 0
        %7210 = vmatmul.mubr.bf16.gmra.mxu0 %v7077
        %v7211 = vpop.f32.mrf.mxu0
        %v7212 = vadd.f32 0.0, %v7211
        %v7213 = vpop.f32.mrf.mxu0
        %v7214 = vpop.f32.mrf.mxu0
        %v7215 = vadd.f32 0.0, %v7214
        %v7216 = vpop.f32.mrf.mxu0
        %7217 = vmatprep.mubr.bf16.mxu0 0
        %7218 = vmatmul.mubr.bf16.gmra.mxu0 %v7080
        %v7219 = vpop.f32.mrf.mxu0
        %v7220 = vadd.f32 0.0, %v7219
        %v7221 = vpop.f32.mrf.mxu0
        %v7222 = vpop.f32.mrf.mxu0
        %v7223 = vadd.f32 0.0, %v7222
        %v7224 = vpop.f32.mrf.mxu0
        %7225 = vmatprep.mubr.bf16.mxu0 0
        %7226 = vmatmul.mubr.bf16.gmra.mxu0 %v7083
        %v7227 = vpop.f32.mrf.mxu0
        %v7228 = vadd.f32 0.0, %v7227
        %v7229 = vpop.f32.mrf.mxu0
        %v7230 = vpop.f32.mrf.mxu0
        %v7231 = vadd.f32 0.0, %v7230
        %v7232 = vpop.f32.mrf.mxu0
        %7233 = vmatprep.mubr.bf16.mxu0 0
        %7234 = vmatmul.mubr.bf16.gmra.mxu0 %v7086
        %v7235 = vpop.f32.mrf.mxu0
        %v7236 = vadd.f32 0.0, %v7235
        %v7237 = vpop.f32.mrf.mxu0
        %v7238 = vpop.f32.mrf.mxu0
        %v7239 = vadd.f32 0.0, %v7238
        %v7240 = vpop.f32.mrf.mxu0
        %7241 = vmatprep.mubr.bf16.mxu0 0
        %7242 = vmatmul.mubr.bf16.gmra.mxu0 %v7089
        %v7243 = vpop.f32.mrf.mxu0
        %v7244 = vadd.f32 0.0, %v7243
        %v7245 = vpop.f32.mrf.mxu0
        %v7246 = vpop.f32.mrf.mxu0
        %v7247 = vadd.f32 0.0, %v7246
        %v7248 = vpop.f32.mrf.mxu0
        %7249 = vmatprep.mubr.bf16.mxu0 0
        %7250 = vmatmul.mubr.bf16.gmra.mxu0 %v7092
        %v7251 = vpop.f32.mrf.mxu0
        %v7252 = vadd.f32 0.0, %v7251
        %v7253 = vpop.f32.mrf.mxu0
        %v7254 = vpop.f32.mrf.mxu0
        %v7255 = vadd.f32 0.0, %v7254
        %v7256 = vpop.f32.mrf.mxu0
        %7257 = vdwg.mxu0
        %v7258 = vadd.f32 %v6814, %v7132
        %v7259 = vadd.f32 %v6815, %v7135
        %v7260 = vadd.f32 %v6816, %v7140
        %v7261 = vadd.f32 %v6817, %v7143
        %v7262 = vadd.f32 %v6818, %v7148
        %v7263 = vadd.f32 %v6819, %v7151
        %v7264 = vadd.f32 %v6820, %v7156
        %v7265 = vadd.f32 %v6821, %v7159
        %v7266 = vadd.f32 %v6822, %v7164
        %v7267 = vadd.f32 %v6823, %v7167
        %v7268 = vadd.f32 %v6824, %v7172
        %v7269 = vadd.f32 %v6825, %v7175
        %v7270 = vadd.f32 %v6826, %v7180
        %v7271 = vadd.f32 %v6827, %v7183
        %v7272 = vadd.f32 %v6828, %v7188
        %v7273 = vadd.f32 %v6829, %v7191
        %v7274 = vadd.f32 %v6830, %v7196
        %v7275 = vadd.f32 %v6831, %v7199
        %v7276 = vadd.f32 %v6832, %v7204
        %v7277 = vadd.f32 %v6833, %v7207
        %v7278 = vadd.f32 %v6834, %v7212
        %v7279 = vadd.f32 %v6835, %v7215
        %v7280 = vadd.f32 %v6836, %v7220
        %v7281 = vadd.f32 %v6837, %v7223
        %v7282 = vadd.f32 %v6838, %v7228
        %v7283 = vadd.f32 %v6839, %v7231
        %v7284 = vadd.f32 %v6840, %v7236
        %v7285 = vadd.f32 %v6841, %v7239
        %v7286 = vadd.f32 %v6842, %v7244
        %v7287 = vadd.f32 %v6843, %v7247
        %v7288 = vadd.f32 %v6844, %v7252
        %v7289 = vadd.f32 %v6845, %v7255
        %v7290 = vshrl.u32 %v7015, 16
        %v7292 = vshll.u32 %v7015, 16
        %v7294 = vrot.slane %v7292, 1
        %v7295 = vor.u32 %v7290, %v7294
        %v7297 = vshll.u32 %v7016, 16
        %v7299 = vrot.slane %v7297, 1
        %v7300 = vsel %vm742, %v7295, %v7299
        %v7301 = vshrl.u32 %v7017, 16
        %v7303 = vshll.u32 %v7017, 16
        %v7305 = vrot.slane %v7303, 1
        %v7306 = vor.u32 %v7301, %v7305
        %v7308 = vshll.u32 %v7018, 16
        %v7310 = vrot.slane %v7308, 1
        %v7311 = vsel %vm742, %v7306, %v7310
        %v7312 = vshrl.u32 %v7019, 16
        %v7314 = vshll.u32 %v7019, 16
        %v7316 = vrot.slane %v7314, 1
        %v7317 = vor.u32 %v7312, %v7316
        %v7319 = vshll.u32 %v7020, 16
        %v7321 = vrot.slane %v7319, 1
        %v7322 = vsel %vm742, %v7317, %v7321
        %v7323 = vshrl.u32 %v7021, 16
        %v7325 = vshll.u32 %v7021, 16
        %v7327 = vrot.slane %v7325, 1
        %v7328 = vor.u32 %v7323, %v7327
        %v7330 = vshll.u32 %v7022, 16
        %v7332 = vrot.slane %v7330, 1
        %v7333 = vsel %vm742, %v7328, %v7332
        %v7334 = vshrl.u32 %v7023, 16
        %v7336 = vshll.u32 %v7023, 16
        %v7338 = vrot.slane %v7336, 1
        %v7339 = vor.u32 %v7334, %v7338
        %v7341 = vshll.u32 %v7024, 16
        %v7343 = vrot.slane %v7341, 1
        %v7344 = vsel %vm742, %v7339, %v7343
        %v7345 = vshrl.u32 %v7025, 16
        %v7347 = vshll.u32 %v7025, 16
        %v7349 = vrot.slane %v7347, 1
        %v7350 = vor.u32 %v7345, %v7349
        %v7352 = vshll.u32 %v7026, 16
        %v7354 = vrot.slane %v7352, 1
        %v7355 = vsel %vm742, %v7350, %v7354
        %v7356 = vshrl.u32 %v7027, 16
        %v7358 = vshll.u32 %v7027, 16
        %v7360 = vrot.slane %v7358, 1
        %v7361 = vor.u32 %v7356, %v7360
        %v7363 = vshll.u32 %v7028, 16
        %v7365 = vrot.slane %v7363, 1
        %v7366 = vsel %vm742, %v7361, %v7365
        %v7367 = vshrl.u32 %v7029, 16
        %v7369 = vshll.u32 %v7029, 16
        %v7371 = vrot.slane %v7369, 1
        %v7372 = vor.u32 %v7367, %v7371
        %v7374 = vshll.u32 %v7030, 16
        %v7376 = vrot.slane %v7374, 1
        %v7377 = vsel %vm742, %v7372, %v7376
        %v7378 = vshrl.u32 %v7031, 16
        %v7380 = vshll.u32 %v7031, 16
        %v7382 = vrot.slane %v7380, 1
        %v7383 = vor.u32 %v7378, %v7382
        %v7385 = vshll.u32 %v7032, 16
        %v7387 = vrot.slane %v7385, 1
        %v7388 = vsel %vm742, %v7383, %v7387
        %v7389 = vshrl.u32 %v7033, 16
        %v7391 = vshll.u32 %v7033, 16
        %v7393 = vrot.slane %v7391, 1
        %v7394 = vor.u32 %v7389, %v7393
        %v7396 = vshll.u32 %v7034, 16
        %v7398 = vrot.slane %v7396, 1
        %v7399 = vsel %vm742, %v7394, %v7398
        %v7400 = vshrl.u32 %v7035, 16
        %v7402 = vshll.u32 %v7035, 16
        %v7404 = vrot.slane %v7402, 1
        %v7405 = vor.u32 %v7400, %v7404
        %v7407 = vshll.u32 %v7036, 16
        %v7409 = vrot.slane %v7407, 1
        %v7410 = vsel %vm742, %v7405, %v7409
        %v7411 = vshrl.u32 %v7037, 16
        %v7413 = vshll.u32 %v7037, 16
        %v7415 = vrot.slane %v7413, 1
        %v7416 = vor.u32 %v7411, %v7415
        %v7418 = vshll.u32 %v7038, 16
        %v7420 = vrot.slane %v7418, 1
        %v7421 = vsel %vm742, %v7416, %v7420
        %v7422 = vshrl.u32 %v7039, 16
        %v7424 = vshll.u32 %v7039, 16
        %v7426 = vrot.slane %v7424, 1
        %v7427 = vor.u32 %v7422, %v7426
        %v7429 = vshll.u32 %v7040, 16
        %v7431 = vrot.slane %v7429, 1
        %v7432 = vsel %vm742, %v7427, %v7431
        %v7433 = vshrl.u32 %v7041, 16
        %v7435 = vshll.u32 %v7041, 16
        %v7437 = vrot.slane %v7435, 1
        %v7438 = vor.u32 %v7433, %v7437
        %v7440 = vshll.u32 %v7042, 16
        %v7442 = vrot.slane %v7440, 1
        %v7443 = vsel %vm742, %v7438, %v7442
        %v7444 = vshrl.u32 %v7043, 16
        %v7446 = vshll.u32 %v7043, 16
        %v7448 = vrot.slane %v7446, 1
        %v7449 = vor.u32 %v7444, %v7448
        %v7451 = vshll.u32 %v7044, 16
        %v7453 = vrot.slane %v7451, 1
        %v7454 = vsel %vm742, %v7449, %v7453
        %v7455 = vsel %vm1520, %v754, 0
        %v7458 = vsel %vm1520, %v7300, 0
        %v7461 = vsel %vm1520, %v7311, 0
        %v7464 = vsel %vm1520, %v7322, 0
        %v7467 = vsel %vm1520, %v7333, 0
        %v7470 = vsel %vm1520, %v7344, 0
        %v7473 = vsel %vm1520, %v7355, 0
        %v7476 = vsel %vm1520, %v7366, 0
        %v7479 = vsel %vm1520, %v7377, 0
        %v7482 = vsel %vm1520, %v7388, 0
        %v7485 = vsel %vm1520, %v7399, 0
        %v7488 = vsel %vm1520, %v7410, 0
        %v7491 = vsel %vm1520, %v7421, 0
        %v7494 = vsel %vm1520, %v7432, 0
        %v7497 = vsel %vm1520, %v7443, 0
        %v7500 = vsel %vm1520, %v7454, 0
        %v7503 = vsel %vm1597, %v6847, 0
        %7505 = vmatprep.subr.bf16.mxu0 0
        %7506 = vmatpush1.bf16.msra.mxu0 0
        %7507 = vmatprep.subr.bf16.mxu0 0
        %7508 = vmatpush1.bf16.msra.mxu0 0
        %7509 = vmatprep.subr.bf16.mxu0 0
        %7510 = vmatpush1.bf16.msra.mxu0 0
        %7511 = vmatprep.subr.bf16.mxu0 0
        %7512 = vmatpush1.bf16.msra.mxu0 0
        %7513 = vmatprep.subr.bf16.mxu0 0
        %7514 = vmatpush1.bf16.msra.mxu0 0
        %7515 = vmatprep.subr.bf16.mxu0 0
        %7516 = vmatpush1.bf16.msra.mxu0 0
        %7517 = vmatprep.subr.bf16.mxu0 0
        %7518 = vmatpush1.bf16.msra.mxu0 0
        %7519 = vmatprep.subr.bf16.mxu0 0
        %7520 = vmatpush1.bf16.msra.mxu0 %v7503
        %7521 = vmatprep.subr.bf16.mxu0 0
        %7522 = vmatpush2.bf16.msra.mxu0 0
        %7523 = vmatprep.subr.bf16.mxu0 0
        %7524 = vmatpush2.bf16.msra.mxu0 0
        %7525 = vmatprep.subr.bf16.mxu0 0
        %7526 = vmatpush2.bf16.msra.mxu0 0
        %7527 = vmatprep.subr.bf16.mxu0 0
        %7528 = vmatpush2.bf16.msra.mxu0 0
        %7529 = vmatprep.subr.bf16.mxu0 0
        %7530 = vmatpush2.bf16.msra.mxu0 0
        %7531 = vmatprep.subr.bf16.mxu0 0
        %7532 = vmatpush2.bf16.msra.mxu0 0
        %7533 = vmatprep.subr.bf16.mxu0 0
        %7534 = vmatpush2.bf16.msra.mxu0 0
        %7535 = vmatprep.subr.bf16.mxu0 0
        %7536 = vmatpush2.bf16.msra.mxu0 0
        %7537 = vmatprep.mubr.bf16.mxu0 0
        %7538 = vmatmul.mubr.bf16.gmra.mxu0 %v7455
        %v7539 = vpop.f32.mrf.mxu0
        %v7540 = vadd.f32 0.0, %v7539
        %v7541 = vpop.f32.mrf.mxu0
        %v7542 = vpop.f32.mrf.mxu0
        %v7543 = vadd.f32 0.0, %v7542
        %v7544 = vpop.f32.mrf.mxu0
        %7545 = vmatprep.mubr.bf16.mxu0 0
        %7546 = vmatmul.mubr.bf16.gmra.mxu0 %v7458
        %v7547 = vpop.f32.mrf.mxu0
        %v7548 = vadd.f32 0.0, %v7547
        %v7549 = vpop.f32.mrf.mxu0
        %v7550 = vpop.f32.mrf.mxu0
        %v7551 = vadd.f32 0.0, %v7550
        %v7552 = vpop.f32.mrf.mxu0
        %7553 = vmatprep.mubr.bf16.mxu0 0
        %7554 = vmatmul.mubr.bf16.gmra.mxu0 %v7461
        %v7555 = vpop.f32.mrf.mxu0
        %v7556 = vadd.f32 0.0, %v7555
        %v7557 = vpop.f32.mrf.mxu0
        %v7558 = vpop.f32.mrf.mxu0
        %v7559 = vadd.f32 0.0, %v7558
        %v7560 = vpop.f32.mrf.mxu0
        %7561 = vmatprep.mubr.bf16.mxu0 0
        %7562 = vmatmul.mubr.bf16.gmra.mxu0 %v7464
        %v7563 = vpop.f32.mrf.mxu0
        %v7564 = vadd.f32 0.0, %v7563
        %v7565 = vpop.f32.mrf.mxu0
        %v7566 = vpop.f32.mrf.mxu0
        %v7567 = vadd.f32 0.0, %v7566
        %v7568 = vpop.f32.mrf.mxu0
        %7569 = vmatprep.mubr.bf16.mxu0 0
        %7570 = vmatmul.mubr.bf16.gmra.mxu0 %v7467
        %v7571 = vpop.f32.mrf.mxu0
        %v7572 = vadd.f32 0.0, %v7571
        %v7573 = vpop.f32.mrf.mxu0
        %v7574 = vpop.f32.mrf.mxu0
        %v7575 = vadd.f32 0.0, %v7574
        %v7576 = vpop.f32.mrf.mxu0
        %7577 = vmatprep.mubr.bf16.mxu0 0
        %7578 = vmatmul.mubr.bf16.gmra.mxu0 %v7470
        %v7579 = vpop.f32.mrf.mxu0
        %v7580 = vadd.f32 0.0, %v7579
        %v7581 = vpop.f32.mrf.mxu0
        %v7582 = vpop.f32.mrf.mxu0
        %v7583 = vadd.f32 0.0, %v7582
        %v7584 = vpop.f32.mrf.mxu0
        %7585 = vmatprep.mubr.bf16.mxu0 0
        %7586 = vmatmul.mubr.bf16.gmra.mxu0 %v7473
        %v7587 = vpop.f32.mrf.mxu0
        %v7588 = vadd.f32 0.0, %v7587
        %v7589 = vpop.f32.mrf.mxu0
        %v7590 = vpop.f32.mrf.mxu0
        %v7591 = vadd.f32 0.0, %v7590
        %v7592 = vpop.f32.mrf.mxu0
        %7593 = vmatprep.mubr.bf16.mxu0 0
        %7594 = vmatmul.mubr.bf16.gmra.mxu0 %v7476
        %v7595 = vpop.f32.mrf.mxu0
        %v7596 = vadd.f32 0.0, %v7595
        %v7597 = vpop.f32.mrf.mxu0
        %v7598 = vpop.f32.mrf.mxu0
        %v7599 = vadd.f32 0.0, %v7598
        %v7600 = vpop.f32.mrf.mxu0
        %7601 = vmatprep.mubr.bf16.mxu0 0
        %7602 = vmatmul.mubr.bf16.gmra.mxu0 %v7479
        %v7603 = vpop.f32.mrf.mxu0
        %v7604 = vadd.f32 0.0, %v7603
        %v7605 = vpop.f32.mrf.mxu0
        %v7606 = vpop.f32.mrf.mxu0
        %v7607 = vadd.f32 0.0, %v7606
        %v7608 = vpop.f32.mrf.mxu0
        %7609 = vmatprep.mubr.bf16.mxu0 0
        %7610 = vmatmul.mubr.bf16.gmra.mxu0 %v7482
        %v7611 = vpop.f32.mrf.mxu0
        %v7612 = vadd.f32 0.0, %v7611
        %v7613 = vpop.f32.mrf.mxu0
        %v7614 = vpop.f32.mrf.mxu0
        %v7615 = vadd.f32 0.0, %v7614
        %v7616 = vpop.f32.mrf.mxu0
        %7617 = vmatprep.mubr.bf16.mxu0 0
        %7618 = vmatmul.mubr.bf16.gmra.mxu0 %v7485
        %v7619 = vpop.f32.mrf.mxu0
        %v7620 = vadd.f32 0.0, %v7619
        %v7621 = vpop.f32.mrf.mxu0
        %v7622 = vpop.f32.mrf.mxu0
        %v7623 = vadd.f32 0.0, %v7622
        %v7624 = vpop.f32.mrf.mxu0
        %7625 = vmatprep.mubr.bf16.mxu0 0
        %7626 = vmatmul.mubr.bf16.gmra.mxu0 %v7488
        %v7627 = vpop.f32.mrf.mxu0
        %v7628 = vadd.f32 0.0, %v7627
        %v7629 = vpop.f32.mrf.mxu0
        %v7630 = vpop.f32.mrf.mxu0
        %v7631 = vadd.f32 0.0, %v7630
        %v7632 = vpop.f32.mrf.mxu0
        %7633 = vmatprep.mubr.bf16.mxu0 0
        %7634 = vmatmul.mubr.bf16.gmra.mxu0 %v7491
        %v7635 = vpop.f32.mrf.mxu0
        %v7636 = vadd.f32 0.0, %v7635
        %v7637 = vpop.f32.mrf.mxu0
        %v7638 = vpop.f32.mrf.mxu0
        %v7639 = vadd.f32 0.0, %v7638
        %v7640 = vpop.f32.mrf.mxu0
        %7641 = vmatprep.mubr.bf16.mxu0 0
        %7642 = vmatmul.mubr.bf16.gmra.mxu0 %v7494
        %v7643 = vpop.f32.mrf.mxu0
        %v7644 = vadd.f32 0.0, %v7643
        %v7645 = vpop.f32.mrf.mxu0
        %v7646 = vpop.f32.mrf.mxu0
        %v7647 = vadd.f32 0.0, %v7646
        %v7648 = vpop.f32.mrf.mxu0
        %7649 = vmatprep.mubr.bf16.mxu0 0
        %7650 = vmatmul.mubr.bf16.gmra.mxu0 %v7497
        %v7651 = vpop.f32.mrf.mxu0
        %v7652 = vadd.f32 0.0, %v7651
        %v7653 = vpop.f32.mrf.mxu0
        %v7654 = vpop.f32.mrf.mxu0
        %v7655 = vadd.f32 0.0, %v7654
        %v7656 = vpop.f32.mrf.mxu0
        %7657 = vmatprep.mubr.bf16.mxu0 0
        %7658 = vmatmul.mubr.bf16.gmra.mxu0 %v7500
        %v7659 = vpop.f32.mrf.mxu0
        %v7660 = vadd.f32 0.0, %v7659
        %v7661 = vpop.f32.mrf.mxu0
        %v7662 = vpop.f32.mrf.mxu0
        %v7663 = vadd.f32 0.0, %v7662
        %v7664 = vpop.f32.mrf.mxu0
        %7665 = vdwg.mxu0
        %v7666 = vadd.f32 %v7258, %v7540
        %v7667 = vadd.f32 %v7259, %v7543
        %v7668 = vadd.f32 %v7260, %v7548
        %v7669 = vadd.f32 %v7261, %v7551
        %v7670 = vadd.f32 %v7262, %v7556
        %v7671 = vadd.f32 %v7263, %v7559
        %v7672 = vadd.f32 %v7264, %v7564
        %v7673 = vadd.f32 %v7265, %v7567
        %v7674 = vadd.f32 %v7266, %v7572
        %v7675 = vadd.f32 %v7267, %v7575
        %v7676 = vadd.f32 %v7268, %v7580
        %v7677 = vadd.f32 %v7269, %v7583
        %v7678 = vadd.f32 %v7270, %v7588
        %v7679 = vadd.f32 %v7271, %v7591
        %v7680 = vadd.f32 %v7272, %v7596
        %v7681 = vadd.f32 %v7273, %v7599
        %v7682 = vadd.f32 %v7274, %v7604
        %v7683 = vadd.f32 %v7275, %v7607
        %v7684 = vadd.f32 %v7276, %v7612
        %v7685 = vadd.f32 %v7277, %v7615
        %v7686 = vadd.f32 %v7278, %v7620
        %v7687 = vadd.f32 %v7279, %v7623
        %v7688 = vadd.f32 %v7280, %v7628
        %v7689 = vadd.f32 %v7281, %v7631
        %v7690 = vadd.f32 %v7282, %v7636
        %v7691 = vadd.f32 %v7283, %v7639
        %v7692 = vadd.f32 %v7284, %v7644
        %v7693 = vadd.f32 %v7285, %v7647
        %v7694 = vadd.f32 %v7286, %v7652
        %v7695 = vadd.f32 %v7287, %v7655
        %v7696 = vadd.f32 %v7288, %v7660
        %v7697 = vadd.f32 %v7289, %v7663
        %v7728 = vrot.slane %v7015, 1
        %v7729 = vrot.slane %v7016, 1
        %v7730 = vsel %vm999, %v7728, %v7729
        %v7731 = vrot.slane %v7017, 1
        %v7732 = vrot.slane %v7018, 1
        %v7733 = vsel %vm999, %v7731, %v7732
        %v7734 = vrot.slane %v7019, 1
        %v7735 = vrot.slane %v7020, 1
        %v7736 = vsel %vm999, %v7734, %v7735
        %v7737 = vrot.slane %v7021, 1
        %v7738 = vrot.slane %v7022, 1
        %v7739 = vsel %vm999, %v7737, %v7738
        %v7740 = vrot.slane %v7023, 1
        %v7741 = vrot.slane %v7024, 1
        %v7742 = vsel %vm999, %v7740, %v7741
        %v7743 = vrot.slane %v7025, 1
        %v7744 = vrot.slane %v7026, 1
        %v7745 = vsel %vm999, %v7743, %v7744
        %v7746 = vrot.slane %v7027, 1
        %v7747 = vrot.slane %v7028, 1
        %v7748 = vsel %vm999, %v7746, %v7747
        %v7749 = vrot.slane %v7029, 1
        %v7750 = vrot.slane %v7030, 1
        %v7751 = vsel %vm999, %v7749, %v7750
        %v7752 = vrot.slane %v7031, 1
        %v7753 = vrot.slane %v7032, 1
        %v7754 = vsel %vm999, %v7752, %v7753
        %v7755 = vrot.slane %v7033, 1
        %v7756 = vrot.slane %v7034, 1
        %v7757 = vsel %vm999, %v7755, %v7756
        %v7758 = vrot.slane %v7035, 1
        %v7759 = vrot.slane %v7036, 1
        %v7760 = vsel %vm999, %v7758, %v7759
        %v7761 = vrot.slane %v7037, 1
        %v7762 = vrot.slane %v7038, 1
        %v7763 = vsel %vm999, %v7761, %v7762
        %v7764 = vrot.slane %v7039, 1
        %v7765 = vrot.slane %v7040, 1
        %v7766 = vsel %vm999, %v7764, %v7765
        %v7767 = vrot.slane %v7041, 1
        %v7768 = vrot.slane %v7042, 1
        %v7769 = vsel %vm999, %v7767, %v7768
        %v7770 = vrot.slane %v7043, 1
        %v7771 = vrot.slane %v7044, 1
        %v7772 = vsel %vm999, %v7770, %v7771
        %v7773 = vsel %vm1520, %v1002, 0
        %v7776 = vsel %vm1520, %v7730, 0
        %v7779 = vsel %vm1520, %v7733, 0
        %v7782 = vsel %vm1520, %v7736, 0
        %v7785 = vsel %vm1520, %v7739, 0
        %v7788 = vsel %vm1520, %v7742, 0
        %v7791 = vsel %vm1520, %v7745, 0
        %v7794 = vsel %vm1520, %v7748, 0
        %v7797 = vsel %vm1520, %v7751, 0
        %v7800 = vsel %vm1520, %v7754, 0
        %v7803 = vsel %vm1520, %v7757, 0
        %v7806 = vsel %vm1520, %v7760, 0
        %v7809 = vsel %vm1520, %v7763, 0
        %v7812 = vsel %vm1520, %v7766, 0
        %v7815 = vsel %vm1520, %v7769, 0
        %v7818 = vsel %vm1520, %v7772, 0
        %v7821 = vsel %vm1597, %v6848, 0
        %7823 = vmatprep.subr.bf16.mxu0 0
        %7824 = vmatpush1.bf16.msra.mxu0 0
        %7825 = vmatprep.subr.bf16.mxu0 0
        %7826 = vmatpush1.bf16.msra.mxu0 0
        %7827 = vmatprep.subr.bf16.mxu0 0
        %7828 = vmatpush1.bf16.msra.mxu0 0
        %7829 = vmatprep.subr.bf16.mxu0 0
        %7830 = vmatpush1.bf16.msra.mxu0 0
        %7831 = vmatprep.subr.bf16.mxu0 0
        %7832 = vmatpush1.bf16.msra.mxu0 0
        %7833 = vmatprep.subr.bf16.mxu0 0
        %7834 = vmatpush1.bf16.msra.mxu0 0
        %7835 = vmatprep.subr.bf16.mxu0 0
        %7836 = vmatpush1.bf16.msra.mxu0 0
        %7837 = vmatprep.subr.bf16.mxu0 0
        %7838 = vmatpush1.bf16.msra.mxu0 %v7821
        %7839 = vmatprep.subr.bf16.mxu0 0
        %7840 = vmatpush2.bf16.msra.mxu0 0
        %7841 = vmatprep.subr.bf16.mxu0 0
        %7842 = vmatpush2.bf16.msra.mxu0 0
        %7843 = vmatprep.subr.bf16.mxu0 0
        %7844 = vmatpush2.bf16.msra.mxu0 0
        %7845 = vmatprep.subr.bf16.mxu0 0
        %7846 = vmatpush2.bf16.msra.mxu0 0
        %7847 = vmatprep.subr.bf16.mxu0 0
        %7848 = vmatpush2.bf16.msra.mxu0 0
        %7849 = vmatprep.subr.bf16.mxu0 0
        %7850 = vmatpush2.bf16.msra.mxu0 0
        %7851 = vmatprep.subr.bf16.mxu0 0
        %7852 = vmatpush2.bf16.msra.mxu0 0
        %7853 = vmatprep.subr.bf16.mxu0 0
        %7854 = vmatpush2.bf16.msra.mxu0 0
        %7855 = vmatprep.mubr.bf16.mxu0 0
        %7856 = vmatmul.mubr.bf16.gmra.mxu0 %v7773
        %v7857 = vpop.f32.mrf.mxu0
        %v7858 = vadd.f32 0.0, %v7857
        %v7859 = vpop.f32.mrf.mxu0
        %v7860 = vpop.f32.mrf.mxu0
        %v7861 = vadd.f32 0.0, %v7860
        %v7862 = vpop.f32.mrf.mxu0
        %7863 = vmatprep.mubr.bf16.mxu0 0
        %7864 = vmatmul.mubr.bf16.gmra.mxu0 %v7776
        %v7865 = vpop.f32.mrf.mxu0
        %v7866 = vadd.f32 0.0, %v7865
        %v7867 = vpop.f32.mrf.mxu0
        %v7868 = vpop.f32.mrf.mxu0
        %v7869 = vadd.f32 0.0, %v7868
        %v7870 = vpop.f32.mrf.mxu0
        %7871 = vmatprep.mubr.bf16.mxu0 0
        %7872 = vmatmul.mubr.bf16.gmra.mxu0 %v7779
        %v7873 = vpop.f32.mrf.mxu0
        %v7874 = vadd.f32 0.0, %v7873
        %v7875 = vpop.f32.mrf.mxu0
        %v7876 = vpop.f32.mrf.mxu0
        %v7877 = vadd.f32 0.0, %v7876
        %v7878 = vpop.f32.mrf.mxu0
        %7879 = vmatprep.mubr.bf16.mxu0 0
        %7880 = vmatmul.mubr.bf16.gmra.mxu0 %v7782
        %v7881 = vpop.f32.mrf.mxu0
        %v7882 = vadd.f32 0.0, %v7881
        %v7883 = vpop.f32.mrf.mxu0
        %v7884 = vpop.f32.mrf.mxu0
        %v7885 = vadd.f32 0.0, %v7884
        %v7886 = vpop.f32.mrf.mxu0
        %7887 = vmatprep.mubr.bf16.mxu0 0
        %7888 = vmatmul.mubr.bf16.gmra.mxu0 %v7785
        %v7889 = vpop.f32.mrf.mxu0
        %v7890 = vadd.f32 0.0, %v7889
        %v7891 = vpop.f32.mrf.mxu0
        %v7892 = vpop.f32.mrf.mxu0
        %v7893 = vadd.f32 0.0, %v7892
        %v7894 = vpop.f32.mrf.mxu0
        %7895 = vmatprep.mubr.bf16.mxu0 0
        %7896 = vmatmul.mubr.bf16.gmra.mxu0 %v7788
        %v7897 = vpop.f32.mrf.mxu0
        %v7898 = vadd.f32 0.0, %v7897
        %v7899 = vpop.f32.mrf.mxu0
        %v7900 = vpop.f32.mrf.mxu0
        %v7901 = vadd.f32 0.0, %v7900
        %v7902 = vpop.f32.mrf.mxu0
        %7903 = vmatprep.mubr.bf16.mxu0 0
        %7904 = vmatmul.mubr.bf16.gmra.mxu0 %v7791
        %v7905 = vpop.f32.mrf.mxu0
        %v7906 = vadd.f32 0.0, %v7905
        %v7907 = vpop.f32.mrf.mxu0
        %v7908 = vpop.f32.mrf.mxu0
        %v7909 = vadd.f32 0.0, %v7908
        %v7910 = vpop.f32.mrf.mxu0
        %7911 = vmatprep.mubr.bf16.mxu0 0
        %7912 = vmatmul.mubr.bf16.gmra.mxu0 %v7794
        %v7913 = vpop.f32.mrf.mxu0
        %v7914 = vadd.f32 0.0, %v7913
        %v7915 = vpop.f32.mrf.mxu0
        %v7916 = vpop.f32.mrf.mxu0
        %v7917 = vadd.f32 0.0, %v7916
        %v7918 = vpop.f32.mrf.mxu0
        %7919 = vmatprep.mubr.bf16.mxu0 0
        %7920 = vmatmul.mubr.bf16.gmra.mxu0 %v7797
        %v7921 = vpop.f32.mrf.mxu0
        %v7922 = vadd.f32 0.0, %v7921
        %v7923 = vpop.f32.mrf.mxu0
        %v7924 = vpop.f32.mrf.mxu0
        %v7925 = vadd.f32 0.0, %v7924
        %v7926 = vpop.f32.mrf.mxu0
        %7927 = vmatprep.mubr.bf16.mxu0 0
        %7928 = vmatmul.mubr.bf16.gmra.mxu0 %v7800
        %v7929 = vpop.f32.mrf.mxu0
        %v7930 = vadd.f32 0.0, %v7929
        %v7931 = vpop.f32.mrf.mxu0
        %v7932 = vpop.f32.mrf.mxu0
        %v7933 = vadd.f32 0.0, %v7932
        %v7934 = vpop.f32.mrf.mxu0
        %7935 = vmatprep.mubr.bf16.mxu0 0
        %7936 = vmatmul.mubr.bf16.gmra.mxu0 %v7803
        %v7937 = vpop.f32.mrf.mxu0
        %v7938 = vadd.f32 0.0, %v7937
        %v7939 = vpop.f32.mrf.mxu0
        %v7940 = vpop.f32.mrf.mxu0
        %v7941 = vadd.f32 0.0, %v7940
        %v7942 = vpop.f32.mrf.mxu0
        %7943 = vmatprep.mubr.bf16.mxu0 0
        %7944 = vmatmul.mubr.bf16.gmra.mxu0 %v7806
        %v7945 = vpop.f32.mrf.mxu0
        %v7946 = vadd.f32 0.0, %v7945
        %v7947 = vpop.f32.mrf.mxu0
        %v7948 = vpop.f32.mrf.mxu0
        %v7949 = vadd.f32 0.0, %v7948
        %v7950 = vpop.f32.mrf.mxu0
        %7951 = vmatprep.mubr.bf16.mxu0 0
        %7952 = vmatmul.mubr.bf16.gmra.mxu0 %v7809
        %v7953 = vpop.f32.mrf.mxu0
        %v7954 = vadd.f32 0.0, %v7953
        %v7955 = vpop.f32.mrf.mxu0
        %v7956 = vpop.f32.mrf.mxu0
        %v7957 = vadd.f32 0.0, %v7956
        %v7958 = vpop.f32.mrf.mxu0
        %7959 = vmatprep.mubr.bf16.mxu0 0
        %7960 = vmatmul.mubr.bf16.gmra.mxu0 %v7812
        %v7961 = vpop.f32.mrf.mxu0
        %v7962 = vadd.f32 0.0, %v7961
        %v7963 = vpop.f32.mrf.mxu0
        %v7964 = vpop.f32.mrf.mxu0
        %v7965 = vadd.f32 0.0, %v7964
        %v7966 = vpop.f32.mrf.mxu0
        %7967 = vmatprep.mubr.bf16.mxu0 0
        %7968 = vmatmul.mubr.bf16.gmra.mxu0 %v7815
        %v7969 = vpop.f32.mrf.mxu0
        %v7970 = vadd.f32 0.0, %v7969
        %v7971 = vpop.f32.mrf.mxu0
        %v7972 = vpop.f32.mrf.mxu0
        %v7973 = vadd.f32 0.0, %v7972
        %v7974 = vpop.f32.mrf.mxu0
        %7975 = vmatprep.mubr.bf16.mxu0 0
        %7976 = vmatmul.mubr.bf16.gmra.mxu0 %v7818
        %v7977 = vpop.f32.mrf.mxu0
        %v7978 = vadd.f32 0.0, %v7977
        %v7979 = vpop.f32.mrf.mxu0
        %v7980 = vpop.f32.mrf.mxu0
        %v7981 = vadd.f32 0.0, %v7980
        %v7982 = vpop.f32.mrf.mxu0
        %7983 = vdwg.mxu0
        %v7984 = vadd.f32 %v7666, %v7858
        %v7985 = vadd.f32 %v7667, %v7861
        %v7986 = vadd.f32 %v7668, %v7866
        %v7987 = vadd.f32 %v7669, %v7869
        %v7988 = vadd.f32 %v7670, %v7874
        %v7989 = vadd.f32 %v7671, %v7877
        %v7990 = vadd.f32 %v7672, %v7882
        %v7991 = vadd.f32 %v7673, %v7885
        %v7992 = vadd.f32 %v7674, %v7890
        %v7993 = vadd.f32 %v7675, %v7893
        %v7994 = vadd.f32 %v7676, %v7898
        %v7995 = vadd.f32 %v7677, %v7901
        %v7996 = vadd.f32 %v7678, %v7906
        %v7997 = vadd.f32 %v7679, %v7909
        %v7998 = vadd.f32 %v7680, %v7914
        %v7999 = vadd.f32 %v7681, %v7917
        %v8000 = vadd.f32 %v7682, %v7922
        %v8001 = vadd.f32 %v7683, %v7925
        %v8002 = vadd.f32 %v7684, %v7930
        %v8003 = vadd.f32 %v7685, %v7933
        %v8004 = vadd.f32 %v7686, %v7938
        %v8005 = vadd.f32 %v7687, %v7941
        %v8006 = vadd.f32 %v7688, %v7946
        %v8007 = vadd.f32 %v7689, %v7949
        %v8008 = vadd.f32 %v7690, %v7954
        %v8009 = vadd.f32 %v7691, %v7957
        %v8010 = vadd.f32 %v7692, %v7962
        %v8011 = vadd.f32 %v7693, %v7965
        %v8012 = vadd.f32 %v7694, %v7970
        %v8013 = vadd.f32 %v7695, %v7973
        %v8014 = vadd.f32 %v7696, %v7978
        %v8015 = vadd.f32 %v7697, %v7981
        %v8017 = vsel %vm1520, %v7045, 0
        %v8020 = vsel %vm1597, %v6849, 0
        %8022 = vmatprep.subr.bf16.mxu0 0
        %8023 = vmatpush1.bf16.msra.mxu0 0
        %8024 = vmatprep.subr.bf16.mxu0 0
        %8025 = vmatpush1.bf16.msra.mxu0 0
        %8026 = vmatprep.subr.bf16.mxu0 0
        %8027 = vmatpush1.bf16.msra.mxu0 0
        %8028 = vmatprep.subr.bf16.mxu0 0
        %8029 = vmatpush1.bf16.msra.mxu0 0
        %8030 = vmatprep.subr.bf16.mxu0 0
        %8031 = vmatpush1.bf16.msra.mxu0 0
        %8032 = vmatprep.subr.bf16.mxu0 0
        %8033 = vmatpush1.bf16.msra.mxu0 0
        %8034 = vmatprep.subr.bf16.mxu0 0
        %8035 = vmatpush1.bf16.msra.mxu0 0
        %8036 = vmatprep.subr.bf16.mxu0 0
        %8037 = vmatpush1.bf16.msra.mxu0 %v8020
        %8038 = vmatprep.subr.bf16.mxu0 0
        %8039 = vmatpush2.bf16.msra.mxu0 0
        %8040 = vmatprep.subr.bf16.mxu0 0
        %8041 = vmatpush2.bf16.msra.mxu0 0
        %8042 = vmatprep.subr.bf16.mxu0 0
        %8043 = vmatpush2.bf16.msra.mxu0 0
        %8044 = vmatprep.subr.bf16.mxu0 0
        %8045 = vmatpush2.bf16.msra.mxu0 0
        %8046 = vmatprep.subr.bf16.mxu0 0
        %8047 = vmatpush2.bf16.msra.mxu0 0
        %8048 = vmatprep.subr.bf16.mxu0 0
        %8049 = vmatpush2.bf16.msra.mxu0 0
        %8050 = vmatprep.subr.bf16.mxu0 0
        %8051 = vmatpush2.bf16.msra.mxu0 0
        %8052 = vmatprep.subr.bf16.mxu0 0
        %8053 = vmatpush2.bf16.msra.mxu0 0
        %8054 = vmatprep.mubr.bf16.mxu0 0
        %8055 = vmatmul.mubr.bf16.gmra.mxu0 %v7050
        %v8056 = vpop.f32.mrf.mxu0
        %v8057 = vadd.f32 0.0, %v8056
        %v8058 = vpop.f32.mrf.mxu0
        %v8059 = vpop.f32.mrf.mxu0
        %v8060 = vadd.f32 0.0, %v8059
        %v8061 = vpop.f32.mrf.mxu0
        %8062 = vmatprep.mubr.bf16.mxu0 0
        %8063 = vmatmul.mubr.bf16.gmra.mxu0 %v7053
        %v8064 = vpop.f32.mrf.mxu0
        %v8065 = vadd.f32 0.0, %v8064
        %v8066 = vpop.f32.mrf.mxu0
        %v8067 = vpop.f32.mrf.mxu0
        %v8068 = vadd.f32 0.0, %v8067
        %v8069 = vpop.f32.mrf.mxu0
        %8070 = vmatprep.mubr.bf16.mxu0 0
        %8071 = vmatmul.mubr.bf16.gmra.mxu0 %v7056
        %v8072 = vpop.f32.mrf.mxu0
        %v8073 = vadd.f32 0.0, %v8072
        %v8074 = vpop.f32.mrf.mxu0
        %v8075 = vpop.f32.mrf.mxu0
        %v8076 = vadd.f32 0.0, %v8075
        %v8077 = vpop.f32.mrf.mxu0
        %8078 = vmatprep.mubr.bf16.mxu0 0
        %8079 = vmatmul.mubr.bf16.gmra.mxu0 %v7059
        %v8080 = vpop.f32.mrf.mxu0
        %v8081 = vadd.f32 0.0, %v8080
        %v8082 = vpop.f32.mrf.mxu0
        %v8083 = vpop.f32.mrf.mxu0
        %v8084 = vadd.f32 0.0, %v8083
        %v8085 = vpop.f32.mrf.mxu0
        %8086 = vmatprep.mubr.bf16.mxu0 0
        %8087 = vmatmul.mubr.bf16.gmra.mxu0 %v7062
        %v8088 = vpop.f32.mrf.mxu0
        %v8089 = vadd.f32 0.0, %v8088
        %v8090 = vpop.f32.mrf.mxu0
        %v8091 = vpop.f32.mrf.mxu0
        %v8092 = vadd.f32 0.0, %v8091
        %v8093 = vpop.f32.mrf.mxu0
        %8094 = vmatprep.mubr.bf16.mxu0 0
        %8095 = vmatmul.mubr.bf16.gmra.mxu0 %v7065
        %v8096 = vpop.f32.mrf.mxu0
        %v8097 = vadd.f32 0.0, %v8096
        %v8098 = vpop.f32.mrf.mxu0
        %v8099 = vpop.f32.mrf.mxu0
        %v8100 = vadd.f32 0.0, %v8099
        %v8101 = vpop.f32.mrf.mxu0
        %8102 = vmatprep.mubr.bf16.mxu0 0
        %8103 = vmatmul.mubr.bf16.gmra.mxu0 %v7068
        %v8104 = vpop.f32.mrf.mxu0
        %v8105 = vadd.f32 0.0, %v8104
        %v8106 = vpop.f32.mrf.mxu0
        %v8107 = vpop.f32.mrf.mxu0
        %v8108 = vadd.f32 0.0, %v8107
        %v8109 = vpop.f32.mrf.mxu0
        %8110 = vmatprep.mubr.bf16.mxu0 0
        %8111 = vmatmul.mubr.bf16.gmra.mxu0 %v7071
        %v8112 = vpop.f32.mrf.mxu0
        %v8113 = vadd.f32 0.0, %v8112
        %v8114 = vpop.f32.mrf.mxu0
        %v8115 = vpop.f32.mrf.mxu0
        %v8116 = vadd.f32 0.0, %v8115
        %v8117 = vpop.f32.mrf.mxu0
        %8118 = vmatprep.mubr.bf16.mxu0 0
        %8119 = vmatmul.mubr.bf16.gmra.mxu0 %v7074
        %v8120 = vpop.f32.mrf.mxu0
        %v8121 = vadd.f32 0.0, %v8120
        %v8122 = vpop.f32.mrf.mxu0
        %v8123 = vpop.f32.mrf.mxu0
        %v8124 = vadd.f32 0.0, %v8123
        %v8125 = vpop.f32.mrf.mxu0
        %8126 = vmatprep.mubr.bf16.mxu0 0
        %8127 = vmatmul.mubr.bf16.gmra.mxu0 %v7077
        %v8128 = vpop.f32.mrf.mxu0
        %v8129 = vadd.f32 0.0, %v8128
        %v8130 = vpop.f32.mrf.mxu0
        %v8131 = vpop.f32.mrf.mxu0
        %v8132 = vadd.f32 0.0, %v8131
        %v8133 = vpop.f32.mrf.mxu0
        %8134 = vmatprep.mubr.bf16.mxu0 0
        %8135 = vmatmul.mubr.bf16.gmra.mxu0 %v7080
        %v8136 = vpop.f32.mrf.mxu0
        %v8137 = vadd.f32 0.0, %v8136
        %v8138 = vpop.f32.mrf.mxu0
        %v8139 = vpop.f32.mrf.mxu0
        %v8140 = vadd.f32 0.0, %v8139
        %v8141 = vpop.f32.mrf.mxu0
        %8142 = vmatprep.mubr.bf16.mxu0 0
        %8143 = vmatmul.mubr.bf16.gmra.mxu0 %v7083
        %v8144 = vpop.f32.mrf.mxu0
        %v8145 = vadd.f32 0.0, %v8144
        %v8146 = vpop.f32.mrf.mxu0
        %v8147 = vpop.f32.mrf.mxu0
        %v8148 = vadd.f32 0.0, %v8147
        %v8149 = vpop.f32.mrf.mxu0
        %8150 = vmatprep.mubr.bf16.mxu0 0
        %8151 = vmatmul.mubr.bf16.gmra.mxu0 %v7086
        %v8152 = vpop.f32.mrf.mxu0
        %v8153 = vadd.f32 0.0, %v8152
        %v8154 = vpop.f32.mrf.mxu0
        %v8155 = vpop.f32.mrf.mxu0
        %v8156 = vadd.f32 0.0, %v8155
        %v8157 = vpop.f32.mrf.mxu0
        %8158 = vmatprep.mubr.bf16.mxu0 0
        %8159 = vmatmul.mubr.bf16.gmra.mxu0 %v7089
        %v8160 = vpop.f32.mrf.mxu0
        %v8161 = vadd.f32 0.0, %v8160
        %v8162 = vpop.f32.mrf.mxu0
        %v8163 = vpop.f32.mrf.mxu0
        %v8164 = vadd.f32 0.0, %v8163
        %v8165 = vpop.f32.mrf.mxu0
        %8166 = vmatprep.mubr.bf16.mxu0 0
        %8167 = vmatmul.mubr.bf16.gmra.mxu0 %v7092
        %v8168 = vpop.f32.mrf.mxu0
        %v8169 = vadd.f32 0.0, %v8168
        %v8170 = vpop.f32.mrf.mxu0
        %v8171 = vpop.f32.mrf.mxu0
        %v8172 = vadd.f32 0.0, %v8171
        %v8173 = vpop.f32.mrf.mxu0
        %8174 = vmatprep.mubr.bf16.mxu0 0
        %8175 = vmatmul.mubr.bf16.gmra.mxu0 %v8017
        %v8176 = vpop.f32.mrf.mxu0
        %v8177 = vadd.f32 0.0, %v8176
        %v8178 = vpop.f32.mrf.mxu0
        %v8179 = vpop.f32.mrf.mxu0
        %v8180 = vadd.f32 0.0, %v8179
        %v8181 = vpop.f32.mrf.mxu0
        %8182 = vdwg.mxu0
        %v8183 = vadd.f32 %v7984, %v8057
        %v8184 = vadd.f32 %v7985, %v8060
        %v8185 = vadd.f32 %v7986, %v8065
        %v8186 = vadd.f32 %v7987, %v8068
        %v8187 = vadd.f32 %v7988, %v8073
        %v8188 = vadd.f32 %v7989, %v8076
        %v8189 = vadd.f32 %v7990, %v8081
        %v8190 = vadd.f32 %v7991, %v8084
        %v8191 = vadd.f32 %v7992, %v8089
        %v8192 = vadd.f32 %v7993, %v8092
        %v8193 = vadd.f32 %v7994, %v8097
        %v8194 = vadd.f32 %v7995, %v8100
        %v8195 = vadd.f32 %v7996, %v8105
        %v8196 = vadd.f32 %v7997, %v8108
        %v8197 = vadd.f32 %v7998, %v8113
        %v8198 = vadd.f32 %v7999, %v8116
        %v8199 = vadd.f32 %v8000, %v8121
        %v8200 = vadd.f32 %v8001, %v8124
        %v8201 = vadd.f32 %v8002, %v8129
        %v8202 = vadd.f32 %v8003, %v8132
        %v8203 = vadd.f32 %v8004, %v8137
        %v8204 = vadd.f32 %v8005, %v8140
        %v8205 = vadd.f32 %v8006, %v8145
        %v8206 = vadd.f32 %v8007, %v8148
        %v8207 = vadd.f32 %v8008, %v8153
        %v8208 = vadd.f32 %v8009, %v8156
        %v8209 = vadd.f32 %v8010, %v8161
        %v8210 = vadd.f32 %v8011, %v8164
        %v8211 = vadd.f32 %v8012, %v8169
        %v8212 = vadd.f32 %v8013, %v8172
        %v8213 = vadd.f32 %v8014, %v8177
        %v8214 = vadd.f32 %v8015, %v8180
        %v8215 = vshrl.u32 %v7045, 16
        %v8217 = vshll.u32 %v7045, 16
        %v8219 = vrot.slane %v8217, 1
        %v8220 = vor.u32 %v8215, %v8219
        %v8222 = vshll.u32 %v7046, 16
        %v8224 = vrot.slane %v8222, 1
        %v8225 = vsel %vm742, %v8220, %v8224
        %v8227 = vsel %vm1520, %v8225, 0
        %v8230 = vsel %vm1597, %v6850, 0
        %8232 = vmatprep.subr.bf16.mxu0 0
        %8233 = vmatpush1.bf16.msra.mxu0 0
        %8234 = vmatprep.subr.bf16.mxu0 0
        %8235 = vmatpush1.bf16.msra.mxu0 0
        %8236 = vmatprep.subr.bf16.mxu0 0
        %8237 = vmatpush1.bf16.msra.mxu0 0
        %8238 = vmatprep.subr.bf16.mxu0 0
        %8239 = vmatpush1.bf16.msra.mxu0 0
        %8240 = vmatprep.subr.bf16.mxu0 0
        %8241 = vmatpush1.bf16.msra.mxu0 0
        %8242 = vmatprep.subr.bf16.mxu0 0
        %8243 = vmatpush1.bf16.msra.mxu0 0
        %8244 = vmatprep.subr.bf16.mxu0 0
        %8245 = vmatpush1.bf16.msra.mxu0 0
        %8246 = vmatprep.subr.bf16.mxu0 0
        %8247 = vmatpush1.bf16.msra.mxu0 %v8230
        %8248 = vmatprep.subr.bf16.mxu0 0
        %8249 = vmatpush2.bf16.msra.mxu0 0
        %8250 = vmatprep.subr.bf16.mxu0 0
        %8251 = vmatpush2.bf16.msra.mxu0 0
        %8252 = vmatprep.subr.bf16.mxu0 0
        %8253 = vmatpush2.bf16.msra.mxu0 0
        %8254 = vmatprep.subr.bf16.mxu0 0
        %8255 = vmatpush2.bf16.msra.mxu0 0
        %8256 = vmatprep.subr.bf16.mxu0 0
        %8257 = vmatpush2.bf16.msra.mxu0 0
        %8258 = vmatprep.subr.bf16.mxu0 0
        %8259 = vmatpush2.bf16.msra.mxu0 0
        %8260 = vmatprep.subr.bf16.mxu0 0
        %8261 = vmatpush2.bf16.msra.mxu0 0
        %8262 = vmatprep.subr.bf16.mxu0 0
        %8263 = vmatpush2.bf16.msra.mxu0 0
        %8264 = vmatprep.mubr.bf16.mxu0 0
        %8265 = vmatmul.mubr.bf16.gmra.mxu0 %v7458
        %v8266 = vpop.f32.mrf.mxu0
        %v8267 = vadd.f32 0.0, %v8266
        %v8268 = vpop.f32.mrf.mxu0
        %v8269 = vpop.f32.mrf.mxu0
        %v8270 = vadd.f32 0.0, %v8269
        %v8271 = vpop.f32.mrf.mxu0
        %8272 = vmatprep.mubr.bf16.mxu0 0
        %8273 = vmatmul.mubr.bf16.gmra.mxu0 %v7461
        %v8274 = vpop.f32.mrf.mxu0
        %v8275 = vadd.f32 0.0, %v8274
        %v8276 = vpop.f32.mrf.mxu0
        %v8277 = vpop.f32.mrf.mxu0
        %v8278 = vadd.f32 0.0, %v8277
        %v8279 = vpop.f32.mrf.mxu0
        %8280 = vmatprep.mubr.bf16.mxu0 0
        %8281 = vmatmul.mubr.bf16.gmra.mxu0 %v7464
        %v8282 = vpop.f32.mrf.mxu0
        %v8283 = vadd.f32 0.0, %v8282
        %v8284 = vpop.f32.mrf.mxu0
        %v8285 = vpop.f32.mrf.mxu0
        %v8286 = vadd.f32 0.0, %v8285
        %v8287 = vpop.f32.mrf.mxu0
        %8288 = vmatprep.mubr.bf16.mxu0 0
        %8289 = vmatmul.mubr.bf16.gmra.mxu0 %v7467
        %v8290 = vpop.f32.mrf.mxu0
        %v8291 = vadd.f32 0.0, %v8290
        %v8292 = vpop.f32.mrf.mxu0
        %v8293 = vpop.f32.mrf.mxu0
        %v8294 = vadd.f32 0.0, %v8293
        %v8295 = vpop.f32.mrf.mxu0
        %8296 = vmatprep.mubr.bf16.mxu0 0
        %8297 = vmatmul.mubr.bf16.gmra.mxu0 %v7470
        %v8298 = vpop.f32.mrf.mxu0
        %v8299 = vadd.f32 0.0, %v8298
        %v8300 = vpop.f32.mrf.mxu0
        %v8301 = vpop.f32.mrf.mxu0
        %v8302 = vadd.f32 0.0, %v8301
        %v8303 = vpop.f32.mrf.mxu0
        %8304 = vmatprep.mubr.bf16.mxu0 0
        %8305 = vmatmul.mubr.bf16.gmra.mxu0 %v7473
        %v8306 = vpop.f32.mrf.mxu0
        %v8307 = vadd.f32 0.0, %v8306
        %v8308 = vpop.f32.mrf.mxu0
        %v8309 = vpop.f32.mrf.mxu0
        %v8310 = vadd.f32 0.0, %v8309
        %v8311 = vpop.f32.mrf.mxu0
        %8312 = vmatprep.mubr.bf16.mxu0 0
        %8313 = vmatmul.mubr.bf16.gmra.mxu0 %v7476
        %v8314 = vpop.f32.mrf.mxu0
        %v8315 = vadd.f32 0.0, %v8314
        %v8316 = vpop.f32.mrf.mxu0
        %v8317 = vpop.f32.mrf.mxu0
        %v8318 = vadd.f32 0.0, %v8317
        %v8319 = vpop.f32.mrf.mxu0
        %8320 = vmatprep.mubr.bf16.mxu0 0
        %8321 = vmatmul.mubr.bf16.gmra.mxu0 %v7479
        %v8322 = vpop.f32.mrf.mxu0
        %v8323 = vadd.f32 0.0, %v8322
        %v8324 = vpop.f32.mrf.mxu0
        %v8325 = vpop.f32.mrf.mxu0
        %v8326 = vadd.f32 0.0, %v8325
        %v8327 = vpop.f32.mrf.mxu0
        %8328 = vmatprep.mubr.bf16.mxu0 0
        %8329 = vmatmul.mubr.bf16.gmra.mxu0 %v7482
        %v8330 = vpop.f32.mrf.mxu0
        %v8331 = vadd.f32 0.0, %v8330
        %v8332 = vpop.f32.mrf.mxu0
        %v8333 = vpop.f32.mrf.mxu0
        %v8334 = vadd.f32 0.0, %v8333
        %v8335 = vpop.f32.mrf.mxu0
        %8336 = vmatprep.mubr.bf16.mxu0 0
        %8337 = vmatmul.mubr.bf16.gmra.mxu0 %v7485
        %v8338 = vpop.f32.mrf.mxu0
        %v8339 = vadd.f32 0.0, %v8338
        %v8340 = vpop.f32.mrf.mxu0
        %v8341 = vpop.f32.mrf.mxu0
        %v8342 = vadd.f32 0.0, %v8341
        %v8343 = vpop.f32.mrf.mxu0
        %8344 = vmatprep.mubr.bf16.mxu0 0
        %8345 = vmatmul.mubr.bf16.gmra.mxu0 %v7488
        %v8346 = vpop.f32.mrf.mxu0
        %v8347 = vadd.f32 0.0, %v8346
        %v8348 = vpop.f32.mrf.mxu0
        %v8349 = vpop.f32.mrf.mxu0
        %v8350 = vadd.f32 0.0, %v8349
        %v8351 = vpop.f32.mrf.mxu0
        %8352 = vmatprep.mubr.bf16.mxu0 0
        %8353 = vmatmul.mubr.bf16.gmra.mxu0 %v7491
        %v8354 = vpop.f32.mrf.mxu0
        %v8355 = vadd.f32 0.0, %v8354
        %v8356 = vpop.f32.mrf.mxu0
        %v8357 = vpop.f32.mrf.mxu0
        %v8358 = vadd.f32 0.0, %v8357
        %v8359 = vpop.f32.mrf.mxu0
        %8360 = vmatprep.mubr.bf16.mxu0 0
        %8361 = vmatmul.mubr.bf16.gmra.mxu0 %v7494
        %v8362 = vpop.f32.mrf.mxu0
        %v8363 = vadd.f32 0.0, %v8362
        %v8364 = vpop.f32.mrf.mxu0
        %v8365 = vpop.f32.mrf.mxu0
        %v8366 = vadd.f32 0.0, %v8365
        %v8367 = vpop.f32.mrf.mxu0
        %8368 = vmatprep.mubr.bf16.mxu0 0
        %8369 = vmatmul.mubr.bf16.gmra.mxu0 %v7497
        %v8370 = vpop.f32.mrf.mxu0
        %v8371 = vadd.f32 0.0, %v8370
        %v8372 = vpop.f32.mrf.mxu0
        %v8373 = vpop.f32.mrf.mxu0
        %v8374 = vadd.f32 0.0, %v8373
        %v8375 = vpop.f32.mrf.mxu0
        %8376 = vmatprep.mubr.bf16.mxu0 0
        %8377 = vmatmul.mubr.bf16.gmra.mxu0 %v7500
        %v8378 = vpop.f32.mrf.mxu0
        %v8379 = vadd.f32 0.0, %v8378
        %v8380 = vpop.f32.mrf.mxu0
        %v8381 = vpop.f32.mrf.mxu0
        %v8382 = vadd.f32 0.0, %v8381
        %v8383 = vpop.f32.mrf.mxu0
        %8384 = vmatprep.mubr.bf16.mxu0 0
        %8385 = vmatmul.mubr.bf16.gmra.mxu0 %v8227
        %v8386 = vpop.f32.mrf.mxu0
        %v8387 = vadd.f32 0.0, %v8386
        %v8388 = vpop.f32.mrf.mxu0
        %v8389 = vpop.f32.mrf.mxu0
        %v8390 = vadd.f32 0.0, %v8389
        %v8391 = vpop.f32.mrf.mxu0
        %8392 = vdwg.mxu0
        %v8393 = vadd.f32 %v8183, %v8267
        %v8394 = vadd.f32 %v8184, %v8270
        %v8395 = vadd.f32 %v8185, %v8275
        %v8396 = vadd.f32 %v8186, %v8278
        %v8397 = vadd.f32 %v8187, %v8283
        %v8398 = vadd.f32 %v8188, %v8286
        %v8399 = vadd.f32 %v8189, %v8291
        %v8400 = vadd.f32 %v8190, %v8294
        %v8401 = vadd.f32 %v8191, %v8299
        %v8402 = vadd.f32 %v8192, %v8302
        %v8403 = vadd.f32 %v8193, %v8307
        %v8404 = vadd.f32 %v8194, %v8310
        %v8405 = vadd.f32 %v8195, %v8315
        %v8406 = vadd.f32 %v8196, %v8318
        %v8407 = vadd.f32 %v8197, %v8323
        %v8408 = vadd.f32 %v8198, %v8326
        %v8409 = vadd.f32 %v8199, %v8331
        %v8410 = vadd.f32 %v8200, %v8334
        %v8411 = vadd.f32 %v8201, %v8339
        %v8412 = vadd.f32 %v8202, %v8342
        %v8413 = vadd.f32 %v8203, %v8347
        %v8414 = vadd.f32 %v8204, %v8350
        %v8415 = vadd.f32 %v8205, %v8355
        %v8416 = vadd.f32 %v8206, %v8358
        %v8417 = vadd.f32 %v8207, %v8363
        %v8418 = vadd.f32 %v8208, %v8366
        %v8419 = vadd.f32 %v8209, %v8371
        %v8420 = vadd.f32 %v8210, %v8374
        %v8421 = vadd.f32 %v8211, %v8379
        %v8422 = vadd.f32 %v8212, %v8382
        %v8423 = vadd.f32 %v8213, %v8387
        %v8424 = vadd.f32 %v8214, %v8390
        %v8427 = vrot.slane %v7045, 1
        %v8428 = vrot.slane %v7046, 1
        %v8429 = vsel %vm999, %v8427, %v8428
        %v8431 = vsel %vm1520, %v8429, 0
        %v8434 = vsel %vm1597, %v6851, 0
        %8436 = vmatprep.subr.bf16.mxu0 0
        %8437 = vmatpush1.bf16.msra.mxu0 0
        %8438 = vmatprep.subr.bf16.mxu0 0
        %8439 = vmatpush1.bf16.msra.mxu0 0
        %8440 = vmatprep.subr.bf16.mxu0 0
        %8441 = vmatpush1.bf16.msra.mxu0 0
        %8442 = vmatprep.subr.bf16.mxu0 0
        %8443 = vmatpush1.bf16.msra.mxu0 0
        %8444 = vmatprep.subr.bf16.mxu0 0
        %8445 = vmatpush1.bf16.msra.mxu0 0
        %8446 = vmatprep.subr.bf16.mxu0 0
        %8447 = vmatpush1.bf16.msra.mxu0 0
        %8448 = vmatprep.subr.bf16.mxu0 0
        %8449 = vmatpush1.bf16.msra.mxu0 0
        %8450 = vmatprep.subr.bf16.mxu0 0
        %8451 = vmatpush1.bf16.msra.mxu0 %v8434
        %8452 = vmatprep.subr.bf16.mxu0 0
        %8453 = vmatpush2.bf16.msra.mxu0 0
        %8454 = vmatprep.subr.bf16.mxu0 0
        %8455 = vmatpush2.bf16.msra.mxu0 0
        %8456 = vmatprep.subr.bf16.mxu0 0
        %8457 = vmatpush2.bf16.msra.mxu0 0
        %8458 = vmatprep.subr.bf16.mxu0 0
        %8459 = vmatpush2.bf16.msra.mxu0 0
        %8460 = vmatprep.subr.bf16.mxu0 0
        %8461 = vmatpush2.bf16.msra.mxu0 0
        %8462 = vmatprep.subr.bf16.mxu0 0
        %8463 = vmatpush2.bf16.msra.mxu0 0
        %8464 = vmatprep.subr.bf16.mxu0 0
        %8465 = vmatpush2.bf16.msra.mxu0 0
        %8466 = vmatprep.subr.bf16.mxu0 0
        %8467 = vmatpush2.bf16.msra.mxu0 0
        %8468 = vmatprep.mubr.bf16.mxu0 0
        %8469 = vmatmul.mubr.bf16.gmra.mxu0 %v7776
        %v8470 = vpop.f32.mrf.mxu0
        %v8471 = vadd.f32 0.0, %v8470
        %v8472 = vpop.f32.mrf.mxu0
        %v8473 = vpop.f32.mrf.mxu0
        %v8474 = vadd.f32 0.0, %v8473
        %v8475 = vpop.f32.mrf.mxu0
        %8476 = vmatprep.mubr.bf16.mxu0 0
        %8477 = vmatmul.mubr.bf16.gmra.mxu0 %v7779
        %v8478 = vpop.f32.mrf.mxu0
        %v8479 = vadd.f32 0.0, %v8478
        %v8480 = vpop.f32.mrf.mxu0
        %v8481 = vpop.f32.mrf.mxu0
        %v8482 = vadd.f32 0.0, %v8481
        %v8483 = vpop.f32.mrf.mxu0
        %8484 = vmatprep.mubr.bf16.mxu0 0
        %8485 = vmatmul.mubr.bf16.gmra.mxu0 %v7782
        %v8486 = vpop.f32.mrf.mxu0
        %v8487 = vadd.f32 0.0, %v8486
        %v8488 = vpop.f32.mrf.mxu0
        %v8489 = vpop.f32.mrf.mxu0
        %v8490 = vadd.f32 0.0, %v8489
        %v8491 = vpop.f32.mrf.mxu0
        %8492 = vmatprep.mubr.bf16.mxu0 0
        %8493 = vmatmul.mubr.bf16.gmra.mxu0 %v7785
        %v8494 = vpop.f32.mrf.mxu0
        %v8495 = vadd.f32 0.0, %v8494
        %v8496 = vpop.f32.mrf.mxu0
        %v8497 = vpop.f32.mrf.mxu0
        %v8498 = vadd.f32 0.0, %v8497
        %v8499 = vpop.f32.mrf.mxu0
        %8500 = vmatprep.mubr.bf16.mxu0 0
        %8501 = vmatmul.mubr.bf16.gmra.mxu0 %v7788
        %v8502 = vpop.f32.mrf.mxu0
        %v8503 = vadd.f32 0.0, %v8502
        %v8504 = vpop.f32.mrf.mxu0
        %v8505 = vpop.f32.mrf.mxu0
        %v8506 = vadd.f32 0.0, %v8505
        %v8507 = vpop.f32.mrf.mxu0
        %8508 = vmatprep.mubr.bf16.mxu0 0
        %8509 = vmatmul.mubr.bf16.gmra.mxu0 %v7791
        %v8510 = vpop.f32.mrf.mxu0
        %v8511 = vadd.f32 0.0, %v8510
        %v8512 = vpop.f32.mrf.mxu0
        %v8513 = vpop.f32.mrf.mxu0
        %v8514 = vadd.f32 0.0, %v8513
        %v8515 = vpop.f32.mrf.mxu0
        %8516 = vmatprep.mubr.bf16.mxu0 0
        %8517 = vmatmul.mubr.bf16.gmra.mxu0 %v7794
        %v8518 = vpop.f32.mrf.mxu0
        %v8519 = vadd.f32 0.0, %v8518
        %v8520 = vpop.f32.mrf.mxu0
        %v8521 = vpop.f32.mrf.mxu0
        %v8522 = vadd.f32 0.0, %v8521
        %v8523 = vpop.f32.mrf.mxu0
        %8524 = vmatprep.mubr.bf16.mxu0 0
        %8525 = vmatmul.mubr.bf16.gmra.mxu0 %v7797
        %v8526 = vpop.f32.mrf.mxu0
        %v8527 = vadd.f32 0.0, %v8526
        %v8528 = vpop.f32.mrf.mxu0
        %v8529 = vpop.f32.mrf.mxu0
        %v8530 = vadd.f32 0.0, %v8529
        %v8531 = vpop.f32.mrf.mxu0
        %8532 = vmatprep.mubr.bf16.mxu0 0
        %8533 = vmatmul.mubr.bf16.gmra.mxu0 %v7800
        %v8534 = vpop.f32.mrf.mxu0
        %v8535 = vadd.f32 0.0, %v8534
        %v8536 = vpop.f32.mrf.mxu0
        %v8537 = vpop.f32.mrf.mxu0
        %v8538 = vadd.f32 0.0, %v8537
        %v8539 = vpop.f32.mrf.mxu0
        %8540 = vmatprep.mubr.bf16.mxu0 0
        %8541 = vmatmul.mubr.bf16.gmra.mxu0 %v7803
        %v8542 = vpop.f32.mrf.mxu0
        %v8543 = vadd.f32 0.0, %v8542
        %v8544 = vpop.f32.mrf.mxu0
        %v8545 = vpop.f32.mrf.mxu0
        %v8546 = vadd.f32 0.0, %v8545
        %v8547 = vpop.f32.mrf.mxu0
        %8548 = vmatprep.mubr.bf16.mxu0 0
        %8549 = vmatmul.mubr.bf16.gmra.mxu0 %v7806
        %v8550 = vpop.f32.mrf.mxu0
        %v8551 = vadd.f32 0.0, %v8550
        %v8552 = vpop.f32.mrf.mxu0
        %v8553 = vpop.f32.mrf.mxu0
        %v8554 = vadd.f32 0.0, %v8553
        %v8555 = vpop.f32.mrf.mxu0
        %8556 = vmatprep.mubr.bf16.mxu0 0
        %8557 = vmatmul.mubr.bf16.gmra.mxu0 %v7809
        %v8558 = vpop.f32.mrf.mxu0
        %v8559 = vadd.f32 0.0, %v8558
        %v8560 = vpop.f32.mrf.mxu0
        %v8561 = vpop.f32.mrf.mxu0
        %v8562 = vadd.f32 0.0, %v8561
        %v8563 = vpop.f32.mrf.mxu0
        %8564 = vmatprep.mubr.bf16.mxu0 0
        %8565 = vmatmul.mubr.bf16.gmra.mxu0 %v7812
        %v8566 = vpop.f32.mrf.mxu0
        %v8567 = vadd.f32 0.0, %v8566
        %v8568 = vpop.f32.mrf.mxu0
        %v8569 = vpop.f32.mrf.mxu0
        %v8570 = vadd.f32 0.0, %v8569
        %v8571 = vpop.f32.mrf.mxu0
        %8572 = vmatprep.mubr.bf16.mxu0 0
        %8573 = vmatmul.mubr.bf16.gmra.mxu0 %v7815
        %v8574 = vpop.f32.mrf.mxu0
        %v8575 = vadd.f32 0.0, %v8574
        %v8576 = vpop.f32.mrf.mxu0
        %v8577 = vpop.f32.mrf.mxu0
        %v8578 = vadd.f32 0.0, %v8577
        %v8579 = vpop.f32.mrf.mxu0
        %8580 = vmatprep.mubr.bf16.mxu0 0
        %8581 = vmatmul.mubr.bf16.gmra.mxu0 %v7818
        %v8582 = vpop.f32.mrf.mxu0
        %v8583 = vadd.f32 0.0, %v8582
        %v8584 = vpop.f32.mrf.mxu0
        %v8585 = vpop.f32.mrf.mxu0
        %v8586 = vadd.f32 0.0, %v8585
        %v8587 = vpop.f32.mrf.mxu0
        %8588 = vmatprep.mubr.bf16.mxu0 0
        %8589 = vmatmul.mubr.bf16.gmra.mxu0 %v8431
        %v8590 = vpop.f32.mrf.mxu0
        %v8591 = vadd.f32 0.0, %v8590
        %v8592 = vpop.f32.mrf.mxu0
        %v8593 = vpop.f32.mrf.mxu0
        %v8594 = vadd.f32 0.0, %v8593
        %v8595 = vpop.f32.mrf.mxu0
        %8596 = vdwg.mxu0
        %v8597 = vadd.f32 %v8393, %v8471
        %v8598 = vadd.f32 %v8394, %v8474
        %v8599 = vadd.f32 %v8395, %v8479
        %v8600 = vadd.f32 %v8396, %v8482
        %v8601 = vadd.f32 %v8397, %v8487
        %v8602 = vadd.f32 %v8398, %v8490
        %v8603 = vadd.f32 %v8399, %v8495
        %v8604 = vadd.f32 %v8400, %v8498
        %v8605 = vadd.f32 %v8401, %v8503
        %v8606 = vadd.f32 %v8402, %v8506
        %v8607 = vadd.f32 %v8403, %v8511
        %v8608 = vadd.f32 %v8404, %v8514
        %v8609 = vadd.f32 %v8405, %v8519
        %v8610 = vadd.f32 %v8406, %v8522
        %v8611 = vadd.f32 %v8407, %v8527
        %v8612 = vadd.f32 %v8408, %v8530
        %v8613 = vadd.f32 %v8409, %v8535
        %v8614 = vadd.f32 %v8410, %v8538
        %v8615 = vadd.f32 %v8411, %v8543
        %v8616 = vadd.f32 %v8412, %v8546
        %v8617 = vadd.f32 %v8413, %v8551
        %v8618 = vadd.f32 %v8414, %v8554
        %v8619 = vadd.f32 %v8415, %v8559
        %v8620 = vadd.f32 %v8416, %v8562
        %v8621 = vadd.f32 %v8417, %v8567
        %v8622 = vadd.f32 %v8418, %v8570
        %v8623 = vadd.f32 %v8419, %v8575
        %v8624 = vadd.f32 %v8420, %v8578
        %v8625 = vadd.f32 %v8421, %v8583
        %v8626 = vadd.f32 %v8422, %v8586
        %v8627 = vadd.f32 %v8423, %v8591
        %v8628 = vadd.f32 %v8424, %v8594
        %v8630 = vsel %vm1597, %v6852, 0
        %8632 = vmatprep.subr.bf16.mxu0 0
        %8633 = vmatpush1.bf16.msra.mxu0 0
        %8634 = vmatprep.subr.bf16.mxu0 0
        %8635 = vmatpush1.bf16.msra.mxu0 0
        %8636 = vmatprep.subr.bf16.mxu0 0
        %8637 = vmatpush1.bf16.msra.mxu0 0
        %8638 = vmatprep.subr.bf16.mxu0 0
        %8639 = vmatpush1.bf16.msra.mxu0 0
        %8640 = vmatprep.subr.bf16.mxu0 0
        %8641 = vmatpush1.bf16.msra.mxu0 0
        %8642 = vmatprep.subr.bf16.mxu0 0
        %8643 = vmatpush1.bf16.msra.mxu0 0
        %8644 = vmatprep.subr.bf16.mxu0 0
        %8645 = vmatpush1.bf16.msra.mxu0 0
        %8646 = vmatprep.subr.bf16.mxu0 0
        %8647 = vmatpush1.bf16.msra.mxu0 %v8630
        %8648 = vmatprep.subr.bf16.mxu0 0
        %8649 = vmatpush2.bf16.msra.mxu0 0
        %8650 = vmatprep.subr.bf16.mxu0 0
        %8651 = vmatpush2.bf16.msra.mxu0 0
        %8652 = vmatprep.subr.bf16.mxu0 0
        %8653 = vmatpush2.bf16.msra.mxu0 0
        %8654 = vmatprep.subr.bf16.mxu0 0
        %8655 = vmatpush2.bf16.msra.mxu0 0
        %8656 = vmatprep.subr.bf16.mxu0 0
        %8657 = vmatpush2.bf16.msra.mxu0 0
        %8658 = vmatprep.subr.bf16.mxu0 0
        %8659 = vmatpush2.bf16.msra.mxu0 0
        %8660 = vmatprep.subr.bf16.mxu0 0
        %8661 = vmatpush2.bf16.msra.mxu0 0
        %8662 = vmatprep.subr.bf16.mxu0 0
        %8663 = vmatpush2.bf16.msra.mxu0 0
        %8664 = vmatprep.mubr.bf16.mxu0 0
        %8665 = vmatmul.mubr.bf16.gmra.mxu0 %v7053
        %v8666 = vpop.f32.mrf.mxu0
        %v8667 = vadd.f32 0.0, %v8666
        %v8668 = vpop.f32.mrf.mxu0
        %v8669 = vpop.f32.mrf.mxu0
        %v8670 = vadd.f32 0.0, %v8669
        %v8671 = vpop.f32.mrf.mxu0
        %8672 = vmatprep.mubr.bf16.mxu0 0
        %8673 = vmatmul.mubr.bf16.gmra.mxu0 %v7056
        %v8674 = vpop.f32.mrf.mxu0
        %v8675 = vadd.f32 0.0, %v8674
        %v8676 = vpop.f32.mrf.mxu0
        %v8677 = vpop.f32.mrf.mxu0
        %v8678 = vadd.f32 0.0, %v8677
        %v8679 = vpop.f32.mrf.mxu0
        %8680 = vmatprep.mubr.bf16.mxu0 0
        %8681 = vmatmul.mubr.bf16.gmra.mxu0 %v7059
        %v8682 = vpop.f32.mrf.mxu0
        %v8683 = vadd.f32 0.0, %v8682
        %v8684 = vpop.f32.mrf.mxu0
        %v8685 = vpop.f32.mrf.mxu0
        %v8686 = vadd.f32 0.0, %v8685
        %v8687 = vpop.f32.mrf.mxu0
        %8688 = vmatprep.mubr.bf16.mxu0 0
        %8689 = vmatmul.mubr.bf16.gmra.mxu0 %v7062
        %v8690 = vpop.f32.mrf.mxu0
        %v8691 = vadd.f32 0.0, %v8690
        %v8692 = vpop.f32.mrf.mxu0
        %v8693 = vpop.f32.mrf.mxu0
        %v8694 = vadd.f32 0.0, %v8693
        %v8695 = vpop.f32.mrf.mxu0
        %8696 = vmatprep.mubr.bf16.mxu0 0
        %8697 = vmatmul.mubr.bf16.gmra.mxu0 %v7065
        %v8698 = vpop.f32.mrf.mxu0
        %v8699 = vadd.f32 0.0, %v8698
        %v8700 = vpop.f32.mrf.mxu0
        %v8701 = vpop.f32.mrf.mxu0
        %v8702 = vadd.f32 0.0, %v8701
        %v8703 = vpop.f32.mrf.mxu0
        %8704 = vmatprep.mubr.bf16.mxu0 0
        %8705 = vmatmul.mubr.bf16.gmra.mxu0 %v7068
        %v8706 = vpop.f32.mrf.mxu0
        %v8707 = vadd.f32 0.0, %v8706
        %v8708 = vpop.f32.mrf.mxu0
        %v8709 = vpop.f32.mrf.mxu0
        %v8710 = vadd.f32 0.0, %v8709
        %v8711 = vpop.f32.mrf.mxu0
        %8712 = vmatprep.mubr.bf16.mxu0 0
        %8713 = vmatmul.mubr.bf16.gmra.mxu0 %v7071
        %v8714 = vpop.f32.mrf.mxu0
        %v8715 = vadd.f32 0.0, %v8714
        %v8716 = vpop.f32.mrf.mxu0
        %v8717 = vpop.f32.mrf.mxu0
        %v8718 = vadd.f32 0.0, %v8717
        %v8719 = vpop.f32.mrf.mxu0
        %8720 = vmatprep.mubr.bf16.mxu0 0
        %8721 = vmatmul.mubr.bf16.gmra.mxu0 %v7074
        %v8722 = vpop.f32.mrf.mxu0
        %v8723 = vadd.f32 0.0, %v8722
        %v8724 = vpop.f32.mrf.mxu0
        %v8725 = vpop.f32.mrf.mxu0
        %v8726 = vadd.f32 0.0, %v8725
        %v8727 = vpop.f32.mrf.mxu0
        %8728 = vmatprep.mubr.bf16.mxu0 0
        %8729 = vmatmul.mubr.bf16.gmra.mxu0 %v7077
        %v8730 = vpop.f32.mrf.mxu0
        %v8731 = vadd.f32 0.0, %v8730
        %v8732 = vpop.f32.mrf.mxu0
        %v8733 = vpop.f32.mrf.mxu0
        %v8734 = vadd.f32 0.0, %v8733
        %v8735 = vpop.f32.mrf.mxu0
        %8736 = vmatprep.mubr.bf16.mxu0 0
        %8737 = vmatmul.mubr.bf16.gmra.mxu0 %v7080
        %v8738 = vpop.f32.mrf.mxu0
        %v8739 = vadd.f32 0.0, %v8738
        %v8740 = vpop.f32.mrf.mxu0
        %v8741 = vpop.f32.mrf.mxu0
        %v8742 = vadd.f32 0.0, %v8741
        %v8743 = vpop.f32.mrf.mxu0
        %8744 = vmatprep.mubr.bf16.mxu0 0
        %8745 = vmatmul.mubr.bf16.gmra.mxu0 %v7083
        %v8746 = vpop.f32.mrf.mxu0
        %v8747 = vadd.f32 0.0, %v8746
        %v8748 = vpop.f32.mrf.mxu0
        %v8749 = vpop.f32.mrf.mxu0
        %v8750 = vadd.f32 0.0, %v8749
        %v8751 = vpop.f32.mrf.mxu0
        %8752 = vmatprep.mubr.bf16.mxu0 0
        %8753 = vmatmul.mubr.bf16.gmra.mxu0 %v7086
        %v8754 = vpop.f32.mrf.mxu0
        %v8755 = vadd.f32 0.0, %v8754
        %v8756 = vpop.f32.mrf.mxu0
        %v8757 = vpop.f32.mrf.mxu0
        %v8758 = vadd.f32 0.0, %v8757
        %v8759 = vpop.f32.mrf.mxu0
        %8760 = vmatprep.mubr.bf16.mxu0 0
        %8761 = vmatmul.mubr.bf16.gmra.mxu0 %v7089
        %v8762 = vpop.f32.mrf.mxu0
        %v8763 = vadd.f32 0.0, %v8762
        %v8764 = vpop.f32.mrf.mxu0
        %v8765 = vpop.f32.mrf.mxu0
        %v8766 = vadd.f32 0.0, %v8765
        %v8767 = vpop.f32.mrf.mxu0
        %8768 = vmatprep.mubr.bf16.mxu0 0
        %8769 = vmatmul.mubr.bf16.gmra.mxu0 %v7092
        %v8770 = vpop.f32.mrf.mxu0
        %v8771 = vadd.f32 0.0, %v8770
        %v8772 = vpop.f32.mrf.mxu0
        %v8773 = vpop.f32.mrf.mxu0
        %v8774 = vadd.f32 0.0, %v8773
        %v8775 = vpop.f32.mrf.mxu0
        %8776 = vmatprep.mubr.bf16.mxu0 0
        %8777 = vmatmul.mubr.bf16.gmra.mxu0 %v8017
        %v8778 = vpop.f32.mrf.mxu0
        %v8779 = vadd.f32 0.0, %v8778
        %v8780 = vpop.f32.mrf.mxu0
        %v8781 = vpop.f32.mrf.mxu0
        %v8782 = vadd.f32 0.0, %v8781
        %v8783 = vpop.f32.mrf.mxu0
        %8784 = vmatprep.mubr.bf16.mxu0 0
        %8785 = vmatmul.mubr.bf16.gmra.mxu0 %v7047
        %v8786 = vpop.f32.mrf.mxu0
        %v8787 = vadd.f32 0.0, %v8786
        %v8788 = vpop.f32.mrf.mxu0
        %v8789 = vpop.f32.mrf.mxu0
        %v8790 = vadd.f32 0.0, %v8789
        %v8791 = vpop.f32.mrf.mxu0
        %8792 = vdwg.mxu0
        %v8793 = vadd.f32 %v8597, %v8667
        %v8794 = vadd.f32 %v8598, %v8670
        %v8795 = vadd.f32 %v8599, %v8675
        %v8796 = vadd.f32 %v8600, %v8678
        %v8797 = vadd.f32 %v8601, %v8683
        %v8798 = vadd.f32 %v8602, %v8686
        %v8799 = vadd.f32 %v8603, %v8691
        %v8800 = vadd.f32 %v8604, %v8694
        %v8801 = vadd.f32 %v8605, %v8699
        %v8802 = vadd.f32 %v8606, %v8702
        %v8803 = vadd.f32 %v8607, %v8707
        %v8804 = vadd.f32 %v8608, %v8710
        %v8805 = vadd.f32 %v8609, %v8715
        %v8806 = vadd.f32 %v8610, %v8718
        %v8807 = vadd.f32 %v8611, %v8723
        %v8808 = vadd.f32 %v8612, %v8726
        %v8809 = vadd.f32 %v8613, %v8731
        %v8810 = vadd.f32 %v8614, %v8734
        %v8811 = vadd.f32 %v8615, %v8739
        %v8812 = vadd.f32 %v8616, %v8742
        %v8813 = vadd.f32 %v8617, %v8747
        %v8814 = vadd.f32 %v8618, %v8750
        %v8815 = vadd.f32 %v8619, %v8755
        %v8816 = vadd.f32 %v8620, %v8758
        %v8817 = vadd.f32 %v8621, %v8763
        %v8818 = vadd.f32 %v8622, %v8766
        %v8819 = vadd.f32 %v8623, %v8771
        %v8820 = vadd.f32 %v8624, %v8774
        %v8821 = vadd.f32 %v8625, %v8779
        %v8822 = vadd.f32 %v8626, %v8782
        %v8823 = vadd.f32 %v8627, %v8787
        %v8824 = vadd.f32 %v8628, %v8790
        %v8826 = vsel %vm1597, %v6853, 0
        %8828 = vmatprep.subr.bf16.mxu0 0
        %8829 = vmatpush1.bf16.msra.mxu0 0
        %8830 = vmatprep.subr.bf16.mxu0 0
        %8831 = vmatpush1.bf16.msra.mxu0 0
        %8832 = vmatprep.subr.bf16.mxu0 0
        %8833 = vmatpush1.bf16.msra.mxu0 0
        %8834 = vmatprep.subr.bf16.mxu0 0
        %8835 = vmatpush1.bf16.msra.mxu0 0
        %8836 = vmatprep.subr.bf16.mxu0 0
        %8837 = vmatpush1.bf16.msra.mxu0 0
        %8838 = vmatprep.subr.bf16.mxu0 0
        %8839 = vmatpush1.bf16.msra.mxu0 0
        %8840 = vmatprep.subr.bf16.mxu0 0
        %8841 = vmatpush1.bf16.msra.mxu0 0
        %8842 = vmatprep.subr.bf16.mxu0 0
        %8843 = vmatpush1.bf16.msra.mxu0 %v8826
        %8844 = vmatprep.subr.bf16.mxu0 0
        %8845 = vmatpush2.bf16.msra.mxu0 0
        %8846 = vmatprep.subr.bf16.mxu0 0
        %8847 = vmatpush2.bf16.msra.mxu0 0
        %8848 = vmatprep.subr.bf16.mxu0 0
        %8849 = vmatpush2.bf16.msra.mxu0 0
        %8850 = vmatprep.subr.bf16.mxu0 0
        %8851 = vmatpush2.bf16.msra.mxu0 0
        %8852 = vmatprep.subr.bf16.mxu0 0
        %8853 = vmatpush2.bf16.msra.mxu0 0
        %8854 = vmatprep.subr.bf16.mxu0 0
        %8855 = vmatpush2.bf16.msra.mxu0 0
        %8856 = vmatprep.subr.bf16.mxu0 0
        %8857 = vmatpush2.bf16.msra.mxu0 0
        %8858 = vmatprep.subr.bf16.mxu0 0
        %8859 = vmatpush2.bf16.msra.mxu0 0
        %8860 = vmatprep.mubr.bf16.mxu0 0
        %8861 = vmatmul.mubr.bf16.gmra.mxu0 %v7461
        %v8862 = vpop.f32.mrf.mxu0
        %v8863 = vadd.f32 0.0, %v8862
        %v8864 = vpop.f32.mrf.mxu0
        %v8865 = vpop.f32.mrf.mxu0
        %v8866 = vadd.f32 0.0, %v8865
        %v8867 = vpop.f32.mrf.mxu0
        %8868 = vmatprep.mubr.bf16.mxu0 0
        %8869 = vmatmul.mubr.bf16.gmra.mxu0 %v7464
        %v8870 = vpop.f32.mrf.mxu0
        %v8871 = vadd.f32 0.0, %v8870
        %v8872 = vpop.f32.mrf.mxu0
        %v8873 = vpop.f32.mrf.mxu0
        %v8874 = vadd.f32 0.0, %v8873
        %v8875 = vpop.f32.mrf.mxu0
        %8876 = vmatprep.mubr.bf16.mxu0 0
        %8877 = vmatmul.mubr.bf16.gmra.mxu0 %v7467
        %v8878 = vpop.f32.mrf.mxu0
        %v8879 = vadd.f32 0.0, %v8878
        %v8880 = vpop.f32.mrf.mxu0
        %v8881 = vpop.f32.mrf.mxu0
        %v8882 = vadd.f32 0.0, %v8881
        %v8883 = vpop.f32.mrf.mxu0
        %8884 = vmatprep.mubr.bf16.mxu0 0
        %8885 = vmatmul.mubr.bf16.gmra.mxu0 %v7470
        %v8886 = vpop.f32.mrf.mxu0
        %v8887 = vadd.f32 0.0, %v8886
        %v8888 = vpop.f32.mrf.mxu0
        %v8889 = vpop.f32.mrf.mxu0
        %v8890 = vadd.f32 0.0, %v8889
        %v8891 = vpop.f32.mrf.mxu0
        %8892 = vmatprep.mubr.bf16.mxu0 0
        %8893 = vmatmul.mubr.bf16.gmra.mxu0 %v7473
        %v8894 = vpop.f32.mrf.mxu0
        %v8895 = vadd.f32 0.0, %v8894
        %v8896 = vpop.f32.mrf.mxu0
        %v8897 = vpop.f32.mrf.mxu0
        %v8898 = vadd.f32 0.0, %v8897
        %v8899 = vpop.f32.mrf.mxu0
        %8900 = vmatprep.mubr.bf16.mxu0 0
        %8901 = vmatmul.mubr.bf16.gmra.mxu0 %v7476
        %v8902 = vpop.f32.mrf.mxu0
        %v8903 = vadd.f32 0.0, %v8902
        %v8904 = vpop.f32.mrf.mxu0
        %v8905 = vpop.f32.mrf.mxu0
        %v8906 = vadd.f32 0.0, %v8905
        %v8907 = vpop.f32.mrf.mxu0
        %8908 = vmatprep.mubr.bf16.mxu0 0
        %8909 = vmatmul.mubr.bf16.gmra.mxu0 %v7479
        %v8910 = vpop.f32.mrf.mxu0
        %v8911 = vadd.f32 0.0, %v8910
        %v8912 = vpop.f32.mrf.mxu0
        %v8913 = vpop.f32.mrf.mxu0
        %v8914 = vadd.f32 0.0, %v8913
        %v8915 = vpop.f32.mrf.mxu0
        %8916 = vmatprep.mubr.bf16.mxu0 0
        %8917 = vmatmul.mubr.bf16.gmra.mxu0 %v7482
        %v8918 = vpop.f32.mrf.mxu0
        %v8919 = vadd.f32 0.0, %v8918
        %v8920 = vpop.f32.mrf.mxu0
        %v8921 = vpop.f32.mrf.mxu0
        %v8922 = vadd.f32 0.0, %v8921
        %v8923 = vpop.f32.mrf.mxu0
        %8924 = vmatprep.mubr.bf16.mxu0 0
        %8925 = vmatmul.mubr.bf16.gmra.mxu0 %v7485
        %v8926 = vpop.f32.mrf.mxu0
        %v8927 = vadd.f32 0.0, %v8926
        %v8928 = vpop.f32.mrf.mxu0
        %v8929 = vpop.f32.mrf.mxu0
        %v8930 = vadd.f32 0.0, %v8929
        %v8931 = vpop.f32.mrf.mxu0
        %8932 = vmatprep.mubr.bf16.mxu0 0
        %8933 = vmatmul.mubr.bf16.gmra.mxu0 %v7488
        %v8934 = vpop.f32.mrf.mxu0
        %v8935 = vadd.f32 0.0, %v8934
        %v8936 = vpop.f32.mrf.mxu0
        %v8937 = vpop.f32.mrf.mxu0
        %v8938 = vadd.f32 0.0, %v8937
        %v8939 = vpop.f32.mrf.mxu0
        %8940 = vmatprep.mubr.bf16.mxu0 0
        %8941 = vmatmul.mubr.bf16.gmra.mxu0 %v7491
        %v8942 = vpop.f32.mrf.mxu0
        %v8943 = vadd.f32 0.0, %v8942
        %v8944 = vpop.f32.mrf.mxu0
        %v8945 = vpop.f32.mrf.mxu0
        %v8946 = vadd.f32 0.0, %v8945
        %v8947 = vpop.f32.mrf.mxu0
        %8948 = vmatprep.mubr.bf16.mxu0 0
        %8949 = vmatmul.mubr.bf16.gmra.mxu0 %v7494
        %v8950 = vpop.f32.mrf.mxu0
        %v8951 = vadd.f32 0.0, %v8950
        %v8952 = vpop.f32.mrf.mxu0
        %v8953 = vpop.f32.mrf.mxu0
        %v8954 = vadd.f32 0.0, %v8953
        %v8955 = vpop.f32.mrf.mxu0
        %8956 = vmatprep.mubr.bf16.mxu0 0
        %8957 = vmatmul.mubr.bf16.gmra.mxu0 %v7497
        %v8958 = vpop.f32.mrf.mxu0
        %v8959 = vadd.f32 0.0, %v8958
        %v8960 = vpop.f32.mrf.mxu0
        %v8961 = vpop.f32.mrf.mxu0
        %v8962 = vadd.f32 0.0, %v8961
        %v8963 = vpop.f32.mrf.mxu0
        %8964 = vmatprep.mubr.bf16.mxu0 0
        %8965 = vmatmul.mubr.bf16.gmra.mxu0 %v7500
        %v8966 = vpop.f32.mrf.mxu0
        %v8967 = vadd.f32 0.0, %v8966
        %v8968 = vpop.f32.mrf.mxu0
        %v8969 = vpop.f32.mrf.mxu0
        %v8970 = vadd.f32 0.0, %v8969
        %v8971 = vpop.f32.mrf.mxu0
        %8972 = vmatprep.mubr.bf16.mxu0 0
        %8973 = vmatmul.mubr.bf16.gmra.mxu0 %v8227
        %v8974 = vpop.f32.mrf.mxu0
        %v8975 = vadd.f32 0.0, %v8974
        %v8976 = vpop.f32.mrf.mxu0
        %v8977 = vpop.f32.mrf.mxu0
        %v8978 = vadd.f32 0.0, %v8977
        %v8979 = vpop.f32.mrf.mxu0
        %8980 = vmatprep.mubr.bf16.mxu0 0
        %8981 = vmatmul.mubr.bf16.gmra.mxu0 %v7455
        %v8982 = vpop.f32.mrf.mxu0
        %v8983 = vadd.f32 0.0, %v8982
        %v8984 = vpop.f32.mrf.mxu0
        %v8985 = vpop.f32.mrf.mxu0
        %v8986 = vadd.f32 0.0, %v8985
        %v8987 = vpop.f32.mrf.mxu0
        %8988 = vdwg.mxu0
        %v8989 = vadd.f32 %v8793, %v8863
        %v8990 = vadd.f32 %v8794, %v8866
        %v8991 = vadd.f32 %v8795, %v8871
        %v8992 = vadd.f32 %v8796, %v8874
        %v8993 = vadd.f32 %v8797, %v8879
        %v8994 = vadd.f32 %v8798, %v8882
        %v8995 = vadd.f32 %v8799, %v8887
        %v8996 = vadd.f32 %v8800, %v8890
        %v8997 = vadd.f32 %v8801, %v8895
        %v8998 = vadd.f32 %v8802, %v8898
        %v8999 = vadd.f32 %v8803, %v8903
        %v9000 = vadd.f32 %v8804, %v8906
        %v9001 = vadd.f32 %v8805, %v8911
        %v9002 = vadd.f32 %v8806, %v8914
        %v9003 = vadd.f32 %v8807, %v8919
        %v9004 = vadd.f32 %v8808, %v8922
        %v9005 = vadd.f32 %v8809, %v8927
        %v9006 = vadd.f32 %v8810, %v8930
        %v9007 = vadd.f32 %v8811, %v8935
        %v9008 = vadd.f32 %v8812, %v8938
        %v9009 = vadd.f32 %v8813, %v8943
        %v9010 = vadd.f32 %v8814, %v8946
        %v9011 = vadd.f32 %v8815, %v8951
        %v9012 = vadd.f32 %v8816, %v8954
        %v9013 = vadd.f32 %v8817, %v8959
        %v9014 = vadd.f32 %v8818, %v8962
        %v9015 = vadd.f32 %v8819, %v8967
        %v9016 = vadd.f32 %v8820, %v8970
        %v9017 = vadd.f32 %v8821, %v8975
        %v9018 = vadd.f32 %v8822, %v8978
        %v9019 = vadd.f32 %v8823, %v8983
        %v9020 = vadd.f32 %v8824, %v8986
        %v9022 = vsel %vm1597, %v6854, 0
        %9024 = vmatprep.subr.bf16.mxu0 0
        %9025 = vmatpush1.bf16.msra.mxu0 0
        %9026 = vmatprep.subr.bf16.mxu0 0
        %9027 = vmatpush1.bf16.msra.mxu0 0
        %9028 = vmatprep.subr.bf16.mxu0 0
        %9029 = vmatpush1.bf16.msra.mxu0 0
        %9030 = vmatprep.subr.bf16.mxu0 0
        %9031 = vmatpush1.bf16.msra.mxu0 0
        %9032 = vmatprep.subr.bf16.mxu0 0
        %9033 = vmatpush1.bf16.msra.mxu0 0
        %9034 = vmatprep.subr.bf16.mxu0 0
        %9035 = vmatpush1.bf16.msra.mxu0 0
        %9036 = vmatprep.subr.bf16.mxu0 0
        %9037 = vmatpush1.bf16.msra.mxu0 0
        %9038 = vmatprep.subr.bf16.mxu0 0
        %9039 = vmatpush1.bf16.msra.mxu0 %v9022
        %9040 = vmatprep.subr.bf16.mxu0 0
        %9041 = vmatpush2.bf16.msra.mxu0 0
        %9042 = vmatprep.subr.bf16.mxu0 0
        %9043 = vmatpush2.bf16.msra.mxu0 0
        %9044 = vmatprep.subr.bf16.mxu0 0
        %9045 = vmatpush2.bf16.msra.mxu0 0
        %9046 = vmatprep.subr.bf16.mxu0 0
        %9047 = vmatpush2.bf16.msra.mxu0 0
        %9048 = vmatprep.subr.bf16.mxu0 0
        %9049 = vmatpush2.bf16.msra.mxu0 0
        %9050 = vmatprep.subr.bf16.mxu0 0
        %9051 = vmatpush2.bf16.msra.mxu0 0
        %9052 = vmatprep.subr.bf16.mxu0 0
        %9053 = vmatpush2.bf16.msra.mxu0 0
        %9054 = vmatprep.subr.bf16.mxu0 0
        %9055 = vmatpush2.bf16.msra.mxu0 0
        %9056 = vmatprep.mubr.bf16.mxu0 0
        %9057 = vmatmul.mubr.bf16.gmra.mxu0 %v7779
        %v9058 = vpop.f32.mrf.mxu0
        %v9059 = vadd.f32 0.0, %v9058
        %v9060 = vpop.f32.mrf.mxu0
        %v9061 = vpop.f32.mrf.mxu0
        %v9062 = vadd.f32 0.0, %v9061
        %v9063 = vpop.f32.mrf.mxu0
        %9064 = vmatprep.mubr.bf16.mxu0 0
        %9065 = vmatmul.mubr.bf16.gmra.mxu0 %v7782
        %v9066 = vpop.f32.mrf.mxu0
        %v9067 = vadd.f32 0.0, %v9066
        %v9068 = vpop.f32.mrf.mxu0
        %v9069 = vpop.f32.mrf.mxu0
        %v9070 = vadd.f32 0.0, %v9069
        %v9071 = vpop.f32.mrf.mxu0
        %9072 = vmatprep.mubr.bf16.mxu0 0
        %9073 = vmatmul.mubr.bf16.gmra.mxu0 %v7785
        %v9074 = vpop.f32.mrf.mxu0
        %v9075 = vadd.f32 0.0, %v9074
        %v9076 = vpop.f32.mrf.mxu0
        %v9077 = vpop.f32.mrf.mxu0
        %v9078 = vadd.f32 0.0, %v9077
        %v9079 = vpop.f32.mrf.mxu0
        %9080 = vmatprep.mubr.bf16.mxu0 0
        %9081 = vmatmul.mubr.bf16.gmra.mxu0 %v7788
        %v9082 = vpop.f32.mrf.mxu0
        %v9083 = vadd.f32 0.0, %v9082
        %v9084 = vpop.f32.mrf.mxu0
        %v9085 = vpop.f32.mrf.mxu0
        %v9086 = vadd.f32 0.0, %v9085
        %v9087 = vpop.f32.mrf.mxu0
        %9088 = vmatprep.mubr.bf16.mxu0 0
        %9089 = vmatmul.mubr.bf16.gmra.mxu0 %v7791
        %v9090 = vpop.f32.mrf.mxu0
        %v9091 = vadd.f32 0.0, %v9090
        %v9092 = vpop.f32.mrf.mxu0
        %v9093 = vpop.f32.mrf.mxu0
        %v9094 = vadd.f32 0.0, %v9093
        %v9095 = vpop.f32.mrf.mxu0
        %9096 = vmatprep.mubr.bf16.mxu0 0
        %9097 = vmatmul.mubr.bf16.gmra.mxu0 %v7794
        %v9098 = vpop.f32.mrf.mxu0
        %v9099 = vadd.f32 0.0, %v9098
        %v9100 = vpop.f32.mrf.mxu0
        %v9101 = vpop.f32.mrf.mxu0
        %v9102 = vadd.f32 0.0, %v9101
        %v9103 = vpop.f32.mrf.mxu0
        %9104 = vmatprep.mubr.bf16.mxu0 0
        %9105 = vmatmul.mubr.bf16.gmra.mxu0 %v7797
        %v9106 = vpop.f32.mrf.mxu0
        %v9107 = vadd.f32 0.0, %v9106
        %v9108 = vpop.f32.mrf.mxu0
        %v9109 = vpop.f32.mrf.mxu0
        %v9110 = vadd.f32 0.0, %v9109
        %v9111 = vpop.f32.mrf.mxu0
        %9112 = vmatprep.mubr.bf16.mxu0 0
        %9113 = vmatmul.mubr.bf16.gmra.mxu0 %v7800
        %v9114 = vpop.f32.mrf.mxu0
        %v9115 = vadd.f32 0.0, %v9114
        %v9116 = vpop.f32.mrf.mxu0
        %v9117 = vpop.f32.mrf.mxu0
        %v9118 = vadd.f32 0.0, %v9117
        %v9119 = vpop.f32.mrf.mxu0
        %9120 = vmatprep.mubr.bf16.mxu0 0
        %9121 = vmatmul.mubr.bf16.gmra.mxu0 %v7803
        %v9122 = vpop.f32.mrf.mxu0
        %v9123 = vadd.f32 0.0, %v9122
        %v9124 = vpop.f32.mrf.mxu0
        %v9125 = vpop.f32.mrf.mxu0
        %v9126 = vadd.f32 0.0, %v9125
        %v9127 = vpop.f32.mrf.mxu0
        %9128 = vmatprep.mubr.bf16.mxu0 0
        %9129 = vmatmul.mubr.bf16.gmra.mxu0 %v7806
        %v9130 = vpop.f32.mrf.mxu0
        %v9131 = vadd.f32 0.0, %v9130
        %v9132 = vpop.f32.mrf.mxu0
        %v9133 = vpop.f32.mrf.mxu0
        %v9134 = vadd.f32 0.0, %v9133
        %v9135 = vpop.f32.mrf.mxu0
        %9136 = vmatprep.mubr.bf16.mxu0 0
        %9137 = vmatmul.mubr.bf16.gmra.mxu0 %v7809
        %v9138 = vpop.f32.mrf.mxu0
        %v9139 = vadd.f32 0.0, %v9138
        %v9140 = vpop.f32.mrf.mxu0
        %v9141 = vpop.f32.mrf.mxu0
        %v9142 = vadd.f32 0.0, %v9141
        %v9143 = vpop.f32.mrf.mxu0
        %9144 = vmatprep.mubr.bf16.mxu0 0
        %9145 = vmatmul.mubr.bf16.gmra.mxu0 %v7812
        %v9146 = vpop.f32.mrf.mxu0
        %v9147 = vadd.f32 0.0, %v9146
        %v9148 = vpop.f32.mrf.mxu0
        %v9149 = vpop.f32.mrf.mxu0
        %v9150 = vadd.f32 0.0, %v9149
        %v9151 = vpop.f32.mrf.mxu0
        %9152 = vmatprep.mubr.bf16.mxu0 0
        %9153 = vmatmul.mubr.bf16.gmra.mxu0 %v7815
        %v9154 = vpop.f32.mrf.mxu0
        %v9155 = vadd.f32 0.0, %v9154
        %v9156 = vpop.f32.mrf.mxu0
        %v9157 = vpop.f32.mrf.mxu0
        %v9158 = vadd.f32 0.0, %v9157
        %v9159 = vpop.f32.mrf.mxu0
        %9160 = vmatprep.mubr.bf16.mxu0 0
        %9161 = vmatmul.mubr.bf16.gmra.mxu0 %v7818
        %v9162 = vpop.f32.mrf.mxu0
        %v9163 = vadd.f32 0.0, %v9162
        %v9164 = vpop.f32.mrf.mxu0
        %v9165 = vpop.f32.mrf.mxu0
        %v9166 = vadd.f32 0.0, %v9165
        %v9167 = vpop.f32.mrf.mxu0
        %9168 = vmatprep.mubr.bf16.mxu0 0
        %9169 = vmatmul.mubr.bf16.gmra.mxu0 %v8431
        %v9170 = vpop.f32.mrf.mxu0
        %v9171 = vadd.f32 0.0, %v9170
        %v9172 = vpop.f32.mrf.mxu0
        %v9173 = vpop.f32.mrf.mxu0
        %v9174 = vadd.f32 0.0, %v9173
        %v9175 = vpop.f32.mrf.mxu0
        %9176 = vmatprep.mubr.bf16.mxu0 0
        %9177 = vmatmul.mubr.bf16.gmra.mxu0 %v7773
        %v9178 = vpop.f32.mrf.mxu0
        %v9179 = vadd.f32 0.0, %v9178
        %v9180 = vpop.f32.mrf.mxu0
        %v9181 = vpop.f32.mrf.mxu0
        %v9182 = vadd.f32 0.0, %v9181
        %v9183 = vpop.f32.mrf.mxu0
        %9184 = vdwg.mxu0
        %v9185 = vadd.f32 %v8989, %v9059
        %v9186 = vadd.f32 %v8990, %v9062
        %v9187 = vadd.f32 %v8991, %v9067
        %v9188 = vadd.f32 %v8992, %v9070
        %v9189 = vadd.f32 %v8993, %v9075
        %v9190 = vadd.f32 %v8994, %v9078
        %v9191 = vadd.f32 %v8995, %v9083
        %v9192 = vadd.f32 %v8996, %v9086
        %v9193 = vadd.f32 %v8997, %v9091
        %v9194 = vadd.f32 %v8998, %v9094
        %v9195 = vadd.f32 %v8999, %v9099
        %v9196 = vadd.f32 %v9000, %v9102
        %v9197 = vadd.f32 %v9001, %v9107
        %v9198 = vadd.f32 %v9002, %v9110
        %v9199 = vadd.f32 %v9003, %v9115
        %v9200 = vadd.f32 %v9004, %v9118
        %v9201 = vadd.f32 %v9005, %v9123
        %v9202 = vadd.f32 %v9006, %v9126
        %v9203 = vadd.f32 %v9007, %v9131
        %v9204 = vadd.f32 %v9008, %v9134
        %v9205 = vadd.f32 %v9009, %v9139
        %v9206 = vadd.f32 %v9010, %v9142
        %v9207 = vadd.f32 %v9011, %v9147
        %v9208 = vadd.f32 %v9012, %v9150
        %v9209 = vadd.f32 %v9013, %v9155
        %v9210 = vadd.f32 %v9014, %v9158
        %v9211 = vadd.f32 %v9015, %v9163
        %v9212 = vadd.f32 %v9016, %v9166
        %v9213 = vadd.f32 %v9017, %v9171
        %v9214 = vadd.f32 %v9018, %v9174
        %v9215 = vadd.f32 %v9019, %v9179
        %v9216 = vadd.f32 %v9020, %v9182
        %v9217 = vld [vmem:[%s7] sm:$0x1]
        %v9219 = vlaneseq
        %v9220 = vshrl.u32 %v9219, 7
        %v9221 = vsub.s32 0, %v9220
        %v9222 = vrot.slane %v9217, %v9221
        %v9224 = vadd.f32 %v9185, %v9222
        %v9225 = vadd.f32 %v9186, %v9222
        %v9226 = vadd.f32 %v9187, %v9222
        %v9227 = vadd.f32 %v9188, %v9222
        %v9228 = vadd.f32 %v9189, %v9222
        %v9229 = vadd.f32 %v9190, %v9222
        %v9230 = vadd.f32 %v9191, %v9222
        %v9231 = vadd.f32 %v9192, %v9222
        %v9232 = vadd.f32 %v9193, %v9222
        %v9233 = vadd.f32 %v9194, %v9222
        %v9234 = vadd.f32 %v9195, %v9222
        %v9235 = vadd.f32 %v9196, %v9222
        %v9236 = vadd.f32 %v9197, %v9222
        %v9237 = vadd.f32 %v9198, %v9222
        %v9238 = vadd.f32 %v9199, %v9222
        %v9239 = vadd.f32 %v9200, %v9222
        %v9240 = vadd.f32 %v9201, %v9222
        %v9241 = vadd.f32 %v9202, %v9222
        %v9242 = vadd.f32 %v9203, %v9222
        %v9243 = vadd.f32 %v9204, %v9222
        %v9244 = vadd.f32 %v9205, %v9222
        %v9245 = vadd.f32 %v9206, %v9222
        %v9246 = vadd.f32 %v9207, %v9222
        %v9247 = vadd.f32 %v9208, %v9222
        %v9248 = vadd.f32 %v9209, %v9222
        %v9249 = vadd.f32 %v9210, %v9222
        %v9250 = vadd.f32 %v9211, %v9222
        %v9251 = vadd.f32 %v9212, %v9222
        %v9252 = vadd.f32 %v9213, %v9222
        %v9253 = vadd.f32 %v9214, %v9222
        %v9254 = vadd.f32 %v9215, %v9222
        %v9255 = vadd.f32 %v9216, %v9222
        %v9256 = vmax.f32 %v9224, 0.0
        %v9257 = vmax.f32 %v9225, 0.0
        %v9258 = vmax.f32 %v9226, 0.0
        %v9259 = vmax.f32 %v9227, 0.0
        %v9260 = vmax.f32 %v9228, 0.0
        %v9261 = vmax.f32 %v9229, 0.0
        %v9262 = vmax.f32 %v9230, 0.0
        %v9263 = vmax.f32 %v9231, 0.0
        %v9264 = vmax.f32 %v9232, 0.0
        %v9265 = vmax.f32 %v9233, 0.0
        %v9266 = vmax.f32 %v9234, 0.0
        %v9267 = vmax.f32 %v9235, 0.0
        %v9268 = vmax.f32 %v9236, 0.0
        %v9269 = vmax.f32 %v9237, 0.0
        %v9270 = vmax.f32 %v9238, 0.0
        %v9271 = vmax.f32 %v9239, 0.0
        %v9272 = vmax.f32 %v9240, 0.0
        %v9273 = vmax.f32 %v9241, 0.0
        %v9274 = vmax.f32 %v9242, 0.0
        %v9275 = vmax.f32 %v9243, 0.0
        %v9276 = vmax.f32 %v9244, 0.0
        %v9277 = vmax.f32 %v9245, 0.0
        %v9278 = vmax.f32 %v9246, 0.0
        %v9279 = vmax.f32 %v9247, 0.0
        %v9280 = vmax.f32 %v9248, 0.0
        %v9281 = vmax.f32 %v9249, 0.0
        %v9282 = vmax.f32 %v9250, 0.0
        %v9283 = vmax.f32 %v9251, 0.0
        %v9284 = vmax.f32 %v9252, 0.0
        %v9285 = vmax.f32 %v9253, 0.0
        %v9286 = vmax.f32 %v9254, 0.0
        %v9287 = vmax.f32 %v9255, 0.0
        %v9288 = vld [vmem:[%s8] sm:$0xff]
        %v9289 = vld [vmem:[%s9] sm:$0x1]
        %v9291 = vlaneseq
        %v9292 = vshrl.u32 %v9291, 7
        %v9293 = vsub.s32 0, %v9292
        %v9294 = vrot.slane %v9289, %v9293
        %v9297 = vsel %vm1520, %v9256, 0
        %v9300 = vsel %vm1520, %v9257, 0
        %v9303 = vsel %vm1520, %v9258, 0
        %v9306 = vsel %vm1520, %v9259, 0
        %v9309 = vsel %vm1520, %v9260, 0
        %v9312 = vsel %vm1520, %v9261, 0
        %v9315 = vsel %vm1520, %v9262, 0
        %v9318 = vsel %vm1520, %v9263, 0
        %v9321 = vsel %vm1520, %v9264, 0
        %v9324 = vsel %vm1520, %v9265, 0
        %v9327 = vsel %vm1520, %v9266, 0
        %v9330 = vsel %vm1520, %v9267, 0
        %v9333 = vsel %vm1520, %v9268, 0
        %v9336 = vsel %vm1520, %v9269, 0
        %v9339 = vsel %vm1520, %v9270, 0
        %v9342 = vsel %vm1520, %v9271, 0
        %v9345 = vsel %vm1520, %v9272, 0
        %v9348 = vsel %vm1520, %v9273, 0
        %v9351 = vsel %vm1520, %v9274, 0
        %v9354 = vsel %vm1520, %v9275, 0
        %v9357 = vsel %vm1520, %v9276, 0
        %v9360 = vsel %vm1520, %v9277, 0
        %v9363 = vsel %vm1520, %v9278, 0
        %v9366 = vsel %vm1520, %v9279, 0
        %v9369 = vsel %vm1520, %v9280, 0
        %v9372 = vsel %vm1520, %v9281, 0
        %v9375 = vsel %vm1520, %v9282, 0
        %v9378 = vsel %vm1520, %v9283, 0
        %v9381 = vsel %vm1520, %v9284, 0
        %v9384 = vsel %vm1520, %v9285, 0
        %v9387 = vsel %vm1520, %v9286, 0
        %v9390 = vsel %vm1520, %v9287, 0
        %9392 = vmatprep.subr.mxu0 0.0
        %9393 = vmatpush1.msra.mxu0 0.0
        %9394 = vmatprep.subr.mxu0 0.0
        %9395 = vmatpush1.msra.mxu0 0.0
        %9396 = vmatprep.subr.mxu0 0.0
        %9397 = vmatpush1.msra.mxu0 0.0
        %9398 = vmatprep.subr.mxu0 0.0
        %9399 = vmatpush1.msra.mxu0 0.0
        %9400 = vmatprep.subr.mxu0 0.0
        %9401 = vmatpush1.msra.mxu0 0.0
        %9402 = vmatprep.subr.mxu0 0.0
        %9403 = vmatpush1.msra.mxu0 0.0
        %9404 = vmatprep.subr.mxu0 0.0
        %9405 = vmatpush1.msra.mxu0 0.0
        %9406 = vmatprep.subr.mxu0 0.0
        %9407 = vmatpush1.msra.mxu0 0.0
        %9408 = vmatprep.subr.mxu0 0.0
        %9409 = vmatpush1.msra.mxu0 0.0
        %9410 = vmatprep.subr.mxu0 0.0
        %9411 = vmatpush1.msra.mxu0 0.0
        %9412 = vmatprep.subr.mxu0 0.0
        %9413 = vmatpush1.msra.mxu0 0.0
        %9414 = vmatprep.subr.mxu0 0.0
        %9415 = vmatpush1.msra.mxu0 0.0
        %9416 = vmatprep.subr.mxu0 0.0
        %9417 = vmatpush1.msra.mxu0 0.0
        %9418 = vmatprep.subr.mxu0 0.0
        %9419 = vmatpush1.msra.mxu0 0.0
        %9420 = vmatprep.subr.mxu0 0.0
        %9421 = vmatpush1.msra.mxu0 0.0
        %9422 = vmatprep.subr.mxu0 0.0
        %9423 = vmatpush1.msra.mxu0 %v9288
        %9424 = vmatprep.subr.mxu0 0.0
        %9425 = vmatpush2.msra.mxu0 0.0
        %9426 = vmatprep.subr.mxu0 0.0
        %9427 = vmatpush2.msra.mxu0 0.0
        %9428 = vmatprep.subr.mxu0 0.0
        %9429 = vmatpush2.msra.mxu0 0.0
        %9430 = vmatprep.subr.mxu0 0.0
        %9431 = vmatpush2.msra.mxu0 0.0
        %9432 = vmatprep.subr.mxu0 0.0
        %9433 = vmatpush2.msra.mxu0 0.0
        %9434 = vmatprep.subr.mxu0 0.0
        %9435 = vmatpush2.msra.mxu0 0.0
        %9436 = vmatprep.subr.mxu0 0.0
        %9437 = vmatpush2.msra.mxu0 0.0
        %9438 = vmatprep.subr.mxu0 0.0
        %9439 = vmatpush2.msra.mxu0 0.0
        %9440 = vmatprep.subr.mxu0 0.0
        %9441 = vmatpush2.msra.mxu0 0.0
        %9442 = vmatprep.subr.mxu0 0.0
        %9443 = vmatpush2.msra.mxu0 0.0
        %9444 = vmatprep.subr.mxu0 0.0
        %9445 = vmatpush2.msra.mxu0 0.0
        %9446 = vmatprep.subr.mxu0 0.0
        %9447 = vmatpush2.msra.mxu0 0.0
        %9448 = vmatprep.subr.mxu0 0.0
        %9449 = vmatpush2.msra.mxu0 0.0
        %9450 = vmatprep.subr.mxu0 0.0
        %9451 = vmatpush2.msra.mxu0 0.0
        %9452 = vmatprep.subr.mxu0 0.0
        %9453 = vmatpush2.msra.mxu0 0.0
        %9454 = vmatprep.subr.mxu0 0.0
        %9455 = vmatpush2.msra.mxu0 0.0
        %9456 = vmatprep.mubr.f32.mxu0 0.0
        %9457 = vmatmul.mubr.f32.gmra.mxu0 %v9297
        %v9458 = vpop.f32.mrf.mxu0
        %v9459 = vadd.f32 %v9294, %v9458
        %v9460 = vpop.f32.mrf.mxu0
        %9461 = vmatprep.mubr.f32.mxu0 0.0
        %9462 = vmatmul.mubr.f32.gmra.mxu0 %v9300
        %v9463 = vpop.f32.mrf.mxu0
        %v9464 = vadd.f32 %v9294, %v9463
        %v9465 = vpop.f32.mrf.mxu0
        %9466 = vmatprep.mubr.f32.mxu0 0.0
        %9467 = vmatmul.mubr.f32.gmra.mxu0 %v9303
        %v9468 = vpop.f32.mrf.mxu0
        %v9469 = vadd.f32 %v9294, %v9468
        %v9470 = vpop.f32.mrf.mxu0
        %9471 = vmatprep.mubr.f32.mxu0 0.0
        %9472 = vmatmul.mubr.f32.gmra.mxu0 %v9306
        %v9473 = vpop.f32.mrf.mxu0
        %v9474 = vadd.f32 %v9294, %v9473
        %v9475 = vpop.f32.mrf.mxu0
        %9476 = vmatprep.mubr.f32.mxu0 0.0
        %9477 = vmatmul.mubr.f32.gmra.mxu0 %v9309
        %v9478 = vpop.f32.mrf.mxu0
        %v9479 = vadd.f32 %v9294, %v9478
        %v9480 = vpop.f32.mrf.mxu0
        %9481 = vmatprep.mubr.f32.mxu0 0.0
        %9482 = vmatmul.mubr.f32.gmra.mxu0 %v9312
        %v9483 = vpop.f32.mrf.mxu0
        %v9484 = vadd.f32 %v9294, %v9483
        %v9485 = vpop.f32.mrf.mxu0
        %9486 = vmatprep.mubr.f32.mxu0 0.0
        %9487 = vmatmul.mubr.f32.gmra.mxu0 %v9315
        %v9488 = vpop.f32.mrf.mxu0
        %v9489 = vadd.f32 %v9294, %v9488
        %v9490 = vpop.f32.mrf.mxu0
        %9491 = vmatprep.mubr.f32.mxu0 0.0
        %9492 = vmatmul.mubr.f32.gmra.mxu0 %v9318
        %v9493 = vpop.f32.mrf.mxu0
        %v9494 = vadd.f32 %v9294, %v9493
        %v9495 = vpop.f32.mrf.mxu0
        %9496 = vmatprep.mubr.f32.mxu0 0.0
        %9497 = vmatmul.mubr.f32.gmra.mxu0 %v9321
        %v9498 = vpop.f32.mrf.mxu0
        %v9499 = vadd.f32 %v9294, %v9498
        %v9500 = vpop.f32.mrf.mxu0
        %9501 = vmatprep.mubr.f32.mxu0 0.0
        %9502 = vmatmul.mubr.f32.gmra.mxu0 %v9324
        %v9503 = vpop.f32.mrf.mxu0
        %v9504 = vadd.f32 %v9294, %v9503
        %v9505 = vpop.f32.mrf.mxu0
        %9506 = vmatprep.mubr.f32.mxu0 0.0
        %9507 = vmatmul.mubr.f32.gmra.mxu0 %v9327
        %v9508 = vpop.f32.mrf.mxu0
        %v9509 = vadd.f32 %v9294, %v9508
        %v9510 = vpop.f32.mrf.mxu0
        %9511 = vmatprep.mubr.f32.mxu0 0.0
        %9512 = vmatmul.mubr.f32.gmra.mxu0 %v9330
        %v9513 = vpop.f32.mrf.mxu0
        %v9514 = vadd.f32 %v9294, %v9513
        %v9515 = vpop.f32.mrf.mxu0
        %9516 = vmatprep.mubr.f32.mxu0 0.0
        %9517 = vmatmul.mubr.f32.gmra.mxu0 %v9333
        %v9518 = vpop.f32.mrf.mxu0
        %v9519 = vadd.f32 %v9294, %v9518
        %v9520 = vpop.f32.mrf.mxu0
        %9521 = vmatprep.mubr.f32.mxu0 0.0
        %9522 = vmatmul.mubr.f32.gmra.mxu0 %v9336
        %v9523 = vpop.f32.mrf.mxu0
        %v9524 = vadd.f32 %v9294, %v9523
        %v9525 = vpop.f32.mrf.mxu0
        %9526 = vmatprep.mubr.f32.mxu0 0.0
        %9527 = vmatmul.mubr.f32.gmra.mxu0 %v9339
        %v9528 = vpop.f32.mrf.mxu0
        %v9529 = vadd.f32 %v9294, %v9528
        %v9530 = vpop.f32.mrf.mxu0
        %9531 = vmatprep.mubr.f32.mxu0 0.0
        %9532 = vmatmul.mubr.f32.gmra.mxu0 %v9342
        %v9533 = vpop.f32.mrf.mxu0
        %v9534 = vadd.f32 %v9294, %v9533
        %v9535 = vpop.f32.mrf.mxu0
        %9536 = vmatprep.mubr.f32.mxu0 0.0
        %9537 = vmatmul.mubr.f32.gmra.mxu0 %v9345
        %v9538 = vpop.f32.mrf.mxu0
        %v9539 = vadd.f32 %v9294, %v9538
        %v9540 = vpop.f32.mrf.mxu0
        %9541 = vmatprep.mubr.f32.mxu0 0.0
        %9542 = vmatmul.mubr.f32.gmra.mxu0 %v9348
        %v9543 = vpop.f32.mrf.mxu0
        %v9544 = vadd.f32 %v9294, %v9543
        %v9545 = vpop.f32.mrf.mxu0
        %9546 = vmatprep.mubr.f32.mxu0 0.0
        %9547 = vmatmul.mubr.f32.gmra.mxu0 %v9351
        %v9548 = vpop.f32.mrf.mxu0
        %v9549 = vadd.f32 %v9294, %v9548
        %v9550 = vpop.f32.mrf.mxu0
        %9551 = vmatprep.mubr.f32.mxu0 0.0
        %9552 = vmatmul.mubr.f32.gmra.mxu0 %v9354
        %v9553 = vpop.f32.mrf.mxu0
        %v9554 = vadd.f32 %v9294, %v9553
        %v9555 = vpop.f32.mrf.mxu0
        %9556 = vmatprep.mubr.f32.mxu0 0.0
        %9557 = vmatmul.mubr.f32.gmra.mxu0 %v9357
        %v9558 = vpop.f32.mrf.mxu0
        %v9559 = vadd.f32 %v9294, %v9558
        %v9560 = vpop.f32.mrf.mxu0
        %9561 = vmatprep.mubr.f32.mxu0 0.0
        %9562 = vmatmul.mubr.f32.gmra.mxu0 %v9360
        %v9563 = vpop.f32.mrf.mxu0
        %v9564 = vadd.f32 %v9294, %v9563
        %v9565 = vpop.f32.mrf.mxu0
        %9566 = vmatprep.mubr.f32.mxu0 0.0
        %9567 = vmatmul.mubr.f32.gmra.mxu0 %v9363
        %v9568 = vpop.f32.mrf.mxu0
        %v9569 = vadd.f32 %v9294, %v9568
        %v9570 = vpop.f32.mrf.mxu0
        %9571 = vmatprep.mubr.f32.mxu0 0.0
        %9572 = vmatmul.mubr.f32.gmra.mxu0 %v9366
        %v9573 = vpop.f32.mrf.mxu0
        %v9574 = vadd.f32 %v9294, %v9573
        %v9575 = vpop.f32.mrf.mxu0
        %9576 = vmatprep.mubr.f32.mxu0 0.0
        %9577 = vmatmul.mubr.f32.gmra.mxu0 %v9369
        %v9578 = vpop.f32.mrf.mxu0
        %v9579 = vadd.f32 %v9294, %v9578
        %v9580 = vpop.f32.mrf.mxu0
        %9581 = vmatprep.mubr.f32.mxu0 0.0
        %9582 = vmatmul.mubr.f32.gmra.mxu0 %v9372
        %v9583 = vpop.f32.mrf.mxu0
        %v9584 = vadd.f32 %v9294, %v9583
        %v9585 = vpop.f32.mrf.mxu0
        %9586 = vmatprep.mubr.f32.mxu0 0.0
        %9587 = vmatmul.mubr.f32.gmra.mxu0 %v9375
        %v9588 = vpop.f32.mrf.mxu0
        %v9589 = vadd.f32 %v9294, %v9588
        %v9590 = vpop.f32.mrf.mxu0
        %9591 = vmatprep.mubr.f32.mxu0 0.0
        %9592 = vmatmul.mubr.f32.gmra.mxu0 %v9378
        %v9593 = vpop.f32.mrf.mxu0
        %v9594 = vadd.f32 %v9294, %v9593
        %v9595 = vpop.f32.mrf.mxu0
        %9596 = vmatprep.mubr.f32.mxu0 0.0
        %9597 = vmatmul.mubr.f32.gmra.mxu0 %v9381
        %v9598 = vpop.f32.mrf.mxu0
        %v9599 = vadd.f32 %v9294, %v9598
        %v9600 = vpop.f32.mrf.mxu0
        %9601 = vmatprep.mubr.f32.mxu0 0.0
        %9602 = vmatmul.mubr.f32.gmra.mxu0 %v9384
        %v9603 = vpop.f32.mrf.mxu0
        %v9604 = vadd.f32 %v9294, %v9603
        %v9605 = vpop.f32.mrf.mxu0
        %9606 = vmatprep.mubr.f32.mxu0 0.0
        %9607 = vmatmul.mubr.f32.gmra.mxu0 %v9387
        %v9608 = vpop.f32.mrf.mxu0
        %v9609 = vadd.f32 %v9294, %v9608
        %v9610 = vpop.f32.mrf.mxu0
        %9611 = vmatprep.mubr.f32.mxu0 0.0
        %9612 = vmatmul.mubr.f32.gmra.mxu0 %v9390
        %v9613 = vpop.f32.mrf.mxu0
        %v9614 = vadd.f32 %v9294, %v9613
        %v9615 = vpop.f32.mrf.mxu0
        %9616 = vdwg.mxu0
        %v9617 = vtanh.pop %v9459
        %v9618 = vtanh.pop %v9464
        %v9619 = vtanh.pop %v9469
        %v9620 = vtanh.pop %v9474
        %v9621 = vtanh.pop %v9479
        %v9622 = vtanh.pop %v9484
        %v9623 = vtanh.pop %v9489
        %v9624 = vtanh.pop %v9494
        %v9625 = vtanh.pop %v9499
        %v9626 = vtanh.pop %v9504
        %v9627 = vtanh.pop %v9509
        %v9628 = vtanh.pop %v9514
        %v9629 = vtanh.pop %v9519
        %v9630 = vtanh.pop %v9524
        %v9631 = vtanh.pop %v9529
        %v9632 = vtanh.pop %v9534
        %v9633 = vtanh.pop %v9539
        %v9634 = vtanh.pop %v9544
        %v9635 = vtanh.pop %v9549
        %v9636 = vtanh.pop %v9554
        %v9637 = vtanh.pop %v9559
        %v9638 = vtanh.pop %v9564
        %v9639 = vtanh.pop %v9569
        %v9640 = vtanh.pop %v9574
        %v9641 = vtanh.pop %v9579
        %v9642 = vtanh.pop %v9584
        %v9643 = vtanh.pop %v9589
        %v9644 = vtanh.pop %v9594
        %v9645 = vtanh.pop %v9599
        %v9646 = vtanh.pop %v9604
        %v9647 = vtanh.pop %v9609
        %v9648 = vtanh.pop %v9614
        %9681 = vrot.lane.b32.xlu0 %v9617, 127
        %v9682 = vpop.permute.xlu0 %9681
        %9683 = vrot.lane.b32.xlu0 %v9618, 127
        %v9684 = vpop.permute.xlu0 %9683
        %9685 = vrot.lane.b32.xlu0 %v9619, 127
        %v9686 = vpop.permute.xlu0 %9685
        %9687 = vrot.lane.b32.xlu0 %v9620, 127
        %v9688 = vpop.permute.xlu0 %9687
        %9689 = vrot.lane.b32.xlu0 %v9621, 127
        %v9690 = vpop.permute.xlu0 %9689
        %9691 = vrot.lane.b32.xlu0 %v9622, 127
        %v9692 = vpop.permute.xlu0 %9691
        %9693 = vrot.lane.b32.xlu0 %v9623, 127
        %v9694 = vpop.permute.xlu0 %9693
        %9695 = vrot.lane.b32.xlu0 %v9624, 127
        %v9696 = vpop.permute.xlu0 %9695
        %9697 = vrot.lane.b32.xlu0 %v9625, 127
        %v9698 = vpop.permute.xlu0 %9697
        %9699 = vrot.lane.b32.xlu0 %v9626, 127
        %v9700 = vpop.permute.xlu0 %9699
        %9701 = vrot.lane.b32.xlu0 %v9627, 127
        %v9702 = vpop.permute.xlu0 %9701
        %9703 = vrot.lane.b32.xlu0 %v9628, 127
        %v9704 = vpop.permute.xlu0 %9703
        %9705 = vrot.lane.b32.xlu0 %v9629, 127
        %v9706 = vpop.permute.xlu0 %9705
        %9707 = vrot.lane.b32.xlu0 %v9630, 127
        %v9708 = vpop.permute.xlu0 %9707
        %9709 = vrot.lane.b32.xlu0 %v9631, 127
        %v9710 = vpop.permute.xlu0 %9709
        %9711 = vrot.lane.b32.xlu0 %v9632, 127
        %v9712 = vpop.permute.xlu0 %9711
        %9713 = vrot.lane.b32.xlu0 %v9633, 127
        %v9714 = vpop.permute.xlu0 %9713
        %9715 = vrot.lane.b32.xlu0 %v9634, 127
        %v9716 = vpop.permute.xlu0 %9715
        %9717 = vrot.lane.b32.xlu0 %v9635, 127
        %v9718 = vpop.permute.xlu0 %9717
        %9719 = vrot.lane.b32.xlu0 %v9636, 127
        %v9720 = vpop.permute.xlu0 %9719
        %9721 = vrot.lane.b32.xlu0 %v9637, 127
        %v9722 = vpop.permute.xlu0 %9721
        %9723 = vrot.lane.b32.xlu0 %v9638, 127
        %v9724 = vpop.permute.xlu0 %9723
        %9725 = vrot.lane.b32.xlu0 %v9639, 127
        %v9726 = vpop.permute.xlu0 %9725
        %9727 = vrot.lane.b32.xlu0 %v9640, 127
        %v9728 = vpop.permute.xlu0 %9727
        %9729 = vrot.lane.b32.xlu0 %v9641, 127
        %v9730 = vpop.permute.xlu0 %9729
        %9731 = vrot.lane.b32.xlu0 %v9642, 127
        %v9732 = vpop.permute.xlu0 %9731
        %9733 = vrot.lane.b32.xlu0 %v9643, 127
        %v9734 = vpop.permute.xlu0 %9733
        %9735 = vrot.lane.b32.xlu0 %v9644, 127
        %v9736 = vpop.permute.xlu0 %9735
        %9737 = vrot.lane.b32.xlu0 %v9645, 127
        %v9738 = vpop.permute.xlu0 %9737
        %9739 = vrot.lane.b32.xlu0 %v9646, 127
        %v9740 = vpop.permute.xlu0 %9739
        %9741 = vrot.lane.b32.xlu0 %v9647, 127
        %v9742 = vpop.permute.xlu0 %9741
        %9743 = vrot.lane.b32.xlu0 %v9648, 127
        %v9744 = vpop.permute.xlu0 %9743
        %9745 = vset.pattern.permute.xlu0 0
        %9746 = vperm.xlu0 %9745, %v9617
        %v9747 = vpop.permute.xlu0 %9746
        %9748 = vset.pattern.permute.xlu0 0
        %9749 = vperm.xlu0 %9748, %v9618
        %v9750 = vpop.permute.xlu0 %9749
        %9751 = vset.pattern.permute.xlu0 0
        %9752 = vperm.xlu0 %9751, %v9619
        %v9753 = vpop.permute.xlu0 %9752
        %9754 = vset.pattern.permute.xlu0 0
        %9755 = vperm.xlu0 %9754, %v9620
        %v9756 = vpop.permute.xlu0 %9755
        %9757 = vset.pattern.permute.xlu0 0
        %9758 = vperm.xlu0 %9757, %v9621
        %v9759 = vpop.permute.xlu0 %9758
        %9760 = vset.pattern.permute.xlu0 0
        %9761 = vperm.xlu0 %9760, %v9622
        %v9762 = vpop.permute.xlu0 %9761
        %9763 = vset.pattern.permute.xlu0 0
        %9764 = vperm.xlu0 %9763, %v9623
        %v9765 = vpop.permute.xlu0 %9764
        %9766 = vset.pattern.permute.xlu0 0
        %9767 = vperm.xlu0 %9766, %v9624
        %v9768 = vpop.permute.xlu0 %9767
        %9769 = vset.pattern.permute.xlu0 0
        %9770 = vperm.xlu0 %9769, %v9625
        %v9771 = vpop.permute.xlu0 %9770
        %9772 = vset.pattern.permute.xlu0 0
        %9773 = vperm.xlu0 %9772, %v9626
        %v9774 = vpop.permute.xlu0 %9773
        %9775 = vset.pattern.permute.xlu0 0
        %9776 = vperm.xlu0 %9775, %v9627
        %v9777 = vpop.permute.xlu0 %9776
        %9778 = vset.pattern.permute.xlu0 0
        %9779 = vperm.xlu0 %9778, %v9628
        %v9780 = vpop.permute.xlu0 %9779
        %9781 = vset.pattern.permute.xlu0 0
        %9782 = vperm.xlu0 %9781, %v9629
        %v9783 = vpop.permute.xlu0 %9782
        %9784 = vset.pattern.permute.xlu0 0
        %9785 = vperm.xlu0 %9784, %v9630
        %v9786 = vpop.permute.xlu0 %9785
        %9787 = vset.pattern.permute.xlu0 0
        %9788 = vperm.xlu0 %9787, %v9631
        %v9789 = vpop.permute.xlu0 %9788
        %9790 = vset.pattern.permute.xlu0 0
        %9791 = vperm.xlu0 %9790, %v9632
        %v9792 = vpop.permute.xlu0 %9791
        %9793 = vset.pattern.permute.xlu0 0
        %9794 = vperm.xlu0 %9793, %v9633
        %v9795 = vpop.permute.xlu0 %9794
        %9796 = vset.pattern.permute.xlu0 0
        %9797 = vperm.xlu0 %9796, %v9634
        %v9798 = vpop.permute.xlu0 %9797
        %9799 = vset.pattern.permute.xlu0 0
        %9800 = vperm.xlu0 %9799, %v9635
        %v9801 = vpop.permute.xlu0 %9800
        %9802 = vset.pattern.permute.xlu0 0
        %9803 = vperm.xlu0 %9802, %v9636
        %v9804 = vpop.permute.xlu0 %9803
        %9805 = vset.pattern.permute.xlu0 0
        %9806 = vperm.xlu0 %9805, %v9637
        %v9807 = vpop.permute.xlu0 %9806
        %9808 = vset.pattern.permute.xlu0 0
        %9809 = vperm.xlu0 %9808, %v9638
        %v9810 = vpop.permute.xlu0 %9809
        %9811 = vset.pattern.permute.xlu0 0
        %9812 = vperm.xlu0 %9811, %v9639
        %v9813 = vpop.permute.xlu0 %9812
        %9814 = vset.pattern.permute.xlu0 0
        %9815 = vperm.xlu0 %9814, %v9640
        %v9816 = vpop.permute.xlu0 %9815
        %9817 = vset.pattern.permute.xlu0 0
        %9818 = vperm.xlu0 %9817, %v9641
        %v9819 = vpop.permute.xlu0 %9818
        %9820 = vset.pattern.permute.xlu0 0
        %9821 = vperm.xlu0 %9820, %v9642
        %v9822 = vpop.permute.xlu0 %9821
        %9823 = vset.pattern.permute.xlu0 0
        %9824 = vperm.xlu0 %9823, %v9643
        %v9825 = vpop.permute.xlu0 %9824
        %9826 = vset.pattern.permute.xlu0 0
        %9827 = vperm.xlu0 %9826, %v9644
        %v9828 = vpop.permute.xlu0 %9827
        %9829 = vset.pattern.permute.xlu0 0
        %9830 = vperm.xlu0 %9829, %v9645
        %v9831 = vpop.permute.xlu0 %9830
        %9832 = vset.pattern.permute.xlu0 0
        %9833 = vperm.xlu0 %9832, %v9646
        %v9834 = vpop.permute.xlu0 %9833
        %9835 = vset.pattern.permute.xlu0 0
        %9836 = vperm.xlu0 %9835, %v9647
        %v9837 = vpop.permute.xlu0 %9836
        %9838 = vset.pattern.permute.xlu0 0
        %9839 = vperm.xlu0 %9838, %v9648
        %v9840 = vpop.permute.xlu0 %9839
        %9841 = vset.pattern.permute.xlu0 0
        %9842 = vperm.xlu0 %9841, %v9682
        %v9843 = vpop.permute.xlu0 %9842
        %9844 = vset.pattern.permute.xlu0 0
        %9845 = vperm.xlu0 %9844, %v9684
        %v9846 = vpop.permute.xlu0 %9845
        %9847 = vset.pattern.permute.xlu0 0
        %9848 = vperm.xlu0 %9847, %v9686
        %v9849 = vpop.permute.xlu0 %9848
        %9850 = vset.pattern.permute.xlu0 0
        %9851 = vperm.xlu0 %9850, %v9688
        %v9852 = vpop.permute.xlu0 %9851
        %9853 = vset.pattern.permute.xlu0 0
        %9854 = vperm.xlu0 %9853, %v9690
        %v9855 = vpop.permute.xlu0 %9854
        %9856 = vset.pattern.permute.xlu0 0
        %9857 = vperm.xlu0 %9856, %v9692
        %v9858 = vpop.permute.xlu0 %9857
        %9859 = vset.pattern.permute.xlu0 0
        %9860 = vperm.xlu0 %9859, %v9694
        %v9861 = vpop.permute.xlu0 %9860
        %9862 = vset.pattern.permute.xlu0 0
        %9863 = vperm.xlu0 %9862, %v9696
        %v9864 = vpop.permute.xlu0 %9863
        %9865 = vset.pattern.permute.xlu0 0
        %9866 = vperm.xlu0 %9865, %v9698
        %v9867 = vpop.permute.xlu0 %9866
        %9868 = vset.pattern.permute.xlu0 0
        %9869 = vperm.xlu0 %9868, %v9700
        %v9870 = vpop.permute.xlu0 %9869
        %9871 = vset.pattern.permute.xlu0 0
        %9872 = vperm.xlu0 %9871, %v9702
        %v9873 = vpop.permute.xlu0 %9872
        %9874 = vset.pattern.permute.xlu0 0
        %9875 = vperm.xlu0 %9874, %v9704
        %v9876 = vpop.permute.xlu0 %9875
        %9877 = vset.pattern.permute.xlu0 0
        %9878 = vperm.xlu0 %9877, %v9706
        %v9879 = vpop.permute.xlu0 %9878
        %9880 = vset.pattern.permute.xlu0 0
        %9881 = vperm.xlu0 %9880, %v9708
        %v9882 = vpop.permute.xlu0 %9881
        %9883 = vset.pattern.permute.xlu0 0
        %9884 = vperm.xlu0 %9883, %v9710
        %v9885 = vpop.permute.xlu0 %9884
        %9886 = vset.pattern.permute.xlu0 0
        %9887 = vperm.xlu0 %9886, %v9712
        %v9888 = vpop.permute.xlu0 %9887
        %9889 = vset.pattern.permute.xlu0 0
        %9890 = vperm.xlu0 %9889, %v9714
        %v9891 = vpop.permute.xlu0 %9890
        %9892 = vset.pattern.permute.xlu0 0
        %9893 = vperm.xlu0 %9892, %v9716
        %v9894 = vpop.permute.xlu0 %9893
        %9895 = vset.pattern.permute.xlu0 0
        %9896 = vperm.xlu0 %9895, %v9718
        %v9897 = vpop.permute.xlu0 %9896
        %9898 = vset.pattern.permute.xlu0 0
        %9899 = vperm.xlu0 %9898, %v9720
        %v9900 = vpop.permute.xlu0 %9899
        %9901 = vset.pattern.permute.xlu0 0
        %9902 = vperm.xlu0 %9901, %v9722
        %v9903 = vpop.permute.xlu0 %9902
        %9904 = vset.pattern.permute.xlu0 0
        %9905 = vperm.xlu0 %9904, %v9724
        %v9906 = vpop.permute.xlu0 %9905
        %9907 = vset.pattern.permute.xlu0 0
        %9908 = vperm.xlu0 %9907, %v9726
        %v9909 = vpop.permute.xlu0 %9908
        %9910 = vset.pattern.permute.xlu0 0
        %9911 = vperm.xlu0 %9910, %v9728
        %v9912 = vpop.permute.xlu0 %9911
        %9913 = vset.pattern.permute.xlu0 0
        %9914 = vperm.xlu0 %9913, %v9730
        %v9915 = vpop.permute.xlu0 %9914
        %9916 = vset.pattern.permute.xlu0 0
        %9917 = vperm.xlu0 %9916, %v9732
        %v9918 = vpop.permute.xlu0 %9917
        %9919 = vset.pattern.permute.xlu0 0
        %9920 = vperm.xlu0 %9919, %v9734
        %v9921 = vpop.permute.xlu0 %9920
        %9922 = vset.pattern.permute.xlu0 0
        %9923 = vperm.xlu0 %9922, %v9736
        %v9924 = vpop.permute.xlu0 %9923
        %9925 = vset.pattern.permute.xlu0 0
        %9926 = vperm.xlu0 %9925, %v9738
        %v9927 = vpop.permute.xlu0 %9926
        %9928 = vset.pattern.permute.xlu0 0
        %9929 = vperm.xlu0 %9928, %v9740
        %v9930 = vpop.permute.xlu0 %9929
        %9931 = vset.pattern.permute.xlu0 0
        %9932 = vperm.xlu0 %9931, %v9742
        %v9933 = vpop.permute.xlu0 %9932
        %9934 = vset.pattern.permute.xlu0 0
        %9935 = vperm.xlu0 %9934, %v9744
        %v9936 = vpop.permute.xlu0 %9935
        %v9937 = vlaneseq
        %v9938 = vand.u32 %v9937, 127
        %v9939 = vlaneseq
        %v9940 = vshrl.u32 %v9939, 7
        %v9941 = vsub.s32 %v9938, %v9940
        %v9942 = vrot.slane %v9747, %v9941
        %v9943 = vadd.s32 %v9938, 4294967288
        %v9944 = vlaneseq
        %v9945 = vshrl.u32 %v9944, 7
        %v9946 = vsub.s32 %v9943, %v9945
        %v9947 = vrot.slane %v9750, %v9946
        %vm9948 = vcmask 130112
        %v9949 = vsel %vm9948, %v9947, %v9942
        %v9950 = vlaneseq
        %v9951 = vshrl.u32 %v9950, 7
        %v9952 = vsub.s32 %v9938, %v9951
        %v9953 = vrot.slane %v9753, %v9952
        %v9954 = vlaneseq
        %v9955 = vshrl.u32 %v9954, 7
        %v9956 = vsub.s32 %v9943, %v9955
        %v9957 = vrot.slane %v9756, %v9956
        %v9958 = vsel %vm9948, %v9957, %v9953
        %v9959 = vlaneseq
        %v9960 = vshrl.u32 %v9959, 7
        %v9961 = vsub.s32 %v9938, %v9960
        %v9962 = vrot.slane %v9759, %v9961
        %v9963 = vlaneseq
        %v9964 = vshrl.u32 %v9963, 7
        %v9965 = vsub.s32 %v9943, %v9964
        %v9966 = vrot.slane %v9762, %v9965
        %v9967 = vsel %vm9948, %v9966, %v9962
        %v9968 = vlaneseq
        %v9969 = vshrl.u32 %v9968, 7
        %v9970 = vsub.s32 %v9938, %v9969
        %v9971 = vrot.slane %v9765, %v9970
        %v9972 = vlaneseq
        %v9973 = vshrl.u32 %v9972, 7
        %v9974 = vsub.s32 %v9943, %v9973
        %v9975 = vrot.slane %v9768, %v9974
        %v9976 = vsel %vm9948, %v9975, %v9971
        %v9977 = vlaneseq
        %v9978 = vshrl.u32 %v9977, 7
        %v9979 = vsub.s32 %v9938, %v9978
        %v9980 = vrot.slane %v9771, %v9979
        %v9981 = vlaneseq
        %v9982 = vshrl.u32 %v9981, 7
        %v9983 = vsub.s32 %v9943, %v9982
        %v9984 = vrot.slane %v9774, %v9983
        %v9985 = vsel %vm9948, %v9984, %v9980
        %v9986 = vlaneseq
        %v9987 = vshrl.u32 %v9986, 7
        %v9988 = vsub.s32 %v9938, %v9987
        %v9989 = vrot.slane %v9777, %v9988
        %v9990 = vlaneseq
        %v9991 = vshrl.u32 %v9990, 7
        %v9992 = vsub.s32 %v9943, %v9991
        %v9993 = vrot.slane %v9780, %v9992
        %v9994 = vsel %vm9948, %v9993, %v9989
        %v9995 = vlaneseq
        %v9996 = vshrl.u32 %v9995, 7
        %v9997 = vsub.s32 %v9938, %v9996
        %v9998 = vrot.slane %v9783, %v9997
        %v9999 = vlaneseq
        %v10000 = vshrl.u32 %v9999, 7
        %v10001 = vsub.s32 %v9943, %v10000
        %v10002 = vrot.slane %v9786, %v10001
        %v10003 = vsel %vm9948, %v10002, %v9998
        %v10004 = vlaneseq
        %v10005 = vshrl.u32 %v10004, 7
        %v10006 = vsub.s32 %v9938, %v10005
        %v10007 = vrot.slane %v9789, %v10006
        %v10008 = vlaneseq
        %v10009 = vshrl.u32 %v10008, 7
        %v10010 = vsub.s32 %v9943, %v10009
        %v10011 = vrot.slane %v9792, %v10010
        %v10012 = vsel %vm9948, %v10011, %v10007
        %v10013 = vlaneseq
        %v10014 = vshrl.u32 %v10013, 7
        %v10015 = vsub.s32 %v9938, %v10014
        %v10016 = vrot.slane %v9795, %v10015
        %v10017 = vlaneseq
        %v10018 = vshrl.u32 %v10017, 7
        %v10019 = vsub.s32 %v9943, %v10018
        %v10020 = vrot.slane %v9798, %v10019
        %v10021 = vsel %vm9948, %v10020, %v10016
        %v10022 = vlaneseq
        %v10023 = vshrl.u32 %v10022, 7
        %v10024 = vsub.s32 %v9938, %v10023
        %v10025 = vrot.slane %v9801, %v10024
        %v10026 = vlaneseq
        %v10027 = vshrl.u32 %v10026, 7
        %v10028 = vsub.s32 %v9943, %v10027
        %v10029 = vrot.slane %v9804, %v10028
        %v10030 = vsel %vm9948, %v10029, %v10025
        %v10031 = vlaneseq
        %v10032 = vshrl.u32 %v10031, 7
        %v10033 = vsub.s32 %v9938, %v10032
        %v10034 = vrot.slane %v9807, %v10033
        %v10035 = vlaneseq
        %v10036 = vshrl.u32 %v10035, 7
        %v10037 = vsub.s32 %v9943, %v10036
        %v10038 = vrot.slane %v9810, %v10037
        %v10039 = vsel %vm9948, %v10038, %v10034
        %v10040 = vlaneseq
        %v10041 = vshrl.u32 %v10040, 7
        %v10042 = vsub.s32 %v9938, %v10041
        %v10043 = vrot.slane %v9813, %v10042
        %v10044 = vlaneseq
        %v10045 = vshrl.u32 %v10044, 7
        %v10046 = vsub.s32 %v9943, %v10045
        %v10047 = vrot.slane %v9816, %v10046
        %v10048 = vsel %vm9948, %v10047, %v10043
        %v10049 = vlaneseq
        %v10050 = vshrl.u32 %v10049, 7
        %v10051 = vsub.s32 %v9938, %v10050
        %v10052 = vrot.slane %v9819, %v10051
        %v10053 = vlaneseq
        %v10054 = vshrl.u32 %v10053, 7
        %v10055 = vsub.s32 %v9943, %v10054
        %v10056 = vrot.slane %v9822, %v10055
        %v10057 = vsel %vm9948, %v10056, %v10052
        %v10058 = vlaneseq
        %v10059 = vshrl.u32 %v10058, 7
        %v10060 = vsub.s32 %v9938, %v10059
        %v10061 = vrot.slane %v9825, %v10060
        %v10062 = vlaneseq
        %v10063 = vshrl.u32 %v10062, 7
        %v10064 = vsub.s32 %v9943, %v10063
        %v10065 = vrot.slane %v9828, %v10064
        %v10066 = vsel %vm9948, %v10065, %v10061
        %v10067 = vlaneseq
        %v10068 = vshrl.u32 %v10067, 7
        %v10069 = vsub.s32 %v9938, %v10068
        %v10070 = vrot.slane %v9831, %v10069
        %v10071 = vlaneseq
        %v10072 = vshrl.u32 %v10071, 7
        %v10073 = vsub.s32 %v9943, %v10072
        %v10074 = vrot.slane %v9834, %v10073
        %v10075 = vsel %vm9948, %v10074, %v10070
        %v10076 = vlaneseq
        %v10077 = vshrl.u32 %v10076, 7
        %v10078 = vsub.s32 %v9938, %v10077
        %v10079 = vrot.slane %v9837, %v10078
        %v10080 = vlaneseq
        %v10081 = vshrl.u32 %v10080, 7
        %v10082 = vsub.s32 %v9943, %v10081
        %v10083 = vrot.slane %v9840, %v10082
        %v10084 = vsel %vm9948, %v10083, %v10079
        %v10085 = vlaneseq
        %v10086 = vshrl.u32 %v10085, 7
        %v10087 = vsub.s32 %v9938, %v10086
        %v10088 = vrot.slane %v9843, %v10087
        %v10089 = vlaneseq
        %v10090 = vshrl.u32 %v10089, 7
        %v10091 = vsub.s32 %v9943, %v10090
        %v10092 = vrot.slane %v9846, %v10091
        %v10093 = vsel %vm9948, %v10092, %v10088
        %v10094 = vlaneseq
        %v10095 = vshrl.u32 %v10094, 7
        %v10096 = vsub.s32 %v9938, %v10095
        %v10097 = vrot.slane %v9849, %v10096
        %v10098 = vlaneseq
        %v10099 = vshrl.u32 %v10098, 7
        %v10100 = vsub.s32 %v9943, %v10099
        %v10101 = vrot.slane %v9852, %v10100
        %v10102 = vsel %vm9948, %v10101, %v10097
        %v10103 = vlaneseq
        %v10104 = vshrl.u32 %v10103, 7
        %v10105 = vsub.s32 %v9938, %v10104
        %v10106 = vrot.slane %v9855, %v10105
        %v10107 = vlaneseq
        %v10108 = vshrl.u32 %v10107, 7
        %v10109 = vsub.s32 %v9943, %v10108
        %v10110 = vrot.slane %v9858, %v10109
        %v10111 = vsel %vm9948, %v10110, %v10106
        %v10112 = vlaneseq
        %v10113 = vshrl.u32 %v10112, 7
        %v10114 = vsub.s32 %v9938, %v10113
        %v10115 = vrot.slane %v9861, %v10114
        %v10116 = vlaneseq
        %v10117 = vshrl.u32 %v10116, 7
        %v10118 = vsub.s32 %v9943, %v10117
        %v10119 = vrot.slane %v9864, %v10118
        %v10120 = vsel %vm9948, %v10119, %v10115
        %v10121 = vlaneseq
        %v10122 = vshrl.u32 %v10121, 7
        %v10123 = vsub.s32 %v9938, %v10122
        %v10124 = vrot.slane %v9867, %v10123
        %v10125 = vlaneseq
        %v10126 = vshrl.u32 %v10125, 7
        %v10127 = vsub.s32 %v9943, %v10126
        %v10128 = vrot.slane %v9870, %v10127
        %v10129 = vsel %vm9948, %v10128, %v10124
        %v10130 = vlaneseq
        %v10131 = vshrl.u32 %v10130, 7
        %v10132 = vsub.s32 %v9938, %v10131
        %v10133 = vrot.slane %v9873, %v10132
        %v10134 = vlaneseq
        %v10135 = vshrl.u32 %v10134, 7
        %v10136 = vsub.s32 %v9943, %v10135
        %v10137 = vrot.slane %v9876, %v10136
        %v10138 = vsel %vm9948, %v10137, %v10133
        %v10139 = vlaneseq
        %v10140 = vshrl.u32 %v10139, 7
        %v10141 = vsub.s32 %v9938, %v10140
        %v10142 = vrot.slane %v9879, %v10141
        %v10143 = vlaneseq
        %v10144 = vshrl.u32 %v10143, 7
        %v10145 = vsub.s32 %v9943, %v10144
        %v10146 = vrot.slane %v9882, %v10145
        %v10147 = vsel %vm9948, %v10146, %v10142
        %v10148 = vlaneseq
        %v10149 = vshrl.u32 %v10148, 7
        %v10150 = vsub.s32 %v9938, %v10149
        %v10151 = vrot.slane %v9885, %v10150
        %v10152 = vlaneseq
        %v10153 = vshrl.u32 %v10152, 7
        %v10154 = vsub.s32 %v9943, %v10153
        %v10155 = vrot.slane %v9888, %v10154
        %v10156 = vsel %vm9948, %v10155, %v10151
        %v10157 = vlaneseq
        %v10158 = vshrl.u32 %v10157, 7
        %v10159 = vsub.s32 %v9938, %v10158
        %v10160 = vrot.slane %v9891, %v10159
        %v10161 = vlaneseq
        %v10162 = vshrl.u32 %v10161, 7
        %v10163 = vsub.s32 %v9943, %v10162
        %v10164 = vrot.slane %v9894, %v10163
        %v10165 = vsel %vm9948, %v10164, %v10160
        %v10166 = vlaneseq
        %v10167 = vshrl.u32 %v10166, 7
        %v10168 = vsub.s32 %v9938, %v10167
        %v10169 = vrot.slane %v9897, %v10168
        %v10170 = vlaneseq
        %v10171 = vshrl.u32 %v10170, 7
        %v10172 = vsub.s32 %v9943, %v10171
        %v10173 = vrot.slane %v9900, %v10172
        %v10174 = vsel %vm9948, %v10173, %v10169
        %v10175 = vlaneseq
        %v10176 = vshrl.u32 %v10175, 7
        %v10177 = vsub.s32 %v9938, %v10176
        %v10178 = vrot.slane %v9903, %v10177
        %v10179 = vlaneseq
        %v10180 = vshrl.u32 %v10179, 7
        %v10181 = vsub.s32 %v9943, %v10180
        %v10182 = vrot.slane %v9906, %v10181
        %v10183 = vsel %vm9948, %v10182, %v10178
        %v10184 = vlaneseq
        %v10185 = vshrl.u32 %v10184, 7
        %v10186 = vsub.s32 %v9938, %v10185
        %v10187 = vrot.slane %v9909, %v10186
        %v10188 = vlaneseq
        %v10189 = vshrl.u32 %v10188, 7
        %v10190 = vsub.s32 %v9943, %v10189
        %v10191 = vrot.slane %v9912, %v10190
        %v10192 = vsel %vm9948, %v10191, %v10187
        %v10193 = vlaneseq
        %v10194 = vshrl.u32 %v10193, 7
        %v10195 = vsub.s32 %v9938, %v10194
        %v10196 = vrot.slane %v9915, %v10195
        %v10197 = vlaneseq
        %v10198 = vshrl.u32 %v10197, 7
        %v10199 = vsub.s32 %v9943, %v10198
        %v10200 = vrot.slane %v9918, %v10199
        %v10201 = vsel %vm9948, %v10200, %v10196
        %v10202 = vlaneseq
        %v10203 = vshrl.u32 %v10202, 7
        %v10204 = vsub.s32 %v9938, %v10203
        %v10205 = vrot.slane %v9921, %v10204
        %v10206 = vlaneseq
        %v10207 = vshrl.u32 %v10206, 7
        %v10208 = vsub.s32 %v9943, %v10207
        %v10209 = vrot.slane %v9924, %v10208
        %v10210 = vsel %vm9948, %v10209, %v10205
        %v10211 = vlaneseq
        %v10212 = vshrl.u32 %v10211, 7
        %v10213 = vsub.s32 %v9938, %v10212
        %v10214 = vrot.slane %v9927, %v10213
        %v10215 = vlaneseq
        %v10216 = vshrl.u32 %v10215, 7
        %v10217 = vsub.s32 %v9943, %v10216
        %v10218 = vrot.slane %v9930, %v10217
        %v10219 = vsel %vm9948, %v10218, %v10214
        %v10220 = vlaneseq
        %v10221 = vshrl.u32 %v10220, 7
        %v10222 = vsub.s32 %v9938, %v10221
        %v10223 = vrot.slane %v9933, %v10222
        %v10224 = vlaneseq
        %v10225 = vshrl.u32 %v10224, 7
        %v10226 = vsub.s32 %v9943, %v10225
        %v10227 = vrot.slane %v9936, %v10226
        %v10228 = vsel %vm9948, %v10227, %v10223
        %v10229 = vsel %vm2750, %v9958, %v9949
        %v10230 = vsel %vm2752, %v9967, %v10229
        %v10231 = vsel %vm2754, %v9976, %v10230
        %v10232 = vsel %vm2756, %v9985, %v10231
        %v10233 = vsel %vm2758, %v9994, %v10232
        %v10234 = vsel %vm2760, %v10003, %v10233
        %v10235 = vsel %vm2762, %v10012, %v10234
        %v10236 = vsel %vm2750, %v10030, %v10021
        %v10237 = vsel %vm2752, %v10039, %v10236
        %v10238 = vsel %vm2754, %v10048, %v10237
        %v10239 = vsel %vm2756, %v10057, %v10238
        %v10240 = vsel %vm2758, %v10066, %v10239
        %v10241 = vsel %vm2760, %v10075, %v10240
        %v10242 = vsel %vm2762, %v10084, %v10241
        %v10243 = vsel %vm2750, %v10102, %v10093
        %v10244 = vsel %vm2752, %v10111, %v10243
        %v10245 = vsel %vm2754, %v10120, %v10244
        %v10246 = vsel %vm2756, %v10129, %v10245
        %v10247 = vsel %vm2758, %v10138, %v10246
        %v10248 = vsel %vm2760, %v10147, %v10247
        %v10249 = vsel %vm2762, %v10156, %v10248
        %v10250 = vsel %vm2750, %v10174, %v10165
        %v10251 = vsel %vm2752, %v10183, %v10250
        %v10252 = vsel %vm2754, %v10192, %v10251
        %v10253 = vsel %vm2756, %v10201, %v10252
        %v10254 = vsel %vm2758, %v10210, %v10253
        %v10255 = vsel %vm2760, %v10219, %v10254
        %v10256 = vsel %vm2762, %v10228, %v10255
        %10261 = vst.msk [vmem:[%s352] sm:$0xff] %vm5012, %v10235
        %10262 = vst.msk [vmem:[%s352 + $0x8] sm:$0xff] %vm5012, %v10242
        %10263 = vst.msk [vmem:[%s352 + $0x10] sm:$0xff] %vm5012, %v10249
        %10264 = vst.msk [vmem:[%s352 + $0x18] sm:$0xff] %vm5012, %v10256
        %s10265 = sand.u32 %s247, 1
        %s10266 = scalar_lea.sflag [#allocation3], %s10265
        %s10267 = sand.u32 %s247, 1
        %s10268 = smul.addr %s10267, 32
        %s10269 = scalar_lea.vmem [#allocation2], %s10268
        // Predicated region
        $region61: #{colorization_forward.1} parent=59 // pred_check
          %p10270 = pneg %p257
        $region62: #{colorization_forward.1} parent=59 // pred_check_branch
          %10272 = sbr.rel (%p10270) target = $region64
        $region63: #{colorization_forward.1} parent=59 // pred_region
          %s10274 = ssub.s32 512, 512
          %10275 = vsyncadd %s10266, %s10274
          %s10276 = smul.addr %s24, 4
          %s10277 = smul.addr %s10276, 128
          %s10278 = scalar_lea.hbm %s10, %s10277
          %s10279 = sshll.u32 %s10269, 4
          %s10280 = int_to_ptr.vmem [resolvable:$true] %s10279
          %10285 = dma.vmem_to_hbm [thread:$0]  %s10280, 512, %s10278, %s10266, 128, 128, 8
        $region64: #{colorization_forward.1} parent=59 // pred_fallthru
          _
      $region60: #{colorization_forward.1} parent=5 // pred_fallthru
        _
      %p10286 = scmp.le.s32.totalorder 2, %s19
      // Predicated region
      $region65: #{colorization_forward.1} parent=5 // pred_check
        %p10287 = pneg %p10286
      $region66: #{colorization_forward.1} parent=5 // pred_check_branch
        %10289 = sbr.rel (%p10287) target = $region68
      $region67: #{colorization_forward.1} parent=5 // pred_region
        %s10290 = ssub.s32 %s19, 2
        // Predicated region
        $region69: #{colorization_forward.1} parent=67 // pred_check
          %p10291 = pneg %p263
        $region70: #{colorization_forward.1} parent=67 // pred_check_branch
          %10293 = sbr.rel (%p10291) target = $region72
        $region71: #{colorization_forward.1} parent=67 // pred_region
          %s10294 = sand.u32 %s248, 1
          %s10295 = scalar_lea.sflag [#allocation3], %s10294
          %s10296 = sand.u32 %s248, 1
          %s10297 = smul.addr %s10296, 32
          %s10298 = scalar_lea.vmem [#allocation2], %s10297
          %10299 = dma.done %s10295, 512
        $region72: #{colorization_forward.1} parent=67 // pred_fallthru
          _
      $region68: #{colorization_forward.1} parent=5 // pred_fallthru
        _
    $region6: #{colorization_forward.1} parent=1 // loop_footer
      %s23 = sadd.s32 1, %s19
    $region7: #{colorization_forward.1} parent=1 // loop_footer_branch
      %18 = sbr.rel target = $region3
    $region8: #{colorization_forward.1} parent=1 // loop_exit
      _
    %10300 = vsyncpa [#allocation3], 1
    %s10301 = scalar_lea.sflag [#allocation3], 1
    %10302 = vsyncpa %s10301, 1

</llo_original>
